<compile_context>
chip_gen: v6e
topology: v6e:2x2x1
jax: 0.10.0
libtpu: 0.0.40
codegen_flags: <defaults>
</compile_context>

<pallas_src>
import functools
import math

import jax
import jax.numpy as jnp
from jax import lax
from jax.experimental import pallas as pl
from jax.experimental.pallas import tpu as pltpu


# ----------------------------------------------------------------------------
# Fused kernel: 3x3 "same" conv -> Gaussian KDE histograms (x & y) -> KL.
# One grid step = one (H, LB) lane-dense slab of packed planes for x and y.
# ----------------------------------------------------------------------------
def _entropy_kernel(w_ref, aux_ref, x_ref, y_ref, o_ref, acc1_ref, acc2_ref, *,
                    L, h, bin_chunk, H, W, eps):
    i = pl.program_id(0)
    LB = x_ref.shape[1]                       # lanes per step (multiple of 128 and of W)

    @pl.when(i == 0)
    def _init():
        acc1_ref[...] = jnp.zeros_like(acc1_ref)
        acc2_ref[...] = jnp.zeros_like(acc2_ref)

    # Per-lane metadata (built in the wrapper; avoids in-kernel integer div/mod).
    col_in_plane = aux_ref[0:1, :]            # (1, LB) f32: column index within its plane
    valid_lane = aux_ref[1:2, :]              # (1, LB) f32: 1 real plane, 0 pad plane

    rows = lax.broadcasted_iota(jnp.int32, (H, LB), 0)
    not_top = (rows >= 1).astype(jnp.float32)              # ok to read row r-1
    not_bot = (rows <= H - 2).astype(jnp.float32)          # ok to read row r+1
    not_lft = (col_in_plane >= 1.0).astype(jnp.float32)    # ok to read col j-1
    not_rgt = (col_in_plane <= float(W - 2)).astype(jnp.float32)

    def tap(a, dr, dc):
        """out[r, j] = a[r+dr, j+dc] with zeros outside the plane (zero 'same' padding)."""
        b = a
        if dr != 0:
            b = pltpu.roll(b, shift=(-dr) % H, axis=0)      # jnp.roll semantics
        if dc != 0:
            b = pltpu.roll(b, shift=(-dc) % LB, axis=1)
        m = None
        for cond, f in ((dr == 1, not_bot), (dr == -1, not_top),
                        (dc == 1, not_rgt), (dc == -1, not_lft)):
            if cond:
                m = f if m is None else m * f
        return b if m is None else b * m

    def conv3x3(a):
        out = None
        for kr in range(3):                                  # F.conv2d cross-correlation
            for kc in range(3):
                t = tap(a, kr - 1, kc - 1) * w_ref[kr * 3 + kc]
                out = t if out is None else out + t
        return out

    # Gaussian soft histogram with a per-chunk exp recurrence:
    #   K_b(v) = exp(-(v-c_b)^2 / 2h^2),  K_{b+1} = K_b * A(v) * s_b,
    #   A = exp(v*dc/h^2) (one exp / element), s_b = exp(-(c_{b+1}^2-c_b^2)/2h^2) (scalar).
    dc_bin = 1.0 / (L - 1)
    inv_h2 = 1.0 / (h * h)

    def kde_accumulate(v, acc_ref):
        A = jnp.exp(v * (dc_bin * inv_h2))                   # (H, LB)
        for c0 in range(0, L, bin_chunk):
            c_lo = c0 * dc_bin
            d = v - c_lo
            K = jnp.exp(d * d * (-0.5 * inv_h2)) * valid_lane   # restart; mask pad lanes
            parts = []
            for b in range(bin_chunk):                       # static unroll
                parts.append(jnp.sum(K, axis=0, keepdims=True))  # (1, LB) sublane reduce
                if b + 1 < bin_chunk:
                    c_cur = (c0 + b) * dc_bin
                    c_nxt = (c0 + b + 1) * dc_bin
                    s_b = math.exp(-(c_nxt * c_nxt - c_cur * c_cur) * 0.5 * inv_h2)
                    K = K * A * s_b
            chunk = jnp.concatenate(parts, axis=0)           # (bin_chunk, LB)
            acc_ref[c0:c0 + bin_chunk, :] += chunk           # wide aligned RMW

    kde_accumulate(conv3x3(x_ref[...]), acc1_ref)
    kde_accumulate(conv3x3(y_ref[...]), acc2_ref)

    # KL(p2 || p1) finalize on the last grid step.
    @pl.when(i == pl.num_programs(0) - 1)
    def _finalize():
        h1 = jnp.sum(acc1_ref[...], axis=1, keepdims=True)   # (L, 1): single lane reduce
        h2 = jnp.sum(acc2_ref[...], axis=1, keepdims=True)
        p1 = h1 / jnp.sum(h1, axis=0, keepdims=True)
        p2 = h2 / jnp.sum(h2, axis=0, keepdims=True)
        kl = jnp.sum(p2 * (jnp.log(p2 + eps) - jnp.log(p1 + eps)),
                     axis=0, keepdims=True)                  # (1, 1)
        o_ref[...] = jnp.zeros_like(o_ref) + kl              # lane-dense (1, 128) store


# ------------------------------ wrapper helpers ------------------------------
def _lcm(a, b):
    return a * b // math.gcd(a, b)


def _pick_lane_block(packed_pad, W, lane_block, max_auto_lanes=512):
    lane_unit = _lcm(W, 128)                  # whole planes per block & 128-lane alignment
    if lane_block is None:
        lb = lane_unit
        while lb * 2 <= max_auto_lanes and packed_pad % (lb * 2) == 0:
            lb *= 2
        return lb
    if lane_block % lane_unit != 0 or packed_pad % lane_block != 0:
        raise ValueError("lane_block must be a multiple of lcm(W, 128) and divide the "
                         "padded packed width")
    return lane_block


def r_entropy_loss(x, y, w, L=64, h=0.5, bin_chunk=16, lane_block=None):
    """Pallas port of r_entropy_loss(input=x, target=y) with a fixed (1,1,3,3) weight."""
    N, C, H, W = x.shape
    assert y.shape == x.shape
    assert C == 1, "F.conv2d with a (1,1,3,3) weight requires a single input channel"
    bin_chunk = min(bin_chunk, L)
    assert L % bin_chunk == 0
    P = N * C

    # Pack all planes side by side along the lane axis: (N,1,H,W) -> (H, P*W).
    xp = jnp.transpose(x.reshape(P, H, W).astype(jnp.float32), (1, 0, 2)).reshape(H, P * W)
    yp = jnp.transpose(y.reshape(P, H, W).astype(jnp.float32), (1, 0, 2)).reshape(H, P * W)

    lane_unit = _lcm(W, 128)
    packed_w = P * W
    packed_pad = ((packed_w + lane_unit - 1) // lane_unit) * lane_unit
    if packed_pad != packed_w:
        # Pad with whole zero "planes"; excluded from the histograms via the validity mask.
        xp = jnp.pad(xp, ((0, 0), (0, packed_pad - packed_w)))
        yp = jnp.pad(yp, ((0, 0), (0, packed_pad - packed_w)))

    LB = _pick_lane_block(packed_pad, W, lane_block)
    nblocks = packed_pad // LB

    lanes = jnp.arange(packed_pad, dtype=jnp.int32)
    aux = jnp.stack([(lanes % W).astype(jnp.float32),
                     (lanes < packed_w).astype(jnp.float32)], axis=0)   # (2, packed_pad)
    w_flat = jnp.reshape(w, (9,)).astype(jnp.float32)

    kernel = functools.partial(_entropy_kernel, L=L, h=float(h), bin_chunk=bin_chunk,
                               H=H, W=W, eps=1e-12)

    out = pl.pallas_call(
        kernel,
        out_shape=jax.ShapeDtypeStruct((1, 128), jnp.float32),
        grid=(nblocks,),
        in_specs=[
            pl.BlockSpec(memory_space=pltpu.MemorySpace.SMEM),     # 3x3 conv weight (flat)
            pl.BlockSpec((2, LB), lambda i: (0, i)),               # per-lane col / validity
            pl.BlockSpec((H, LB), lambda i: (0, i)),               # packed x slab
            pl.BlockSpec((H, LB), lambda i: (0, i)),               # packed y slab
        ],
        out_specs=pl.BlockSpec((1, 128), lambda i: (0, 0)),
        scratch_shapes=[
            pltpu.VMEM((L, LB), jnp.float32),                      # per-lane histogram (x)
            pltpu.VMEM((L, LB), jnp.float32),                      # per-lane histogram (y)
        ],
        compiler_params=pltpu.CompilerParams(
            dimension_semantics=("arbitrary",),                    # lane axis carries accs
        ),
    )(w_flat, aux, xp, yp)
    return out[0, 0]


# --------------------------- pure-JAX reference ------------------------------
def r_entropy_loss_ref(x, y, w, L=64, h=0.5, eps=1e-12):
    """Direct (per-bin exp, no Pallas) reference used only for validation."""
    N, C, H, W = x.shape
    P = N * C
    w33 = jnp.reshape(w, (3, 3)).astype(jnp.float32)

    def conv(img):                                             # zero-padded cross-correlation
        padded = jnp.pad(img, ((0, 0), (1, 1), (1, 1)))
        out = jnp.zeros_like(img)
        for kr in range(3):
            for kc in range(3):
                out = out + w33[kr, kc] * padded[:, kr:kr + H, kc:kc + W]
        return out

    centers = jnp.arange(L, dtype=jnp.float32) / jnp.float32(L - 1)

    def hist(img):
        v = conv(img).reshape(-1)
        k = jnp.exp(-((v[None, :] - centers[:, None]) ** 2) / (2.0 * h * h))
        p = jnp.sum(k, axis=1)
        return p / jnp.sum(p)

    p1 = hist(x.reshape(P, H, W).astype(jnp.float32))
    p2 = hist(y.reshape(P, H, W).astype(jnp.float32))
    return jnp.sum(p2 * (jnp.log(p2 + eps) - jnp.log(p1 + eps)))


# ------------------------------ module wrapper -------------------------------
class EntropyLossPallas:
    """Pallas port of EntropyLoss(pixel_level, name='relative')."""

    def __init__(self, pixel_level=64, name="relative", key=None):
        self.L = pixel_level
        self.name = name
        key = jax.random.PRNGKey(0) if key is None else key
        # Deterministic stand-in for the torch.randn(1,1,3,3) drawn inside r_entropy_loss.
        self.w = jax.random.normal(key, (1, 1, 3, 3), dtype=jnp.float32)

    def __call__(self, x, y):
        if self.name != "relative":
            # TODO(synk): 'cross', 'hel', 'helsmooth', 'learn' branches not implemented.
            raise NotImplementedError("only the default 'relative' branch is implemented")
        return r_entropy_loss(x, y, self.w, L=self.L, h=0.5)


if __name__ == "__main__":
    key = jax.random.PRNGKey(0)
    kx, ky, kw = jax.random.split(key, 3)
    # C = 1 because the original F.conv2d with a (1,1,3,3) weight requires one channel.
    x = jax.random.uniform(kx, (8, 1, 32, 32), dtype=jnp.float32)
    y = jax.random.uniform(ky, (8, 1, 32, 32), dtype=jnp.float32)

    loss_mod = EntropyLossPallas(pixel_level=64, name="relative", key=kw)
    loss = jax.jit(loss_mod.__call__)(x, y)
    jax.block_until_ready(loss)
    assert loss.shape == () and bool(jnp.isfinite(loss))

    # Multi-step grid path (2 lane blocks) must agree with the single-block path.
    loss_tiled = r_entropy_loss(x, y, loss_mod.w, L=64, h=0.5, lane_block=128)
    jax.block_until_ready(loss_tiled)
    assert abs(float(loss) - float(loss_tiled)) <= 1e-5 + 1e-4 * abs(float(loss))

    # Validate the lane packing / shifted-add conv / exp recurrence against a direct ref.
    ref = r_entropy_loss_ref(x, y, loss_mod.w, L=64, h=0.5)
    assert abs(float(loss) - float(ref)) <= 1e-4 + 5e-3 * abs(float(ref)), \
        (float(loss), float(ref))

    print("KERNEL_OK")
</pallas_src>

<mosaic_0001>
module attributes {stable_mosaic.version = 11 : i64} {
  func.func @_entropy_kernel(%arg0: i32, %arg1: memref<9xf32, #tpu.memory_space<smem>>, %arg2: memref<2x256xf32, #tpu.memory_space<vmem>>, %arg3: memref<32x256xf32, #tpu.memory_space<vmem>>, %arg4: memref<32x256xf32, #tpu.memory_space<vmem>>, %arg5: memref<1x128xf32, #tpu.memory_space<vmem>>, %arg6: memref<64x256xf32, #tpu.memory_space<vmem>>, %arg7: memref<64x256xf32, #tpu.memory_space<vmem>>) attributes {dimension_semantics = [#tpu.dimension_semantics<arbitrary>], iteration_bounds = array<i64: 1>, scalar_prefetch = 0 : i64, scratch_operands = 2 : i64, tpu.core_type = #tpu.core_type<tc>, window_params = [{transform_indices = @transform_0, window_bounds = array<i64: 9>}, {transform_indices = @transform_1, window_bounds = array<i64: 2, 256>}, {transform_indices = @transform_2, window_bounds = array<i64: 32, 256>}, {transform_indices = @transform_3, window_bounds = array<i64: 32, 256>}, {pipeline_mode = #tpu.pipeline_mode<synchronous>, transform_indices = @transform_4, window_bounds = array<i64: 1, 128>}]} {
    %c0_i32 = arith.constant 0 : i32
    %0 = arith.cmpi eq, %arg0, %c0_i32 : i32
    %1 = arith.extui %0 : i1 to i32
    %c0_i32_0 = arith.constant 0 : i32
    %2 = arith.cmpi ne, %1, %c0_i32_0 : i32
    scf.if %2 {
      %cst_338 = arith.constant 0.000000e+00 : f32
      %875 = vector.broadcast %cst_338 : f32 to vector<64x256xf32>
      %c0_339 = arith.constant 0 : index
      %c0_340 = arith.constant 0 : index
      %876 = vector.load %arg6[%c0_339, %c0_340] : memref<64x256xf32, #tpu.memory_space<vmem>>, vector<64x256xf32>
      tpu.vector_store %arg6[%c0_339, %c0_340], %875 {strides = array<i32>} : memref<64x256xf32, #tpu.memory_space<vmem>>, vector<64x256xf32>,
      %cst_341 = arith.constant 0.000000e+00 : f32
      %877 = vector.broadcast %cst_341 : f32 to vector<64x256xf32>
      %c0_342 = arith.constant 0 : index
      %c0_343 = arith.constant 0 : index
      %878 = vector.load %arg7[%c0_342, %c0_343] : memref<64x256xf32, #tpu.memory_space<vmem>>, vector<64x256xf32>
      tpu.vector_store %arg7[%c0_342, %c0_343], %877 {strides = array<i32>} : memref<64x256xf32, #tpu.memory_space<vmem>>, vector<64x256xf32>,
    } else {
    }
    %c0 = arith.constant 0 : index
    %c0_1 = arith.constant 0 : index
    %3 = vector.load %arg2[%c0, %c0_1] : memref<2x256xf32, #tpu.memory_space<vmem>>, vector<1x256xf32>
    %c1 = arith.constant 1 : index
    %c0_2 = arith.constant 0 : index
    %4 = vector.load %arg2[%c1, %c0_2] : memref<2x256xf32, #tpu.memory_space<vmem>>, vector<1x256xf32>
    %5 = tpu.iota {dimensions = array<i32: 0>} : vector<32x256xi32>
    %c1_i32 = arith.constant 1 : i32
    %6 = vector.broadcast %c1_i32 : i32 to vector<32x256xi32>
    %7 = arith.cmpi sge, %5, %6 : vector<32x256xi32>
    %8 = arith.extui %7 : vector<32x256xi1> to vector<32x256xi32>
    %9 = arith.sitofp %8 : vector<32x256xi32> to vector<32x256xf32>
    %c30_i32 = arith.constant 30 : i32
    %10 = vector.broadcast %c30_i32 : i32 to vector<32x256xi32>
    %11 = arith.cmpi sle, %5, %10 : vector<32x256xi32>
    %12 = arith.extui %11 : vector<32x256xi1> to vector<32x256xi32>
    %13 = arith.sitofp %12 : vector<32x256xi32> to vector<32x256xf32>
    %cst = arith.constant 1.000000e+00 : f32
    %14 = vector.broadcast %cst : f32 to vector<1x256xf32>
    %15 = arith.cmpf oge, %3, %14 : vector<1x256xf32>
    %16 = arith.extui %15 : vector<1x256xi1> to vector<1x256xi32>
    %17 = arith.sitofp %16 : vector<1x256xi32> to vector<1x256xf32>
    %cst_3 = arith.constant 3.000000e+01 : f32
    %18 = vector.broadcast %cst_3 : f32 to vector<1x256xf32>
    %19 = arith.cmpf ole, %3, %18 : vector<1x256xf32>
    %20 = arith.extui %19 : vector<1x256xi1> to vector<1x256xi32>
    %21 = arith.sitofp %20 : vector<1x256xi32> to vector<1x256xf32>
    %c0_4 = arith.constant 0 : index
    %c0_5 = arith.constant 0 : index
    %22 = vector.load %arg3[%c0_4, %c0_5] : memref<32x256xf32, #tpu.memory_space<vmem>>, vector<32x256xf32>
    %c1_i32_6 = arith.constant 1 : i32
    %23 = tpu.dynamic_rotate %22 by %c1_i32_6 dim 0 : vector<32x256xf32>, i32 -> vector<32x256xf32>
    %c1_i32_7 = arith.constant 1 : i32
    %24 = tpu.dynamic_rotate %23 by %c1_i32_7 dim 1 : vector<32x256xf32>, i32 -> vector<32x256xf32>
    %25 = vector.broadcast %17 : vector<1x256xf32> to vector<32x256xf32>
    %26 = arith.mulf %9, %25 : vector<32x256xf32>
    %27 = arith.mulf %24, %26 : vector<32x256xf32>
    %c0_8 = arith.constant 0 : index
    %28 = memref.load %arg1[%c0_8] : memref<9xf32, #tpu.memory_space<smem>>
    %29 = vector.broadcast %28 : f32 to vector<32x256xf32>
    %30 = arith.mulf %27, %29 : vector<32x256xf32>
    %c1_i32_9 = arith.constant 1 : i32
    %31 = tpu.dynamic_rotate %22 by %c1_i32_9 dim 0 : vector<32x256xf32>, i32 -> vector<32x256xf32>
    %32 = arith.mulf %31, %9 : vector<32x256xf32>
    %c1_10 = arith.constant 1 : index
    %33 = memref.load %arg1[%c1_10] : memref<9xf32, #tpu.memory_space<smem>>
    %34 = vector.broadcast %33 : f32 to vector<32x256xf32>
    %35 = arith.mulf %32, %34 : vector<32x256xf32>
    %36 = arith.addf %30, %35 : vector<32x256xf32>
    %c1_i32_11 = arith.constant 1 : i32
    %37 = tpu.dynamic_rotate %22 by %c1_i32_11 dim 0 : vector<32x256xf32>, i32 -> vector<32x256xf32>
    %c255_i32 = arith.constant 255 : i32
    %38 = tpu.dynamic_rotate %37 by %c255_i32 dim 1 : vector<32x256xf32>, i32 -> vector<32x256xf32>
    %39 = vector.broadcast %21 : vector<1x256xf32> to vector<32x256xf32>
    %40 = arith.mulf %9, %39 : vector<32x256xf32>
    %41 = arith.mulf %38, %40 : vector<32x256xf32>
    %c2 = arith.constant 2 : index
    %42 = memref.load %arg1[%c2] : memref<9xf32, #tpu.memory_space<smem>>
    %43 = vector.broadcast %42 : f32 to vector<32x256xf32>
    %44 = arith.mulf %41, %43 : vector<32x256xf32>
    %45 = arith.addf %36, %44 : vector<32x256xf32>
    %c1_i32_12 = arith.constant 1 : i32
    %46 = tpu.dynamic_rotate %22 by %c1_i32_12 dim 1 : vector<32x256xf32>, i32 -> vector<32x256xf32>
    %47 = vector.broadcast %17 : vector<1x256xf32> to vector<32x256xf32>
    %48 = arith.mulf %46, %47 : vector<32x256xf32>
    %c3 = arith.constant 3 : index
    %49 = memref.load %arg1[%c3] : memref<9xf32, #tpu.memory_space<smem>>
    %50 = vector.broadcast %49 : f32 to vector<32x256xf32>
    %51 = arith.mulf %48, %50 : vector<32x256xf32>
    %52 = arith.addf %45, %51 : vector<32x256xf32>
    %c4 = arith.constant 4 : index
    %53 = memref.load %arg1[%c4] : memref<9xf32, #tpu.memory_space<smem>>
    %54 = vector.broadcast %53 : f32 to vector<32x256xf32>
    %55 = arith.mulf %22, %54 : vector<32x256xf32>
    %56 = arith.addf %52, %55 : vector<32x256xf32>
    %c255_i32_13 = arith.constant 255 : i32
    %57 = tpu.dynamic_rotate %22 by %c255_i32_13 dim 1 : vector<32x256xf32>, i32 -> vector<32x256xf32>
    %58 = vector.broadcast %21 : vector<1x256xf32> to vector<32x256xf32>
    %59 = arith.mulf %57, %58 : vector<32x256xf32>
    %c5 = arith.constant 5 : index
    %60 = memref.load %arg1[%c5] : memref<9xf32, #tpu.memory_space<smem>>
    %61 = vector.broadcast %60 : f32 to vector<32x256xf32>
    %62 = arith.mulf %59, %61 : vector<32x256xf32>
    %63 = arith.addf %56, %62 : vector<32x256xf32>
    %c31_i32 = arith.constant 31 : i32
    %64 = tpu.dynamic_rotate %22 by %c31_i32 dim 0 : vector<32x256xf32>, i32 -> vector<32x256xf32>
    %c1_i32_14 = arith.constant 1 : i32
    %65 = tpu.dynamic_rotate %64 by %c1_i32_14 dim 1 : vector<32x256xf32>, i32 -> vector<32x256xf32>
    %66 = vector.broadcast %17 : vector<1x256xf32> to vector<32x256xf32>
    %67 = arith.mulf %13, %66 : vector<32x256xf32>
    %68 = arith.mulf %65, %67 : vector<32x256xf32>
    %c6 = arith.constant 6 : index
    %69 = memref.load %arg1[%c6] : memref<9xf32, #tpu.memory_space<smem>>
    %70 = vector.broadcast %69 : f32 to vector<32x256xf32>
    %71 = arith.mulf %68, %70 : vector<32x256xf32>
    %72 = arith.addf %63, %71 : vector<32x256xf32>
    %c31_i32_15 = arith.constant 31 : i32
    %73 = tpu.dynamic_rotate %22 by %c31_i32_15 dim 0 : vector<32x256xf32>, i32 -> vector<32x256xf32>
    %74 = arith.mulf %73, %13 : vector<32x256xf32>
    %c7 = arith.constant 7 : index
    %75 = memref.load %arg1[%c7] : memref<9xf32, #tpu.memory_space<smem>>
    %76 = vector.broadcast %75 : f32 to vector<32x256xf32>
    %77 = arith.mulf %74, %76 : vector<32x256xf32>
    %78 = arith.addf %72, %77 : vector<32x256xf32>
    %c31_i32_16 = arith.constant 31 : i32
    %79 = tpu.dynamic_rotate %22 by %c31_i32_16 dim 0 : vector<32x256xf32>, i32 -> vector<32x256xf32>
    %c255_i32_17 = arith.constant 255 : i32
    %80 = tpu.dynamic_rotate %79 by %c255_i32_17 dim 1 : vector<32x256xf32>, i32 -> vector<32x256xf32>
    %81 = vector.broadcast %21 : vector<1x256xf32> to vector<32x256xf32>
    %82 = arith.mulf %13, %81 : vector<32x256xf32>
    %83 = arith.mulf %80, %82 : vector<32x256xf32>
    %c8 = arith.constant 8 : index
    %84 = memref.load %arg1[%c8] : memref<9xf32, #tpu.memory_space<smem>>
    %85 = vector.broadcast %84 : f32 to vector<32x256xf32>
    %86 = arith.mulf %83, %85 : vector<32x256xf32>
    %87 = arith.addf %78, %86 : vector<32x256xf32>
    %cst_18 = arith.constant 0.0634920672 : f32
    %88 = vector.broadcast %cst_18 : f32 to vector<32x256xf32>
    %89 = arith.mulf %87, %88 : vector<32x256xf32>
    %90 = math.exp %89 : vector<32x256xf32>
    %cst_19 = arith.constant 0.000000e+00 : f32
    %91 = vector.broadcast %cst_19 : f32 to vector<32x256xf32>
    %92 = arith.subf %87, %91 : vector<32x256xf32>
    %93 = arith.mulf %92, %92 : vector<32x256xf32>
    %cst_20 = arith.constant -2.000000e+00 : f32
    %94 = vector.broadcast %cst_20 : f32 to vector<32x256xf32>
    %95 = arith.mulf %93, %94 : vector<32x256xf32>
    %96 = math.exp %95 : vector<32x256xf32>
    %97 = vector.broadcast %4 : vector<1x256xf32> to vector<32x256xf32>
    %98 = arith.mulf %96, %97 : vector<32x256xf32>
    %cst_21 = arith.constant dense<0.000000e+00> : vector<256xf32>
    %99 = vector.multi_reduction <add>, %98, %cst_21 [0] : vector<32x256xf32> to vector<256xf32>
    %100 = vector.shape_cast %99 : vector<256xf32> to vector<1x256xf32>
    %101 = arith.mulf %98, %90 : vector<32x256xf32>
    %cst_22 = arith.constant 0.999496221 : f32
    %102 = vector.broadcast %cst_22 : f32 to vector<32x256xf32>
    %103 = arith.mulf %101, %102 : vector<32x256xf32>
    %cst_23 = arith.constant dense<0.000000e+00> : vector<256xf32>
    %104 = vector.multi_reduction <add>, %103, %cst_23 [0] : vector<32x256xf32> to vector<256xf32>
    %105 = vector.shape_cast %104 : vector<256xf32> to vector<1x256xf32>
    %106 = arith.mulf %103, %90 : vector<32x256xf32>
    %cst_24 = arith.constant 0.998489439 : f32
    %107 = vector.broadcast %cst_24 : f32 to vector<32x256xf32>
    %108 = arith.mulf %106, %107 : vector<32x256xf32>
    %cst_25 = arith.constant dense<0.000000e+00> : vector<256xf32>
    %109 = vector.multi_reduction <add>, %108, %cst_25 [0] : vector<32x256xf32> to vector<256xf32>
    %110 = vector.shape_cast %109 : vector<256xf32> to vector<1x256xf32>
    %111 = arith.mulf %108, %90 : vector<32x256xf32>
    %cst_26 = arith.constant 0.99748367 : f32
    %112 = vector.broadcast %cst_26 : f32 to vector<32x256xf32>
    %113 = arith.mulf %111, %112 : vector<32x256xf32>
    %cst_27 = arith.constant dense<0.000000e+00> : vector<256xf32>
    %114 = vector.multi_reduction <add>, %113, %cst_27 [0] : vector<32x256xf32> to vector<256xf32>
    %115 = vector.shape_cast %114 : vector<256xf32> to vector<1x256xf32>
    %116 = arith.mulf %113, %90 : vector<32x256xf32>
    %cst_28 = arith.constant 0.996478855 : f32
    %117 = vector.broadcast %cst_28 : f32 to vector<32x256xf32>
    %118 = arith.mulf %116, %117 : vector<32x256xf32>
    %cst_29 = arith.constant dense<0.000000e+00> : vector<256xf32>
    %119 = vector.multi_reduction <add>, %118, %cst_29 [0] : vector<32x256xf32> to vector<256xf32>
    %120 = vector.shape_cast %119 : vector<256xf32> to vector<1x256xf32>
    %121 = arith.mulf %118, %90 : vector<32x256xf32>
    %cst_30 = arith.constant 0.995475113 : f32
    %122 = vector.broadcast %cst_30 : f32 to vector<32x256xf32>
    %123 = arith.mulf %121, %122 : vector<32x256xf32>
    %cst_31 = arith.constant dense<0.000000e+00> : vector<256xf32>
    %124 = vector.multi_reduction <add>, %123, %cst_31 [0] : vector<32x256xf32> to vector<256xf32>
    %125 = vector.shape_cast %124 : vector<256xf32> to vector<1x256xf32>
    %126 = arith.mulf %123, %90 : vector<32x256xf32>
    %cst_32 = arith.constant 0.994472384 : f32
    %127 = vector.broadcast %cst_32 : f32 to vector<32x256xf32>
    %128 = arith.mulf %126, %127 : vector<32x256xf32>
    %cst_33 = arith.constant dense<0.000000e+00> : vector<256xf32>
    %129 = vector.multi_reduction <add>, %128, %cst_33 [0] : vector<32x256xf32> to vector<256xf32>
    %130 = vector.shape_cast %129 : vector<256xf32> to vector<1x256xf32>
    %131 = arith.mulf %128, %90 : vector<32x256xf32>
    %cst_34 = arith.constant 0.993470668 : f32
    %132 = vector.broadcast %cst_34 : f32 to vector<32x256xf32>
    %133 = arith.mulf %131, %132 : vector<32x256xf32>
    %cst_35 = arith.constant dense<0.000000e+00> : vector<256xf32>
    %134 = vector.multi_reduction <add>, %133, %cst_35 [0] : vector<32x256xf32> to vector<256xf32>
    %135 = vector.shape_cast %134 : vector<256xf32> to vector<1x256xf32>
    %136 = arith.mulf %133, %90 : vector<32x256xf32>
    %cst_36 = arith.constant 0.992469906 : f32
    %137 = vector.broadcast %cst_36 : f32 to vector<32x256xf32>
    %138 = arith.mulf %136, %137 : vector<32x256xf32>
    %cst_37 = arith.constant dense<0.000000e+00> : vector<256xf32>
    %139 = vector.multi_reduction <add>, %138, %cst_37 [0] : vector<32x256xf32> to vector<256xf32>
    %140 = vector.shape_cast %139 : vector<256xf32> to vector<1x256xf32>
    %141 = arith.mulf %138, %90 : vector<32x256xf32>
    %cst_38 = arith.constant 0.991470217 : f32
    %142 = vector.broadcast %cst_38 : f32 to vector<32x256xf32>
    %143 = arith.mulf %141, %142 : vector<32x256xf32>
    %cst_39 = arith.constant dense<0.000000e+00> : vector<256xf32>
    %144 = vector.multi_reduction <add>, %143, %cst_39 [0] : vector<32x256xf32> to vector<256xf32>
    %145 = vector.shape_cast %144 : vector<256xf32> to vector<1x256xf32>
    %146 = arith.mulf %143, %90 : vector<32x256xf32>
    %cst_40 = arith.constant 0.990471482 : f32
    %147 = vector.broadcast %cst_40 : f32 to vector<32x256xf32>
    %148 = arith.mulf %146, %147 : vector<32x256xf32>
    %cst_41 = arith.constant dense<0.000000e+00> : vector<256xf32>
    %149 = vector.multi_reduction <add>, %148, %cst_41 [0] : vector<32x256xf32> to vector<256xf32>
    %150 = vector.shape_cast %149 : vector<256xf32> to vector<1x256xf32>
    %151 = arith.mulf %148, %90 : vector<32x256xf32>
    %cst_42 = arith.constant 0.98947376 : f32
    %152 = vector.broadcast %cst_42 : f32 to vector<32x256xf32>
    %153 = arith.mulf %151, %152 : vector<32x256xf32>
    %cst_43 = arith.constant dense<0.000000e+00> : vector<256xf32>
    %154 = vector.multi_reduction <add>, %153, %cst_43 [0] : vector<32x256xf32> to vector<256xf32>
    %155 = vector.shape_cast %154 : vector<256xf32> to vector<1x256xf32>
    %156 = arith.mulf %153, %90 : vector<32x256xf32>
    %cst_44 = arith.constant 0.98847711 : f32
    %157 = vector.broadcast %cst_44 : f32 to vector<32x256xf32>
    %158 = arith.mulf %156, %157 : vector<32x256xf32>
    %cst_45 = arith.constant dense<0.000000e+00> : vector<256xf32>
    %159 = vector.multi_reduction <add>, %158, %cst_45 [0] : vector<32x256xf32> to vector<256xf32>
    %160 = vector.shape_cast %159 : vector<256xf32> to vector<1x256xf32>
    %161 = arith.mulf %158, %90 : vector<32x256xf32>
    %cst_46 = arith.constant 0.987481415 : f32
    %162 = vector.broadcast %cst_46 : f32 to vector<32x256xf32>
    %163 = arith.mulf %161, %162 : vector<32x256xf32>
    %cst_47 = arith.constant dense<0.000000e+00> : vector<256xf32>
    %164 = vector.multi_reduction <add>, %163, %cst_47 [0] : vector<32x256xf32> to vector<256xf32>
    %165 = vector.shape_cast %164 : vector<256xf32> to vector<1x256xf32>
    %166 = arith.mulf %163, %90 : vector<32x256xf32>
    %cst_48 = arith.constant 0.986486673 : f32
    %167 = vector.broadcast %cst_48 : f32 to vector<32x256xf32>
    %168 = arith.mulf %166, %167 : vector<32x256xf32>
    %cst_49 = arith.constant dense<0.000000e+00> : vector<256xf32>
    %169 = vector.multi_reduction <add>, %168, %cst_49 [0] : vector<32x256xf32> to vector<256xf32>
    %170 = vector.shape_cast %169 : vector<256xf32> to vector<1x256xf32>
    %171 = arith.mulf %168, %90 : vector<32x256xf32>
    %cst_50 = arith.constant 9.854930e-01 : f32
    %172 = vector.broadcast %cst_50 : f32 to vector<32x256xf32>
    %173 = arith.mulf %171, %172 : vector<32x256xf32>
    %cst_51 = arith.constant dense<0.000000e+00> : vector<256xf32>
    %174 = vector.multi_reduction <add>, %173, %cst_51 [0] : vector<32x256xf32> to vector<256xf32>
    %175 = vector.shape_cast %174 : vector<256xf32> to vector<1x256xf32>
    %176 = tpu.concatenate %100, %105, %110, %115, %120, %125, %130, %135, %140, %145, %150, %155, %160, %165, %170, %175 in 0 : vector<1x256xf32>, vector<1x256xf32>, vector<1x256xf32>, vector<1x256xf32>, vector<1x256xf32>, vector<1x256xf32>, vector<1x256xf32>, vector<1x256xf32>, vector<1x256xf32>, vector<1x256xf32>, vector<1x256xf32>, vector<1x256xf32>, vector<1x256xf32>, vector<1x256xf32>, vector<1x256xf32>, vector<1x256xf32> -> vector<16x256xf32>
    %c0_52 = arith.constant 0 : index
    %c0_53 = arith.constant 0 : index
    %177 = vector.load %arg6[%c0_52, %c0_53] : memref<64x256xf32, #tpu.memory_space<vmem>>, vector<16x256xf32>
    %178 = arith.addf %177, %176 : vector<16x256xf32>
    %c0_54 = arith.constant 0 : index
    %c0_55 = arith.constant 0 : index
    %179 = vector.load %arg6[%c0_54, %c0_55] : memref<64x256xf32, #tpu.memory_space<vmem>>, vector<16x256xf32>
    tpu.vector_store %arg6[%c0_54, %c0_55], %178 {strides = array<i32>} : memref<64x256xf32, #tpu.memory_space<vmem>>, vector<16x256xf32>,
    %cst_56 = arith.constant 0.253968269 : f32
    %180 = vector.broadcast %cst_56 : f32 to vector<32x256xf32>
    %181 = arith.subf %87, %180 : vector<32x256xf32>
    %182 = arith.mulf %181, %181 : vector<32x256xf32>
    %cst_57 = arith.constant -2.000000e+00 : f32
    %183 = vector.broadcast %cst_57 : f32 to vector<32x256xf32>
    %184 = arith.mulf %182, %183 : vector<32x256xf32>
    %185 = math.exp %184 : vector<32x256xf32>
    %186 = vector.broadcast %4 : vector<1x256xf32> to vector<32x256xf32>
    %187 = arith.mulf %185, %186 : vector<32x256xf32>
    %cst_58 = arith.constant dense<0.000000e+00> : vector<256xf32>
    %188 = vector.multi_reduction <add>, %187, %cst_58 [0] : vector<32x256xf32> to vector<256xf32>
    %189 = vector.shape_cast %188 : vector<256xf32> to vector<1x256xf32>
    %190 = arith.mulf %187, %90 : vector<32x256xf32>
    %cst_59 = arith.constant 0.983508646 : f32
    %191 = vector.broadcast %cst_59 : f32 to vector<32x256xf32>
    %192 = arith.mulf %190, %191 : vector<32x256xf32>
    %cst_60 = arith.constant dense<0.000000e+00> : vector<256xf32>
    %193 = vector.multi_reduction <add>, %192, %cst_60 [0] : vector<32x256xf32> to vector<256xf32>
    %194 = vector.shape_cast %193 : vector<256xf32> to vector<1x256xf32>
    %195 = arith.mulf %192, %90 : vector<32x256xf32>
    %cst_61 = arith.constant 0.982517957 : f32
    %196 = vector.broadcast %cst_61 : f32 to vector<32x256xf32>
    %197 = arith.mulf %195, %196 : vector<32x256xf32>
    %cst_62 = arith.constant dense<0.000000e+00> : vector<256xf32>
    %198 = vector.multi_reduction <add>, %197, %cst_62 [0] : vector<32x256xf32> to vector<256xf32>
    %199 = vector.shape_cast %198 : vector<256xf32> to vector<1x256xf32>
    %200 = arith.mulf %197, %90 : vector<32x256xf32>
    %cst_63 = arith.constant 0.981528222 : f32
    %201 = vector.broadcast %cst_63 : f32 to vector<32x256xf32>
    %202 = arith.mulf %200, %201 : vector<32x256xf32>
    %cst_64 = arith.constant dense<0.000000e+00> : vector<256xf32>
    %203 = vector.multi_reduction <add>, %202, %cst_64 [0] : vector<32x256xf32> to vector<256xf32>
    %204 = vector.shape_cast %203 : vector<256xf32> to vector<1x256xf32>
    %205 = arith.mulf %202, %90 : vector<32x256xf32>
    %cst_65 = arith.constant 0.98053956 : f32
    %206 = vector.broadcast %cst_65 : f32 to vector<32x256xf32>
    %207 = arith.mulf %205, %206 : vector<32x256xf32>
    %cst_66 = arith.constant dense<0.000000e+00> : vector<256xf32>
    %208 = vector.multi_reduction <add>, %207, %cst_66 [0] : vector<32x256xf32> to vector<256xf32>
    %209 = vector.shape_cast %208 : vector<256xf32> to vector<1x256xf32>
    %210 = arith.mulf %207, %90 : vector<32x256xf32>
    %cst_67 = arith.constant 0.979551851 : f32
    %211 = vector.broadcast %cst_67 : f32 to vector<32x256xf32>
    %212 = arith.mulf %210, %211 : vector<32x256xf32>
    %cst_68 = arith.constant dense<0.000000e+00> : vector<256xf32>
    %213 = vector.multi_reduction <add>, %212, %cst_68 [0] : vector<32x256xf32> to vector<256xf32>
    %214 = vector.shape_cast %213 : vector<256xf32> to vector<1x256xf32>
    %215 = arith.mulf %212, %90 : vector<32x256xf32>
    %cst_69 = arith.constant 0.978565156 : f32
    %216 = vector.broadcast %cst_69 : f32 to vector<32x256xf32>
    %217 = arith.mulf %215, %216 : vector<32x256xf32>
    %cst_70 = arith.constant dense<0.000000e+00> : vector<256xf32>
    %218 = vector.multi_reduction <add>, %217, %cst_70 [0] : vector<32x256xf32> to vector<256xf32>
    %219 = vector.shape_cast %218 : vector<256xf32> to vector<1x256xf32>
    %220 = arith.mulf %217, %90 : vector<32x256xf32>
    %cst_71 = arith.constant 0.977579414 : f32
    %221 = vector.broadcast %cst_71 : f32 to vector<32x256xf32>
    %222 = arith.mulf %220, %221 : vector<32x256xf32>
    %cst_72 = arith.constant dense<0.000000e+00> : vector<256xf32>
    %223 = vector.multi_reduction <add>, %222, %cst_72 [0] : vector<32x256xf32> to vector<256xf32>
    %224 = vector.shape_cast %223 : vector<256xf32> to vector<1x256xf32>
    %225 = arith.mulf %222, %90 : vector<32x256xf32>
    %cst_73 = arith.constant 0.976594686 : f32
    %226 = vector.broadcast %cst_73 : f32 to vector<32x256xf32>
    %227 = arith.mulf %225, %226 : vector<32x256xf32>
    %cst_74 = arith.constant dense<0.000000e+00> : vector<256xf32>
    %228 = vector.multi_reduction <add>, %227, %cst_74 [0] : vector<32x256xf32> to vector<256xf32>
    %229 = vector.shape_cast %228 : vector<256xf32> to vector<1x256xf32>
    %230 = arith.mulf %227, %90 : vector<32x256xf32>
    %cst_75 = arith.constant 0.975610971 : f32
    %231 = vector.broadcast %cst_75 : f32 to vector<32x256xf32>
    %232 = arith.mulf %230, %231 : vector<32x256xf32>
    %cst_76 = arith.constant dense<0.000000e+00> : vector<256xf32>
    %233 = vector.multi_reduction <add>, %232, %cst_76 [0] : vector<32x256xf32> to vector<256xf32>
    %234 = vector.shape_cast %233 : vector<256xf32> to vector<1x256xf32>
    %235 = arith.mulf %232, %90 : vector<32x256xf32>
    %cst_77 = arith.constant 0.974628269 : f32
    %236 = vector.broadcast %cst_77 : f32 to vector<32x256xf32>
    %237 = arith.mulf %235, %236 : vector<32x256xf32>
    %cst_78 = arith.constant dense<0.000000e+00> : vector<256xf32>
    %238 = vector.multi_reduction <add>, %237, %cst_78 [0] : vector<32x256xf32> to vector<256xf32>
    %239 = vector.shape_cast %238 : vector<256xf32> to vector<1x256xf32>
    %240 = arith.mulf %237, %90 : vector<32x256xf32>
    %cst_79 = arith.constant 0.973646521 : f32
    %241 = vector.broadcast %cst_79 : f32 to vector<32x256xf32>
    %242 = arith.mulf %240, %241 : vector<32x256xf32>
    %cst_80 = arith.constant dense<0.000000e+00> : vector<256xf32>
    %243 = vector.multi_reduction <add>, %242, %cst_80 [0] : vector<32x256xf32> to vector<256xf32>
    %244 = vector.shape_cast %243 : vector<256xf32> to vector<1x256xf32>
    %245 = arith.mulf %242, %90 : vector<32x256xf32>
    %cst_81 = arith.constant 0.972665727 : f32
    %246 = vector.broadcast %cst_81 : f32 to vector<32x256xf32>
    %247 = arith.mulf %245, %246 : vector<32x256xf32>
    %cst_82 = arith.constant dense<0.000000e+00> : vector<256xf32>
    %248 = vector.multi_reduction <add>, %247, %cst_82 [0] : vector<32x256xf32> to vector<256xf32>
    %249 = vector.shape_cast %248 : vector<256xf32> to vector<1x256xf32>
    %250 = arith.mulf %247, %90 : vector<32x256xf32>
    %cst_83 = arith.constant 0.971685945 : f32
    %251 = vector.broadcast %cst_83 : f32 to vector<32x256xf32>
    %252 = arith.mulf %250, %251 : vector<32x256xf32>
    %cst_84 = arith.constant dense<0.000000e+00> : vector<256xf32>
    %253 = vector.multi_reduction <add>, %252, %cst_84 [0] : vector<32x256xf32> to vector<256xf32>
    %254 = vector.shape_cast %253 : vector<256xf32> to vector<1x256xf32>
    %255 = arith.mulf %252, %90 : vector<32x256xf32>
    %cst_85 = arith.constant 0.970707178 : f32
    %256 = vector.broadcast %cst_85 : f32 to vector<32x256xf32>
    %257 = arith.mulf %255, %256 : vector<32x256xf32>
    %cst_86 = arith.constant dense<0.000000e+00> : vector<256xf32>
    %258 = vector.multi_reduction <add>, %257, %cst_86 [0] : vector<32x256xf32> to vector<256xf32>
    %259 = vector.shape_cast %258 : vector<256xf32> to vector<1x256xf32>
    %260 = arith.mulf %257, %90 : vector<32x256xf32>
    %cst_87 = arith.constant 0.969729423 : f32
    %261 = vector.broadcast %cst_87 : f32 to vector<32x256xf32>
    %262 = arith.mulf %260, %261 : vector<32x256xf32>
    %cst_88 = arith.constant dense<0.000000e+00> : vector<256xf32>
    %263 = vector.multi_reduction <add>, %262, %cst_88 [0] : vector<32x256xf32> to vector<256xf32>
    %264 = vector.shape_cast %263 : vector<256xf32> to vector<1x256xf32>
    %265 = tpu.concatenate %189, %194, %199, %204, %209, %214, %219, %224, %229, %234, %239, %244, %249, %254, %259, %264 in 0 : vector<1x256xf32>, vector<1x256xf32>, vector<1x256xf32>, vector<1x256xf32>, vector<1x256xf32>, vector<1x256xf32>, vector<1x256xf32>, vector<1x256xf32>, vector<1x256xf32>, vector<1x256xf32>, vector<1x256xf32>, vector<1x256xf32>, vector<1x256xf32>, vector<1x256xf32>, vector<1x256xf32>, vector<1x256xf32> -> vector<16x256xf32>
    %c16 = arith.constant 16 : index
    %c0_89 = arith.constant 0 : index
    %266 = vector.load %arg6[%c16, %c0_89] : memref<64x256xf32, #tpu.memory_space<vmem>>, vector<16x256xf32>
    %267 = arith.addf %266, %265 : vector<16x256xf32>
    %c16_90 = arith.constant 16 : index
    %c0_91 = arith.constant 0 : index
    %268 = vector.load %arg6[%c16_90, %c0_91] : memref<64x256xf32, #tpu.memory_space<vmem>>, vector<16x256xf32>
    tpu.vector_store %arg6[%c16_90, %c0_91], %267 {strides = array<i32>} : memref<64x256xf32, #tpu.memory_space<vmem>>, vector<16x256xf32>,
    %cst_92 = arith.constant 0.507936537 : f32
    %269 = vector.broadcast %cst_92 : f32 to vector<32x256xf32>
    %270 = arith.subf %87, %269 : vector<32x256xf32>
    %271 = arith.mulf %270, %270 : vector<32x256xf32>
    %cst_93 = arith.constant -2.000000e+00 : f32
    %272 = vector.broadcast %cst_93 : f32 to vector<32x256xf32>
    %273 = arith.mulf %271, %272 : vector<32x256xf32>
    %274 = math.exp %273 : vector<32x256xf32>
    %275 = vector.broadcast %4 : vector<1x256xf32> to vector<32x256xf32>
    %276 = arith.mulf %274, %275 : vector<32x256xf32>
    %cst_94 = arith.constant dense<0.000000e+00> : vector<256xf32>
    %277 = vector.multi_reduction <add>, %276, %cst_94 [0] : vector<32x256xf32> to vector<256xf32>
    %278 = vector.shape_cast %277 : vector<256xf32> to vector<1x256xf32>
    %279 = arith.mulf %276, %90 : vector<32x256xf32>
    %cst_95 = arith.constant 0.967776775 : f32
    %280 = vector.broadcast %cst_95 : f32 to vector<32x256xf32>
    %281 = arith.mulf %279, %280 : vector<32x256xf32>
    %cst_96 = arith.constant dense<0.000000e+00> : vector<256xf32>
    %282 = vector.multi_reduction <add>, %281, %cst_96 [0] : vector<32x256xf32> to vector<256xf32>
    %283 = vector.shape_cast %282 : vector<256xf32> to vector<1x256xf32>
    %284 = arith.mulf %281, %90 : vector<32x256xf32>
    %cst_97 = arith.constant 0.966801941 : f32
    %285 = vector.broadcast %cst_97 : f32 to vector<32x256xf32>
    %286 = arith.mulf %284, %285 : vector<32x256xf32>
    %cst_98 = arith.constant dense<0.000000e+00> : vector<256xf32>
    %287 = vector.multi_reduction <add>, %286, %cst_98 [0] : vector<32x256xf32> to vector<256xf32>
    %288 = vector.shape_cast %287 : vector<256xf32> to vector<1x256xf32>
    %289 = arith.mulf %286, %90 : vector<32x256xf32>
    %cst_99 = arith.constant 0.965828061 : f32
    %290 = vector.broadcast %cst_99 : f32 to vector<32x256xf32>
    %291 = arith.mulf %289, %290 : vector<32x256xf32>
    %cst_100 = arith.constant dense<0.000000e+00> : vector<256xf32>
    %292 = vector.multi_reduction <add>, %291, %cst_100 [0] : vector<32x256xf32> to vector<256xf32>
    %293 = vector.shape_cast %292 : vector<256xf32> to vector<1x256xf32>
    %294 = arith.mulf %291, %90 : vector<32x256xf32>
    %cst_101 = arith.constant 0.964855194 : f32
    %295 = vector.broadcast %cst_101 : f32 to vector<32x256xf32>
    %296 = arith.mulf %294, %295 : vector<32x256xf32>
    %cst_102 = arith.constant dense<0.000000e+00> : vector<256xf32>
    %297 = vector.multi_reduction <add>, %296, %cst_102 [0] : vector<32x256xf32> to vector<256xf32>
    %298 = vector.shape_cast %297 : vector<256xf32> to vector<1x256xf32>
    %299 = arith.mulf %296, %90 : vector<32x256xf32>
    %cst_103 = arith.constant 0.96388328 : f32
    %300 = vector.broadcast %cst_103 : f32 to vector<32x256xf32>
    %301 = arith.mulf %299, %300 : vector<32x256xf32>
    %cst_104 = arith.constant dense<0.000000e+00> : vector<256xf32>
    %302 = vector.multi_reduction <add>, %301, %cst_104 [0] : vector<32x256xf32> to vector<256xf32>
    %303 = vector.shape_cast %302 : vector<256xf32> to vector<1x256xf32>
    %304 = arith.mulf %301, %90 : vector<32x256xf32>
    %cst_105 = arith.constant 0.962912321 : f32
    %305 = vector.broadcast %cst_105 : f32 to vector<32x256xf32>
    %306 = arith.mulf %304, %305 : vector<32x256xf32>
    %cst_106 = arith.constant dense<0.000000e+00> : vector<256xf32>
    %307 = vector.multi_reduction <add>, %306, %cst_106 [0] : vector<32x256xf32> to vector<256xf32>
    %308 = vector.shape_cast %307 : vector<256xf32> to vector<1x256xf32>
    %309 = arith.mulf %306, %90 : vector<32x256xf32>
    %cst_107 = arith.constant 0.961942374 : f32
    %310 = vector.broadcast %cst_107 : f32 to vector<32x256xf32>
    %311 = arith.mulf %309, %310 : vector<32x256xf32>
    %cst_108 = arith.constant dense<0.000000e+00> : vector<256xf32>
    %312 = vector.multi_reduction <add>, %311, %cst_108 [0] : vector<32x256xf32> to vector<256xf32>
    %313 = vector.shape_cast %312 : vector<256xf32> to vector<1x256xf32>
    %314 = arith.mulf %311, %90 : vector<32x256xf32>
    %cst_109 = arith.constant 0.960973441 : f32
    %315 = vector.broadcast %cst_109 : f32 to vector<32x256xf32>
    %316 = arith.mulf %314, %315 : vector<32x256xf32>
    %cst_110 = arith.constant dense<0.000000e+00> : vector<256xf32>
    %317 = vector.multi_reduction <add>, %316, %cst_110 [0] : vector<32x256xf32> to vector<256xf32>
    %318 = vector.shape_cast %317 : vector<256xf32> to vector<1x256xf32>
    %319 = arith.mulf %316, %90 : vector<32x256xf32>
    %cst_111 = arith.constant 0.960005462 : f32
    %320 = vector.broadcast %cst_111 : f32 to vector<32x256xf32>
    %321 = arith.mulf %319, %320 : vector<32x256xf32>
    %cst_112 = arith.constant dense<0.000000e+00> : vector<256xf32>
    %322 = vector.multi_reduction <add>, %321, %cst_112 [0] : vector<32x256xf32> to vector<256xf32>
    %323 = vector.shape_cast %322 : vector<256xf32> to vector<1x256xf32>
    %324 = arith.mulf %321, %90 : vector<32x256xf32>
    %cst_113 = arith.constant 0.959038436 : f32
    %325 = vector.broadcast %cst_113 : f32 to vector<32x256xf32>
    %326 = arith.mulf %324, %325 : vector<32x256xf32>
    %cst_114 = arith.constant dense<0.000000e+00> : vector<256xf32>
    %327 = vector.multi_reduction <add>, %326, %cst_114 [0] : vector<32x256xf32> to vector<256xf32>
    %328 = vector.shape_cast %327 : vector<256xf32> to vector<1x256xf32>
    %329 = arith.mulf %326, %90 : vector<32x256xf32>
    %cst_115 = arith.constant 0.958072364 : f32
    %330 = vector.broadcast %cst_115 : f32 to vector<32x256xf32>
    %331 = arith.mulf %329, %330 : vector<32x256xf32>
    %cst_116 = arith.constant dense<0.000000e+00> : vector<256xf32>
    %332 = vector.multi_reduction <add>, %331, %cst_116 [0] : vector<32x256xf32> to vector<256xf32>
    %333 = vector.shape_cast %332 : vector<256xf32> to vector<1x256xf32>
    %334 = arith.mulf %331, %90 : vector<32x256xf32>
    %cst_117 = arith.constant 0.957107305 : f32
    %335 = vector.broadcast %cst_117 : f32 to vector<32x256xf32>
    %336 = arith.mulf %334, %335 : vector<32x256xf32>
    %cst_118 = arith.constant dense<0.000000e+00> : vector<256xf32>
    %337 = vector.multi_reduction <add>, %336, %cst_118 [0] : vector<32x256xf32> to vector<256xf32>
    %338 = vector.shape_cast %337 : vector<256xf32> to vector<1x256xf32>
    %339 = arith.mulf %336, %90 : vector<32x256xf32>
    %cst_119 = arith.constant 0.9561432 : f32
    %340 = vector.broadcast %cst_119 : f32 to vector<32x256xf32>
    %341 = arith.mulf %339, %340 : vector<32x256xf32>
    %cst_120 = arith.constant dense<0.000000e+00> : vector<256xf32>
    %342 = vector.multi_reduction <add>, %341, %cst_120 [0] : vector<32x256xf32> to vector<256xf32>
    %343 = vector.shape_cast %342 : vector<256xf32> to vector<1x256xf32>
    %344 = arith.mulf %341, %90 : vector<32x256xf32>
    %cst_121 = arith.constant 0.955180108 : f32
    %345 = vector.broadcast %cst_121 : f32 to vector<32x256xf32>
    %346 = arith.mulf %344, %345 : vector<32x256xf32>
    %cst_122 = arith.constant dense<0.000000e+00> : vector<256xf32>
    %347 = vector.multi_reduction <add>, %346, %cst_122 [0] : vector<32x256xf32> to vector<256xf32>
    %348 = vector.shape_cast %347 : vector<256xf32> to vector<1x256xf32>
    %349 = arith.mulf %346, %90 : vector<32x256xf32>
    %cst_123 = arith.constant 0.95421791 : f32
    %350 = vector.broadcast %cst_123 : f32 to vector<32x256xf32>
    %351 = arith.mulf %349, %350 : vector<32x256xf32>
    %cst_124 = arith.constant dense<0.000000e+00> : vector<256xf32>
    %352 = vector.multi_reduction <add>, %351, %cst_124 [0] : vector<32x256xf32> to vector<256xf32>
    %353 = vector.shape_cast %352 : vector<256xf32> to vector<1x256xf32>
    %354 = tpu.concatenate %278, %283, %288, %293, %298, %303, %308, %313, %318, %323, %328, %333, %338, %343, %348, %353 in 0 : vector<1x256xf32>, vector<1x256xf32>, vector<1x256xf32>, vector<1x256xf32>, vector<1x256xf32>, vector<1x256xf32>, vector<1x256xf32>, vector<1x256xf32>, vector<1x256xf32>, vector<1x256xf32>, vector<1x256xf32>, vector<1x256xf32>, vector<1x256xf32>, vector<1x256xf32>, vector<1x256xf32>, vector<1x256xf32> -> vector<16x256xf32>
    %c32 = arith.constant 32 : index
    %c0_125 = arith.constant 0 : index
    %355 = vector.load %arg6[%c32, %c0_125] : memref<64x256xf32, #tpu.memory_space<vmem>>, vector<16x256xf32>
    %356 = arith.addf %355, %354 : vector<16x256xf32>
    %c32_126 = arith.constant 32 : index
    %c0_127 = arith.constant 0 : index
    %357 = vector.load %arg6[%c32_126, %c0_127] : memref<64x256xf32, #tpu.memory_space<vmem>>, vector<16x256xf32>
    tpu.vector_store %arg6[%c32_126, %c0_127], %356 {strides = array<i32>} : memref<64x256xf32, #tpu.memory_space<vmem>>, vector<16x256xf32>,
    %cst_128 = arith.constant 0.761904776 : f32
    %358 = vector.broadcast %cst_128 : f32 to vector<32x256xf32>
    %359 = arith.subf %87, %358 : vector<32x256xf32>
    %360 = arith.mulf %359, %359 : vector<32x256xf32>
    %cst_129 = arith.constant -2.000000e+00 : f32
    %361 = vector.broadcast %cst_129 : f32 to vector<32x256xf32>
    %362 = arith.mulf %360, %361 : vector<32x256xf32>
    %363 = math.exp %362 : vector<32x256xf32>
    %364 = vector.broadcast %4 : vector<1x256xf32> to vector<32x256xf32>
    %365 = arith.mulf %363, %364 : vector<32x256xf32>
    %cst_130 = arith.constant dense<0.000000e+00> : vector<256xf32>
    %366 = vector.multi_reduction <add>, %365, %cst_130 [0] : vector<32x256xf32> to vector<256xf32>
    %367 = vector.shape_cast %366 : vector<256xf32> to vector<1x256xf32>
    %368 = arith.mulf %365, %90 : vector<32x256xf32>
    %cst_131 = arith.constant 0.952296555 : f32
    %369 = vector.broadcast %cst_131 : f32 to vector<32x256xf32>
    %370 = arith.mulf %368, %369 : vector<32x256xf32>
    %cst_132 = arith.constant dense<0.000000e+00> : vector<256xf32>
    %371 = vector.multi_reduction <add>, %370, %cst_132 [0] : vector<32x256xf32> to vector<256xf32>
    %372 = vector.shape_cast %371 : vector<256xf32> to vector<1x256xf32>
    %373 = arith.mulf %370, %90 : vector<32x256xf32>
    %cst_133 = arith.constant 0.951337277 : f32
    %374 = vector.broadcast %cst_133 : f32 to vector<32x256xf32>
    %375 = arith.mulf %373, %374 : vector<32x256xf32>
    %cst_134 = arith.constant dense<0.000000e+00> : vector<256xf32>
    %376 = vector.multi_reduction <add>, %375, %cst_134 [0] : vector<32x256xf32> to vector<256xf32>
    %377 = vector.shape_cast %376 : vector<256xf32> to vector<1x256xf32>
    %378 = arith.mulf %375, %90 : vector<32x256xf32>
    %cst_135 = arith.constant 9.503790e-01 : f32
    %379 = vector.broadcast %cst_135 : f32 to vector<32x256xf32>
    %380 = arith.mulf %378, %379 : vector<32x256xf32>
    %cst_136 = arith.constant dense<0.000000e+00> : vector<256xf32>
    %381 = vector.multi_reduction <add>, %380, %cst_136 [0] : vector<32x256xf32> to vector<256xf32>
    %382 = vector.shape_cast %381 : vector<256xf32> to vector<1x256xf32>
    %383 = arith.mulf %380, %90 : vector<32x256xf32>
    %cst_137 = arith.constant 0.949421703 : f32
    %384 = vector.broadcast %cst_137 : f32 to vector<32x256xf32>
    %385 = arith.mulf %383, %384 : vector<32x256xf32>
    %cst_138 = arith.constant dense<0.000000e+00> : vector<256xf32>
    %386 = vector.multi_reduction <add>, %385, %cst_138 [0] : vector<32x256xf32> to vector<256xf32>
    %387 = vector.shape_cast %386 : vector<256xf32> to vector<1x256xf32>
    %388 = arith.mulf %385, %90 : vector<32x256xf32>
    %cst_139 = arith.constant 0.948465347 : f32
    %389 = vector.broadcast %cst_139 : f32 to vector<32x256xf32>
    %390 = arith.mulf %388, %389 : vector<32x256xf32>
    %cst_140 = arith.constant dense<0.000000e+00> : vector<256xf32>
    %391 = vector.multi_reduction <add>, %390, %cst_140 [0] : vector<32x256xf32> to vector<256xf32>
    %392 = vector.shape_cast %391 : vector<256xf32> to vector<1x256xf32>
    %393 = arith.mulf %390, %90 : vector<32x256xf32>
    %cst_141 = arith.constant 0.947509944 : f32
    %394 = vector.broadcast %cst_141 : f32 to vector<32x256xf32>
    %395 = arith.mulf %393, %394 : vector<32x256xf32>
    %cst_142 = arith.constant dense<0.000000e+00> : vector<256xf32>
    %396 = vector.multi_reduction <add>, %395, %cst_142 [0] : vector<32x256xf32> to vector<256xf32>
    %397 = vector.shape_cast %396 : vector<256xf32> to vector<1x256xf32>
    %398 = arith.mulf %395, %90 : vector<32x256xf32>
    %cst_143 = arith.constant 0.946555495 : f32
    %399 = vector.broadcast %cst_143 : f32 to vector<32x256xf32>
    %400 = arith.mulf %398, %399 : vector<32x256xf32>
    %cst_144 = arith.constant dense<0.000000e+00> : vector<256xf32>
    %401 = vector.multi_reduction <add>, %400, %cst_144 [0] : vector<32x256xf32> to vector<256xf32>
    %402 = vector.shape_cast %401 : vector<256xf32> to vector<1x256xf32>
    %403 = arith.mulf %400, %90 : vector<32x256xf32>
    %cst_145 = arith.constant 0.945602059 : f32
    %404 = vector.broadcast %cst_145 : f32 to vector<32x256xf32>
    %405 = arith.mulf %403, %404 : vector<32x256xf32>
    %cst_146 = arith.constant dense<0.000000e+00> : vector<256xf32>
    %406 = vector.multi_reduction <add>, %405, %cst_146 [0] : vector<32x256xf32> to vector<256xf32>
    %407 = vector.shape_cast %406 : vector<256xf32> to vector<1x256xf32>
    %408 = arith.mulf %405, %90 : vector<32x256xf32>
    %cst_147 = arith.constant 0.944649517 : f32
    %409 = vector.broadcast %cst_147 : f32 to vector<32x256xf32>
    %410 = arith.mulf %408, %409 : vector<32x256xf32>
    %cst_148 = arith.constant dense<0.000000e+00> : vector<256xf32>
    %411 = vector.multi_reduction <add>, %410, %cst_148 [0] : vector<32x256xf32> to vector<256xf32>
    %412 = vector.shape_cast %411 : vector<256xf32> to vector<1x256xf32>
    %413 = arith.mulf %410, %90 : vector<32x256xf32>
    %cst_149 = arith.constant 0.943697988 : f32
    %414 = vector.broadcast %cst_149 : f32 to vector<32x256xf32>
    %415 = arith.mulf %413, %414 : vector<32x256xf32>
    %cst_150 = arith.constant dense<0.000000e+00> : vector<256xf32>
    %416 = vector.multi_reduction <add>, %415, %cst_150 [0] : vector<32x256xf32> to vector<256xf32>
    %417 = vector.shape_cast %416 : vector<256xf32> to vector<1x256xf32>
    %418 = arith.mulf %415, %90 : vector<32x256xf32>
    %cst_151 = arith.constant 0.942747414 : f32
    %419 = vector.broadcast %cst_151 : f32 to vector<32x256xf32>
    %420 = arith.mulf %418, %419 : vector<32x256xf32>
    %cst_152 = arith.constant dense<0.000000e+00> : vector<256xf32>
    %421 = vector.multi_reduction <add>, %420, %cst_152 [0] : vector<32x256xf32> to vector<256xf32>
    %422 = vector.shape_cast %421 : vector<256xf32> to vector<1x256xf32>
    %423 = arith.mulf %420, %90 : vector<32x256xf32>
    %cst_153 = arith.constant 0.941797733 : f32
    %424 = vector.broadcast %cst_153 : f32 to vector<32x256xf32>
    %425 = arith.mulf %423, %424 : vector<32x256xf32>
    %cst_154 = arith.constant dense<0.000000e+00> : vector<256xf32>
    %426 = vector.multi_reduction <add>, %425, %cst_154 [0] : vector<32x256xf32> to vector<256xf32>
    %427 = vector.shape_cast %426 : vector<256xf32> to vector<1x256xf32>
    %428 = arith.mulf %425, %90 : vector<32x256xf32>
    %cst_155 = arith.constant 0.940849066 : f32
    %429 = vector.broadcast %cst_155 : f32 to vector<32x256xf32>
    %430 = arith.mulf %428, %429 : vector<32x256xf32>
    %cst_156 = arith.constant dense<0.000000e+00> : vector<256xf32>
    %431 = vector.multi_reduction <add>, %430, %cst_156 [0] : vector<32x256xf32> to vector<256xf32>
    %432 = vector.shape_cast %431 : vector<256xf32> to vector<1x256xf32>
    %433 = arith.mulf %430, %90 : vector<32x256xf32>
    %cst_157 = arith.constant 0.939901351 : f32
    %434 = vector.broadcast %cst_157 : f32 to vector<32x256xf32>
    %435 = arith.mulf %433, %434 : vector<32x256xf32>
    %cst_158 = arith.constant dense<0.000000e+00> : vector<256xf32>
    %436 = vector.multi_reduction <add>, %435, %cst_158 [0] : vector<32x256xf32> to vector<256xf32>
    %437 = vector.shape_cast %436 : vector<256xf32> to vector<1x256xf32>
    %438 = arith.mulf %435, %90 : vector<32x256xf32>
    %cst_159 = arith.constant 0.938954592 : f32
    %439 = vector.broadcast %cst_159 : f32 to vector<32x256xf32>
    %440 = arith.mulf %438, %439 : vector<32x256xf32>
    %cst_160 = arith.constant dense<0.000000e+00> : vector<256xf32>
    %441 = vector.multi_reduction <add>, %440, %cst_160 [0] : vector<32x256xf32> to vector<256xf32>
    %442 = vector.shape_cast %441 : vector<256xf32> to vector<1x256xf32>
    %443 = tpu.concatenate %367, %372, %377, %382, %387, %392, %397, %402, %407, %412, %417, %422, %427, %432, %437, %442 in 0 : vector<1x256xf32>, vector<1x256xf32>, vector<1x256xf32>, vector<1x256xf32>, vector<1x256xf32>, vector<1x256xf32>, vector<1x256xf32>, vector<1x256xf32>, vector<1x256xf32>, vector<1x256xf32>, vector<1x256xf32>, vector<1x256xf32>, vector<1x256xf32>, vector<1x256xf32>, vector<1x256xf32>, vector<1x256xf32> -> vector<16x256xf32>
    %c48 = arith.constant 48 : index
    %c0_161 = arith.constant 0 : index
    %444 = vector.load %arg6[%c48, %c0_161] : memref<64x256xf32, #tpu.memory_space<vmem>>, vector<16x256xf32>
    %445 = arith.addf %444, %443 : vector<16x256xf32>
    %c48_162 = arith.constant 48 : index
    %c0_163 = arith.constant 0 : index
    %446 = vector.load %arg6[%c48_162, %c0_163] : memref<64x256xf32, #tpu.memory_space<vmem>>, vector<16x256xf32>
    tpu.vector_store %arg6[%c48_162, %c0_163], %445 {strides = array<i32>} : memref<64x256xf32, #tpu.memory_space<vmem>>, vector<16x256xf32>,
    %c0_164 = arith.constant 0 : index
    %c0_165 = arith.constant 0 : index
    %447 = vector.load %arg4[%c0_164, %c0_165] : memref<32x256xf32, #tpu.memory_space<vmem>>, vector<32x256xf32>
    %c1_i32_166 = arith.constant 1 : i32
    %448 = tpu.dynamic_rotate %447 by %c1_i32_166 dim 0 : vector<32x256xf32>, i32 -> vector<32x256xf32>
    %c1_i32_167 = arith.constant 1 : i32
    %449 = tpu.dynamic_rotate %448 by %c1_i32_167 dim 1 : vector<32x256xf32>, i32 -> vector<32x256xf32>
    %450 = vector.broadcast %17 : vector<1x256xf32> to vector<32x256xf32>
    %451 = arith.mulf %9, %450 : vector<32x256xf32>
    %452 = arith.mulf %449, %451 : vector<32x256xf32>
    %c0_168 = arith.constant 0 : index
    %453 = memref.load %arg1[%c0_168] : memref<9xf32, #tpu.memory_space<smem>>
    %454 = vector.broadcast %453 : f32 to vector<32x256xf32>
    %455 = arith.mulf %452, %454 : vector<32x256xf32>
    %c1_i32_169 = arith.constant 1 : i32
    %456 = tpu.dynamic_rotate %447 by %c1_i32_169 dim 0 : vector<32x256xf32>, i32 -> vector<32x256xf32>
    %457 = arith.mulf %456, %9 : vector<32x256xf32>
    %c1_170 = arith.constant 1 : index
    %458 = memref.load %arg1[%c1_170] : memref<9xf32, #tpu.memory_space<smem>>
    %459 = vector.broadcast %458 : f32 to vector<32x256xf32>
    %460 = arith.mulf %457, %459 : vector<32x256xf32>
    %461 = arith.addf %455, %460 : vector<32x256xf32>
    %c1_i32_171 = arith.constant 1 : i32
    %462 = tpu.dynamic_rotate %447 by %c1_i32_171 dim 0 : vector<32x256xf32>, i32 -> vector<32x256xf32>
    %c255_i32_172 = arith.constant 255 : i32
    %463 = tpu.dynamic_rotate %462 by %c255_i32_172 dim 1 : vector<32x256xf32>, i32 -> vector<32x256xf32>
    %464 = vector.broadcast %21 : vector<1x256xf32> to vector<32x256xf32>
    %465 = arith.mulf %9, %464 : vector<32x256xf32>
    %466 = arith.mulf %463, %465 : vector<32x256xf32>
    %c2_173 = arith.constant 2 : index
    %467 = memref.load %arg1[%c2_173] : memref<9xf32, #tpu.memory_space<smem>>
    %468 = vector.broadcast %467 : f32 to vector<32x256xf32>
    %469 = arith.mulf %466, %468 : vector<32x256xf32>
    %470 = arith.addf %461, %469 : vector<32x256xf32>
    %c1_i32_174 = arith.constant 1 : i32
    %471 = tpu.dynamic_rotate %447 by %c1_i32_174 dim 1 : vector<32x256xf32>, i32 -> vector<32x256xf32>
    %472 = vector.broadcast %17 : vector<1x256xf32> to vector<32x256xf32>
    %473 = arith.mulf %471, %472 : vector<32x256xf32>
    %c3_175 = arith.constant 3 : index
    %474 = memref.load %arg1[%c3_175] : memref<9xf32, #tpu.memory_space<smem>>
    %475 = vector.broadcast %474 : f32 to vector<32x256xf32>
    %476 = arith.mulf %473, %475 : vector<32x256xf32>
    %477 = arith.addf %470, %476 : vector<32x256xf32>
    %c4_176 = arith.constant 4 : index
    %478 = memref.load %arg1[%c4_176] : memref<9xf32, #tpu.memory_space<smem>>
    %479 = vector.broadcast %478 : f32 to vector<32x256xf32>
    %480 = arith.mulf %447, %479 : vector<32x256xf32>
    %481 = arith.addf %477, %480 : vector<32x256xf32>
    %c255_i32_177 = arith.constant 255 : i32
    %482 = tpu.dynamic_rotate %447 by %c255_i32_177 dim 1 : vector<32x256xf32>, i32 -> vector<32x256xf32>
    %483 = vector.broadcast %21 : vector<1x256xf32> to vector<32x256xf32>
    %484 = arith.mulf %482, %483 : vector<32x256xf32>
    %c5_178 = arith.constant 5 : index
    %485 = memref.load %arg1[%c5_178] : memref<9xf32, #tpu.memory_space<smem>>
    %486 = vector.broadcast %485 : f32 to vector<32x256xf32>
    %487 = arith.mulf %484, %486 : vector<32x256xf32>
    %488 = arith.addf %481, %487 : vector<32x256xf32>
    %c31_i32_179 = arith.constant 31 : i32
    %489 = tpu.dynamic_rotate %447 by %c31_i32_179 dim 0 : vector<32x256xf32>, i32 -> vector<32x256xf32>
    %c1_i32_180 = arith.constant 1 : i32
    %490 = tpu.dynamic_rotate %489 by %c1_i32_180 dim 1 : vector<32x256xf32>, i32 -> vector<32x256xf32>
    %491 = vector.broadcast %17 : vector<1x256xf32> to vector<32x256xf32>
    %492 = arith.mulf %13, %491 : vector<32x256xf32>
    %493 = arith.mulf %490, %492 : vector<32x256xf32>
    %c6_181 = arith.constant 6 : index
    %494 = memref.load %arg1[%c6_181] : memref<9xf32, #tpu.memory_space<smem>>
    %495 = vector.broadcast %494 : f32 to vector<32x256xf32>
    %496 = arith.mulf %493, %495 : vector<32x256xf32>
    %497 = arith.addf %488, %496 : vector<32x256xf32>
    %c31_i32_182 = arith.constant 31 : i32
    %498 = tpu.dynamic_rotate %447 by %c31_i32_182 dim 0 : vector<32x256xf32>, i32 -> vector<32x256xf32>
    %499 = arith.mulf %498, %13 : vector<32x256xf32>
    %c7_183 = arith.constant 7 : index
    %500 = memref.load %arg1[%c7_183] : memref<9xf32, #tpu.memory_space<smem>>
    %501 = vector.broadcast %500 : f32 to vector<32x256xf32>
    %502 = arith.mulf %499, %501 : vector<32x256xf32>
    %503 = arith.addf %497, %502 : vector<32x256xf32>
    %c31_i32_184 = arith.constant 31 : i32
    %504 = tpu.dynamic_rotate %447 by %c31_i32_184 dim 0 : vector<32x256xf32>, i32 -> vector<32x256xf32>
    %c255_i32_185 = arith.constant 255 : i32
    %505 = tpu.dynamic_rotate %504 by %c255_i32_185 dim 1 : vector<32x256xf32>, i32 -> vector<32x256xf32>
    %506 = vector.broadcast %21 : vector<1x256xf32> to vector<32x256xf32>
    %507 = arith.mulf %13, %506 : vector<32x256xf32>
    %508 = arith.mulf %505, %507 : vector<32x256xf32>
    %c8_186 = arith.constant 8 : index
    %509 = memref.load %arg1[%c8_186] : memref<9xf32, #tpu.memory_space<smem>>
    %510 = vector.broadcast %509 : f32 to vector<32x256xf32>
    %511 = arith.mulf %508, %510 : vector<32x256xf32>
    %512 = arith.addf %503, %511 : vector<32x256xf32>
    %cst_187 = arith.constant 0.0634920672 : f32
    %513 = vector.broadcast %cst_187 : f32 to vector<32x256xf32>
    %514 = arith.mulf %512, %513 : vector<32x256xf32>
    %515 = math.exp %514 : vector<32x256xf32>
    %cst_188 = arith.constant 0.000000e+00 : f32
    %516 = vector.broadcast %cst_188 : f32 to vector<32x256xf32>
    %517 = arith.subf %512, %516 : vector<32x256xf32>
    %518 = arith.mulf %517, %517 : vector<32x256xf32>
    %cst_189 = arith.constant -2.000000e+00 : f32
    %519 = vector.broadcast %cst_189 : f32 to vector<32x256xf32>
    %520 = arith.mulf %518, %519 : vector<32x256xf32>
    %521 = math.exp %520 : vector<32x256xf32>
    %522 = vector.broadcast %4 : vector<1x256xf32> to vector<32x256xf32>
    %523 = arith.mulf %521, %522 : vector<32x256xf32>
    %cst_190 = arith.constant dense<0.000000e+00> : vector<256xf32>
    %524 = vector.multi_reduction <add>, %523, %cst_190 [0] : vector<32x256xf32> to vector<256xf32>
    %525 = vector.shape_cast %524 : vector<256xf32> to vector<1x256xf32>
    %526 = arith.mulf %523, %515 : vector<32x256xf32>
    %cst_191 = arith.constant 0.999496221 : f32
    %527 = vector.broadcast %cst_191 : f32 to vector<32x256xf32>
    %528 = arith.mulf %526, %527 : vector<32x256xf32>
    %cst_192 = arith.constant dense<0.000000e+00> : vector<256xf32>
    %529 = vector.multi_reduction <add>, %528, %cst_192 [0] : vector<32x256xf32> to vector<256xf32>
    %530 = vector.shape_cast %529 : vector<256xf32> to vector<1x256xf32>
    %531 = arith.mulf %528, %515 : vector<32x256xf32>
    %cst_193 = arith.constant 0.998489439 : f32
    %532 = vector.broadcast %cst_193 : f32 to vector<32x256xf32>
    %533 = arith.mulf %531, %532 : vector<32x256xf32>
    %cst_194 = arith.constant dense<0.000000e+00> : vector<256xf32>
    %534 = vector.multi_reduction <add>, %533, %cst_194 [0] : vector<32x256xf32> to vector<256xf32>
    %535 = vector.shape_cast %534 : vector<256xf32> to vector<1x256xf32>
    %536 = arith.mulf %533, %515 : vector<32x256xf32>
    %cst_195 = arith.constant 0.99748367 : f32
    %537 = vector.broadcast %cst_195 : f32 to vector<32x256xf32>
    %538 = arith.mulf %536, %537 : vector<32x256xf32>
    %cst_196 = arith.constant dense<0.000000e+00> : vector<256xf32>
    %539 = vector.multi_reduction <add>, %538, %cst_196 [0] : vector<32x256xf32> to vector<256xf32>
    %540 = vector.shape_cast %539 : vector<256xf32> to vector<1x256xf32>
    %541 = arith.mulf %538, %515 : vector<32x256xf32>
    %cst_197 = arith.constant 0.996478855 : f32
    %542 = vector.broadcast %cst_197 : f32 to vector<32x256xf32>
    %543 = arith.mulf %541, %542 : vector<32x256xf32>
    %cst_198 = arith.constant dense<0.000000e+00> : vector<256xf32>
    %544 = vector.multi_reduction <add>, %543, %cst_198 [0] : vector<32x256xf32> to vector<256xf32>
    %545 = vector.shape_cast %544 : vector<256xf32> to vector<1x256xf32>
    %546 = arith.mulf %543, %515 : vector<32x256xf32>
    %cst_199 = arith.constant 0.995475113 : f32
    %547 = vector.broadcast %cst_199 : f32 to vector<32x256xf32>
    %548 = arith.mulf %546, %547 : vector<32x256xf32>
    %cst_200 = arith.constant dense<0.000000e+00> : vector<256xf32>
    %549 = vector.multi_reduction <add>, %548, %cst_200 [0] : vector<32x256xf32> to vector<256xf32>
    %550 = vector.shape_cast %549 : vector<256xf32> to vector<1x256xf32>
    %551 = arith.mulf %548, %515 : vector<32x256xf32>
    %cst_201 = arith.constant 0.994472384 : f32
    %552 = vector.broadcast %cst_201 : f32 to vector<32x256xf32>
    %553 = arith.mulf %551, %552 : vector<32x256xf32>
    %cst_202 = arith.constant dense<0.000000e+00> : vector<256xf32>
    %554 = vector.multi_reduction <add>, %553, %cst_202 [0] : vector<32x256xf32> to vector<256xf32>
    %555 = vector.shape_cast %554 : vector<256xf32> to vector<1x256xf32>
    %556 = arith.mulf %553, %515 : vector<32x256xf32>
    %cst_203 = arith.constant 0.993470668 : f32
    %557 = vector.broadcast %cst_203 : f32 to vector<32x256xf32>
    %558 = arith.mulf %556, %557 : vector<32x256xf32>
    %cst_204 = arith.constant dense<0.000000e+00> : vector<256xf32>
    %559 = vector.multi_reduction <add>, %558, %cst_204 [0] : vector<32x256xf32> to vector<256xf32>
    %560 = vector.shape_cast %559 : vector<256xf32> to vector<1x256xf32>
    %561 = arith.mulf %558, %515 : vector<32x256xf32>
    %cst_205 = arith.constant 0.992469906 : f32
    %562 = vector.broadcast %cst_205 : f32 to vector<32x256xf32>
    %563 = arith.mulf %561, %562 : vector<32x256xf32>
    %cst_206 = arith.constant dense<0.000000e+00> : vector<256xf32>
    %564 = vector.multi_reduction <add>, %563, %cst_206 [0] : vector<32x256xf32> to vector<256xf32>
    %565 = vector.shape_cast %564 : vector<256xf32> to vector<1x256xf32>
    %566 = arith.mulf %563, %515 : vector<32x256xf32>
    %cst_207 = arith.constant 0.991470217 : f32
    %567 = vector.broadcast %cst_207 : f32 to vector<32x256xf32>
    %568 = arith.mulf %566, %567 : vector<32x256xf32>
    %cst_208 = arith.constant dense<0.000000e+00> : vector<256xf32>
    %569 = vector.multi_reduction <add>, %568, %cst_208 [0] : vector<32x256xf32> to vector<256xf32>
    %570 = vector.shape_cast %569 : vector<256xf32> to vector<1x256xf32>
    %571 = arith.mulf %568, %515 : vector<32x256xf32>
    %cst_209 = arith.constant 0.990471482 : f32
    %572 = vector.broadcast %cst_209 : f32 to vector<32x256xf32>
    %573 = arith.mulf %571, %572 : vector<32x256xf32>
    %cst_210 = arith.constant dense<0.000000e+00> : vector<256xf32>
    %574 = vector.multi_reduction <add>, %573, %cst_210 [0] : vector<32x256xf32> to vector<256xf32>
    %575 = vector.shape_cast %574 : vector<256xf32> to vector<1x256xf32>
    %576 = arith.mulf %573, %515 : vector<32x256xf32>
    %cst_211 = arith.constant 0.98947376 : f32
    %577 = vector.broadcast %cst_211 : f32 to vector<32x256xf32>
    %578 = arith.mulf %576, %577 : vector<32x256xf32>
    %cst_212 = arith.constant dense<0.000000e+00> : vector<256xf32>
    %579 = vector.multi_reduction <add>, %578, %cst_212 [0] : vector<32x256xf32> to vector<256xf32>
    %580 = vector.shape_cast %579 : vector<256xf32> to vector<1x256xf32>
    %581 = arith.mulf %578, %515 : vector<32x256xf32>
    %cst_213 = arith.constant 0.98847711 : f32
    %582 = vector.broadcast %cst_213 : f32 to vector<32x256xf32>
    %583 = arith.mulf %581, %582 : vector<32x256xf32>
    %cst_214 = arith.constant dense<0.000000e+00> : vector<256xf32>
    %584 = vector.multi_reduction <add>, %583, %cst_214 [0] : vector<32x256xf32> to vector<256xf32>
    %585 = vector.shape_cast %584 : vector<256xf32> to vector<1x256xf32>
    %586 = arith.mulf %583, %515 : vector<32x256xf32>
    %cst_215 = arith.constant 0.987481415 : f32
    %587 = vector.broadcast %cst_215 : f32 to vector<32x256xf32>
    %588 = arith.mulf %586, %587 : vector<32x256xf32>
    %cst_216 = arith.constant dense<0.000000e+00> : vector<256xf32>
    %589 = vector.multi_reduction <add>, %588, %cst_216 [0] : vector<32x256xf32> to vector<256xf32>
    %590 = vector.shape_cast %589 : vector<256xf32> to vector<1x256xf32>
    %591 = arith.mulf %588, %515 : vector<32x256xf32>
    %cst_217 = arith.constant 0.986486673 : f32
    %592 = vector.broadcast %cst_217 : f32 to vector<32x256xf32>
    %593 = arith.mulf %591, %592 : vector<32x256xf32>
    %cst_218 = arith.constant dense<0.000000e+00> : vector<256xf32>
    %594 = vector.multi_reduction <add>, %593, %cst_218 [0] : vector<32x256xf32> to vector<256xf32>
    %595 = vector.shape_cast %594 : vector<256xf32> to vector<1x256xf32>
    %596 = arith.mulf %593, %515 : vector<32x256xf32>
    %cst_219 = arith.constant 9.854930e-01 : f32
    %597 = vector.broadcast %cst_219 : f32 to vector<32x256xf32>
    %598 = arith.mulf %596, %597 : vector<32x256xf32>
    %cst_220 = arith.constant dense<0.000000e+00> : vector<256xf32>
    %599 = vector.multi_reduction <add>, %598, %cst_220 [0] : vector<32x256xf32> to vector<256xf32>
    %600 = vector.shape_cast %599 : vector<256xf32> to vector<1x256xf32>
    %601 = tpu.concatenate %525, %530, %535, %540, %545, %550, %555, %560, %565, %570, %575, %580, %585, %590, %595, %600 in 0 : vector<1x256xf32>, vector<1x256xf32>, vector<1x256xf32>, vector<1x256xf32>, vector<1x256xf32>, vector<1x256xf32>, vector<1x256xf32>, vector<1x256xf32>, vector<1x256xf32>, vector<1x256xf32>, vector<1x256xf32>, vector<1x256xf32>, vector<1x256xf32>, vector<1x256xf32>, vector<1x256xf32>, vector<1x256xf32> -> vector<16x256xf32>
    %c0_221 = arith.constant 0 : index
    %c0_222 = arith.constant 0 : index
    %602 = vector.load %arg7[%c0_221, %c0_222] : memref<64x256xf32, #tpu.memory_space<vmem>>, vector<16x256xf32>
    %603 = arith.addf %602, %601 : vector<16x256xf32>
    %c0_223 = arith.constant 0 : index
    %c0_224 = arith.constant 0 : index
    %604 = vector.load %arg7[%c0_223, %c0_224] : memref<64x256xf32, #tpu.memory_space<vmem>>, vector<16x256xf32>
    tpu.vector_store %arg7[%c0_223, %c0_224], %603 {strides = array<i32>} : memref<64x256xf32, #tpu.memory_space<vmem>>, vector<16x256xf32>,
    %cst_225 = arith.constant 0.253968269 : f32
    %605 = vector.broadcast %cst_225 : f32 to vector<32x256xf32>
    %606 = arith.subf %512, %605 : vector<32x256xf32>
    %607 = arith.mulf %606, %606 : vector<32x256xf32>
    %cst_226 = arith.constant -2.000000e+00 : f32
    %608 = vector.broadcast %cst_226 : f32 to vector<32x256xf32>
    %609 = arith.mulf %607, %608 : vector<32x256xf32>
    %610 = math.exp %609 : vector<32x256xf32>
    %611 = vector.broadcast %4 : vector<1x256xf32> to vector<32x256xf32>
    %612 = arith.mulf %610, %611 : vector<32x256xf32>
    %cst_227 = arith.constant dense<0.000000e+00> : vector<256xf32>
    %613 = vector.multi_reduction <add>, %612, %cst_227 [0] : vector<32x256xf32> to vector<256xf32>
    %614 = vector.shape_cast %613 : vector<256xf32> to vector<1x256xf32>
    %615 = arith.mulf %612, %515 : vector<32x256xf32>
    %cst_228 = arith.constant 0.983508646 : f32
    %616 = vector.broadcast %cst_228 : f32 to vector<32x256xf32>
    %617 = arith.mulf %615, %616 : vector<32x256xf32>
    %cst_229 = arith.constant dense<0.000000e+00> : vector<256xf32>
    %618 = vector.multi_reduction <add>, %617, %cst_229 [0] : vector<32x256xf32> to vector<256xf32>
    %619 = vector.shape_cast %618 : vector<256xf32> to vector<1x256xf32>
    %620 = arith.mulf %617, %515 : vector<32x256xf32>
    %cst_230 = arith.constant 0.982517957 : f32
    %621 = vector.broadcast %cst_230 : f32 to vector<32x256xf32>
    %622 = arith.mulf %620, %621 : vector<32x256xf32>
    %cst_231 = arith.constant dense<0.000000e+00> : vector<256xf32>
    %623 = vector.multi_reduction <add>, %622, %cst_231 [0] : vector<32x256xf32> to vector<256xf32>
    %624 = vector.shape_cast %623 : vector<256xf32> to vector<1x256xf32>
    %625 = arith.mulf %622, %515 : vector<32x256xf32>
    %cst_232 = arith.constant 0.981528222 : f32
    %626 = vector.broadcast %cst_232 : f32 to vector<32x256xf32>
    %627 = arith.mulf %625, %626 : vector<32x256xf32>
    %cst_233 = arith.constant dense<0.000000e+00> : vector<256xf32>
    %628 = vector.multi_reduction <add>, %627, %cst_233 [0] : vector<32x256xf32> to vector<256xf32>
    %629 = vector.shape_cast %628 : vector<256xf32> to vector<1x256xf32>
    %630 = arith.mulf %627, %515 : vector<32x256xf32>
    %cst_234 = arith.constant 0.98053956 : f32
    %631 = vector.broadcast %cst_234 : f32 to vector<32x256xf32>
    %632 = arith.mulf %630, %631 : vector<32x256xf32>
    %cst_235 = arith.constant dense<0.000000e+00> : vector<256xf32>
    %633 = vector.multi_reduction <add>, %632, %cst_235 [0] : vector<32x256xf32> to vector<256xf32>
    %634 = vector.shape_cast %633 : vector<256xf32> to vector<1x256xf32>
    %635 = arith.mulf %632, %515 : vector<32x256xf32>
    %cst_236 = arith.constant 0.979551851 : f32
    %636 = vector.broadcast %cst_236 : f32 to vector<32x256xf32>
    %637 = arith.mulf %635, %636 : vector<32x256xf32>
    %cst_237 = arith.constant dense<0.000000e+00> : vector<256xf32>
    %638 = vector.multi_reduction <add>, %637, %cst_237 [0] : vector<32x256xf32> to vector<256xf32>
    %639 = vector.shape_cast %638 : vector<256xf32> to vector<1x256xf32>
    %640 = arith.mulf %637, %515 : vector<32x256xf32>
    %cst_238 = arith.constant 0.978565156 : f32
    %641 = vector.broadcast %cst_238 : f32 to vector<32x256xf32>
    %642 = arith.mulf %640, %641 : vector<32x256xf32>
    %cst_239 = arith.constant dense<0.000000e+00> : vector<256xf32>
    %643 = vector.multi_reduction <add>, %642, %cst_239 [0] : vector<32x256xf32> to vector<256xf32>
    %644 = vector.shape_cast %643 : vector<256xf32> to vector<1x256xf32>
    %645 = arith.mulf %642, %515 : vector<32x256xf32>
    %cst_240 = arith.constant 0.977579414 : f32
    %646 = vector.broadcast %cst_240 : f32 to vector<32x256xf32>
    %647 = arith.mulf %645, %646 : vector<32x256xf32>
    %cst_241 = arith.constant dense<0.000000e+00> : vector<256xf32>
    %648 = vector.multi_reduction <add>, %647, %cst_241 [0] : vector<32x256xf32> to vector<256xf32>
    %649 = vector.shape_cast %648 : vector<256xf32> to vector<1x256xf32>
    %650 = arith.mulf %647, %515 : vector<32x256xf32>
    %cst_242 = arith.constant 0.976594686 : f32
    %651 = vector.broadcast %cst_242 : f32 to vector<32x256xf32>
    %652 = arith.mulf %650, %651 : vector<32x256xf32>
    %cst_243 = arith.constant dense<0.000000e+00> : vector<256xf32>
    %653 = vector.multi_reduction <add>, %652, %cst_243 [0] : vector<32x256xf32> to vector<256xf32>
    %654 = vector.shape_cast %653 : vector<256xf32> to vector<1x256xf32>
    %655 = arith.mulf %652, %515 : vector<32x256xf32>
    %cst_244 = arith.constant 0.975610971 : f32
    %656 = vector.broadcast %cst_244 : f32 to vector<32x256xf32>
    %657 = arith.mulf %655, %656 : vector<32x256xf32>
    %cst_245 = arith.constant dense<0.000000e+00> : vector<256xf32>
    %658 = vector.multi_reduction <add>, %657, %cst_245 [0] : vector<32x256xf32> to vector<256xf32>
    %659 = vector.shape_cast %658 : vector<256xf32> to vector<1x256xf32>
    %660 = arith.mulf %657, %515 : vector<32x256xf32>
    %cst_246 = arith.constant 0.974628269 : f32
    %661 = vector.broadcast %cst_246 : f32 to vector<32x256xf32>
    %662 = arith.mulf %660, %661 : vector<32x256xf32>
    %cst_247 = arith.constant dense<0.000000e+00> : vector<256xf32>
    %663 = vector.multi_reduction <add>, %662, %cst_247 [0] : vector<32x256xf32> to vector<256xf32>
    %664 = vector.shape_cast %663 : vector<256xf32> to vector<1x256xf32>
    %665 = arith.mulf %662, %515 : vector<32x256xf32>
    %cst_248 = arith.constant 0.973646521 : f32
    %666 = vector.broadcast %cst_248 : f32 to vector<32x256xf32>
    %667 = arith.mulf %665, %666 : vector<32x256xf32>
    %cst_249 = arith.constant dense<0.000000e+00> : vector<256xf32>
    %668 = vector.multi_reduction <add>, %667, %cst_249 [0] : vector<32x256xf32> to vector<256xf32>
    %669 = vector.shape_cast %668 : vector<256xf32> to vector<1x256xf32>
    %670 = arith.mulf %667, %515 : vector<32x256xf32>
    %cst_250 = arith.constant 0.972665727 : f32
    %671 = vector.broadcast %cst_250 : f32 to vector<32x256xf32>
    %672 = arith.mulf %670, %671 : vector<32x256xf32>
    %cst_251 = arith.constant dense<0.000000e+00> : vector<256xf32>
    %673 = vector.multi_reduction <add>, %672, %cst_251 [0] : vector<32x256xf32> to vector<256xf32>
    %674 = vector.shape_cast %673 : vector<256xf32> to vector<1x256xf32>
    %675 = arith.mulf %672, %515 : vector<32x256xf32>
    %cst_252 = arith.constant 0.971685945 : f32
    %676 = vector.broadcast %cst_252 : f32 to vector<32x256xf32>
    %677 = arith.mulf %675, %676 : vector<32x256xf32>
    %cst_253 = arith.constant dense<0.000000e+00> : vector<256xf32>
    %678 = vector.multi_reduction <add>, %677, %cst_253 [0] : vector<32x256xf32> to vector<256xf32>
    %679 = vector.shape_cast %678 : vector<256xf32> to vector<1x256xf32>
    %680 = arith.mulf %677, %515 : vector<32x256xf32>
    %cst_254 = arith.constant 0.970707178 : f32
    %681 = vector.broadcast %cst_254 : f32 to vector<32x256xf32>
    %682 = arith.mulf %680, %681 : vector<32x256xf32>
    %cst_255 = arith.constant dense<0.000000e+00> : vector<256xf32>
    %683 = vector.multi_reduction <add>, %682, %cst_255 [0] : vector<32x256xf32> to vector<256xf32>
    %684 = vector.shape_cast %683 : vector<256xf32> to vector<1x256xf32>
    %685 = arith.mulf %682, %515 : vector<32x256xf32>
    %cst_256 = arith.constant 0.969729423 : f32
    %686 = vector.broadcast %cst_256 : f32 to vector<32x256xf32>
    %687 = arith.mulf %685, %686 : vector<32x256xf32>
    %cst_257 = arith.constant dense<0.000000e+00> : vector<256xf32>
    %688 = vector.multi_reduction <add>, %687, %cst_257 [0] : vector<32x256xf32> to vector<256xf32>
    %689 = vector.shape_cast %688 : vector<256xf32> to vector<1x256xf32>
    %690 = tpu.concatenate %614, %619, %624, %629, %634, %639, %644, %649, %654, %659, %664, %669, %674, %679, %684, %689 in 0 : vector<1x256xf32>, vector<1x256xf32>, vector<1x256xf32>, vector<1x256xf32>, vector<1x256xf32>, vector<1x256xf32>, vector<1x256xf32>, vector<1x256xf32>, vector<1x256xf32>, vector<1x256xf32>, vector<1x256xf32>, vector<1x256xf32>, vector<1x256xf32>, vector<1x256xf32>, vector<1x256xf32>, vector<1x256xf32> -> vector<16x256xf32>
    %c16_258 = arith.constant 16 : index
    %c0_259 = arith.constant 0 : index
    %691 = vector.load %arg7[%c16_258, %c0_259] : memref<64x256xf32, #tpu.memory_space<vmem>>, vector<16x256xf32>
    %692 = arith.addf %691, %690 : vector<16x256xf32>
    %c16_260 = arith.constant 16 : index
    %c0_261 = arith.constant 0 : index
    %693 = vector.load %arg7[%c16_260, %c0_261] : memref<64x256xf32, #tpu.memory_space<vmem>>, vector<16x256xf32>
    tpu.vector_store %arg7[%c16_260, %c0_261], %692 {strides = array<i32>} : memref<64x256xf32, #tpu.memory_space<vmem>>, vector<16x256xf32>,
    %cst_262 = arith.constant 0.507936537 : f32
    %694 = vector.broadcast %cst_262 : f32 to vector<32x256xf32>
    %695 = arith.subf %512, %694 : vector<32x256xf32>
    %696 = arith.mulf %695, %695 : vector<32x256xf32>
    %cst_263 = arith.constant -2.000000e+00 : f32
    %697 = vector.broadcast %cst_263 : f32 to vector<32x256xf32>
    %698 = arith.mulf %696, %697 : vector<32x256xf32>
    %699 = math.exp %698 : vector<32x256xf32>
    %700 = vector.broadcast %4 : vector<1x256xf32> to vector<32x256xf32>
    %701 = arith.mulf %699, %700 : vector<32x256xf32>
    %cst_264 = arith.constant dense<0.000000e+00> : vector<256xf32>
    %702 = vector.multi_reduction <add>, %701, %cst_264 [0] : vector<32x256xf32> to vector<256xf32>
    %703 = vector.shape_cast %702 : vector<256xf32> to vector<1x256xf32>
    %704 = arith.mulf %701, %515 : vector<32x256xf32>
    %cst_265 = arith.constant 0.967776775 : f32
    %705 = vector.broadcast %cst_265 : f32 to vector<32x256xf32>
    %706 = arith.mulf %704, %705 : vector<32x256xf32>
    %cst_266 = arith.constant dense<0.000000e+00> : vector<256xf32>
    %707 = vector.multi_reduction <add>, %706, %cst_266 [0] : vector<32x256xf32> to vector<256xf32>
    %708 = vector.shape_cast %707 : vector<256xf32> to vector<1x256xf32>
    %709 = arith.mulf %706, %515 : vector<32x256xf32>
    %cst_267 = arith.constant 0.966801941 : f32
    %710 = vector.broadcast %cst_267 : f32 to vector<32x256xf32>
    %711 = arith.mulf %709, %710 : vector<32x256xf32>
    %cst_268 = arith.constant dense<0.000000e+00> : vector<256xf32>
    %712 = vector.multi_reduction <add>, %711, %cst_268 [0] : vector<32x256xf32> to vector<256xf32>
    %713 = vector.shape_cast %712 : vector<256xf32> to vector<1x256xf32>
    %714 = arith.mulf %711, %515 : vector<32x256xf32>
    %cst_269 = arith.constant 0.965828061 : f32
    %715 = vector.broadcast %cst_269 : f32 to vector<32x256xf32>
    %716 = arith.mulf %714, %715 : vector<32x256xf32>
    %cst_270 = arith.constant dense<0.000000e+00> : vector<256xf32>
    %717 = vector.multi_reduction <add>, %716, %cst_270 [0] : vector<32x256xf32> to vector<256xf32>
    %718 = vector.shape_cast %717 : vector<256xf32> to vector<1x256xf32>
    %719 = arith.mulf %716, %515 : vector<32x256xf32>
    %cst_271 = arith.constant 0.964855194 : f32
    %720 = vector.broadcast %cst_271 : f32 to vector<32x256xf32>
    %721 = arith.mulf %719, %720 : vector<32x256xf32>
    %cst_272 = arith.constant dense<0.000000e+00> : vector<256xf32>
    %722 = vector.multi_reduction <add>, %721, %cst_272 [0] : vector<32x256xf32> to vector<256xf32>
    %723 = vector.shape_cast %722 : vector<256xf32> to vector<1x256xf32>
    %724 = arith.mulf %721, %515 : vector<32x256xf32>
    %cst_273 = arith.constant 0.96388328 : f32
    %725 = vector.broadcast %cst_273 : f32 to vector<32x256xf32>
    %726 = arith.mulf %724, %725 : vector<32x256xf32>
    %cst_274 = arith.constant dense<0.000000e+00> : vector<256xf32>
    %727 = vector.multi_reduction <add>, %726, %cst_274 [0] : vector<32x256xf32> to vector<256xf32>
    %728 = vector.shape_cast %727 : vector<256xf32> to vector<1x256xf32>
    %729 = arith.mulf %726, %515 : vector<32x256xf32>
    %cst_275 = arith.constant 0.962912321 : f32
    %730 = vector.broadcast %cst_275 : f32 to vector<32x256xf32>
    %731 = arith.mulf %729, %730 : vector<32x256xf32>
    %cst_276 = arith.constant dense<0.000000e+00> : vector<256xf32>
    %732 = vector.multi_reduction <add>, %731, %cst_276 [0] : vector<32x256xf32> to vector<256xf32>
    %733 = vector.shape_cast %732 : vector<256xf32> to vector<1x256xf32>
    %734 = arith.mulf %731, %515 : vector<32x256xf32>
    %cst_277 = arith.constant 0.961942374 : f32
    %735 = vector.broadcast %cst_277 : f32 to vector<32x256xf32>
    %736 = arith.mulf %734, %735 : vector<32x256xf32>
    %cst_278 = arith.constant dense<0.000000e+00> : vector<256xf32>
    %737 = vector.multi_reduction <add>, %736, %cst_278 [0] : vector<32x256xf32> to vector<256xf32>
    %738 = vector.shape_cast %737 : vector<256xf32> to vector<1x256xf32>
    %739 = arith.mulf %736, %515 : vector<32x256xf32>
    %cst_279 = arith.constant 0.960973441 : f32
    %740 = vector.broadcast %cst_279 : f32 to vector<32x256xf32>
    %741 = arith.mulf %739, %740 : vector<32x256xf32>
    %cst_280 = arith.constant dense<0.000000e+00> : vector<256xf32>
    %742 = vector.multi_reduction <add>, %741, %cst_280 [0] : vector<32x256xf32> to vector<256xf32>
    %743 = vector.shape_cast %742 : vector<256xf32> to vector<1x256xf32>
    %744 = arith.mulf %741, %515 : vector<32x256xf32>
    %cst_281 = arith.constant 0.960005462 : f32
    %745 = vector.broadcast %cst_281 : f32 to vector<32x256xf32>
    %746 = arith.mulf %744, %745 : vector<32x256xf32>
    %cst_282 = arith.constant dense<0.000000e+00> : vector<256xf32>
    %747 = vector.multi_reduction <add>, %746, %cst_282 [0] : vector<32x256xf32> to vector<256xf32>
    %748 = vector.shape_cast %747 : vector<256xf32> to vector<1x256xf32>
    %749 = arith.mulf %746, %515 : vector<32x256xf32>
    %cst_283 = arith.constant 0.959038436 : f32
    %750 = vector.broadcast %cst_283 : f32 to vector<32x256xf32>
    %751 = arith.mulf %749, %750 : vector<32x256xf32>
    %cst_284 = arith.constant dense<0.000000e+00> : vector<256xf32>
    %752 = vector.multi_reduction <add>, %751, %cst_284 [0] : vector<32x256xf32> to vector<256xf32>
    %753 = vector.shape_cast %752 : vector<256xf32> to vector<1x256xf32>
    %754 = arith.mulf %751, %515 : vector<32x256xf32>
    %cst_285 = arith.constant 0.958072364 : f32
    %755 = vector.broadcast %cst_285 : f32 to vector<32x256xf32>
    %756 = arith.mulf %754, %755 : vector<32x256xf32>
    %cst_286 = arith.constant dense<0.000000e+00> : vector<256xf32>
    %757 = vector.multi_reduction <add>, %756, %cst_286 [0] : vector<32x256xf32> to vector<256xf32>
    %758 = vector.shape_cast %757 : vector<256xf32> to vector<1x256xf32>
    %759 = arith.mulf %756, %515 : vector<32x256xf32>
    %cst_287 = arith.constant 0.957107305 : f32
    %760 = vector.broadcast %cst_287 : f32 to vector<32x256xf32>
    %761 = arith.mulf %759, %760 : vector<32x256xf32>
    %cst_288 = arith.constant dense<0.000000e+00> : vector<256xf32>
    %762 = vector.multi_reduction <add>, %761, %cst_288 [0] : vector<32x256xf32> to vector<256xf32>
    %763 = vector.shape_cast %762 : vector<256xf32> to vector<1x256xf32>
    %764 = arith.mulf %761, %515 : vector<32x256xf32>
    %cst_289 = arith.constant 0.9561432 : f32
    %765 = vector.broadcast %cst_289 : f32 to vector<32x256xf32>
    %766 = arith.mulf %764, %765 : vector<32x256xf32>
    %cst_290 = arith.constant dense<0.000000e+00> : vector<256xf32>
    %767 = vector.multi_reduction <add>, %766, %cst_290 [0] : vector<32x256xf32> to vector<256xf32>
    %768 = vector.shape_cast %767 : vector<256xf32> to vector<1x256xf32>
    %769 = arith.mulf %766, %515 : vector<32x256xf32>
    %cst_291 = arith.constant 0.955180108 : f32
    %770 = vector.broadcast %cst_291 : f32 to vector<32x256xf32>
    %771 = arith.mulf %769, %770 : vector<32x256xf32>
    %cst_292 = arith.constant dense<0.000000e+00> : vector<256xf32>
    %772 = vector.multi_reduction <add>, %771, %cst_292 [0] : vector<32x256xf32> to vector<256xf32>
    %773 = vector.shape_cast %772 : vector<256xf32> to vector<1x256xf32>
    %774 = arith.mulf %771, %515 : vector<32x256xf32>
    %cst_293 = arith.constant 0.95421791 : f32
    %775 = vector.broadcast %cst_293 : f32 to vector<32x256xf32>
    %776 = arith.mulf %774, %775 : vector<32x256xf32>
    %cst_294 = arith.constant dense<0.000000e+00> : vector<256xf32>
    %777 = vector.multi_reduction <add>, %776, %cst_294 [0] : vector<32x256xf32> to vector<256xf32>
    %778 = vector.shape_cast %777 : vector<256xf32> to vector<1x256xf32>
    %779 = tpu.concatenate %703, %708, %713, %718, %723, %728, %733, %738, %743, %748, %753, %758, %763, %768, %773, %778 in 0 : vector<1x256xf32>, vector<1x256xf32>, vector<1x256xf32>, vector<1x256xf32>, vector<1x256xf32>, vector<1x256xf32>, vector<1x256xf32>, vector<1x256xf32>, vector<1x256xf32>, vector<1x256xf32>, vector<1x256xf32>, vector<1x256xf32>, vector<1x256xf32>, vector<1x256xf32>, vector<1x256xf32>, vector<1x256xf32> -> vector<16x256xf32>
    %c32_295 = arith.constant 32 : index
    %c0_296 = arith.constant 0 : index
    %780 = vector.load %arg7[%c32_295, %c0_296] : memref<64x256xf32, #tpu.memory_space<vmem>>, vector<16x256xf32>
    %781 = arith.addf %780, %779 : vector<16x256xf32>
    %c32_297 = arith.constant 32 : index
    %c0_298 = arith.constant 0 : index
    %782 = vector.load %arg7[%c32_297, %c0_298] : memref<64x256xf32, #tpu.memory_space<vmem>>, vector<16x256xf32>
    tpu.vector_store %arg7[%c32_297, %c0_298], %781 {strides = array<i32>} : memref<64x256xf32, #tpu.memory_space<vmem>>, vector<16x256xf32>,
    %cst_299 = arith.constant 0.761904776 : f32
    %783 = vector.broadcast %cst_299 : f32 to vector<32x256xf32>
    %784 = arith.subf %512, %783 : vector<32x256xf32>
    %785 = arith.mulf %784, %784 : vector<32x256xf32>
    %cst_300 = arith.constant -2.000000e+00 : f32
    %786 = vector.broadcast %cst_300 : f32 to vector<32x256xf32>
    %787 = arith.mulf %785, %786 : vector<32x256xf32>
    %788 = math.exp %787 : vector<32x256xf32>
    %789 = vector.broadcast %4 : vector<1x256xf32> to vector<32x256xf32>
    %790 = arith.mulf %788, %789 : vector<32x256xf32>
    %cst_301 = arith.constant dense<0.000000e+00> : vector<256xf32>
    %791 = vector.multi_reduction <add>, %790, %cst_301 [0] : vector<32x256xf32> to vector<256xf32>
    %792 = vector.shape_cast %791 : vector<256xf32> to vector<1x256xf32>
    %793 = arith.mulf %790, %515 : vector<32x256xf32>
    %cst_302 = arith.constant 0.952296555 : f32
    %794 = vector.broadcast %cst_302 : f32 to vector<32x256xf32>
    %795 = arith.mulf %793, %794 : vector<32x256xf32>
    %cst_303 = arith.constant dense<0.000000e+00> : vector<256xf32>
    %796 = vector.multi_reduction <add>, %795, %cst_303 [0] : vector<32x256xf32> to vector<256xf32>
    %797 = vector.shape_cast %796 : vector<256xf32> to vector<1x256xf32>
    %798 = arith.mulf %795, %515 : vector<32x256xf32>
    %cst_304 = arith.constant 0.951337277 : f32
    %799 = vector.broadcast %cst_304 : f32 to vector<32x256xf32>
    %800 = arith.mulf %798, %799 : vector<32x256xf32>
    %cst_305 = arith.constant dense<0.000000e+00> : vector<256xf32>
    %801 = vector.multi_reduction <add>, %800, %cst_305 [0] : vector<32x256xf32> to vector<256xf32>
    %802 = vector.shape_cast %801 : vector<256xf32> to vector<1x256xf32>
    %803 = arith.mulf %800, %515 : vector<32x256xf32>
    %cst_306 = arith.constant 9.503790e-01 : f32
    %804 = vector.broadcast %cst_306 : f32 to vector<32x256xf32>
    %805 = arith.mulf %803, %804 : vector<32x256xf32>
    %cst_307 = arith.constant dense<0.000000e+00> : vector<256xf32>
    %806 = vector.multi_reduction <add>, %805, %cst_307 [0] : vector<32x256xf32> to vector<256xf32>
    %807 = vector.shape_cast %806 : vector<256xf32> to vector<1x256xf32>
    %808 = arith.mulf %805, %515 : vector<32x256xf32>
    %cst_308 = arith.constant 0.949421703 : f32
    %809 = vector.broadcast %cst_308 : f32 to vector<32x256xf32>
    %810 = arith.mulf %808, %809 : vector<32x256xf32>
    %cst_309 = arith.constant dense<0.000000e+00> : vector<256xf32>
    %811 = vector.multi_reduction <add>, %810, %cst_309 [0] : vector<32x256xf32> to vector<256xf32>
    %812 = vector.shape_cast %811 : vector<256xf32> to vector<1x256xf32>
    %813 = arith.mulf %810, %515 : vector<32x256xf32>
    %cst_310 = arith.constant 0.948465347 : f32
    %814 = vector.broadcast %cst_310 : f32 to vector<32x256xf32>
    %815 = arith.mulf %813, %814 : vector<32x256xf32>
    %cst_311 = arith.constant dense<0.000000e+00> : vector<256xf32>
    %816 = vector.multi_reduction <add>, %815, %cst_311 [0] : vector<32x256xf32> to vector<256xf32>
    %817 = vector.shape_cast %816 : vector<256xf32> to vector<1x256xf32>
    %818 = arith.mulf %815, %515 : vector<32x256xf32>
    %cst_312 = arith.constant 0.947509944 : f32
    %819 = vector.broadcast %cst_312 : f32 to vector<32x256xf32>
    %820 = arith.mulf %818, %819 : vector<32x256xf32>
    %cst_313 = arith.constant dense<0.000000e+00> : vector<256xf32>
    %821 = vector.multi_reduction <add>, %820, %cst_313 [0] : vector<32x256xf32> to vector<256xf32>
    %822 = vector.shape_cast %821 : vector<256xf32> to vector<1x256xf32>
    %823 = arith.mulf %820, %515 : vector<32x256xf32>
    %cst_314 = arith.constant 0.946555495 : f32
    %824 = vector.broadcast %cst_314 : f32 to vector<32x256xf32>
    %825 = arith.mulf %823, %824 : vector<32x256xf32>
    %cst_315 = arith.constant dense<0.000000e+00> : vector<256xf32>
    %826 = vector.multi_reduction <add>, %825, %cst_315 [0] : vector<32x256xf32> to vector<256xf32>
    %827 = vector.shape_cast %826 : vector<256xf32> to vector<1x256xf32>
    %828 = arith.mulf %825, %515 : vector<32x256xf32>
    %cst_316 = arith.constant 0.945602059 : f32
    %829 = vector.broadcast %cst_316 : f32 to vector<32x256xf32>
    %830 = arith.mulf %828, %829 : vector<32x256xf32>
    %cst_317 = arith.constant dense<0.000000e+00> : vector<256xf32>
    %831 = vector.multi_reduction <add>, %830, %cst_317 [0] : vector<32x256xf32> to vector<256xf32>
    %832 = vector.shape_cast %831 : vector<256xf32> to vector<1x256xf32>
    %833 = arith.mulf %830, %515 : vector<32x256xf32>
    %cst_318 = arith.constant 0.944649517 : f32
    %834 = vector.broadcast %cst_318 : f32 to vector<32x256xf32>
    %835 = arith.mulf %833, %834 : vector<32x256xf32>
    %cst_319 = arith.constant dense<0.000000e+00> : vector<256xf32>
    %836 = vector.multi_reduction <add>, %835, %cst_319 [0] : vector<32x256xf32> to vector<256xf32>
    %837 = vector.shape_cast %836 : vector<256xf32> to vector<1x256xf32>
    %838 = arith.mulf %835, %515 : vector<32x256xf32>
    %cst_320 = arith.constant 0.943697988 : f32
    %839 = vector.broadcast %cst_320 : f32 to vector<32x256xf32>
    %840 = arith.mulf %838, %839 : vector<32x256xf32>
    %cst_321 = arith.constant dense<0.000000e+00> : vector<256xf32>
    %841 = vector.multi_reduction <add>, %840, %cst_321 [0] : vector<32x256xf32> to vector<256xf32>
    %842 = vector.shape_cast %841 : vector<256xf32> to vector<1x256xf32>
    %843 = arith.mulf %840, %515 : vector<32x256xf32>
    %cst_322 = arith.constant 0.942747414 : f32
    %844 = vector.broadcast %cst_322 : f32 to vector<32x256xf32>
    %845 = arith.mulf %843, %844 : vector<32x256xf32>
    %cst_323 = arith.constant dense<0.000000e+00> : vector<256xf32>
    %846 = vector.multi_reduction <add>, %845, %cst_323 [0] : vector<32x256xf32> to vector<256xf32>
    %847 = vector.shape_cast %846 : vector<256xf32> to vector<1x256xf32>
    %848 = arith.mulf %845, %515 : vector<32x256xf32>
    %cst_324 = arith.constant 0.941797733 : f32
    %849 = vector.broadcast %cst_324 : f32 to vector<32x256xf32>
    %850 = arith.mulf %848, %849 : vector<32x256xf32>
    %cst_325 = arith.constant dense<0.000000e+00> : vector<256xf32>
    %851 = vector.multi_reduction <add>, %850, %cst_325 [0] : vector<32x256xf32> to vector<256xf32>
    %852 = vector.shape_cast %851 : vector<256xf32> to vector<1x256xf32>
    %853 = arith.mulf %850, %515 : vector<32x256xf32>
    %cst_326 = arith.constant 0.940849066 : f32
    %854 = vector.broadcast %cst_326 : f32 to vector<32x256xf32>
    %855 = arith.mulf %853, %854 : vector<32x256xf32>
    %cst_327 = arith.constant dense<0.000000e+00> : vector<256xf32>
    %856 = vector.multi_reduction <add>, %855, %cst_327 [0] : vector<32x256xf32> to vector<256xf32>
    %857 = vector.shape_cast %856 : vector<256xf32> to vector<1x256xf32>
    %858 = arith.mulf %855, %515 : vector<32x256xf32>
    %cst_328 = arith.constant 0.939901351 : f32
    %859 = vector.broadcast %cst_328 : f32 to vector<32x256xf32>
    %860 = arith.mulf %858, %859 : vector<32x256xf32>
    %cst_329 = arith.constant dense<0.000000e+00> : vector<256xf32>
    %861 = vector.multi_reduction <add>, %860, %cst_329 [0] : vector<32x256xf32> to vector<256xf32>
    %862 = vector.shape_cast %861 : vector<256xf32> to vector<1x256xf32>
    %863 = arith.mulf %860, %515 : vector<32x256xf32>
    %cst_330 = arith.constant 0.938954592 : f32
    %864 = vector.broadcast %cst_330 : f32 to vector<32x256xf32>
    %865 = arith.mulf %863, %864 : vector<32x256xf32>
    %cst_331 = arith.constant dense<0.000000e+00> : vector<256xf32>
    %866 = vector.multi_reduction <add>, %865, %cst_331 [0] : vector<32x256xf32> to vector<256xf32>
    %867 = vector.shape_cast %866 : vector<256xf32> to vector<1x256xf32>
    %868 = tpu.concatenate %792, %797, %802, %807, %812, %817, %822, %827, %832, %837, %842, %847, %852, %857, %862, %867 in 0 : vector<1x256xf32>, vector<1x256xf32>, vector<1x256xf32>, vector<1x256xf32>, vector<1x256xf32>, vector<1x256xf32>, vector<1x256xf32>, vector<1x256xf32>, vector<1x256xf32>, vector<1x256xf32>, vector<1x256xf32>, vector<1x256xf32>, vector<1x256xf32>, vector<1x256xf32>, vector<1x256xf32>, vector<1x256xf32> -> vector<16x256xf32>
    %c48_332 = arith.constant 48 : index
    %c0_333 = arith.constant 0 : index
    %869 = vector.load %arg7[%c48_332, %c0_333] : memref<64x256xf32, #tpu.memory_space<vmem>>, vector<16x256xf32>
    %870 = arith.addf %869, %868 : vector<16x256xf32>
    %c48_334 = arith.constant 48 : index
    %c0_335 = arith.constant 0 : index
    %871 = vector.load %arg7[%c48_334, %c0_335] : memref<64x256xf32, #tpu.memory_space<vmem>>, vector<16x256xf32>
    tpu.vector_store %arg7[%c48_334, %c0_335], %870 {strides = array<i32>} : memref<64x256xf32, #tpu.memory_space<vmem>>, vector<16x256xf32>,
    %c0_i32_336 = arith.constant 0 : i32
    %872 = arith.cmpi eq, %arg0, %c0_i32_336 : i32
    %873 = arith.extui %872 : i1 to i32
    %c0_i32_337 = arith.constant 0 : i32
    %874 = arith.cmpi ne, %873, %c0_i32_337 : i32
    scf.if %874 {
      %c0_338 = arith.constant 0 : index
      %c0_339 = arith.constant 0 : index
      %875 = vector.load %arg6[%c0_338, %c0_339] : memref<64x256xf32, #tpu.memory_space<vmem>>, vector<64x256xf32>
      %cst_340 = arith.constant dense<0.000000e+00> : vector<64xf32>
      %876 = vector.multi_reduction <add>, %875, %cst_340 [1] : vector<64x256xf32> to vector<64xf32>
      %877 = vector.shape_cast %876 : vector<64xf32> to vector<64x1xf32>
      %c0_341 = arith.constant 0 : index
      %c0_342 = arith.constant 0 : index
      %878 = vector.load %arg7[%c0_341, %c0_342] : memref<64x256xf32, #tpu.memory_space<vmem>>, vector<64x256xf32>
      %cst_343 = arith.constant dense<0.000000e+00> : vector<64xf32>
      %879 = vector.multi_reduction <add>, %878, %cst_343 [1] : vector<64x256xf32> to vector<64xf32>
      %880 = vector.shape_cast %879 : vector<64xf32> to vector<64x1xf32>
      %cst_344 = arith.constant dense<0.000000e+00> : vector<1xf32>
      %881 = vector.multi_reduction <add>, %877, %cst_344 [0] : vector<64x1xf32> to vector<1xf32>
      %882 = vector.shape_cast %881 : vector<1xf32> to vector<1x1xf32>
      %883 = vector.broadcast %882 : vector<1x1xf32> to vector<64x1xf32>
      %884 = arith.divf %877, %883 : vector<64x1xf32>
      %cst_345 = arith.constant dense<0.000000e+00> : vector<1xf32>
      %885 = vector.multi_reduction <add>, %880, %cst_345 [0] : vector<64x1xf32> to vector<1xf32>
      %886 = vector.shape_cast %885 : vector<1xf32> to vector<1x1xf32>
      %887 = vector.broadcast %886 : vector<1x1xf32> to vector<64x1xf32>
      %888 = arith.divf %880, %887 : vector<64x1xf32>
      %cst_346 = arith.constant 9.99999996E-13 : f32
      %889 = vector.broadcast %cst_346 : f32 to vector<64x1xf32>
      %890 = arith.addf %888, %889 : vector<64x1xf32>
      %891 = math.log %890 : vector<64x1xf32>
      %cst_347 = arith.constant 9.99999996E-13 : f32
      %892 = vector.broadcast %cst_347 : f32 to vector<64x1xf32>
      %893 = arith.addf %884, %892 : vector<64x1xf32>
      %894 = math.log %893 : vector<64x1xf32>
      %895 = arith.subf %891, %894 : vector<64x1xf32>
      %896 = arith.mulf %888, %895 : vector<64x1xf32>
      %cst_348 = arith.constant dense<0.000000e+00> : vector<1xf32>
      %897 = vector.multi_reduction <add>, %896, %cst_348 [0] : vector<64x1xf32> to vector<1xf32>
      %898 = vector.shape_cast %897 : vector<1xf32> to vector<1x1xf32>
      %cst_349 = arith.constant 0.000000e+00 : f32
      %899 = vector.broadcast %cst_349 : f32 to vector<1x128xf32>
      %900 = vector.broadcast %898 : vector<1x1xf32> to vector<1x128xf32>
      %901 = arith.addf %899, %900 : vector<1x128xf32>
      %c0_350 = arith.constant 0 : index
      %c0_351 = arith.constant 0 : index
      %902 = vector.load %arg5[%c0_350, %c0_351] : memref<1x128xf32, #tpu.memory_space<vmem>>, vector<1x128xf32>
      tpu.vector_store %arg5[%c0_350, %c0_351], %901 {strides = array<i32>} : memref<1x128xf32, #tpu.memory_space<vmem>>, vector<1x128xf32>,
    } else {
    }
    return
  }
  func.func @transform_0(%arg0: i32) -> i32 {
    %c0_i32 = arith.constant 0 : i32
    %c0_i32_0 = arith.constant 0 : i32
    return %c0_i32 : i32
  }
  func.func @transform_1(%arg0: i32) -> (i32, i32) {
    %c0_i32 = arith.constant 0 : i32
    %c0_i32_0 = arith.constant 0 : i32
    return %c0_i32, %arg0 : i32, i32
  }
  func.func @transform_2(%arg0: i32) -> (i32, i32) {
    %c0_i32 = arith.constant 0 : i32
    %c0_i32_0 = arith.constant 0 : i32
    return %c0_i32, %arg0 : i32, i32
  }
  func.func @transform_3(%arg0: i32) -> (i32, i32) {
    %c0_i32 = arith.constant 0 : i32
    %c0_i32_0 = arith.constant 0 : i32
    return %c0_i32, %arg0 : i32, i32
  }
  func.func @transform_4(%arg0: i32) -> (i32, i32) {
    %c0_i32 = arith.constant 0 : i32
    %c0_i32_0 = arith.constant 0 : i32
    %c0_i32_1 = arith.constant 0 : i32
    return %c0_i32, %c0_i32_0 : i32, i32
  }
}

</mosaic_0001>

<llo_original>
// kernel: a_call__.1
$region0: #{a_call__.1}
  #allocation0 [shape = 'u32[]', space=smem, size = 0x4, offset = 0x4, fixed_abs, tag = 'smem constant byte address 0x4 - core index']
  #allocation1 [shape = 'u32[144,128]{1,0:T(1,128)}', space=vmem, size = 0x12000, scoped, tag = 'internal scratch']
  #allocation2 [shape = 'f32[64,256]{1,0:T(8,128)}', space=vmem, size = 0x10000, scoped, tag = 'scratch operand']
  #allocation3 [shape = 'f32[64,256]{1,0:T(8,128)}', space=vmem, size = 0x10000, scoped, tag = 'scratch operand']
  %s0 = inlined_call_operand.vmem [shape: f32[9], index: 0, kind: input, shape index: {}]
  %s1 = inlined_call_operand.vmem [shape: f32[2,256], index: 1, kind: input, shape index: {}]
  %s2 = inlined_call_operand.vmem [shape: f32[32,256], index: 2, kind: input, shape index: {}]
  %s3 = inlined_call_operand.vmem [shape: f32[32,256], index: 3, kind: input, shape index: {}]
  %s4 = inlined_call_operand.hbm [shape: f32[1,128], index: 4, kind: output, shape index: {}]
  %s5 = sld [smem:[#allocation0]]
  $region38: #{a_call__.1} parent=0
    _
  %s7 = ssub.s32 1, %s5
  %s8 = scalar_select 0, %s7, %s5
  $region1: #{a_call__.1} parent=0
    #allocation4 [shape = 'u8[512]{0}', space=smem, size = 0x200, scoped, tag = 'input window, operand 0, single buffered']
    #allocation5 [shape = 's32[1]{0}', space=sflag, size = 0x4, scoped, tag = 'scoped memory for a_call__.1']
    #allocation6 [shape = 's32[1]{0}', space=sflag, size = 0x4, scoped, tag = 'scoped memory for a_call__.1']
    #allocation7 [shape = 'u8[512]{0}', space=vmem, size = 0x400, scoped, tag = 'output window, operand 0, single buffered']
    %9 = vsyncpa [#allocation6], 0
    %10 = vsyncpa [#allocation5], 0
    // Predicated region
    $region2: #{a_call__.1} parent=1 // pred_check
      _
    $region3: #{a_call__.1} parent=1 // pred_check_branch
      %12 = sbr.rel (0) target = $region5
    $region4: #{a_call__.1} parent=1 // pred_region
      %s14 = ssub.s32 16, 16
      %15 = vsyncadd [#allocation6], %s14
      %s17 = sshll.u32 %s0, 4
      %s18 = int_to_ptr.vmem [resolvable:$true] %s17
      %20 = dma.vmem_to_smem %s18, 16, [#allocation4], [#allocation6]
    $region5: #{a_call__.1} parent=1 // pred_fallthru
      _
    // Predicated region
    $region6: #{a_call__.1} parent=1 // pred_check
      _
    $region7: #{a_call__.1} parent=1 // pred_check_branch
      %22 = sbr.rel (0) target = $region9
    $region8: #{a_call__.1} parent=1 // pred_region
      _
    $region9: #{a_call__.1} parent=1 // pred_fallthru
      _
    // Predicated region
    $region10: #{a_call__.1} parent=1 // pred_check
      _
    $region11: #{a_call__.1} parent=1 // pred_check_branch
      %24 = sbr.rel (0) target = $region13
    $region12: #{a_call__.1} parent=1 // pred_region
      _
    $region13: #{a_call__.1} parent=1 // pred_fallthru
      _
    // Predicated region
    $region14: #{a_call__.1} parent=1 // pred_check
      _
    $region15: #{a_call__.1} parent=1 // pred_check_branch
      %26 = sbr.rel (0) target = $region17
    $region16: #{a_call__.1} parent=1 // pred_region
      _
    $region17: #{a_call__.1} parent=1 // pred_fallthru
      _
    // Predicated region
    $region18: #{a_call__.1} parent=1 // pred_check
      _
    $region19: #{a_call__.1} parent=1 // pred_check_branch
      %28 = sbr.rel (0) target = $region21
    $region20: #{a_call__.1} parent=1 // pred_region
      %29 = dma.done [#allocation6], 16
    $region21: #{a_call__.1} parent=1 // pred_fallthru
      _
    %30 = sfence
    %p31 = scmp.eq.s32.totalorder 0, 0
    // Predicated region
    $region22: #{a_call__.1} parent=1 // pred_check
      %p32 = pneg %p31
    $region23: #{a_call__.1} parent=1 // pred_check_branch
      %34 = sbr.rel (%p32) target = $region25
    $region24: #{a_call__.1} parent=1 // pred_region
      %35 = vst [vmem:[#allocation2] sm:$0xff] 0.0
      %36 = vst [vmem:[#allocation2 + $0x8] sm:$0xff] 0.0
      %37 = vst [vmem:[#allocation2 + $0x10] sm:$0xff] 0.0
      %38 = vst [vmem:[#allocation2 + $0x18] sm:$0xff] 0.0
      %39 = vst [vmem:[#allocation2 + $0x20] sm:$0xff] 0.0
      %40 = vst [vmem:[#allocation2 + $0x28] sm:$0xff] 0.0
      %41 = vst [vmem:[#allocation2 + $0x30] sm:$0xff] 0.0
      %42 = vst [vmem:[#allocation2 + $0x38] sm:$0xff] 0.0
      %43 = vst [vmem:[#allocation2 + $0x40] sm:$0xff] 0.0
      %44 = vst [vmem:[#allocation2 + $0x48] sm:$0xff] 0.0
      %45 = vst [vmem:[#allocation2 + $0x50] sm:$0xff] 0.0
      %46 = vst [vmem:[#allocation2 + $0x58] sm:$0xff] 0.0
      %47 = vst [vmem:[#allocation2 + $0x60] sm:$0xff] 0.0
      %48 = vst [vmem:[#allocation2 + $0x68] sm:$0xff] 0.0
      %49 = vst [vmem:[#allocation2 + $0x70] sm:$0xff] 0.0
      %50 = vst [vmem:[#allocation2 + $0x78] sm:$0xff] 0.0
      %51 = vst [vmem:[#allocation3] sm:$0xff] 0.0
      %52 = vst [vmem:[#allocation3 + $0x8] sm:$0xff] 0.0
      %53 = vst [vmem:[#allocation3 + $0x10] sm:$0xff] 0.0
      %54 = vst [vmem:[#allocation3 + $0x18] sm:$0xff] 0.0
      %55 = vst [vmem:[#allocation3 + $0x20] sm:$0xff] 0.0
      %56 = vst [vmem:[#allocation3 + $0x28] sm:$0xff] 0.0
      %57 = vst [vmem:[#allocation3 + $0x30] sm:$0xff] 0.0
      %58 = vst [vmem:[#allocation3 + $0x38] sm:$0xff] 0.0
      %59 = vst [vmem:[#allocation3 + $0x40] sm:$0xff] 0.0
      %60 = vst [vmem:[#allocation3 + $0x48] sm:$0xff] 0.0
      %61 = vst [vmem:[#allocation3 + $0x50] sm:$0xff] 0.0
      %62 = vst [vmem:[#allocation3 + $0x58] sm:$0xff] 0.0
      %63 = vst [vmem:[#allocation3 + $0x60] sm:$0xff] 0.0
      %64 = vst [vmem:[#allocation3 + $0x68] sm:$0xff] 0.0
      %65 = vst [vmem:[#allocation3 + $0x70] sm:$0xff] 0.0
      %66 = vst [vmem:[#allocation3 + $0x78] sm:$0xff] 0.0
    $region25: #{a_call__.1} parent=1 // pred_fallthru
      _
    %v67 = vld [vmem:[%s1] ss:$2 sm:$0x3]
    %s68 = scalar_lea.vmem %s1, 1
    %v69 = vld [vmem:[%s68] ss:$2 sm:$0x3]
    %v70 = vlaneseq
    %v71 = vshrl.u32 %v70, 7
    %v72 = vadd.s32 %v71, 8
    %v73 = vadd.s32 %v71, 16
    %v74 = vadd.s32 %v71, 24
    %vm75 = vcmp.ge.s32.totalorder %v71, 1
    %vm76 = vcmp.ge.s32.totalorder %v72, 1
    %vm77 = vcmp.ge.s32.totalorder %v73, 1
    %vm78 = vcmp.ge.s32.totalorder %v74, 1
    %v79 = vsel %vm75, 1, 0
    %v80 = vsel %vm76, 1, 0
    %v81 = vsel %vm77, 1, 0
    %v82 = vsel %vm78, 1, 0
    %v83 = vcvt.s32.f32 %v79
    %v84 = vcvt.s32.f32 %v80
    %v85 = vcvt.s32.f32 %v81
    %v86 = vcvt.s32.f32 %v82
    %vm87 = vcmp.le.s32.totalorder %v71, 30
    %vm88 = vcmp.le.s32.totalorder %v72, 30
    %vm89 = vcmp.le.s32.totalorder %v73, 30
    %vm90 = vcmp.le.s32.totalorder %v74, 30
    %v91 = vsel %vm87, 1, 0
    %v92 = vsel %vm88, 1, 0
    %v93 = vsel %vm89, 1, 0
    %v94 = vsel %vm90, 1, 0
    %v95 = vcvt.s32.f32 %v91
    %v96 = vcvt.s32.f32 %v92
    %v97 = vcvt.s32.f32 %v93
    %v98 = vcvt.s32.f32 %v94
    %vm99 = vcmp.ge.f32.partialorder %v67, 1.0
    %v100 = vsel %vm99, 1, 0
    %v101 = vcvt.s32.f32 %v100
    %vm102 = vcmp.le.f32.partialorder %v67, 30.0
    %v103 = vsel %vm102, 1, 0
    %v104 = vcvt.s32.f32 %v103
    %v105 = vld [vmem:[%s2] sm:$0xff]
    %v106 = vld [vmem:[%s2 + $0x8] sm:$0xff]
    %v107 = vld [vmem:[%s2 + $0x10] sm:$0xff]
    %v108 = vld [vmem:[%s2 + $0x18] sm:$0xff]
    %v109 = vld [vmem:[%s2 + $0x20] sm:$0xff]
    %v110 = vld [vmem:[%s2 + $0x28] sm:$0xff]
    %v111 = vld [vmem:[%s2 + $0x30] sm:$0xff]
    %v112 = vld [vmem:[%s2 + $0x38] sm:$0xff]
    %v113 = vrot.slane %v105, 7
    %v114 = vrot.slane %v106, 7
    %v115 = vrot.slane %v107, 7
    %v116 = vrot.slane %v108, 7
    %v117 = vrot.slane %v109, 7
    %v118 = vrot.slane %v110, 7
    %v119 = vrot.slane %v111, 7
    %v120 = vrot.slane %v112, 7
    %vm121 = vcmp.lt.s32.totalorder %v71, 1
    %v122 = vsel %vm121, %v117, %v119
    %v123 = vsel %vm121, %v118, %v120
    %v124 = vsel %vm121, %v115, %v117
    %v125 = vsel %vm121, %v116, %v118
    %v126 = vsel %vm121, %v113, %v115
    %v127 = vsel %vm121, %v114, %v116
    %v128 = vsel %vm121, %v119, %v113
    %v129 = vsel %vm121, %v120, %v114
    %130 = vrot.lane.b32.xlu0 %v128, 1
    %v131 = vpop.permute.xlu0 %130
    %132 = vrot.lane.b32.xlu0 %v126, 1
    %v133 = vpop.permute.xlu0 %132
    %134 = vrot.lane.b32.xlu0 %v124, 1
    %v135 = vpop.permute.xlu0 %134
    %136 = vrot.lane.b32.xlu0 %v122, 1
    %v137 = vpop.permute.xlu0 %136
    %138 = vrot.lane.b32.xlu0 %v129, 1
    %v139 = vpop.permute.xlu0 %138
    %140 = vrot.lane.b32.xlu0 %v127, 1
    %v141 = vpop.permute.xlu0 %140
    %142 = vrot.lane.b32.xlu0 %v125, 1
    %v143 = vpop.permute.xlu0 %142
    %144 = vrot.lane.b32.xlu0 %v123, 1
    %v145 = vpop.permute.xlu0 %144
    %v146 = vlaneseq
    %v147 = vand.u32 %v146, 127
    %vm148 = vcmp.lt.s32.totalorder %v147, 1
    %v149 = vsel %vm148, %v131, %v139
    %v150 = vsel %vm148, %v133, %v141
    %v151 = vsel %vm148, %v135, %v143
    %v152 = vsel %vm148, %v137, %v145
    %v153 = vsel %vm148, %v139, %v131
    %v154 = vsel %vm148, %v141, %v133
    %v155 = vsel %vm148, %v143, %v135
    %v156 = vsel %vm148, %v145, %v137
    %v158 = vlaneseq
    %v159 = vshrl.u32 %v158, 7
    %v160 = vsub.s32 0, %v159
    %v161 = vrot.slane %v101, %v160
    %v162 = vlaneseq
    %v163 = vshrl.u32 %v162, 7
    %v164 = vsub.s32 1, %v163
    %v165 = vrot.slane %v101, %v164
    %v168 = vmul.f32 %v83, %v161
    %v169 = vmul.f32 %v83, %v165
    %v170 = vmul.f32 %v84, %v161
    %v171 = vmul.f32 %v84, %v165
    %v172 = vmul.f32 %v85, %v161
    %v173 = vmul.f32 %v85, %v165
    %v174 = vmul.f32 %v86, %v161
    %v175 = vmul.f32 %v86, %v165
    %v176 = vmul.f32 %v153, %v168
    %v177 = vmul.f32 %v149, %v169
    %v178 = vmul.f32 %v154, %v170
    %v179 = vmul.f32 %v150, %v171
    %v180 = vmul.f32 %v155, %v172
    %v181 = vmul.f32 %v151, %v173
    %v182 = vmul.f32 %v156, %v174
    %v183 = vmul.f32 %v152, %v175
    %s184 = sld [smem:[#allocation4]]
    %v185 = vstv %s184
    %v186 = vmul.f32 %v176, %v185
    %v187 = vmul.f32 %v177, %v185
    %v188 = vmul.f32 %v178, %v185
    %v189 = vmul.f32 %v179, %v185
    %v190 = vmul.f32 %v180, %v185
    %v191 = vmul.f32 %v181, %v185
    %v192 = vmul.f32 %v182, %v185
    %v193 = vmul.f32 %v183, %v185
    %v194 = vmul.f32 %v128, %v83
    %v195 = vmul.f32 %v129, %v83
    %v196 = vmul.f32 %v126, %v84
    %v197 = vmul.f32 %v127, %v84
    %v198 = vmul.f32 %v124, %v85
    %v199 = vmul.f32 %v125, %v85
    %v200 = vmul.f32 %v122, %v86
    %v201 = vmul.f32 %v123, %v86
    %s202 = sld [smem:[#allocation4 + $0x1]]
    %v203 = vstv %s202
    %v204 = vmul.f32 %v194, %v203
    %v205 = vmul.f32 %v195, %v203
    %v206 = vmul.f32 %v196, %v203
    %v207 = vmul.f32 %v197, %v203
    %v208 = vmul.f32 %v198, %v203
    %v209 = vmul.f32 %v199, %v203
    %v210 = vmul.f32 %v200, %v203
    %v211 = vmul.f32 %v201, %v203
    %v212 = vadd.f32 %v186, %v204
    %v213 = vadd.f32 %v187, %v205
    %v214 = vadd.f32 %v188, %v206
    %v215 = vadd.f32 %v189, %v207
    %v216 = vadd.f32 %v190, %v208
    %v217 = vadd.f32 %v191, %v209
    %v218 = vadd.f32 %v192, %v210
    %v219 = vadd.f32 %v193, %v211
    %220 = vrot.lane.b32.xlu0 %v128, 127
    %v221 = vpop.permute.xlu0 %220
    %222 = vrot.lane.b32.xlu0 %v126, 127
    %v223 = vpop.permute.xlu0 %222
    %224 = vrot.lane.b32.xlu0 %v124, 127
    %v225 = vpop.permute.xlu0 %224
    %226 = vrot.lane.b32.xlu0 %v122, 127
    %v227 = vpop.permute.xlu0 %226
    %228 = vrot.lane.b32.xlu0 %v129, 127
    %v229 = vpop.permute.xlu0 %228
    %230 = vrot.lane.b32.xlu0 %v127, 127
    %v231 = vpop.permute.xlu0 %230
    %232 = vrot.lane.b32.xlu0 %v125, 127
    %v233 = vpop.permute.xlu0 %232
    %234 = vrot.lane.b32.xlu0 %v123, 127
    %v235 = vpop.permute.xlu0 %234
    %vm236 = vcmp.lt.s32.totalorder %v147, 127
    %v237 = vsel %vm236, %v221, %v229
    %v238 = vsel %vm236, %v223, %v231
    %v239 = vsel %vm236, %v225, %v233
    %v240 = vsel %vm236, %v227, %v235
    %v241 = vsel %vm236, %v229, %v221
    %v242 = vsel %vm236, %v231, %v223
    %v243 = vsel %vm236, %v233, %v225
    %v244 = vsel %vm236, %v235, %v227
    %v246 = vlaneseq
    %v247 = vshrl.u32 %v246, 7
    %v248 = vsub.s32 0, %v247
    %v249 = vrot.slane %v104, %v248
    %v250 = vlaneseq
    %v251 = vshrl.u32 %v250, 7
    %v252 = vsub.s32 1, %v251
    %v253 = vrot.slane %v104, %v252
    %v256 = vmul.f32 %v83, %v249
    %v257 = vmul.f32 %v83, %v253
    %v258 = vmul.f32 %v84, %v249
    %v259 = vmul.f32 %v84, %v253
    %v260 = vmul.f32 %v85, %v249
    %v261 = vmul.f32 %v85, %v253
    %v262 = vmul.f32 %v86, %v249
    %v263 = vmul.f32 %v86, %v253
    %v264 = vmul.f32 %v237, %v256
    %v265 = vmul.f32 %v241, %v257
    %v266 = vmul.f32 %v238, %v258
    %v267 = vmul.f32 %v242, %v259
    %v268 = vmul.f32 %v239, %v260
    %v269 = vmul.f32 %v243, %v261
    %v270 = vmul.f32 %v240, %v262
    %v271 = vmul.f32 %v244, %v263
    %s272 = sld [smem:[#allocation4 + $0x2]]
    %v273 = vstv %s272
    %v274 = vmul.f32 %v264, %v273
    %v275 = vmul.f32 %v265, %v273
    %v276 = vmul.f32 %v266, %v273
    %v277 = vmul.f32 %v267, %v273
    %v278 = vmul.f32 %v268, %v273
    %v279 = vmul.f32 %v269, %v273
    %v280 = vmul.f32 %v270, %v273
    %v281 = vmul.f32 %v271, %v273
    %v282 = vadd.f32 %v212, %v274
    %v283 = vadd.f32 %v213, %v275
    %v284 = vadd.f32 %v214, %v276
    %v285 = vadd.f32 %v215, %v277
    %v286 = vadd.f32 %v216, %v278
    %v287 = vadd.f32 %v217, %v279
    %v288 = vadd.f32 %v218, %v280
    %v289 = vadd.f32 %v219, %v281
    %290 = vrot.lane.b32.xlu0 %v105, 1
    %v291 = vpop.permute.xlu0 %290
    %292 = vrot.lane.b32.xlu0 %v107, 1
    %v293 = vpop.permute.xlu0 %292
    %294 = vrot.lane.b32.xlu0 %v109, 1
    %v295 = vpop.permute.xlu0 %294
    %296 = vrot.lane.b32.xlu0 %v111, 1
    %v297 = vpop.permute.xlu0 %296
    %298 = vrot.lane.b32.xlu0 %v106, 1
    %v299 = vpop.permute.xlu0 %298
    %300 = vrot.lane.b32.xlu0 %v108, 1
    %v301 = vpop.permute.xlu0 %300
    %302 = vrot.lane.b32.xlu0 %v110, 1
    %v303 = vpop.permute.xlu0 %302
    %304 = vrot.lane.b32.xlu0 %v112, 1
    %v305 = vpop.permute.xlu0 %304
    %v306 = vsel %vm148, %v291, %v299
    %v307 = vsel %vm148, %v293, %v301
    %v308 = vsel %vm148, %v295, %v303
    %v309 = vsel %vm148, %v297, %v305
    %v310 = vsel %vm148, %v299, %v291
    %v311 = vsel %vm148, %v301, %v293
    %v312 = vsel %vm148, %v303, %v295
    %v313 = vsel %vm148, %v305, %v297
    %v314 = vmul.f32 %v310, %v161
    %v315 = vmul.f32 %v306, %v165
    %v316 = vmul.f32 %v311, %v161
    %v317 = vmul.f32 %v307, %v165
    %v318 = vmul.f32 %v312, %v161
    %v319 = vmul.f32 %v308, %v165
    %v320 = vmul.f32 %v313, %v161
    %v321 = vmul.f32 %v309, %v165
    %s322 = sld [smem:[#allocation4 + $0x3]]
    %v323 = vstv %s322
    %v324 = vmul.f32 %v314, %v323
    %v325 = vmul.f32 %v315, %v323
    %v326 = vmul.f32 %v316, %v323
    %v327 = vmul.f32 %v317, %v323
    %v328 = vmul.f32 %v318, %v323
    %v329 = vmul.f32 %v319, %v323
    %v330 = vmul.f32 %v320, %v323
    %v331 = vmul.f32 %v321, %v323
    %v332 = vadd.f32 %v282, %v324
    %v333 = vadd.f32 %v283, %v325
    %v334 = vadd.f32 %v284, %v326
    %v335 = vadd.f32 %v285, %v327
    %v336 = vadd.f32 %v286, %v328
    %v337 = vadd.f32 %v287, %v329
    %v338 = vadd.f32 %v288, %v330
    %v339 = vadd.f32 %v289, %v331
    %s340 = sld [smem:[#allocation4 + $0x4]]
    %v341 = vstv %s340
    %v342 = vmul.f32 %v105, %v341
    %v343 = vmul.f32 %v106, %v341
    %v344 = vmul.f32 %v107, %v341
    %v345 = vmul.f32 %v108, %v341
    %v346 = vmul.f32 %v109, %v341
    %v347 = vmul.f32 %v110, %v341
    %v348 = vmul.f32 %v111, %v341
    %v349 = vmul.f32 %v112, %v341
    %v350 = vadd.f32 %v332, %v342
    %v351 = vadd.f32 %v333, %v343
    %v352 = vadd.f32 %v334, %v344
    %v353 = vadd.f32 %v335, %v345
    %v354 = vadd.f32 %v336, %v346
    %v355 = vadd.f32 %v337, %v347
    %v356 = vadd.f32 %v338, %v348
    %v357 = vadd.f32 %v339, %v349
    %358 = vrot.lane.b32.xlu0 %v105, 127
    %v359 = vpop.permute.xlu0 %358
    %360 = vrot.lane.b32.xlu0 %v107, 127
    %v361 = vpop.permute.xlu0 %360
    %362 = vrot.lane.b32.xlu0 %v109, 127
    %v363 = vpop.permute.xlu0 %362
    %364 = vrot.lane.b32.xlu0 %v111, 127
    %v365 = vpop.permute.xlu0 %364
    %366 = vrot.lane.b32.xlu0 %v106, 127
    %v367 = vpop.permute.xlu0 %366
    %368 = vrot.lane.b32.xlu0 %v108, 127
    %v369 = vpop.permute.xlu0 %368
    %370 = vrot.lane.b32.xlu0 %v110, 127
    %v371 = vpop.permute.xlu0 %370
    %372 = vrot.lane.b32.xlu0 %v112, 127
    %v373 = vpop.permute.xlu0 %372
    %v374 = vsel %vm236, %v359, %v367
    %v375 = vsel %vm236, %v361, %v369
    %v376 = vsel %vm236, %v363, %v371
    %v377 = vsel %vm236, %v365, %v373
    %v378 = vsel %vm236, %v367, %v359
    %v379 = vsel %vm236, %v369, %v361
    %v380 = vsel %vm236, %v371, %v363
    %v381 = vsel %vm236, %v373, %v365
    %v382 = vmul.f32 %v374, %v249
    %v383 = vmul.f32 %v378, %v253
    %v384 = vmul.f32 %v375, %v249
    %v385 = vmul.f32 %v379, %v253
    %v386 = vmul.f32 %v376, %v249
    %v387 = vmul.f32 %v380, %v253
    %v388 = vmul.f32 %v377, %v249
    %v389 = vmul.f32 %v381, %v253
    %s390 = sld [smem:[#allocation4 + $0x5]]
    %v391 = vstv %s390
    %v392 = vmul.f32 %v382, %v391
    %v393 = vmul.f32 %v383, %v391
    %v394 = vmul.f32 %v384, %v391
    %v395 = vmul.f32 %v385, %v391
    %v396 = vmul.f32 %v386, %v391
    %v397 = vmul.f32 %v387, %v391
    %v398 = vmul.f32 %v388, %v391
    %v399 = vmul.f32 %v389, %v391
    %v400 = vadd.f32 %v350, %v392
    %v401 = vadd.f32 %v351, %v393
    %v402 = vadd.f32 %v352, %v394
    %v403 = vadd.f32 %v353, %v395
    %v404 = vadd.f32 %v354, %v396
    %v405 = vadd.f32 %v355, %v397
    %v406 = vadd.f32 %v356, %v398
    %v407 = vadd.f32 %v357, %v399
    %v408 = vrot.slane %v105, 1
    %v409 = vrot.slane %v106, 1
    %v410 = vrot.slane %v107, 1
    %v411 = vrot.slane %v108, 1
    %v412 = vrot.slane %v109, 1
    %v413 = vrot.slane %v110, 1
    %v414 = vrot.slane %v111, 1
    %v415 = vrot.slane %v112, 1
    %vm416 = vcmp.lt.s32.totalorder %v71, 7
    %v417 = vsel %vm416, %v412, %v414
    %v418 = vsel %vm416, %v413, %v415
    %v419 = vsel %vm416, %v410, %v412
    %v420 = vsel %vm416, %v411, %v413
    %v421 = vsel %vm416, %v408, %v410
    %v422 = vsel %vm416, %v409, %v411
    %v423 = vsel %vm416, %v414, %v408
    %v424 = vsel %vm416, %v415, %v409
    %425 = vrot.lane.b32.xlu0 %v421, 1
    %v426 = vpop.permute.xlu0 %425
    %427 = vrot.lane.b32.xlu0 %v419, 1
    %v428 = vpop.permute.xlu0 %427
    %429 = vrot.lane.b32.xlu0 %v417, 1
    %v430 = vpop.permute.xlu0 %429
    %431 = vrot.lane.b32.xlu0 %v423, 1
    %v432 = vpop.permute.xlu0 %431
    %433 = vrot.lane.b32.xlu0 %v422, 1
    %v434 = vpop.permute.xlu0 %433
    %435 = vrot.lane.b32.xlu0 %v420, 1
    %v436 = vpop.permute.xlu0 %435
    %437 = vrot.lane.b32.xlu0 %v418, 1
    %v438 = vpop.permute.xlu0 %437
    %439 = vrot.lane.b32.xlu0 %v424, 1
    %v440 = vpop.permute.xlu0 %439
    %v441 = vsel %vm148, %v426, %v434
    %v442 = vsel %vm148, %v428, %v436
    %v443 = vsel %vm148, %v430, %v438
    %v444 = vsel %vm148, %v432, %v440
    %v445 = vsel %vm148, %v434, %v426
    %v446 = vsel %vm148, %v436, %v428
    %v447 = vsel %vm148, %v438, %v430
    %v448 = vsel %vm148, %v440, %v432
    %v449 = vmul.f32 %v95, %v161
    %v450 = vmul.f32 %v95, %v165
    %v451 = vmul.f32 %v96, %v161
    %v452 = vmul.f32 %v96, %v165
    %v453 = vmul.f32 %v97, %v161
    %v454 = vmul.f32 %v97, %v165
    %v455 = vmul.f32 %v98, %v161
    %v456 = vmul.f32 %v98, %v165
    %v457 = vmul.f32 %v445, %v449
    %v458 = vmul.f32 %v441, %v450
    %v459 = vmul.f32 %v446, %v451
    %v460 = vmul.f32 %v442, %v452
    %v461 = vmul.f32 %v447, %v453
    %v462 = vmul.f32 %v443, %v454
    %v463 = vmul.f32 %v448, %v455
    %v464 = vmul.f32 %v444, %v456
    %s465 = sld [smem:[#allocation4 + $0x6]]
    %v466 = vstv %s465
    %v467 = vmul.f32 %v457, %v466
    %v468 = vmul.f32 %v458, %v466
    %v469 = vmul.f32 %v459, %v466
    %v470 = vmul.f32 %v460, %v466
    %v471 = vmul.f32 %v461, %v466
    %v472 = vmul.f32 %v462, %v466
    %v473 = vmul.f32 %v463, %v466
    %v474 = vmul.f32 %v464, %v466
    %v475 = vadd.f32 %v400, %v467
    %v476 = vadd.f32 %v401, %v468
    %v477 = vadd.f32 %v402, %v469
    %v478 = vadd.f32 %v403, %v470
    %v479 = vadd.f32 %v404, %v471
    %v480 = vadd.f32 %v405, %v472
    %v481 = vadd.f32 %v406, %v473
    %v482 = vadd.f32 %v407, %v474
    %v483 = vmul.f32 %v421, %v95
    %v484 = vmul.f32 %v422, %v95
    %v485 = vmul.f32 %v419, %v96
    %v486 = vmul.f32 %v420, %v96
    %v487 = vmul.f32 %v417, %v97
    %v488 = vmul.f32 %v418, %v97
    %v489 = vmul.f32 %v423, %v98
    %v490 = vmul.f32 %v424, %v98
    %s491 = sld [smem:[#allocation4 + $0x7]]
    %v492 = vstv %s491
    %v493 = vmul.f32 %v483, %v492
    %v494 = vmul.f32 %v484, %v492
    %v495 = vmul.f32 %v485, %v492
    %v496 = vmul.f32 %v486, %v492
    %v497 = vmul.f32 %v487, %v492
    %v498 = vmul.f32 %v488, %v492
    %v499 = vmul.f32 %v489, %v492
    %v500 = vmul.f32 %v490, %v492
    %v501 = vadd.f32 %v475, %v493
    %v502 = vadd.f32 %v476, %v494
    %v503 = vadd.f32 %v477, %v495
    %v504 = vadd.f32 %v478, %v496
    %v505 = vadd.f32 %v479, %v497
    %v506 = vadd.f32 %v480, %v498
    %v507 = vadd.f32 %v481, %v499
    %v508 = vadd.f32 %v482, %v500
    %509 = vrot.lane.b32.xlu0 %v421, 127
    %v510 = vpop.permute.xlu0 %509
    %511 = vrot.lane.b32.xlu0 %v419, 127
    %v512 = vpop.permute.xlu0 %511
    %513 = vrot.lane.b32.xlu0 %v417, 127
    %v514 = vpop.permute.xlu0 %513
    %515 = vrot.lane.b32.xlu0 %v423, 127
    %v516 = vpop.permute.xlu0 %515
    %517 = vrot.lane.b32.xlu0 %v422, 127
    %v518 = vpop.permute.xlu0 %517
    %519 = vrot.lane.b32.xlu0 %v420, 127
    %v520 = vpop.permute.xlu0 %519
    %521 = vrot.lane.b32.xlu0 %v418, 127
    %v522 = vpop.permute.xlu0 %521
    %523 = vrot.lane.b32.xlu0 %v424, 127
    %v524 = vpop.permute.xlu0 %523
    %v525 = vsel %vm236, %v510, %v518
    %v526 = vsel %vm236, %v512, %v520
    %v527 = vsel %vm236, %v514, %v522
    %v528 = vsel %vm236, %v516, %v524
    %v529 = vsel %vm236, %v518, %v510
    %v530 = vsel %vm236, %v520, %v512
    %v531 = vsel %vm236, %v522, %v514
    %v532 = vsel %vm236, %v524, %v516
    %v533 = vmul.f32 %v95, %v249
    %v534 = vmul.f32 %v95, %v253
    %v535 = vmul.f32 %v96, %v249
    %v536 = vmul.f32 %v96, %v253
    %v537 = vmul.f32 %v97, %v249
    %v538 = vmul.f32 %v97, %v253
    %v539 = vmul.f32 %v98, %v249
    %v540 = vmul.f32 %v98, %v253
    %v541 = vmul.f32 %v525, %v533
    %v542 = vmul.f32 %v529, %v534
    %v543 = vmul.f32 %v526, %v535
    %v544 = vmul.f32 %v530, %v536
    %v545 = vmul.f32 %v527, %v537
    %v546 = vmul.f32 %v531, %v538
    %v547 = vmul.f32 %v528, %v539
    %v548 = vmul.f32 %v532, %v540
    %s549 = sld [smem:[#allocation4 + $0x8]]
    %v550 = vstv %s549
    %v551 = vmul.f32 %v541, %v550
    %v552 = vmul.f32 %v542, %v550
    %v553 = vmul.f32 %v543, %v550
    %v554 = vmul.f32 %v544, %v550
    %v555 = vmul.f32 %v545, %v550
    %v556 = vmul.f32 %v546, %v550
    %v557 = vmul.f32 %v547, %v550
    %v558 = vmul.f32 %v548, %v550
    %v559 = vadd.f32 %v501, %v551
    %v560 = vadd.f32 %v502, %v552
    %v561 = vadd.f32 %v503, %v553
    %v562 = vadd.f32 %v504, %v554
    %v563 = vadd.f32 %v505, %v555
    %v564 = vadd.f32 %v506, %v556
    %v565 = vadd.f32 %v507, %v557
    %v566 = vadd.f32 %v508, %v558
    %v567 = vmul.f32 %v559, 0.06349207
    %v568 = vmul.f32 %v560, 0.06349207
    %v569 = vmul.f32 %v561, 0.06349207
    %v570 = vmul.f32 %v562, 0.06349207
    %v571 = vmul.f32 %v563, 0.06349207
    %v572 = vmul.f32 %v564, 0.06349207
    %v573 = vmul.f32 %v565, 0.06349207
    %v574 = vmul.f32 %v566, 0.06349207
    %v575 = vmul.f32 %v567, 1.442695
    %v576 = vpow.pop %v575
    %v577 = vmul.f32 %v568, 1.442695
    %v578 = vpow.pop %v577
    %v579 = vmul.f32 %v569, 1.442695
    %v580 = vpow.pop %v579
    %v581 = vmul.f32 %v570, 1.442695
    %v582 = vpow.pop %v581
    %v583 = vmul.f32 %v571, 1.442695
    %v584 = vpow.pop %v583
    %v585 = vmul.f32 %v572, 1.442695
    %v586 = vpow.pop %v585
    %v587 = vmul.f32 %v573, 1.442695
    %v588 = vpow.pop %v587
    %v589 = vmul.f32 %v574, 1.442695
    %v590 = vpow.pop %v589
    %v591 = vmul.f32 %v559, %v559
    %v592 = vmul.f32 %v560, %v560
    %v593 = vmul.f32 %v561, %v561
    %v594 = vmul.f32 %v562, %v562
    %v595 = vmul.f32 %v563, %v563
    %v596 = vmul.f32 %v564, %v564
    %v597 = vmul.f32 %v565, %v565
    %v598 = vmul.f32 %v566, %v566
    %v599 = vmul.f32 %v591, -2.0
    %v600 = vmul.f32 %v592, -2.0
    %v601 = vmul.f32 %v593, -2.0
    %v602 = vmul.f32 %v594, -2.0
    %v603 = vmul.f32 %v595, -2.0
    %v604 = vmul.f32 %v596, -2.0
    %v605 = vmul.f32 %v597, -2.0
    %v606 = vmul.f32 %v598, -2.0
    %v607 = vmul.f32 %v599, 1.442695
    %v608 = vpow.pop %v607
    %v609 = vmul.f32 %v600, 1.442695
    %v610 = vpow.pop %v609
    %v611 = vmul.f32 %v601, 1.442695
    %v612 = vpow.pop %v611
    %v613 = vmul.f32 %v602, 1.442695
    %v614 = vpow.pop %v613
    %v615 = vmul.f32 %v603, 1.442695
    %v616 = vpow.pop %v615
    %v617 = vmul.f32 %v604, 1.442695
    %v618 = vpow.pop %v617
    %v619 = vmul.f32 %v605, 1.442695
    %v620 = vpow.pop %v619
    %v621 = vmul.f32 %v606, 1.442695
    %v622 = vpow.pop %v621
    %v624 = vlaneseq
    %v625 = vshrl.u32 %v624, 7
    %v626 = vsub.s32 0, %v625
    %v627 = vrot.slane %v69, %v626
    %v628 = vlaneseq
    %v629 = vshrl.u32 %v628, 7
    %v630 = vsub.s32 1, %v629
    %v631 = vrot.slane %v69, %v630
    %v634 = vmul.f32 %v608, %v627
    %v635 = vmul.f32 %v610, %v631
    %v636 = vmul.f32 %v612, %v627
    %v637 = vmul.f32 %v614, %v631
    %v638 = vmul.f32 %v616, %v627
    %v639 = vmul.f32 %v618, %v631
    %v640 = vmul.f32 %v620, %v627
    %v641 = vmul.f32 %v622, %v631
    %v642 = vadd.f32 %v634, %v636
    %v643 = vadd.f32 %v642, %v638
    %v644 = vadd.f32 %v643, %v640
    %v645 = vrot.slane %v644, 4
    %v646 = vadd.f32 %v644, %v645
    %v647 = vrot.slane %v646, 2
    %v648 = vadd.f32 %v646, %v647
    %v649 = vrot.slane %v648, 1
    %v650 = vadd.f32 %v648, %v649
    %v651 = vadd.f32 %v635, %v637
    %v652 = vadd.f32 %v651, %v639
    %v653 = vadd.f32 %v652, %v641
    %v654 = vrot.slane %v653, 4
    %v655 = vadd.f32 %v653, %v654
    %v656 = vrot.slane %v655, 2
    %v657 = vadd.f32 %v655, %v656
    %v658 = vrot.slane %v657, 1
    %v659 = vadd.f32 %v657, %v658
    %v660 = vmul.f32 %v634, %v576
    %v661 = vmul.f32 %v635, %v578
    %v662 = vmul.f32 %v636, %v580
    %v663 = vmul.f32 %v637, %v582
    %v664 = vmul.f32 %v638, %v584
    %v665 = vmul.f32 %v639, %v586
    %v666 = vmul.f32 %v640, %v588
    %v667 = vmul.f32 %v641, %v590
    %v668 = vmul.f32 %v660, 0.9994962
    %v669 = vmul.f32 %v661, 0.9994962
    %v670 = vmul.f32 %v662, 0.9994962
    %v671 = vmul.f32 %v663, 0.9994962
    %v672 = vmul.f32 %v664, 0.9994962
    %v673 = vmul.f32 %v665, 0.9994962
    %v674 = vmul.f32 %v666, 0.9994962
    %v675 = vmul.f32 %v667, 0.9994962
    %v676 = vadd.f32 %v668, %v670
    %v677 = vadd.f32 %v676, %v672
    %v678 = vadd.f32 %v677, %v674
    %v679 = vrot.slane %v678, 4
    %v680 = vadd.f32 %v678, %v679
    %v681 = vrot.slane %v680, 2
    %v682 = vadd.f32 %v680, %v681
    %v683 = vrot.slane %v682, 1
    %v684 = vadd.f32 %v682, %v683
    %v685 = vadd.f32 %v669, %v671
    %v686 = vadd.f32 %v685, %v673
    %v687 = vadd.f32 %v686, %v675
    %v688 = vrot.slane %v687, 4
    %v689 = vadd.f32 %v687, %v688
    %v690 = vrot.slane %v689, 2
    %v691 = vadd.f32 %v689, %v690
    %v692 = vrot.slane %v691, 1
    %v693 = vadd.f32 %v691, %v692
    %v694 = vmul.f32 %v668, %v576
    %v695 = vmul.f32 %v669, %v578
    %v696 = vmul.f32 %v670, %v580
    %v697 = vmul.f32 %v671, %v582
    %v698 = vmul.f32 %v672, %v584
    %v699 = vmul.f32 %v673, %v586
    %v700 = vmul.f32 %v674, %v588
    %v701 = vmul.f32 %v675, %v590
    %v702 = vmul.f32 %v694, 0.99848944
    %v703 = vmul.f32 %v695, 0.99848944
    %v704 = vmul.f32 %v696, 0.99848944
    %v705 = vmul.f32 %v697, 0.99848944
    %v706 = vmul.f32 %v698, 0.99848944
    %v707 = vmul.f32 %v699, 0.99848944
    %v708 = vmul.f32 %v700, 0.99848944
    %v709 = vmul.f32 %v701, 0.99848944
    %v710 = vadd.f32 %v702, %v704
    %v711 = vadd.f32 %v710, %v706
    %v712 = vadd.f32 %v711, %v708
    %v713 = vrot.slane %v712, 4
    %v714 = vadd.f32 %v712, %v713
    %v715 = vrot.slane %v714, 2
    %v716 = vadd.f32 %v714, %v715
    %v717 = vrot.slane %v716, 1
    %v718 = vadd.f32 %v716, %v717
    %v719 = vadd.f32 %v703, %v705
    %v720 = vadd.f32 %v719, %v707
    %v721 = vadd.f32 %v720, %v709
    %v722 = vrot.slane %v721, 4
    %v723 = vadd.f32 %v721, %v722
    %v724 = vrot.slane %v723, 2
    %v725 = vadd.f32 %v723, %v724
    %v726 = vrot.slane %v725, 1
    %v727 = vadd.f32 %v725, %v726
    %v728 = vmul.f32 %v702, %v576
    %v729 = vmul.f32 %v703, %v578
    %v730 = vmul.f32 %v704, %v580
    %v731 = vmul.f32 %v705, %v582
    %v732 = vmul.f32 %v706, %v584
    %v733 = vmul.f32 %v707, %v586
    %v734 = vmul.f32 %v708, %v588
    %v735 = vmul.f32 %v709, %v590
    %v736 = vmul.f32 %v728, 0.9974837
    %v737 = vmul.f32 %v729, 0.9974837
    %v738 = vmul.f32 %v730, 0.9974837
    %v739 = vmul.f32 %v731, 0.9974837
    %v740 = vmul.f32 %v732, 0.9974837
    %v741 = vmul.f32 %v733, 0.9974837
    %v742 = vmul.f32 %v734, 0.9974837
    %v743 = vmul.f32 %v735, 0.9974837
    %v744 = vadd.f32 %v736, %v738
    %v745 = vadd.f32 %v744, %v740
    %v746 = vadd.f32 %v745, %v742
    %v747 = vrot.slane %v746, 4
    %v748 = vadd.f32 %v746, %v747
    %v749 = vrot.slane %v748, 2
    %v750 = vadd.f32 %v748, %v749
    %v751 = vrot.slane %v750, 1
    %v752 = vadd.f32 %v750, %v751
    %v753 = vadd.f32 %v737, %v739
    %v754 = vadd.f32 %v753, %v741
    %v755 = vadd.f32 %v754, %v743
    %v756 = vrot.slane %v755, 4
    %v757 = vadd.f32 %v755, %v756
    %v758 = vrot.slane %v757, 2
    %v759 = vadd.f32 %v757, %v758
    %v760 = vrot.slane %v759, 1
    %v761 = vadd.f32 %v759, %v760
    %v762 = vmul.f32 %v736, %v576
    %v763 = vmul.f32 %v737, %v578
    %v764 = vmul.f32 %v738, %v580
    %v765 = vmul.f32 %v739, %v582
    %v766 = vmul.f32 %v740, %v584
    %v767 = vmul.f32 %v741, %v586
    %v768 = vmul.f32 %v742, %v588
    %v769 = vmul.f32 %v743, %v590
    %v770 = vmul.f32 %v762, 0.99647886
    %v771 = vmul.f32 %v763, 0.99647886
    %v772 = vmul.f32 %v764, 0.99647886
    %v773 = vmul.f32 %v765, 0.99647886
    %v774 = vmul.f32 %v766, 0.99647886
    %v775 = vmul.f32 %v767, 0.99647886
    %v776 = vmul.f32 %v768, 0.99647886
    %v777 = vmul.f32 %v769, 0.99647886
    %v778 = vadd.f32 %v770, %v772
    %v779 = vadd.f32 %v778, %v774
    %v780 = vadd.f32 %v779, %v776
    %v781 = vrot.slane %v780, 4
    %v782 = vadd.f32 %v780, %v781
    %v783 = vrot.slane %v782, 2
    %v784 = vadd.f32 %v782, %v783
    %v785 = vrot.slane %v784, 1
    %v786 = vadd.f32 %v784, %v785
    %v787 = vadd.f32 %v771, %v773
    %v788 = vadd.f32 %v787, %v775
    %v789 = vadd.f32 %v788, %v777
    %v790 = vrot.slane %v789, 4
    %v791 = vadd.f32 %v789, %v790
    %v792 = vrot.slane %v791, 2
    %v793 = vadd.f32 %v791, %v792
    %v794 = vrot.slane %v793, 1
    %v795 = vadd.f32 %v793, %v794
    %v796 = vmul.f32 %v770, %v576
    %v797 = vmul.f32 %v771, %v578
    %v798 = vmul.f32 %v772, %v580
    %v799 = vmul.f32 %v773, %v582
    %v800 = vmul.f32 %v774, %v584
    %v801 = vmul.f32 %v775, %v586
    %v802 = vmul.f32 %v776, %v588
    %v803 = vmul.f32 %v777, %v590
    %v804 = vmul.f32 %v796, 0.9954751
    %v805 = vmul.f32 %v797, 0.9954751
    %v806 = vmul.f32 %v798, 0.9954751
    %v807 = vmul.f32 %v799, 0.9954751
    %v808 = vmul.f32 %v800, 0.9954751
    %v809 = vmul.f32 %v801, 0.9954751
    %v810 = vmul.f32 %v802, 0.9954751
    %v811 = vmul.f32 %v803, 0.9954751
    %v812 = vadd.f32 %v804, %v806
    %v813 = vadd.f32 %v812, %v808
    %v814 = vadd.f32 %v813, %v810
    %v815 = vrot.slane %v814, 4
    %v816 = vadd.f32 %v814, %v815
    %v817 = vrot.slane %v816, 2
    %v818 = vadd.f32 %v816, %v817
    %v819 = vrot.slane %v818, 1
    %v820 = vadd.f32 %v818, %v819
    %v821 = vadd.f32 %v805, %v807
    %v822 = vadd.f32 %v821, %v809
    %v823 = vadd.f32 %v822, %v811
    %v824 = vrot.slane %v823, 4
    %v825 = vadd.f32 %v823, %v824
    %v826 = vrot.slane %v825, 2
    %v827 = vadd.f32 %v825, %v826
    %v828 = vrot.slane %v827, 1
    %v829 = vadd.f32 %v827, %v828
    %v830 = vmul.f32 %v804, %v576
    %v831 = vmul.f32 %v805, %v578
    %v832 = vmul.f32 %v806, %v580
    %v833 = vmul.f32 %v807, %v582
    %v834 = vmul.f32 %v808, %v584
    %v835 = vmul.f32 %v809, %v586
    %v836 = vmul.f32 %v810, %v588
    %v837 = vmul.f32 %v811, %v590
    %v838 = vmul.f32 %v830, 0.9944724
    %v839 = vmul.f32 %v831, 0.9944724
    %v840 = vmul.f32 %v832, 0.9944724
    %v841 = vmul.f32 %v833, 0.9944724
    %v842 = vmul.f32 %v834, 0.9944724
    %v843 = vmul.f32 %v835, 0.9944724
    %v844 = vmul.f32 %v836, 0.9944724
    %v845 = vmul.f32 %v837, 0.9944724
    %v846 = vadd.f32 %v838, %v840
    %v847 = vadd.f32 %v846, %v842
    %v848 = vadd.f32 %v847, %v844
    %v849 = vrot.slane %v848, 4
    %v850 = vadd.f32 %v848, %v849
    %v851 = vrot.slane %v850, 2
    %v852 = vadd.f32 %v850, %v851
    %v853 = vrot.slane %v852, 1
    %v854 = vadd.f32 %v852, %v853
    %v855 = vadd.f32 %v839, %v841
    %v856 = vadd.f32 %v855, %v843
    %v857 = vadd.f32 %v856, %v845
    %v858 = vrot.slane %v857, 4
    %v859 = vadd.f32 %v857, %v858
    %v860 = vrot.slane %v859, 2
    %v861 = vadd.f32 %v859, %v860
    %v862 = vrot.slane %v861, 1
    %v863 = vadd.f32 %v861, %v862
    %v864 = vmul.f32 %v838, %v576
    %v865 = vmul.f32 %v839, %v578
    %v866 = vmul.f32 %v840, %v580
    %v867 = vmul.f32 %v841, %v582
    %v868 = vmul.f32 %v842, %v584
    %v869 = vmul.f32 %v843, %v586
    %v870 = vmul.f32 %v844, %v588
    %v871 = vmul.f32 %v845, %v590
    %v872 = vmul.f32 %v864, 0.99347067
    %v873 = vmul.f32 %v865, 0.99347067
    %v874 = vmul.f32 %v866, 0.99347067
    %v875 = vmul.f32 %v867, 0.99347067
    %v876 = vmul.f32 %v868, 0.99347067
    %v877 = vmul.f32 %v869, 0.99347067
    %v878 = vmul.f32 %v870, 0.99347067
    %v879 = vmul.f32 %v871, 0.99347067
    %v880 = vadd.f32 %v872, %v874
    %v881 = vadd.f32 %v880, %v876
    %v882 = vadd.f32 %v881, %v878
    %v883 = vrot.slane %v882, 4
    %v884 = vadd.f32 %v882, %v883
    %v885 = vrot.slane %v884, 2
    %v886 = vadd.f32 %v884, %v885
    %v887 = vrot.slane %v886, 1
    %v888 = vadd.f32 %v886, %v887
    %v889 = vadd.f32 %v873, %v875
    %v890 = vadd.f32 %v889, %v877
    %v891 = vadd.f32 %v890, %v879
    %v892 = vrot.slane %v891, 4
    %v893 = vadd.f32 %v891, %v892
    %v894 = vrot.slane %v893, 2
    %v895 = vadd.f32 %v893, %v894
    %v896 = vrot.slane %v895, 1
    %v897 = vadd.f32 %v895, %v896
    %v898 = vmul.f32 %v872, %v576
    %v899 = vmul.f32 %v873, %v578
    %v900 = vmul.f32 %v874, %v580
    %v901 = vmul.f32 %v875, %v582
    %v902 = vmul.f32 %v876, %v584
    %v903 = vmul.f32 %v877, %v586
    %v904 = vmul.f32 %v878, %v588
    %v905 = vmul.f32 %v879, %v590
    %v906 = vmul.f32 %v898, 0.9924699
    %v907 = vmul.f32 %v899, 0.9924699
    %v908 = vmul.f32 %v900, 0.9924699
    %v909 = vmul.f32 %v901, 0.9924699
    %v910 = vmul.f32 %v902, 0.9924699
    %v911 = vmul.f32 %v903, 0.9924699
    %v912 = vmul.f32 %v904, 0.9924699
    %v913 = vmul.f32 %v905, 0.9924699
    %v914 = vadd.f32 %v906, %v908
    %v915 = vadd.f32 %v914, %v910
    %v916 = vadd.f32 %v915, %v912
    %v917 = vrot.slane %v916, 4
    %v918 = vadd.f32 %v916, %v917
    %v919 = vrot.slane %v918, 2
    %v920 = vadd.f32 %v918, %v919
    %v921 = vrot.slane %v920, 1
    %v922 = vadd.f32 %v920, %v921
    %v923 = vadd.f32 %v907, %v909
    %v924 = vadd.f32 %v923, %v911
    %v925 = vadd.f32 %v924, %v913
    %v926 = vrot.slane %v925, 4
    %v927 = vadd.f32 %v925, %v926
    %v928 = vrot.slane %v927, 2
    %v929 = vadd.f32 %v927, %v928
    %v930 = vrot.slane %v929, 1
    %v931 = vadd.f32 %v929, %v930
    %v932 = vmul.f32 %v906, %v576
    %v933 = vmul.f32 %v907, %v578
    %v934 = vmul.f32 %v908, %v580
    %v935 = vmul.f32 %v909, %v582
    %v936 = vmul.f32 %v910, %v584
    %v937 = vmul.f32 %v911, %v586
    %v938 = vmul.f32 %v912, %v588
    %v939 = vmul.f32 %v913, %v590
    %v940 = vmul.f32 %v932, 0.9914702
    %v941 = vmul.f32 %v933, 0.9914702
    %v942 = vmul.f32 %v934, 0.9914702
    %v943 = vmul.f32 %v935, 0.9914702
    %v944 = vmul.f32 %v936, 0.9914702
    %v945 = vmul.f32 %v937, 0.9914702
    %v946 = vmul.f32 %v938, 0.9914702
    %v947 = vmul.f32 %v939, 0.9914702
    %v948 = vadd.f32 %v940, %v942
    %v949 = vadd.f32 %v948, %v944
    %v950 = vadd.f32 %v949, %v946
    %v951 = vrot.slane %v950, 4
    %v952 = vadd.f32 %v950, %v951
    %v953 = vrot.slane %v952, 2
    %v954 = vadd.f32 %v952, %v953
    %v955 = vrot.slane %v954, 1
    %v956 = vadd.f32 %v954, %v955
    %v957 = vadd.f32 %v941, %v943
    %v958 = vadd.f32 %v957, %v945
    %v959 = vadd.f32 %v958, %v947
    %v960 = vrot.slane %v959, 4
    %v961 = vadd.f32 %v959, %v960
    %v962 = vrot.slane %v961, 2
    %v963 = vadd.f32 %v961, %v962
    %v964 = vrot.slane %v963, 1
    %v965 = vadd.f32 %v963, %v964
    %v966 = vmul.f32 %v940, %v576
    %v967 = vmul.f32 %v941, %v578
    %v968 = vmul.f32 %v942, %v580
    %v969 = vmul.f32 %v943, %v582
    %v970 = vmul.f32 %v944, %v584
    %v971 = vmul.f32 %v945, %v586
    %v972 = vmul.f32 %v946, %v588
    %v973 = vmul.f32 %v947, %v590
    %v974 = vmul.f32 %v966, 0.9904715
    %v975 = vmul.f32 %v967, 0.9904715
    %v976 = vmul.f32 %v968, 0.9904715
    %v977 = vmul.f32 %v969, 0.9904715
    %v978 = vmul.f32 %v970, 0.9904715
    %v979 = vmul.f32 %v971, 0.9904715
    %v980 = vmul.f32 %v972, 0.9904715
    %v981 = vmul.f32 %v973, 0.9904715
    %v982 = vadd.f32 %v974, %v976
    %v983 = vadd.f32 %v982, %v978
    %v984 = vadd.f32 %v983, %v980
    %v985 = vrot.slane %v984, 4
    %v986 = vadd.f32 %v984, %v985
    %v987 = vrot.slane %v986, 2
    %v988 = vadd.f32 %v986, %v987
    %v989 = vrot.slane %v988, 1
    %v990 = vadd.f32 %v988, %v989
    %v991 = vadd.f32 %v975, %v977
    %v992 = vadd.f32 %v991, %v979
    %v993 = vadd.f32 %v992, %v981
    %v994 = vrot.slane %v993, 4
    %v995 = vadd.f32 %v993, %v994
    %v996 = vrot.slane %v995, 2
    %v997 = vadd.f32 %v995, %v996
    %v998 = vrot.slane %v997, 1
    %v999 = vadd.f32 %v997, %v998
    %v1000 = vmul.f32 %v974, %v576
    %v1001 = vmul.f32 %v975, %v578
    %v1002 = vmul.f32 %v976, %v580
    %v1003 = vmul.f32 %v977, %v582
    %v1004 = vmul.f32 %v978, %v584
    %v1005 = vmul.f32 %v979, %v586
    %v1006 = vmul.f32 %v980, %v588
    %v1007 = vmul.f32 %v981, %v590
    %v1008 = vmul.f32 %v1000, 0.98947376
    %v1009 = vmul.f32 %v1001, 0.98947376
    %v1010 = vmul.f32 %v1002, 0.98947376
    %v1011 = vmul.f32 %v1003, 0.98947376
    %v1012 = vmul.f32 %v1004, 0.98947376
    %v1013 = vmul.f32 %v1005, 0.98947376
    %v1014 = vmul.f32 %v1006, 0.98947376
    %v1015 = vmul.f32 %v1007, 0.98947376
    %v1016 = vadd.f32 %v1008, %v1010
    %v1017 = vadd.f32 %v1016, %v1012
    %v1018 = vadd.f32 %v1017, %v1014
    %v1019 = vrot.slane %v1018, 4
    %v1020 = vadd.f32 %v1018, %v1019
    %v1021 = vrot.slane %v1020, 2
    %v1022 = vadd.f32 %v1020, %v1021
    %v1023 = vrot.slane %v1022, 1
    %v1024 = vadd.f32 %v1022, %v1023
    %v1025 = vadd.f32 %v1009, %v1011
    %v1026 = vadd.f32 %v1025, %v1013
    %v1027 = vadd.f32 %v1026, %v1015
    %v1028 = vrot.slane %v1027, 4
    %v1029 = vadd.f32 %v1027, %v1028
    %v1030 = vrot.slane %v1029, 2
    %v1031 = vadd.f32 %v1029, %v1030
    %v1032 = vrot.slane %v1031, 1
    %v1033 = vadd.f32 %v1031, %v1032
    %v1034 = vmul.f32 %v1008, %v576
    %v1035 = vmul.f32 %v1009, %v578
    %v1036 = vmul.f32 %v1010, %v580
    %v1037 = vmul.f32 %v1011, %v582
    %v1038 = vmul.f32 %v1012, %v584
    %v1039 = vmul.f32 %v1013, %v586
    %v1040 = vmul.f32 %v1014, %v588
    %v1041 = vmul.f32 %v1015, %v590
    %v1042 = vmul.f32 %v1034, 0.9884771
    %v1043 = vmul.f32 %v1035, 0.9884771
    %v1044 = vmul.f32 %v1036, 0.9884771
    %v1045 = vmul.f32 %v1037, 0.9884771
    %v1046 = vmul.f32 %v1038, 0.9884771
    %v1047 = vmul.f32 %v1039, 0.9884771
    %v1048 = vmul.f32 %v1040, 0.9884771
    %v1049 = vmul.f32 %v1041, 0.9884771
    %v1050 = vadd.f32 %v1042, %v1044
    %v1051 = vadd.f32 %v1050, %v1046
    %v1052 = vadd.f32 %v1051, %v1048
    %v1053 = vrot.slane %v1052, 4
    %v1054 = vadd.f32 %v1052, %v1053
    %v1055 = vrot.slane %v1054, 2
    %v1056 = vadd.f32 %v1054, %v1055
    %v1057 = vrot.slane %v1056, 1
    %v1058 = vadd.f32 %v1056, %v1057
    %v1059 = vadd.f32 %v1043, %v1045
    %v1060 = vadd.f32 %v1059, %v1047
    %v1061 = vadd.f32 %v1060, %v1049
    %v1062 = vrot.slane %v1061, 4
    %v1063 = vadd.f32 %v1061, %v1062
    %v1064 = vrot.slane %v1063, 2
    %v1065 = vadd.f32 %v1063, %v1064
    %v1066 = vrot.slane %v1065, 1
    %v1067 = vadd.f32 %v1065, %v1066
    %v1068 = vmul.f32 %v1042, %v576
    %v1069 = vmul.f32 %v1043, %v578
    %v1070 = vmul.f32 %v1044, %v580
    %v1071 = vmul.f32 %v1045, %v582
    %v1072 = vmul.f32 %v1046, %v584
    %v1073 = vmul.f32 %v1047, %v586
    %v1074 = vmul.f32 %v1048, %v588
    %v1075 = vmul.f32 %v1049, %v590
    %v1076 = vmul.f32 %v1068, 0.9874814
    %v1077 = vmul.f32 %v1069, 0.9874814
    %v1078 = vmul.f32 %v1070, 0.9874814
    %v1079 = vmul.f32 %v1071, 0.9874814
    %v1080 = vmul.f32 %v1072, 0.9874814
    %v1081 = vmul.f32 %v1073, 0.9874814
    %v1082 = vmul.f32 %v1074, 0.9874814
    %v1083 = vmul.f32 %v1075, 0.9874814
    %v1084 = vadd.f32 %v1076, %v1078
    %v1085 = vadd.f32 %v1084, %v1080
    %v1086 = vadd.f32 %v1085, %v1082
    %v1087 = vrot.slane %v1086, 4
    %v1088 = vadd.f32 %v1086, %v1087
    %v1089 = vrot.slane %v1088, 2
    %v1090 = vadd.f32 %v1088, %v1089
    %v1091 = vrot.slane %v1090, 1
    %v1092 = vadd.f32 %v1090, %v1091
    %v1093 = vadd.f32 %v1077, %v1079
    %v1094 = vadd.f32 %v1093, %v1081
    %v1095 = vadd.f32 %v1094, %v1083
    %v1096 = vrot.slane %v1095, 4
    %v1097 = vadd.f32 %v1095, %v1096
    %v1098 = vrot.slane %v1097, 2
    %v1099 = vadd.f32 %v1097, %v1098
    %v1100 = vrot.slane %v1099, 1
    %v1101 = vadd.f32 %v1099, %v1100
    %v1102 = vmul.f32 %v1076, %v576
    %v1103 = vmul.f32 %v1077, %v578
    %v1104 = vmul.f32 %v1078, %v580
    %v1105 = vmul.f32 %v1079, %v582
    %v1106 = vmul.f32 %v1080, %v584
    %v1107 = vmul.f32 %v1081, %v586
    %v1108 = vmul.f32 %v1082, %v588
    %v1109 = vmul.f32 %v1083, %v590
    %v1110 = vmul.f32 %v1102, 0.9864867
    %v1111 = vmul.f32 %v1103, 0.9864867
    %v1112 = vmul.f32 %v1104, 0.9864867
    %v1113 = vmul.f32 %v1105, 0.9864867
    %v1114 = vmul.f32 %v1106, 0.9864867
    %v1115 = vmul.f32 %v1107, 0.9864867
    %v1116 = vmul.f32 %v1108, 0.9864867
    %v1117 = vmul.f32 %v1109, 0.9864867
    %v1118 = vadd.f32 %v1110, %v1112
    %v1119 = vadd.f32 %v1118, %v1114
    %v1120 = vadd.f32 %v1119, %v1116
    %v1121 = vrot.slane %v1120, 4
    %v1122 = vadd.f32 %v1120, %v1121
    %v1123 = vrot.slane %v1122, 2
    %v1124 = vadd.f32 %v1122, %v1123
    %v1125 = vrot.slane %v1124, 1
    %v1126 = vadd.f32 %v1124, %v1125
    %v1127 = vadd.f32 %v1111, %v1113
    %v1128 = vadd.f32 %v1127, %v1115
    %v1129 = vadd.f32 %v1128, %v1117
    %v1130 = vrot.slane %v1129, 4
    %v1131 = vadd.f32 %v1129, %v1130
    %v1132 = vrot.slane %v1131, 2
    %v1133 = vadd.f32 %v1131, %v1132
    %v1134 = vrot.slane %v1133, 1
    %v1135 = vadd.f32 %v1133, %v1134
    %v1136 = vmul.f32 %v1110, %v576
    %v1137 = vmul.f32 %v1111, %v578
    %v1138 = vmul.f32 %v1112, %v580
    %v1139 = vmul.f32 %v1113, %v582
    %v1140 = vmul.f32 %v1114, %v584
    %v1141 = vmul.f32 %v1115, %v586
    %v1142 = vmul.f32 %v1116, %v588
    %v1143 = vmul.f32 %v1117, %v590
    %v1144 = vmul.f32 %v1136, 0.985493
    %v1145 = vmul.f32 %v1137, 0.985493
    %v1146 = vmul.f32 %v1138, 0.985493
    %v1147 = vmul.f32 %v1139, 0.985493
    %v1148 = vmul.f32 %v1140, 0.985493
    %v1149 = vmul.f32 %v1141, 0.985493
    %v1150 = vmul.f32 %v1142, 0.985493
    %v1151 = vmul.f32 %v1143, 0.985493
    %v1152 = vadd.f32 %v1144, %v1146
    %v1153 = vadd.f32 %v1152, %v1148
    %v1154 = vadd.f32 %v1153, %v1150
    %v1155 = vrot.slane %v1154, 4
    %v1156 = vadd.f32 %v1154, %v1155
    %v1157 = vrot.slane %v1156, 2
    %v1158 = vadd.f32 %v1156, %v1157
    %v1159 = vrot.slane %v1158, 1
    %v1160 = vadd.f32 %v1158, %v1159
    %v1161 = vadd.f32 %v1145, %v1147
    %v1162 = vadd.f32 %v1161, %v1149
    %v1163 = vadd.f32 %v1162, %v1151
    %v1164 = vrot.slane %v1163, 4
    %v1165 = vadd.f32 %v1163, %v1164
    %v1166 = vrot.slane %v1165, 2
    %v1167 = vadd.f32 %v1165, %v1166
    %v1168 = vrot.slane %v1167, 1
    %v1169 = vadd.f32 %v1167, %v1168
    %vm1170 = vcmask 1040384
    %v1171 = vsel %vm1170, %v650, %v684
    %v1172 = vsel %vm1170, %v659, %v693
    %vm1173 = vcmask 1041408
    %v1174 = vsel %vm1173, %v1171, %v718
    %v1175 = vsel %vm1173, %v1172, %v727
    %vm1176 = vcmask 1042432
    %v1177 = vsel %vm1176, %v1174, %v752
    %v1178 = vsel %vm1176, %v1175, %v761
    %vm1179 = vcmask 1043456
    %v1180 = vsel %vm1179, %v1177, %v786
    %v1181 = vsel %vm1179, %v1178, %v795
    %vm1182 = vcmask 1044480
    %v1183 = vsel %vm1182, %v1180, %v820
    %v1184 = vsel %vm1182, %v1181, %v829
    %vm1185 = vcmask 1045504
    %v1186 = vsel %vm1185, %v1183, %v854
    %v1187 = vsel %vm1185, %v1184, %v863
    %vm1188 = vcmask 1046528
    %v1189 = vsel %vm1188, %v1186, %v888
    %v1190 = vsel %vm1188, %v1187, %v897
    %v1191 = vsel %vm1170, %v922, %v956
    %v1192 = vsel %vm1170, %v931, %v965
    %v1193 = vsel %vm1173, %v1191, %v990
    %v1194 = vsel %vm1173, %v1192, %v999
    %v1195 = vsel %vm1176, %v1193, %v1024
    %v1196 = vsel %vm1176, %v1194, %v1033
    %v1197 = vsel %vm1179, %v1195, %v1058
    %v1198 = vsel %vm1179, %v1196, %v1067
    %v1199 = vsel %vm1182, %v1197, %v1092
    %v1200 = vsel %vm1182, %v1198, %v1101
    %v1201 = vsel %vm1185, %v1199, %v1126
    %v1202 = vsel %vm1185, %v1200, %v1135
    %v1203 = vsel %vm1188, %v1201, %v1160
    %v1204 = vsel %vm1188, %v1202, %v1169
    %v1205 = vld [vmem:[#allocation2] sm:$0xff]
    %v1206 = vld [vmem:[#allocation2 + $0x8] sm:$0xff]
    %v1207 = vld [vmem:[#allocation2 + $0x10] sm:$0xff]
    %v1208 = vld [vmem:[#allocation2 + $0x18] sm:$0xff]
    %v1209 = vadd.f32 %v1205, %v1189
    %v1210 = vadd.f32 %v1206, %v1190
    %v1211 = vadd.f32 %v1207, %v1203
    %v1212 = vadd.f32 %v1208, %v1204
    %1213 = vst [vmem:[#allocation2] sm:$0xff] %v1209
    %1214 = vst [vmem:[#allocation2 + $0x8] sm:$0xff] %v1210
    %1215 = vst [vmem:[#allocation2 + $0x10] sm:$0xff] %v1211
    %1216 = vst [vmem:[#allocation2 + $0x18] sm:$0xff] %v1212
    %v1217 = vsub.f32 %v559, 0.25396827
    %v1218 = vsub.f32 %v560, 0.25396827
    %v1219 = vsub.f32 %v561, 0.25396827
    %v1220 = vsub.f32 %v562, 0.25396827
    %v1221 = vsub.f32 %v563, 0.25396827
    %v1222 = vsub.f32 %v564, 0.25396827
    %v1223 = vsub.f32 %v565, 0.25396827
    %v1224 = vsub.f32 %v566, 0.25396827
    %v1225 = vmul.f32 %v1217, %v1217
    %v1226 = vmul.f32 %v1218, %v1218
    %v1227 = vmul.f32 %v1219, %v1219
    %v1228 = vmul.f32 %v1220, %v1220
    %v1229 = vmul.f32 %v1221, %v1221
    %v1230 = vmul.f32 %v1222, %v1222
    %v1231 = vmul.f32 %v1223, %v1223
    %v1232 = vmul.f32 %v1224, %v1224
    %v1233 = vmul.f32 %v1225, -2.0
    %v1234 = vmul.f32 %v1226, -2.0
    %v1235 = vmul.f32 %v1227, -2.0
    %v1236 = vmul.f32 %v1228, -2.0
    %v1237 = vmul.f32 %v1229, -2.0
    %v1238 = vmul.f32 %v1230, -2.0
    %v1239 = vmul.f32 %v1231, -2.0
    %v1240 = vmul.f32 %v1232, -2.0
    %v1241 = vmul.f32 %v1233, 1.442695
    %v1242 = vpow.pop %v1241
    %v1243 = vmul.f32 %v1234, 1.442695
    %v1244 = vpow.pop %v1243
    %v1245 = vmul.f32 %v1235, 1.442695
    %v1246 = vpow.pop %v1245
    %v1247 = vmul.f32 %v1236, 1.442695
    %v1248 = vpow.pop %v1247
    %v1249 = vmul.f32 %v1237, 1.442695
    %v1250 = vpow.pop %v1249
    %v1251 = vmul.f32 %v1238, 1.442695
    %v1252 = vpow.pop %v1251
    %v1253 = vmul.f32 %v1239, 1.442695
    %v1254 = vpow.pop %v1253
    %v1255 = vmul.f32 %v1240, 1.442695
    %v1256 = vpow.pop %v1255
    %v1257 = vmul.f32 %v1242, %v627
    %v1258 = vmul.f32 %v1244, %v631
    %v1259 = vmul.f32 %v1246, %v627
    %v1260 = vmul.f32 %v1248, %v631
    %v1261 = vmul.f32 %v1250, %v627
    %v1262 = vmul.f32 %v1252, %v631
    %v1263 = vmul.f32 %v1254, %v627
    %v1264 = vmul.f32 %v1256, %v631
    %v1265 = vadd.f32 %v1257, %v1259
    %v1266 = vadd.f32 %v1265, %v1261
    %v1267 = vadd.f32 %v1266, %v1263
    %v1268 = vrot.slane %v1267, 4
    %v1269 = vadd.f32 %v1267, %v1268
    %v1270 = vrot.slane %v1269, 2
    %v1271 = vadd.f32 %v1269, %v1270
    %v1272 = vrot.slane %v1271, 1
    %v1273 = vadd.f32 %v1271, %v1272
    %v1274 = vadd.f32 %v1258, %v1260
    %v1275 = vadd.f32 %v1274, %v1262
    %v1276 = vadd.f32 %v1275, %v1264
    %v1277 = vrot.slane %v1276, 4
    %v1278 = vadd.f32 %v1276, %v1277
    %v1279 = vrot.slane %v1278, 2
    %v1280 = vadd.f32 %v1278, %v1279
    %v1281 = vrot.slane %v1280, 1
    %v1282 = vadd.f32 %v1280, %v1281
    %v1283 = vmul.f32 %v1257, %v576
    %v1284 = vmul.f32 %v1258, %v578
    %v1285 = vmul.f32 %v1259, %v580
    %v1286 = vmul.f32 %v1260, %v582
    %v1287 = vmul.f32 %v1261, %v584
    %v1288 = vmul.f32 %v1262, %v586
    %v1289 = vmul.f32 %v1263, %v588
    %v1290 = vmul.f32 %v1264, %v590
    %v1291 = vmul.f32 %v1283, 0.98350865
    %v1292 = vmul.f32 %v1284, 0.98350865
    %v1293 = vmul.f32 %v1285, 0.98350865
    %v1294 = vmul.f32 %v1286, 0.98350865
    %v1295 = vmul.f32 %v1287, 0.98350865
    %v1296 = vmul.f32 %v1288, 0.98350865
    %v1297 = vmul.f32 %v1289, 0.98350865
    %v1298 = vmul.f32 %v1290, 0.98350865
    %v1299 = vadd.f32 %v1291, %v1293
    %v1300 = vadd.f32 %v1299, %v1295
    %v1301 = vadd.f32 %v1300, %v1297
    %v1302 = vrot.slane %v1301, 4
    %v1303 = vadd.f32 %v1301, %v1302
    %v1304 = vrot.slane %v1303, 2
    %v1305 = vadd.f32 %v1303, %v1304
    %v1306 = vrot.slane %v1305, 1
    %v1307 = vadd.f32 %v1305, %v1306
    %v1308 = vadd.f32 %v1292, %v1294
    %v1309 = vadd.f32 %v1308, %v1296
    %v1310 = vadd.f32 %v1309, %v1298
    %v1311 = vrot.slane %v1310, 4
    %v1312 = vadd.f32 %v1310, %v1311
    %v1313 = vrot.slane %v1312, 2
    %v1314 = vadd.f32 %v1312, %v1313
    %v1315 = vrot.slane %v1314, 1
    %v1316 = vadd.f32 %v1314, %v1315
    %v1317 = vmul.f32 %v1291, %v576
    %v1318 = vmul.f32 %v1292, %v578
    %v1319 = vmul.f32 %v1293, %v580
    %v1320 = vmul.f32 %v1294, %v582
    %v1321 = vmul.f32 %v1295, %v584
    %v1322 = vmul.f32 %v1296, %v586
    %v1323 = vmul.f32 %v1297, %v588
    %v1324 = vmul.f32 %v1298, %v590
    %v1325 = vmul.f32 %v1317, 0.98251796
    %v1326 = vmul.f32 %v1318, 0.98251796
    %v1327 = vmul.f32 %v1319, 0.98251796
    %v1328 = vmul.f32 %v1320, 0.98251796
    %v1329 = vmul.f32 %v1321, 0.98251796
    %v1330 = vmul.f32 %v1322, 0.98251796
    %v1331 = vmul.f32 %v1323, 0.98251796
    %v1332 = vmul.f32 %v1324, 0.98251796
    %v1333 = vadd.f32 %v1325, %v1327
    %v1334 = vadd.f32 %v1333, %v1329
    %v1335 = vadd.f32 %v1334, %v1331
    %v1336 = vrot.slane %v1335, 4
    %v1337 = vadd.f32 %v1335, %v1336
    %v1338 = vrot.slane %v1337, 2
    %v1339 = vadd.f32 %v1337, %v1338
    %v1340 = vrot.slane %v1339, 1
    %v1341 = vadd.f32 %v1339, %v1340
    %v1342 = vadd.f32 %v1326, %v1328
    %v1343 = vadd.f32 %v1342, %v1330
    %v1344 = vadd.f32 %v1343, %v1332
    %v1345 = vrot.slane %v1344, 4
    %v1346 = vadd.f32 %v1344, %v1345
    %v1347 = vrot.slane %v1346, 2
    %v1348 = vadd.f32 %v1346, %v1347
    %v1349 = vrot.slane %v1348, 1
    %v1350 = vadd.f32 %v1348, %v1349
    %v1351 = vmul.f32 %v1325, %v576
    %v1352 = vmul.f32 %v1326, %v578
    %v1353 = vmul.f32 %v1327, %v580
    %v1354 = vmul.f32 %v1328, %v582
    %v1355 = vmul.f32 %v1329, %v584
    %v1356 = vmul.f32 %v1330, %v586
    %v1357 = vmul.f32 %v1331, %v588
    %v1358 = vmul.f32 %v1332, %v590
    %v1359 = vmul.f32 %v1351, 0.9815282
    %v1360 = vmul.f32 %v1352, 0.9815282
    %v1361 = vmul.f32 %v1353, 0.9815282
    %v1362 = vmul.f32 %v1354, 0.9815282
    %v1363 = vmul.f32 %v1355, 0.9815282
    %v1364 = vmul.f32 %v1356, 0.9815282
    %v1365 = vmul.f32 %v1357, 0.9815282
    %v1366 = vmul.f32 %v1358, 0.9815282
    %v1367 = vadd.f32 %v1359, %v1361
    %v1368 = vadd.f32 %v1367, %v1363
    %v1369 = vadd.f32 %v1368, %v1365
    %v1370 = vrot.slane %v1369, 4
    %v1371 = vadd.f32 %v1369, %v1370
    %v1372 = vrot.slane %v1371, 2
    %v1373 = vadd.f32 %v1371, %v1372
    %v1374 = vrot.slane %v1373, 1
    %v1375 = vadd.f32 %v1373, %v1374
    %v1376 = vadd.f32 %v1360, %v1362
    %v1377 = vadd.f32 %v1376, %v1364
    %v1378 = vadd.f32 %v1377, %v1366
    %v1379 = vrot.slane %v1378, 4
    %v1380 = vadd.f32 %v1378, %v1379
    %v1381 = vrot.slane %v1380, 2
    %v1382 = vadd.f32 %v1380, %v1381
    %v1383 = vrot.slane %v1382, 1
    %v1384 = vadd.f32 %v1382, %v1383
    %v1385 = vmul.f32 %v1359, %v576
    %v1386 = vmul.f32 %v1360, %v578
    %v1387 = vmul.f32 %v1361, %v580
    %v1388 = vmul.f32 %v1362, %v582
    %v1389 = vmul.f32 %v1363, %v584
    %v1390 = vmul.f32 %v1364, %v586
    %v1391 = vmul.f32 %v1365, %v588
    %v1392 = vmul.f32 %v1366, %v590
    %v1393 = vmul.f32 %v1385, 0.98053956
    %v1394 = vmul.f32 %v1386, 0.98053956
    %v1395 = vmul.f32 %v1387, 0.98053956
    %v1396 = vmul.f32 %v1388, 0.98053956
    %v1397 = vmul.f32 %v1389, 0.98053956
    %v1398 = vmul.f32 %v1390, 0.98053956
    %v1399 = vmul.f32 %v1391, 0.98053956
    %v1400 = vmul.f32 %v1392, 0.98053956
    %v1401 = vadd.f32 %v1393, %v1395
    %v1402 = vadd.f32 %v1401, %v1397
    %v1403 = vadd.f32 %v1402, %v1399
    %v1404 = vrot.slane %v1403, 4
    %v1405 = vadd.f32 %v1403, %v1404
    %v1406 = vrot.slane %v1405, 2
    %v1407 = vadd.f32 %v1405, %v1406
    %v1408 = vrot.slane %v1407, 1
    %v1409 = vadd.f32 %v1407, %v1408
    %v1410 = vadd.f32 %v1394, %v1396
    %v1411 = vadd.f32 %v1410, %v1398
    %v1412 = vadd.f32 %v1411, %v1400
    %v1413 = vrot.slane %v1412, 4
    %v1414 = vadd.f32 %v1412, %v1413
    %v1415 = vrot.slane %v1414, 2
    %v1416 = vadd.f32 %v1414, %v1415
    %v1417 = vrot.slane %v1416, 1
    %v1418 = vadd.f32 %v1416, %v1417
    %v1419 = vmul.f32 %v1393, %v576
    %v1420 = vmul.f32 %v1394, %v578
    %v1421 = vmul.f32 %v1395, %v580
    %v1422 = vmul.f32 %v1396, %v582
    %v1423 = vmul.f32 %v1397, %v584
    %v1424 = vmul.f32 %v1398, %v586
    %v1425 = vmul.f32 %v1399, %v588
    %v1426 = vmul.f32 %v1400, %v590
    %v1427 = vmul.f32 %v1419, 0.97955185
    %v1428 = vmul.f32 %v1420, 0.97955185
    %v1429 = vmul.f32 %v1421, 0.97955185
    %v1430 = vmul.f32 %v1422, 0.97955185
    %v1431 = vmul.f32 %v1423, 0.97955185
    %v1432 = vmul.f32 %v1424, 0.97955185
    %v1433 = vmul.f32 %v1425, 0.97955185
    %v1434 = vmul.f32 %v1426, 0.97955185
    %v1435 = vadd.f32 %v1427, %v1429
    %v1436 = vadd.f32 %v1435, %v1431
    %v1437 = vadd.f32 %v1436, %v1433
    %v1438 = vrot.slane %v1437, 4
    %v1439 = vadd.f32 %v1437, %v1438
    %v1440 = vrot.slane %v1439, 2
    %v1441 = vadd.f32 %v1439, %v1440
    %v1442 = vrot.slane %v1441, 1
    %v1443 = vadd.f32 %v1441, %v1442
    %v1444 = vadd.f32 %v1428, %v1430
    %v1445 = vadd.f32 %v1444, %v1432
    %v1446 = vadd.f32 %v1445, %v1434
    %v1447 = vrot.slane %v1446, 4
    %v1448 = vadd.f32 %v1446, %v1447
    %v1449 = vrot.slane %v1448, 2
    %v1450 = vadd.f32 %v1448, %v1449
    %v1451 = vrot.slane %v1450, 1
    %v1452 = vadd.f32 %v1450, %v1451
    %v1453 = vmul.f32 %v1427, %v576
    %v1454 = vmul.f32 %v1428, %v578
    %v1455 = vmul.f32 %v1429, %v580
    %v1456 = vmul.f32 %v1430, %v582
    %v1457 = vmul.f32 %v1431, %v584
    %v1458 = vmul.f32 %v1432, %v586
    %v1459 = vmul.f32 %v1433, %v588
    %v1460 = vmul.f32 %v1434, %v590
    %v1461 = vmul.f32 %v1453, 0.97856516
    %v1462 = vmul.f32 %v1454, 0.97856516
    %v1463 = vmul.f32 %v1455, 0.97856516
    %v1464 = vmul.f32 %v1456, 0.97856516
    %v1465 = vmul.f32 %v1457, 0.97856516
    %v1466 = vmul.f32 %v1458, 0.97856516
    %v1467 = vmul.f32 %v1459, 0.97856516
    %v1468 = vmul.f32 %v1460, 0.97856516
    %v1469 = vadd.f32 %v1461, %v1463
    %v1470 = vadd.f32 %v1469, %v1465
    %v1471 = vadd.f32 %v1470, %v1467
    %v1472 = vrot.slane %v1471, 4
    %v1473 = vadd.f32 %v1471, %v1472
    %v1474 = vrot.slane %v1473, 2
    %v1475 = vadd.f32 %v1473, %v1474
    %v1476 = vrot.slane %v1475, 1
    %v1477 = vadd.f32 %v1475, %v1476
    %v1478 = vadd.f32 %v1462, %v1464
    %v1479 = vadd.f32 %v1478, %v1466
    %v1480 = vadd.f32 %v1479, %v1468
    %v1481 = vrot.slane %v1480, 4
    %v1482 = vadd.f32 %v1480, %v1481
    %v1483 = vrot.slane %v1482, 2
    %v1484 = vadd.f32 %v1482, %v1483
    %v1485 = vrot.slane %v1484, 1
    %v1486 = vadd.f32 %v1484, %v1485
    %v1487 = vmul.f32 %v1461, %v576
    %v1488 = vmul.f32 %v1462, %v578
    %v1489 = vmul.f32 %v1463, %v580
    %v1490 = vmul.f32 %v1464, %v582
    %v1491 = vmul.f32 %v1465, %v584
    %v1492 = vmul.f32 %v1466, %v586
    %v1493 = vmul.f32 %v1467, %v588
    %v1494 = vmul.f32 %v1468, %v590
    %v1495 = vmul.f32 %v1487, 0.9775794
    %v1496 = vmul.f32 %v1488, 0.9775794
    %v1497 = vmul.f32 %v1489, 0.9775794
    %v1498 = vmul.f32 %v1490, 0.9775794
    %v1499 = vmul.f32 %v1491, 0.9775794
    %v1500 = vmul.f32 %v1492, 0.9775794
    %v1501 = vmul.f32 %v1493, 0.9775794
    %v1502 = vmul.f32 %v1494, 0.9775794
    %v1503 = vadd.f32 %v1495, %v1497
    %v1504 = vadd.f32 %v1503, %v1499
    %v1505 = vadd.f32 %v1504, %v1501
    %v1506 = vrot.slane %v1505, 4
    %v1507 = vadd.f32 %v1505, %v1506
    %v1508 = vrot.slane %v1507, 2
    %v1509 = vadd.f32 %v1507, %v1508
    %v1510 = vrot.slane %v1509, 1
    %v1511 = vadd.f32 %v1509, %v1510
    %v1512 = vadd.f32 %v1496, %v1498
    %v1513 = vadd.f32 %v1512, %v1500
    %v1514 = vadd.f32 %v1513, %v1502
    %v1515 = vrot.slane %v1514, 4
    %v1516 = vadd.f32 %v1514, %v1515
    %v1517 = vrot.slane %v1516, 2
    %v1518 = vadd.f32 %v1516, %v1517
    %v1519 = vrot.slane %v1518, 1
    %v1520 = vadd.f32 %v1518, %v1519
    %v1521 = vmul.f32 %v1495, %v576
    %v1522 = vmul.f32 %v1496, %v578
    %v1523 = vmul.f32 %v1497, %v580
    %v1524 = vmul.f32 %v1498, %v582
    %v1525 = vmul.f32 %v1499, %v584
    %v1526 = vmul.f32 %v1500, %v586
    %v1527 = vmul.f32 %v1501, %v588
    %v1528 = vmul.f32 %v1502, %v590
    %v1529 = vmul.f32 %v1521, 0.9765947
    %v1530 = vmul.f32 %v1522, 0.9765947
    %v1531 = vmul.f32 %v1523, 0.9765947
    %v1532 = vmul.f32 %v1524, 0.9765947
    %v1533 = vmul.f32 %v1525, 0.9765947
    %v1534 = vmul.f32 %v1526, 0.9765947
    %v1535 = vmul.f32 %v1527, 0.9765947
    %v1536 = vmul.f32 %v1528, 0.9765947
    %v1537 = vadd.f32 %v1529, %v1531
    %v1538 = vadd.f32 %v1537, %v1533
    %v1539 = vadd.f32 %v1538, %v1535
    %v1540 = vrot.slane %v1539, 4
    %v1541 = vadd.f32 %v1539, %v1540
    %v1542 = vrot.slane %v1541, 2
    %v1543 = vadd.f32 %v1541, %v1542
    %v1544 = vrot.slane %v1543, 1
    %v1545 = vadd.f32 %v1543, %v1544
    %v1546 = vadd.f32 %v1530, %v1532
    %v1547 = vadd.f32 %v1546, %v1534
    %v1548 = vadd.f32 %v1547, %v1536
    %v1549 = vrot.slane %v1548, 4
    %v1550 = vadd.f32 %v1548, %v1549
    %v1551 = vrot.slane %v1550, 2
    %v1552 = vadd.f32 %v1550, %v1551
    %v1553 = vrot.slane %v1552, 1
    %v1554 = vadd.f32 %v1552, %v1553
    %v1555 = vmul.f32 %v1529, %v576
    %v1556 = vmul.f32 %v1530, %v578
    %v1557 = vmul.f32 %v1531, %v580
    %v1558 = vmul.f32 %v1532, %v582
    %v1559 = vmul.f32 %v1533, %v584
    %v1560 = vmul.f32 %v1534, %v586
    %v1561 = vmul.f32 %v1535, %v588
    %v1562 = vmul.f32 %v1536, %v590
    %v1563 = vmul.f32 %v1555, 0.975611
    %v1564 = vmul.f32 %v1556, 0.975611
    %v1565 = vmul.f32 %v1557, 0.975611
    %v1566 = vmul.f32 %v1558, 0.975611
    %v1567 = vmul.f32 %v1559, 0.975611
    %v1568 = vmul.f32 %v1560, 0.975611
    %v1569 = vmul.f32 %v1561, 0.975611
    %v1570 = vmul.f32 %v1562, 0.975611
    %v1571 = vadd.f32 %v1563, %v1565
    %v1572 = vadd.f32 %v1571, %v1567
    %v1573 = vadd.f32 %v1572, %v1569
    %v1574 = vrot.slane %v1573, 4
    %v1575 = vadd.f32 %v1573, %v1574
    %v1576 = vrot.slane %v1575, 2
    %v1577 = vadd.f32 %v1575, %v1576
    %v1578 = vrot.slane %v1577, 1
    %v1579 = vadd.f32 %v1577, %v1578
    %v1580 = vadd.f32 %v1564, %v1566
    %v1581 = vadd.f32 %v1580, %v1568
    %v1582 = vadd.f32 %v1581, %v1570
    %v1583 = vrot.slane %v1582, 4
    %v1584 = vadd.f32 %v1582, %v1583
    %v1585 = vrot.slane %v1584, 2
    %v1586 = vadd.f32 %v1584, %v1585
    %v1587 = vrot.slane %v1586, 1
    %v1588 = vadd.f32 %v1586, %v1587
    %v1589 = vmul.f32 %v1563, %v576
    %v1590 = vmul.f32 %v1564, %v578
    %v1591 = vmul.f32 %v1565, %v580
    %v1592 = vmul.f32 %v1566, %v582
    %v1593 = vmul.f32 %v1567, %v584
    %v1594 = vmul.f32 %v1568, %v586
    %v1595 = vmul.f32 %v1569, %v588
    %v1596 = vmul.f32 %v1570, %v590
    %v1597 = vmul.f32 %v1589, 0.97462827
    %v1598 = vmul.f32 %v1590, 0.97462827
    %v1599 = vmul.f32 %v1591, 0.97462827
    %v1600 = vmul.f32 %v1592, 0.97462827
    %v1601 = vmul.f32 %v1593, 0.97462827
    %v1602 = vmul.f32 %v1594, 0.97462827
    %v1603 = vmul.f32 %v1595, 0.97462827
    %v1604 = vmul.f32 %v1596, 0.97462827
    %v1605 = vadd.f32 %v1597, %v1599
    %v1606 = vadd.f32 %v1605, %v1601
    %v1607 = vadd.f32 %v1606, %v1603
    %v1608 = vrot.slane %v1607, 4
    %v1609 = vadd.f32 %v1607, %v1608
    %v1610 = vrot.slane %v1609, 2
    %v1611 = vadd.f32 %v1609, %v1610
    %v1612 = vrot.slane %v1611, 1
    %v1613 = vadd.f32 %v1611, %v1612
    %v1614 = vadd.f32 %v1598, %v1600
    %v1615 = vadd.f32 %v1614, %v1602
    %v1616 = vadd.f32 %v1615, %v1604
    %v1617 = vrot.slane %v1616, 4
    %v1618 = vadd.f32 %v1616, %v1617
    %v1619 = vrot.slane %v1618, 2
    %v1620 = vadd.f32 %v1618, %v1619
    %v1621 = vrot.slane %v1620, 1
    %v1622 = vadd.f32 %v1620, %v1621
    %v1623 = vmul.f32 %v1597, %v576
    %v1624 = vmul.f32 %v1598, %v578
    %v1625 = vmul.f32 %v1599, %v580
    %v1626 = vmul.f32 %v1600, %v582
    %v1627 = vmul.f32 %v1601, %v584
    %v1628 = vmul.f32 %v1602, %v586
    %v1629 = vmul.f32 %v1603, %v588
    %v1630 = vmul.f32 %v1604, %v590
    %v1631 = vmul.f32 %v1623, 0.9736465
    %v1632 = vmul.f32 %v1624, 0.9736465
    %v1633 = vmul.f32 %v1625, 0.9736465
    %v1634 = vmul.f32 %v1626, 0.9736465
    %v1635 = vmul.f32 %v1627, 0.9736465
    %v1636 = vmul.f32 %v1628, 0.9736465
    %v1637 = vmul.f32 %v1629, 0.9736465
    %v1638 = vmul.f32 %v1630, 0.9736465
    %v1639 = vadd.f32 %v1631, %v1633
    %v1640 = vadd.f32 %v1639, %v1635
    %v1641 = vadd.f32 %v1640, %v1637
    %v1642 = vrot.slane %v1641, 4
    %v1643 = vadd.f32 %v1641, %v1642
    %v1644 = vrot.slane %v1643, 2
    %v1645 = vadd.f32 %v1643, %v1644
    %v1646 = vrot.slane %v1645, 1
    %v1647 = vadd.f32 %v1645, %v1646
    %v1648 = vadd.f32 %v1632, %v1634
    %v1649 = vadd.f32 %v1648, %v1636
    %v1650 = vadd.f32 %v1649, %v1638
    %v1651 = vrot.slane %v1650, 4
    %v1652 = vadd.f32 %v1650, %v1651
    %v1653 = vrot.slane %v1652, 2
    %v1654 = vadd.f32 %v1652, %v1653
    %v1655 = vrot.slane %v1654, 1
    %v1656 = vadd.f32 %v1654, %v1655
    %v1657 = vmul.f32 %v1631, %v576
    %v1658 = vmul.f32 %v1632, %v578
    %v1659 = vmul.f32 %v1633, %v580
    %v1660 = vmul.f32 %v1634, %v582
    %v1661 = vmul.f32 %v1635, %v584
    %v1662 = vmul.f32 %v1636, %v586
    %v1663 = vmul.f32 %v1637, %v588
    %v1664 = vmul.f32 %v1638, %v590
    %v1665 = vmul.f32 %v1657, 0.9726657
    %v1666 = vmul.f32 %v1658, 0.9726657
    %v1667 = vmul.f32 %v1659, 0.9726657
    %v1668 = vmul.f32 %v1660, 0.9726657
    %v1669 = vmul.f32 %v1661, 0.9726657
    %v1670 = vmul.f32 %v1662, 0.9726657
    %v1671 = vmul.f32 %v1663, 0.9726657
    %v1672 = vmul.f32 %v1664, 0.9726657
    %v1673 = vadd.f32 %v1665, %v1667
    %v1674 = vadd.f32 %v1673, %v1669
    %v1675 = vadd.f32 %v1674, %v1671
    %v1676 = vrot.slane %v1675, 4
    %v1677 = vadd.f32 %v1675, %v1676
    %v1678 = vrot.slane %v1677, 2
    %v1679 = vadd.f32 %v1677, %v1678
    %v1680 = vrot.slane %v1679, 1
    %v1681 = vadd.f32 %v1679, %v1680
    %v1682 = vadd.f32 %v1666, %v1668
    %v1683 = vadd.f32 %v1682, %v1670
    %v1684 = vadd.f32 %v1683, %v1672
    %v1685 = vrot.slane %v1684, 4
    %v1686 = vadd.f32 %v1684, %v1685
    %v1687 = vrot.slane %v1686, 2
    %v1688 = vadd.f32 %v1686, %v1687
    %v1689 = vrot.slane %v1688, 1
    %v1690 = vadd.f32 %v1688, %v1689
    %v1691 = vmul.f32 %v1665, %v576
    %v1692 = vmul.f32 %v1666, %v578
    %v1693 = vmul.f32 %v1667, %v580
    %v1694 = vmul.f32 %v1668, %v582
    %v1695 = vmul.f32 %v1669, %v584
    %v1696 = vmul.f32 %v1670, %v586
    %v1697 = vmul.f32 %v1671, %v588
    %v1698 = vmul.f32 %v1672, %v590
    %v1699 = vmul.f32 %v1691, 0.97168595
    %v1700 = vmul.f32 %v1692, 0.97168595
    %v1701 = vmul.f32 %v1693, 0.97168595
    %v1702 = vmul.f32 %v1694, 0.97168595
    %v1703 = vmul.f32 %v1695, 0.97168595
    %v1704 = vmul.f32 %v1696, 0.97168595
    %v1705 = vmul.f32 %v1697, 0.97168595
    %v1706 = vmul.f32 %v1698, 0.97168595
    %v1707 = vadd.f32 %v1699, %v1701
    %v1708 = vadd.f32 %v1707, %v1703
    %v1709 = vadd.f32 %v1708, %v1705
    %v1710 = vrot.slane %v1709, 4
    %v1711 = vadd.f32 %v1709, %v1710
    %v1712 = vrot.slane %v1711, 2
    %v1713 = vadd.f32 %v1711, %v1712
    %v1714 = vrot.slane %v1713, 1
    %v1715 = vadd.f32 %v1713, %v1714
    %v1716 = vadd.f32 %v1700, %v1702
    %v1717 = vadd.f32 %v1716, %v1704
    %v1718 = vadd.f32 %v1717, %v1706
    %v1719 = vrot.slane %v1718, 4
    %v1720 = vadd.f32 %v1718, %v1719
    %v1721 = vrot.slane %v1720, 2
    %v1722 = vadd.f32 %v1720, %v1721
    %v1723 = vrot.slane %v1722, 1
    %v1724 = vadd.f32 %v1722, %v1723
    %v1725 = vmul.f32 %v1699, %v576
    %v1726 = vmul.f32 %v1700, %v578
    %v1727 = vmul.f32 %v1701, %v580
    %v1728 = vmul.f32 %v1702, %v582
    %v1729 = vmul.f32 %v1703, %v584
    %v1730 = vmul.f32 %v1704, %v586
    %v1731 = vmul.f32 %v1705, %v588
    %v1732 = vmul.f32 %v1706, %v590
    %v1733 = vmul.f32 %v1725, 0.9707072
    %v1734 = vmul.f32 %v1726, 0.9707072
    %v1735 = vmul.f32 %v1727, 0.9707072
    %v1736 = vmul.f32 %v1728, 0.9707072
    %v1737 = vmul.f32 %v1729, 0.9707072
    %v1738 = vmul.f32 %v1730, 0.9707072
    %v1739 = vmul.f32 %v1731, 0.9707072
    %v1740 = vmul.f32 %v1732, 0.9707072
    %v1741 = vadd.f32 %v1733, %v1735
    %v1742 = vadd.f32 %v1741, %v1737
    %v1743 = vadd.f32 %v1742, %v1739
    %v1744 = vrot.slane %v1743, 4
    %v1745 = vadd.f32 %v1743, %v1744
    %v1746 = vrot.slane %v1745, 2
    %v1747 = vadd.f32 %v1745, %v1746
    %v1748 = vrot.slane %v1747, 1
    %v1749 = vadd.f32 %v1747, %v1748
    %v1750 = vadd.f32 %v1734, %v1736
    %v1751 = vadd.f32 %v1750, %v1738
    %v1752 = vadd.f32 %v1751, %v1740
    %v1753 = vrot.slane %v1752, 4
    %v1754 = vadd.f32 %v1752, %v1753
    %v1755 = vrot.slane %v1754, 2
    %v1756 = vadd.f32 %v1754, %v1755
    %v1757 = vrot.slane %v1756, 1
    %v1758 = vadd.f32 %v1756, %v1757
    %v1759 = vmul.f32 %v1733, %v576
    %v1760 = vmul.f32 %v1734, %v578
    %v1761 = vmul.f32 %v1735, %v580
    %v1762 = vmul.f32 %v1736, %v582
    %v1763 = vmul.f32 %v1737, %v584
    %v1764 = vmul.f32 %v1738, %v586
    %v1765 = vmul.f32 %v1739, %v588
    %v1766 = vmul.f32 %v1740, %v590
    %v1767 = vmul.f32 %v1759, 0.9697294
    %v1768 = vmul.f32 %v1760, 0.9697294
    %v1769 = vmul.f32 %v1761, 0.9697294
    %v1770 = vmul.f32 %v1762, 0.9697294
    %v1771 = vmul.f32 %v1763, 0.9697294
    %v1772 = vmul.f32 %v1764, 0.9697294
    %v1773 = vmul.f32 %v1765, 0.9697294
    %v1774 = vmul.f32 %v1766, 0.9697294
    %v1775 = vadd.f32 %v1767, %v1769
    %v1776 = vadd.f32 %v1775, %v1771
    %v1777 = vadd.f32 %v1776, %v1773
    %v1778 = vrot.slane %v1777, 4
    %v1779 = vadd.f32 %v1777, %v1778
    %v1780 = vrot.slane %v1779, 2
    %v1781 = vadd.f32 %v1779, %v1780
    %v1782 = vrot.slane %v1781, 1
    %v1783 = vadd.f32 %v1781, %v1782
    %v1784 = vadd.f32 %v1768, %v1770
    %v1785 = vadd.f32 %v1784, %v1772
    %v1786 = vadd.f32 %v1785, %v1774
    %v1787 = vrot.slane %v1786, 4
    %v1788 = vadd.f32 %v1786, %v1787
    %v1789 = vrot.slane %v1788, 2
    %v1790 = vadd.f32 %v1788, %v1789
    %v1791 = vrot.slane %v1790, 1
    %v1792 = vadd.f32 %v1790, %v1791
    %v1793 = vsel %vm1170, %v1273, %v1307
    %v1794 = vsel %vm1170, %v1282, %v1316
    %v1795 = vsel %vm1173, %v1793, %v1341
    %v1796 = vsel %vm1173, %v1794, %v1350
    %v1797 = vsel %vm1176, %v1795, %v1375
    %v1798 = vsel %vm1176, %v1796, %v1384
    %v1799 = vsel %vm1179, %v1797, %v1409
    %v1800 = vsel %vm1179, %v1798, %v1418
    %v1801 = vsel %vm1182, %v1799, %v1443
    %v1802 = vsel %vm1182, %v1800, %v1452
    %v1803 = vsel %vm1185, %v1801, %v1477
    %v1804 = vsel %vm1185, %v1802, %v1486
    %v1805 = vsel %vm1188, %v1803, %v1511
    %v1806 = vsel %vm1188, %v1804, %v1520
    %v1807 = vsel %vm1170, %v1545, %v1579
    %v1808 = vsel %vm1170, %v1554, %v1588
    %v1809 = vsel %vm1173, %v1807, %v1613
    %v1810 = vsel %vm1173, %v1808, %v1622
    %v1811 = vsel %vm1176, %v1809, %v1647
    %v1812 = vsel %vm1176, %v1810, %v1656
    %v1813 = vsel %vm1179, %v1811, %v1681
    %v1814 = vsel %vm1179, %v1812, %v1690
    %v1815 = vsel %vm1182, %v1813, %v1715
    %v1816 = vsel %vm1182, %v1814, %v1724
    %v1817 = vsel %vm1185, %v1815, %v1749
    %v1818 = vsel %vm1185, %v1816, %v1758
    %v1819 = vsel %vm1188, %v1817, %v1783
    %v1820 = vsel %vm1188, %v1818, %v1792
    %v1821 = vld [vmem:[#allocation2 + $0x20] sm:$0xff]
    %v1822 = vld [vmem:[#allocation2 + $0x28] sm:$0xff]
    %v1823 = vld [vmem:[#allocation2 + $0x30] sm:$0xff]
    %v1824 = vld [vmem:[#allocation2 + $0x38] sm:$0xff]
    %v1825 = vadd.f32 %v1821, %v1805
    %v1826 = vadd.f32 %v1822, %v1806
    %v1827 = vadd.f32 %v1823, %v1819
    %v1828 = vadd.f32 %v1824, %v1820
    %1829 = vst [vmem:[#allocation2 + $0x20] sm:$0xff] %v1825
    %1830 = vst [vmem:[#allocation2 + $0x28] sm:$0xff] %v1826
    %1831 = vst [vmem:[#allocation2 + $0x30] sm:$0xff] %v1827
    %1832 = vst [vmem:[#allocation2 + $0x38] sm:$0xff] %v1828
    %v1833 = vsub.f32 %v559, 0.50793654
    %v1834 = vsub.f32 %v560, 0.50793654
    %v1835 = vsub.f32 %v561, 0.50793654
    %v1836 = vsub.f32 %v562, 0.50793654
    %v1837 = vsub.f32 %v563, 0.50793654
    %v1838 = vsub.f32 %v564, 0.50793654
    %v1839 = vsub.f32 %v565, 0.50793654
    %v1840 = vsub.f32 %v566, 0.50793654
    %v1841 = vmul.f32 %v1833, %v1833
    %v1842 = vmul.f32 %v1834, %v1834
    %v1843 = vmul.f32 %v1835, %v1835
    %v1844 = vmul.f32 %v1836, %v1836
    %v1845 = vmul.f32 %v1837, %v1837
    %v1846 = vmul.f32 %v1838, %v1838
    %v1847 = vmul.f32 %v1839, %v1839
    %v1848 = vmul.f32 %v1840, %v1840
    %v1849 = vmul.f32 %v1841, -2.0
    %v1850 = vmul.f32 %v1842, -2.0
    %v1851 = vmul.f32 %v1843, -2.0
    %v1852 = vmul.f32 %v1844, -2.0
    %v1853 = vmul.f32 %v1845, -2.0
    %v1854 = vmul.f32 %v1846, -2.0
    %v1855 = vmul.f32 %v1847, -2.0
    %v1856 = vmul.f32 %v1848, -2.0
    %v1857 = vmul.f32 %v1849, 1.442695
    %v1858 = vpow.pop %v1857
    %v1859 = vmul.f32 %v1850, 1.442695
    %v1860 = vpow.pop %v1859
    %v1861 = vmul.f32 %v1851, 1.442695
    %v1862 = vpow.pop %v1861
    %v1863 = vmul.f32 %v1852, 1.442695
    %v1864 = vpow.pop %v1863
    %v1865 = vmul.f32 %v1853, 1.442695
    %v1866 = vpow.pop %v1865
    %v1867 = vmul.f32 %v1854, 1.442695
    %v1868 = vpow.pop %v1867
    %v1869 = vmul.f32 %v1855, 1.442695
    %v1870 = vpow.pop %v1869
    %v1871 = vmul.f32 %v1856, 1.442695
    %v1872 = vpow.pop %v1871
    %v1873 = vmul.f32 %v1858, %v627
    %v1874 = vmul.f32 %v1860, %v631
    %v1875 = vmul.f32 %v1862, %v627
    %v1876 = vmul.f32 %v1864, %v631
    %v1877 = vmul.f32 %v1866, %v627
    %v1878 = vmul.f32 %v1868, %v631
    %v1879 = vmul.f32 %v1870, %v627
    %v1880 = vmul.f32 %v1872, %v631
    %v1881 = vadd.f32 %v1873, %v1875
    %v1882 = vadd.f32 %v1881, %v1877
    %v1883 = vadd.f32 %v1882, %v1879
    %v1884 = vrot.slane %v1883, 4
    %v1885 = vadd.f32 %v1883, %v1884
    %v1886 = vrot.slane %v1885, 2
    %v1887 = vadd.f32 %v1885, %v1886
    %v1888 = vrot.slane %v1887, 1
    %v1889 = vadd.f32 %v1887, %v1888
    %v1890 = vadd.f32 %v1874, %v1876
    %v1891 = vadd.f32 %v1890, %v1878
    %v1892 = vadd.f32 %v1891, %v1880
    %v1893 = vrot.slane %v1892, 4
    %v1894 = vadd.f32 %v1892, %v1893
    %v1895 = vrot.slane %v1894, 2
    %v1896 = vadd.f32 %v1894, %v1895
    %v1897 = vrot.slane %v1896, 1
    %v1898 = vadd.f32 %v1896, %v1897
    %v1899 = vmul.f32 %v1873, %v576
    %v1900 = vmul.f32 %v1874, %v578
    %v1901 = vmul.f32 %v1875, %v580
    %v1902 = vmul.f32 %v1876, %v582
    %v1903 = vmul.f32 %v1877, %v584
    %v1904 = vmul.f32 %v1878, %v586
    %v1905 = vmul.f32 %v1879, %v588
    %v1906 = vmul.f32 %v1880, %v590
    %v1907 = vmul.f32 %v1899, 0.9677768
    %v1908 = vmul.f32 %v1900, 0.9677768
    %v1909 = vmul.f32 %v1901, 0.9677768
    %v1910 = vmul.f32 %v1902, 0.9677768
    %v1911 = vmul.f32 %v1903, 0.9677768
    %v1912 = vmul.f32 %v1904, 0.9677768
    %v1913 = vmul.f32 %v1905, 0.9677768
    %v1914 = vmul.f32 %v1906, 0.9677768
    %v1915 = vadd.f32 %v1907, %v1909
    %v1916 = vadd.f32 %v1915, %v1911
    %v1917 = vadd.f32 %v1916, %v1913
    %v1918 = vrot.slane %v1917, 4
    %v1919 = vadd.f32 %v1917, %v1918
    %v1920 = vrot.slane %v1919, 2
    %v1921 = vadd.f32 %v1919, %v1920
    %v1922 = vrot.slane %v1921, 1
    %v1923 = vadd.f32 %v1921, %v1922
    %v1924 = vadd.f32 %v1908, %v1910
    %v1925 = vadd.f32 %v1924, %v1912
    %v1926 = vadd.f32 %v1925, %v1914
    %v1927 = vrot.slane %v1926, 4
    %v1928 = vadd.f32 %v1926, %v1927
    %v1929 = vrot.slane %v1928, 2
    %v1930 = vadd.f32 %v1928, %v1929
    %v1931 = vrot.slane %v1930, 1
    %v1932 = vadd.f32 %v1930, %v1931
    %v1933 = vmul.f32 %v1907, %v576
    %v1934 = vmul.f32 %v1908, %v578
    %v1935 = vmul.f32 %v1909, %v580
    %v1936 = vmul.f32 %v1910, %v582
    %v1937 = vmul.f32 %v1911, %v584
    %v1938 = vmul.f32 %v1912, %v586
    %v1939 = vmul.f32 %v1913, %v588
    %v1940 = vmul.f32 %v1914, %v590
    %v1941 = vmul.f32 %v1933, 0.96680194
    %v1942 = vmul.f32 %v1934, 0.96680194
    %v1943 = vmul.f32 %v1935, 0.96680194
    %v1944 = vmul.f32 %v1936, 0.96680194
    %v1945 = vmul.f32 %v1937, 0.96680194
    %v1946 = vmul.f32 %v1938, 0.96680194
    %v1947 = vmul.f32 %v1939, 0.96680194
    %v1948 = vmul.f32 %v1940, 0.96680194
    %v1949 = vadd.f32 %v1941, %v1943
    %v1950 = vadd.f32 %v1949, %v1945
    %v1951 = vadd.f32 %v1950, %v1947
    %v1952 = vrot.slane %v1951, 4
    %v1953 = vadd.f32 %v1951, %v1952
    %v1954 = vrot.slane %v1953, 2
    %v1955 = vadd.f32 %v1953, %v1954
    %v1956 = vrot.slane %v1955, 1
    %v1957 = vadd.f32 %v1955, %v1956
    %v1958 = vadd.f32 %v1942, %v1944
    %v1959 = vadd.f32 %v1958, %v1946
    %v1960 = vadd.f32 %v1959, %v1948
    %v1961 = vrot.slane %v1960, 4
    %v1962 = vadd.f32 %v1960, %v1961
    %v1963 = vrot.slane %v1962, 2
    %v1964 = vadd.f32 %v1962, %v1963
    %v1965 = vrot.slane %v1964, 1
    %v1966 = vadd.f32 %v1964, %v1965
    %v1967 = vmul.f32 %v1941, %v576
    %v1968 = vmul.f32 %v1942, %v578
    %v1969 = vmul.f32 %v1943, %v580
    %v1970 = vmul.f32 %v1944, %v582
    %v1971 = vmul.f32 %v1945, %v584
    %v1972 = vmul.f32 %v1946, %v586
    %v1973 = vmul.f32 %v1947, %v588
    %v1974 = vmul.f32 %v1948, %v590
    %v1975 = vmul.f32 %v1967, 0.96582806
    %v1976 = vmul.f32 %v1968, 0.96582806
    %v1977 = vmul.f32 %v1969, 0.96582806
    %v1978 = vmul.f32 %v1970, 0.96582806
    %v1979 = vmul.f32 %v1971, 0.96582806
    %v1980 = vmul.f32 %v1972, 0.96582806
    %v1981 = vmul.f32 %v1973, 0.96582806
    %v1982 = vmul.f32 %v1974, 0.96582806
    %v1983 = vadd.f32 %v1975, %v1977
    %v1984 = vadd.f32 %v1983, %v1979
    %v1985 = vadd.f32 %v1984, %v1981
    %v1986 = vrot.slane %v1985, 4
    %v1987 = vadd.f32 %v1985, %v1986
    %v1988 = vrot.slane %v1987, 2
    %v1989 = vadd.f32 %v1987, %v1988
    %v1990 = vrot.slane %v1989, 1
    %v1991 = vadd.f32 %v1989, %v1990
    %v1992 = vadd.f32 %v1976, %v1978
    %v1993 = vadd.f32 %v1992, %v1980
    %v1994 = vadd.f32 %v1993, %v1982
    %v1995 = vrot.slane %v1994, 4
    %v1996 = vadd.f32 %v1994, %v1995
    %v1997 = vrot.slane %v1996, 2
    %v1998 = vadd.f32 %v1996, %v1997
    %v1999 = vrot.slane %v1998, 1
    %v2000 = vadd.f32 %v1998, %v1999
    %v2001 = vmul.f32 %v1975, %v576
    %v2002 = vmul.f32 %v1976, %v578
    %v2003 = vmul.f32 %v1977, %v580
    %v2004 = vmul.f32 %v1978, %v582
    %v2005 = vmul.f32 %v1979, %v584
    %v2006 = vmul.f32 %v1980, %v586
    %v2007 = vmul.f32 %v1981, %v588
    %v2008 = vmul.f32 %v1982, %v590
    %v2009 = vmul.f32 %v2001, 0.9648552
    %v2010 = vmul.f32 %v2002, 0.9648552
    %v2011 = vmul.f32 %v2003, 0.9648552
    %v2012 = vmul.f32 %v2004, 0.9648552
    %v2013 = vmul.f32 %v2005, 0.9648552
    %v2014 = vmul.f32 %v2006, 0.9648552
    %v2015 = vmul.f32 %v2007, 0.9648552
    %v2016 = vmul.f32 %v2008, 0.9648552
    %v2017 = vadd.f32 %v2009, %v2011
    %v2018 = vadd.f32 %v2017, %v2013
    %v2019 = vadd.f32 %v2018, %v2015
    %v2020 = vrot.slane %v2019, 4
    %v2021 = vadd.f32 %v2019, %v2020
    %v2022 = vrot.slane %v2021, 2
    %v2023 = vadd.f32 %v2021, %v2022
    %v2024 = vrot.slane %v2023, 1
    %v2025 = vadd.f32 %v2023, %v2024
    %v2026 = vadd.f32 %v2010, %v2012
    %v2027 = vadd.f32 %v2026, %v2014
    %v2028 = vadd.f32 %v2027, %v2016
    %v2029 = vrot.slane %v2028, 4
    %v2030 = vadd.f32 %v2028, %v2029
    %v2031 = vrot.slane %v2030, 2
    %v2032 = vadd.f32 %v2030, %v2031
    %v2033 = vrot.slane %v2032, 1
    %v2034 = vadd.f32 %v2032, %v2033
    %v2035 = vmul.f32 %v2009, %v576
    %v2036 = vmul.f32 %v2010, %v578
    %v2037 = vmul.f32 %v2011, %v580
    %v2038 = vmul.f32 %v2012, %v582
    %v2039 = vmul.f32 %v2013, %v584
    %v2040 = vmul.f32 %v2014, %v586
    %v2041 = vmul.f32 %v2015, %v588
    %v2042 = vmul.f32 %v2016, %v590
    %v2043 = vmul.f32 %v2035, 0.9638833
    %v2044 = vmul.f32 %v2036, 0.9638833
    %v2045 = vmul.f32 %v2037, 0.9638833
    %v2046 = vmul.f32 %v2038, 0.9638833
    %v2047 = vmul.f32 %v2039, 0.9638833
    %v2048 = vmul.f32 %v2040, 0.9638833
    %v2049 = vmul.f32 %v2041, 0.9638833
    %v2050 = vmul.f32 %v2042, 0.9638833
    %v2051 = vadd.f32 %v2043, %v2045
    %v2052 = vadd.f32 %v2051, %v2047
    %v2053 = vadd.f32 %v2052, %v2049
    %v2054 = vrot.slane %v2053, 4
    %v2055 = vadd.f32 %v2053, %v2054
    %v2056 = vrot.slane %v2055, 2
    %v2057 = vadd.f32 %v2055, %v2056
    %v2058 = vrot.slane %v2057, 1
    %v2059 = vadd.f32 %v2057, %v2058
    %v2060 = vadd.f32 %v2044, %v2046
    %v2061 = vadd.f32 %v2060, %v2048
    %v2062 = vadd.f32 %v2061, %v2050
    %v2063 = vrot.slane %v2062, 4
    %v2064 = vadd.f32 %v2062, %v2063
    %v2065 = vrot.slane %v2064, 2
    %v2066 = vadd.f32 %v2064, %v2065
    %v2067 = vrot.slane %v2066, 1
    %v2068 = vadd.f32 %v2066, %v2067
    %v2069 = vmul.f32 %v2043, %v576
    %v2070 = vmul.f32 %v2044, %v578
    %v2071 = vmul.f32 %v2045, %v580
    %v2072 = vmul.f32 %v2046, %v582
    %v2073 = vmul.f32 %v2047, %v584
    %v2074 = vmul.f32 %v2048, %v586
    %v2075 = vmul.f32 %v2049, %v588
    %v2076 = vmul.f32 %v2050, %v590
    %v2077 = vmul.f32 %v2069, 0.9629123
    %v2078 = vmul.f32 %v2070, 0.9629123
    %v2079 = vmul.f32 %v2071, 0.9629123
    %v2080 = vmul.f32 %v2072, 0.9629123
    %v2081 = vmul.f32 %v2073, 0.9629123
    %v2082 = vmul.f32 %v2074, 0.9629123
    %v2083 = vmul.f32 %v2075, 0.9629123
    %v2084 = vmul.f32 %v2076, 0.9629123
    %v2085 = vadd.f32 %v2077, %v2079
    %v2086 = vadd.f32 %v2085, %v2081
    %v2087 = vadd.f32 %v2086, %v2083
    %v2088 = vrot.slane %v2087, 4
    %v2089 = vadd.f32 %v2087, %v2088
    %v2090 = vrot.slane %v2089, 2
    %v2091 = vadd.f32 %v2089, %v2090
    %v2092 = vrot.slane %v2091, 1
    %v2093 = vadd.f32 %v2091, %v2092
    %v2094 = vadd.f32 %v2078, %v2080
    %v2095 = vadd.f32 %v2094, %v2082
    %v2096 = vadd.f32 %v2095, %v2084
    %v2097 = vrot.slane %v2096, 4
    %v2098 = vadd.f32 %v2096, %v2097
    %v2099 = vrot.slane %v2098, 2
    %v2100 = vadd.f32 %v2098, %v2099
    %v2101 = vrot.slane %v2100, 1
    %v2102 = vadd.f32 %v2100, %v2101
    %v2103 = vmul.f32 %v2077, %v576
    %v2104 = vmul.f32 %v2078, %v578
    %v2105 = vmul.f32 %v2079, %v580
    %v2106 = vmul.f32 %v2080, %v582
    %v2107 = vmul.f32 %v2081, %v584
    %v2108 = vmul.f32 %v2082, %v586
    %v2109 = vmul.f32 %v2083, %v588
    %v2110 = vmul.f32 %v2084, %v590
    %v2111 = vmul.f32 %v2103, 0.9619424
    %v2112 = vmul.f32 %v2104, 0.9619424
    %v2113 = vmul.f32 %v2105, 0.9619424
    %v2114 = vmul.f32 %v2106, 0.9619424
    %v2115 = vmul.f32 %v2107, 0.9619424
    %v2116 = vmul.f32 %v2108, 0.9619424
    %v2117 = vmul.f32 %v2109, 0.9619424
    %v2118 = vmul.f32 %v2110, 0.9619424
    %v2119 = vadd.f32 %v2111, %v2113
    %v2120 = vadd.f32 %v2119, %v2115
    %v2121 = vadd.f32 %v2120, %v2117
    %v2122 = vrot.slane %v2121, 4
    %v2123 = vadd.f32 %v2121, %v2122
    %v2124 = vrot.slane %v2123, 2
    %v2125 = vadd.f32 %v2123, %v2124
    %v2126 = vrot.slane %v2125, 1
    %v2127 = vadd.f32 %v2125, %v2126
    %v2128 = vadd.f32 %v2112, %v2114
    %v2129 = vadd.f32 %v2128, %v2116
    %v2130 = vadd.f32 %v2129, %v2118
    %v2131 = vrot.slane %v2130, 4
    %v2132 = vadd.f32 %v2130, %v2131
    %v2133 = vrot.slane %v2132, 2
    %v2134 = vadd.f32 %v2132, %v2133
    %v2135 = vrot.slane %v2134, 1
    %v2136 = vadd.f32 %v2134, %v2135
    %v2137 = vmul.f32 %v2111, %v576
    %v2138 = vmul.f32 %v2112, %v578
    %v2139 = vmul.f32 %v2113, %v580
    %v2140 = vmul.f32 %v2114, %v582
    %v2141 = vmul.f32 %v2115, %v584
    %v2142 = vmul.f32 %v2116, %v586
    %v2143 = vmul.f32 %v2117, %v588
    %v2144 = vmul.f32 %v2118, %v590
    %v2145 = vmul.f32 %v2137, 0.96097344
    %v2146 = vmul.f32 %v2138, 0.96097344
    %v2147 = vmul.f32 %v2139, 0.96097344
    %v2148 = vmul.f32 %v2140, 0.96097344
    %v2149 = vmul.f32 %v2141, 0.96097344
    %v2150 = vmul.f32 %v2142, 0.96097344
    %v2151 = vmul.f32 %v2143, 0.96097344
    %v2152 = vmul.f32 %v2144, 0.96097344
    %v2153 = vadd.f32 %v2145, %v2147
    %v2154 = vadd.f32 %v2153, %v2149
    %v2155 = vadd.f32 %v2154, %v2151
    %v2156 = vrot.slane %v2155, 4
    %v2157 = vadd.f32 %v2155, %v2156
    %v2158 = vrot.slane %v2157, 2
    %v2159 = vadd.f32 %v2157, %v2158
    %v2160 = vrot.slane %v2159, 1
    %v2161 = vadd.f32 %v2159, %v2160
    %v2162 = vadd.f32 %v2146, %v2148
    %v2163 = vadd.f32 %v2162, %v2150
    %v2164 = vadd.f32 %v2163, %v2152
    %v2165 = vrot.slane %v2164, 4
    %v2166 = vadd.f32 %v2164, %v2165
    %v2167 = vrot.slane %v2166, 2
    %v2168 = vadd.f32 %v2166, %v2167
    %v2169 = vrot.slane %v2168, 1
    %v2170 = vadd.f32 %v2168, %v2169
    %v2171 = vmul.f32 %v2145, %v576
    %v2172 = vmul.f32 %v2146, %v578
    %v2173 = vmul.f32 %v2147, %v580
    %v2174 = vmul.f32 %v2148, %v582
    %v2175 = vmul.f32 %v2149, %v584
    %v2176 = vmul.f32 %v2150, %v586
    %v2177 = vmul.f32 %v2151, %v588
    %v2178 = vmul.f32 %v2152, %v590
    %v2179 = vmul.f32 %v2171, 0.96000546
    %v2180 = vmul.f32 %v2172, 0.96000546
    %v2181 = vmul.f32 %v2173, 0.96000546
    %v2182 = vmul.f32 %v2174, 0.96000546
    %v2183 = vmul.f32 %v2175, 0.96000546
    %v2184 = vmul.f32 %v2176, 0.96000546
    %v2185 = vmul.f32 %v2177, 0.96000546
    %v2186 = vmul.f32 %v2178, 0.96000546
    %v2187 = vadd.f32 %v2179, %v2181
    %v2188 = vadd.f32 %v2187, %v2183
    %v2189 = vadd.f32 %v2188, %v2185
    %v2190 = vrot.slane %v2189, 4
    %v2191 = vadd.f32 %v2189, %v2190
    %v2192 = vrot.slane %v2191, 2
    %v2193 = vadd.f32 %v2191, %v2192
    %v2194 = vrot.slane %v2193, 1
    %v2195 = vadd.f32 %v2193, %v2194
    %v2196 = vadd.f32 %v2180, %v2182
    %v2197 = vadd.f32 %v2196, %v2184
    %v2198 = vadd.f32 %v2197, %v2186
    %v2199 = vrot.slane %v2198, 4
    %v2200 = vadd.f32 %v2198, %v2199
    %v2201 = vrot.slane %v2200, 2
    %v2202 = vadd.f32 %v2200, %v2201
    %v2203 = vrot.slane %v2202, 1
    %v2204 = vadd.f32 %v2202, %v2203
    %v2205 = vmul.f32 %v2179, %v576
    %v2206 = vmul.f32 %v2180, %v578
    %v2207 = vmul.f32 %v2181, %v580
    %v2208 = vmul.f32 %v2182, %v582
    %v2209 = vmul.f32 %v2183, %v584
    %v2210 = vmul.f32 %v2184, %v586
    %v2211 = vmul.f32 %v2185, %v588
    %v2212 = vmul.f32 %v2186, %v590
    %v2213 = vmul.f32 %v2205, 0.95903844
    %v2214 = vmul.f32 %v2206, 0.95903844
    %v2215 = vmul.f32 %v2207, 0.95903844
    %v2216 = vmul.f32 %v2208, 0.95903844
    %v2217 = vmul.f32 %v2209, 0.95903844
    %v2218 = vmul.f32 %v2210, 0.95903844
    %v2219 = vmul.f32 %v2211, 0.95903844
    %v2220 = vmul.f32 %v2212, 0.95903844
    %v2221 = vadd.f32 %v2213, %v2215
    %v2222 = vadd.f32 %v2221, %v2217
    %v2223 = vadd.f32 %v2222, %v2219
    %v2224 = vrot.slane %v2223, 4
    %v2225 = vadd.f32 %v2223, %v2224
    %v2226 = vrot.slane %v2225, 2
    %v2227 = vadd.f32 %v2225, %v2226
    %v2228 = vrot.slane %v2227, 1
    %v2229 = vadd.f32 %v2227, %v2228
    %v2230 = vadd.f32 %v2214, %v2216
    %v2231 = vadd.f32 %v2230, %v2218
    %v2232 = vadd.f32 %v2231, %v2220
    %v2233 = vrot.slane %v2232, 4
    %v2234 = vadd.f32 %v2232, %v2233
    %v2235 = vrot.slane %v2234, 2
    %v2236 = vadd.f32 %v2234, %v2235
    %v2237 = vrot.slane %v2236, 1
    %v2238 = vadd.f32 %v2236, %v2237
    %v2239 = vmul.f32 %v2213, %v576
    %v2240 = vmul.f32 %v2214, %v578
    %v2241 = vmul.f32 %v2215, %v580
    %v2242 = vmul.f32 %v2216, %v582
    %v2243 = vmul.f32 %v2217, %v584
    %v2244 = vmul.f32 %v2218, %v586
    %v2245 = vmul.f32 %v2219, %v588
    %v2246 = vmul.f32 %v2220, %v590
    %v2247 = vmul.f32 %v2239, 0.95807236
    %v2248 = vmul.f32 %v2240, 0.95807236
    %v2249 = vmul.f32 %v2241, 0.95807236
    %v2250 = vmul.f32 %v2242, 0.95807236
    %v2251 = vmul.f32 %v2243, 0.95807236
    %v2252 = vmul.f32 %v2244, 0.95807236
    %v2253 = vmul.f32 %v2245, 0.95807236
    %v2254 = vmul.f32 %v2246, 0.95807236
    %v2255 = vadd.f32 %v2247, %v2249
    %v2256 = vadd.f32 %v2255, %v2251
    %v2257 = vadd.f32 %v2256, %v2253
    %v2258 = vrot.slane %v2257, 4
    %v2259 = vadd.f32 %v2257, %v2258
    %v2260 = vrot.slane %v2259, 2
    %v2261 = vadd.f32 %v2259, %v2260
    %v2262 = vrot.slane %v2261, 1
    %v2263 = vadd.f32 %v2261, %v2262
    %v2264 = vadd.f32 %v2248, %v2250
    %v2265 = vadd.f32 %v2264, %v2252
    %v2266 = vadd.f32 %v2265, %v2254
    %v2267 = vrot.slane %v2266, 4
    %v2268 = vadd.f32 %v2266, %v2267
    %v2269 = vrot.slane %v2268, 2
    %v2270 = vadd.f32 %v2268, %v2269
    %v2271 = vrot.slane %v2270, 1
    %v2272 = vadd.f32 %v2270, %v2271
    %v2273 = vmul.f32 %v2247, %v576
    %v2274 = vmul.f32 %v2248, %v578
    %v2275 = vmul.f32 %v2249, %v580
    %v2276 = vmul.f32 %v2250, %v582
    %v2277 = vmul.f32 %v2251, %v584
    %v2278 = vmul.f32 %v2252, %v586
    %v2279 = vmul.f32 %v2253, %v588
    %v2280 = vmul.f32 %v2254, %v590
    %v2281 = vmul.f32 %v2273, 0.9571073
    %v2282 = vmul.f32 %v2274, 0.9571073
    %v2283 = vmul.f32 %v2275, 0.9571073
    %v2284 = vmul.f32 %v2276, 0.9571073
    %v2285 = vmul.f32 %v2277, 0.9571073
    %v2286 = vmul.f32 %v2278, 0.9571073
    %v2287 = vmul.f32 %v2279, 0.9571073
    %v2288 = vmul.f32 %v2280, 0.9571073
    %v2289 = vadd.f32 %v2281, %v2283
    %v2290 = vadd.f32 %v2289, %v2285
    %v2291 = vadd.f32 %v2290, %v2287
    %v2292 = vrot.slane %v2291, 4
    %v2293 = vadd.f32 %v2291, %v2292
    %v2294 = vrot.slane %v2293, 2
    %v2295 = vadd.f32 %v2293, %v2294
    %v2296 = vrot.slane %v2295, 1
    %v2297 = vadd.f32 %v2295, %v2296
    %v2298 = vadd.f32 %v2282, %v2284
    %v2299 = vadd.f32 %v2298, %v2286
    %v2300 = vadd.f32 %v2299, %v2288
    %v2301 = vrot.slane %v2300, 4
    %v2302 = vadd.f32 %v2300, %v2301
    %v2303 = vrot.slane %v2302, 2
    %v2304 = vadd.f32 %v2302, %v2303
    %v2305 = vrot.slane %v2304, 1
    %v2306 = vadd.f32 %v2304, %v2305
    %v2307 = vmul.f32 %v2281, %v576
    %v2308 = vmul.f32 %v2282, %v578
    %v2309 = vmul.f32 %v2283, %v580
    %v2310 = vmul.f32 %v2284, %v582
    %v2311 = vmul.f32 %v2285, %v584
    %v2312 = vmul.f32 %v2286, %v586
    %v2313 = vmul.f32 %v2287, %v588
    %v2314 = vmul.f32 %v2288, %v590
    %v2315 = vmul.f32 %v2307, 0.9561432
    %v2316 = vmul.f32 %v2308, 0.9561432
    %v2317 = vmul.f32 %v2309, 0.9561432
    %v2318 = vmul.f32 %v2310, 0.9561432
    %v2319 = vmul.f32 %v2311, 0.9561432
    %v2320 = vmul.f32 %v2312, 0.9561432
    %v2321 = vmul.f32 %v2313, 0.9561432
    %v2322 = vmul.f32 %v2314, 0.9561432
    %v2323 = vadd.f32 %v2315, %v2317
    %v2324 = vadd.f32 %v2323, %v2319
    %v2325 = vadd.f32 %v2324, %v2321
    %v2326 = vrot.slane %v2325, 4
    %v2327 = vadd.f32 %v2325, %v2326
    %v2328 = vrot.slane %v2327, 2
    %v2329 = vadd.f32 %v2327, %v2328
    %v2330 = vrot.slane %v2329, 1
    %v2331 = vadd.f32 %v2329, %v2330
    %v2332 = vadd.f32 %v2316, %v2318
    %v2333 = vadd.f32 %v2332, %v2320
    %v2334 = vadd.f32 %v2333, %v2322
    %v2335 = vrot.slane %v2334, 4
    %v2336 = vadd.f32 %v2334, %v2335
    %v2337 = vrot.slane %v2336, 2
    %v2338 = vadd.f32 %v2336, %v2337
    %v2339 = vrot.slane %v2338, 1
    %v2340 = vadd.f32 %v2338, %v2339
    %v2341 = vmul.f32 %v2315, %v576
    %v2342 = vmul.f32 %v2316, %v578
    %v2343 = vmul.f32 %v2317, %v580
    %v2344 = vmul.f32 %v2318, %v582
    %v2345 = vmul.f32 %v2319, %v584
    %v2346 = vmul.f32 %v2320, %v586
    %v2347 = vmul.f32 %v2321, %v588
    %v2348 = vmul.f32 %v2322, %v590
    %v2349 = vmul.f32 %v2341, 0.9551801
    %v2350 = vmul.f32 %v2342, 0.9551801
    %v2351 = vmul.f32 %v2343, 0.9551801
    %v2352 = vmul.f32 %v2344, 0.9551801
    %v2353 = vmul.f32 %v2345, 0.9551801
    %v2354 = vmul.f32 %v2346, 0.9551801
    %v2355 = vmul.f32 %v2347, 0.9551801
    %v2356 = vmul.f32 %v2348, 0.9551801
    %v2357 = vadd.f32 %v2349, %v2351
    %v2358 = vadd.f32 %v2357, %v2353
    %v2359 = vadd.f32 %v2358, %v2355
    %v2360 = vrot.slane %v2359, 4
    %v2361 = vadd.f32 %v2359, %v2360
    %v2362 = vrot.slane %v2361, 2
    %v2363 = vadd.f32 %v2361, %v2362
    %v2364 = vrot.slane %v2363, 1
    %v2365 = vadd.f32 %v2363, %v2364
    %v2366 = vadd.f32 %v2350, %v2352
    %v2367 = vadd.f32 %v2366, %v2354
    %v2368 = vadd.f32 %v2367, %v2356
    %v2369 = vrot.slane %v2368, 4
    %v2370 = vadd.f32 %v2368, %v2369
    %v2371 = vrot.slane %v2370, 2
    %v2372 = vadd.f32 %v2370, %v2371
    %v2373 = vrot.slane %v2372, 1
    %v2374 = vadd.f32 %v2372, %v2373
    %v2375 = vmul.f32 %v2349, %v576
    %v2376 = vmul.f32 %v2350, %v578
    %v2377 = vmul.f32 %v2351, %v580
    %v2378 = vmul.f32 %v2352, %v582
    %v2379 = vmul.f32 %v2353, %v584
    %v2380 = vmul.f32 %v2354, %v586
    %v2381 = vmul.f32 %v2355, %v588
    %v2382 = vmul.f32 %v2356, %v590
    %v2383 = vmul.f32 %v2375, 0.9542179
    %v2384 = vmul.f32 %v2376, 0.9542179
    %v2385 = vmul.f32 %v2377, 0.9542179
    %v2386 = vmul.f32 %v2378, 0.9542179
    %v2387 = vmul.f32 %v2379, 0.9542179
    %v2388 = vmul.f32 %v2380, 0.9542179
    %v2389 = vmul.f32 %v2381, 0.9542179
    %v2390 = vmul.f32 %v2382, 0.9542179
    %v2391 = vadd.f32 %v2383, %v2385
    %v2392 = vadd.f32 %v2391, %v2387
    %v2393 = vadd.f32 %v2392, %v2389
    %v2394 = vrot.slane %v2393, 4
    %v2395 = vadd.f32 %v2393, %v2394
    %v2396 = vrot.slane %v2395, 2
    %v2397 = vadd.f32 %v2395, %v2396
    %v2398 = vrot.slane %v2397, 1
    %v2399 = vadd.f32 %v2397, %v2398
    %v2400 = vadd.f32 %v2384, %v2386
    %v2401 = vadd.f32 %v2400, %v2388
    %v2402 = vadd.f32 %v2401, %v2390
    %v2403 = vrot.slane %v2402, 4
    %v2404 = vadd.f32 %v2402, %v2403
    %v2405 = vrot.slane %v2404, 2
    %v2406 = vadd.f32 %v2404, %v2405
    %v2407 = vrot.slane %v2406, 1
    %v2408 = vadd.f32 %v2406, %v2407
    %v2409 = vsel %vm1170, %v1889, %v1923
    %v2410 = vsel %vm1170, %v1898, %v1932
    %v2411 = vsel %vm1173, %v2409, %v1957
    %v2412 = vsel %vm1173, %v2410, %v1966
    %v2413 = vsel %vm1176, %v2411, %v1991
    %v2414 = vsel %vm1176, %v2412, %v2000
    %v2415 = vsel %vm1179, %v2413, %v2025
    %v2416 = vsel %vm1179, %v2414, %v2034
    %v2417 = vsel %vm1182, %v2415, %v2059
    %v2418 = vsel %vm1182, %v2416, %v2068
    %v2419 = vsel %vm1185, %v2417, %v2093
    %v2420 = vsel %vm1185, %v2418, %v2102
    %v2421 = vsel %vm1188, %v2419, %v2127
    %v2422 = vsel %vm1188, %v2420, %v2136
    %v2423 = vsel %vm1170, %v2161, %v2195
    %v2424 = vsel %vm1170, %v2170, %v2204
    %v2425 = vsel %vm1173, %v2423, %v2229
    %v2426 = vsel %vm1173, %v2424, %v2238
    %v2427 = vsel %vm1176, %v2425, %v2263
    %v2428 = vsel %vm1176, %v2426, %v2272
    %v2429 = vsel %vm1179, %v2427, %v2297
    %v2430 = vsel %vm1179, %v2428, %v2306
    %v2431 = vsel %vm1182, %v2429, %v2331
    %v2432 = vsel %vm1182, %v2430, %v2340
    %v2433 = vsel %vm1185, %v2431, %v2365
    %v2434 = vsel %vm1185, %v2432, %v2374
    %v2435 = vsel %vm1188, %v2433, %v2399
    %v2436 = vsel %vm1188, %v2434, %v2408
    %v2437 = vld [vmem:[#allocation2 + $0x40] sm:$0xff]
    %v2438 = vld [vmem:[#allocation2 + $0x48] sm:$0xff]
    %v2439 = vld [vmem:[#allocation2 + $0x50] sm:$0xff]
    %v2440 = vld [vmem:[#allocation2 + $0x58] sm:$0xff]
    %v2441 = vadd.f32 %v2437, %v2421
    %v2442 = vadd.f32 %v2438, %v2422
    %v2443 = vadd.f32 %v2439, %v2435
    %v2444 = vadd.f32 %v2440, %v2436
    %2445 = vst [vmem:[#allocation2 + $0x40] sm:$0xff] %v2441
    %2446 = vst [vmem:[#allocation2 + $0x48] sm:$0xff] %v2442
    %2447 = vst [vmem:[#allocation2 + $0x50] sm:$0xff] %v2443
    %2448 = vst [vmem:[#allocation2 + $0x58] sm:$0xff] %v2444
    %v2449 = vsub.f32 %v559, 0.7619048
    %v2450 = vsub.f32 %v560, 0.7619048
    %v2451 = vsub.f32 %v561, 0.7619048
    %v2452 = vsub.f32 %v562, 0.7619048
    %v2453 = vsub.f32 %v563, 0.7619048
    %v2454 = vsub.f32 %v564, 0.7619048
    %v2455 = vsub.f32 %v565, 0.7619048
    %v2456 = vsub.f32 %v566, 0.7619048
    %v2457 = vmul.f32 %v2449, %v2449
    %v2458 = vmul.f32 %v2450, %v2450
    %v2459 = vmul.f32 %v2451, %v2451
    %v2460 = vmul.f32 %v2452, %v2452
    %v2461 = vmul.f32 %v2453, %v2453
    %v2462 = vmul.f32 %v2454, %v2454
    %v2463 = vmul.f32 %v2455, %v2455
    %v2464 = vmul.f32 %v2456, %v2456
    %v2465 = vmul.f32 %v2457, -2.0
    %v2466 = vmul.f32 %v2458, -2.0
    %v2467 = vmul.f32 %v2459, -2.0
    %v2468 = vmul.f32 %v2460, -2.0
    %v2469 = vmul.f32 %v2461, -2.0
    %v2470 = vmul.f32 %v2462, -2.0
    %v2471 = vmul.f32 %v2463, -2.0
    %v2472 = vmul.f32 %v2464, -2.0
    %v2473 = vmul.f32 %v2465, 1.442695
    %v2474 = vpow.pop %v2473
    %v2475 = vmul.f32 %v2466, 1.442695
    %v2476 = vpow.pop %v2475
    %v2477 = vmul.f32 %v2467, 1.442695
    %v2478 = vpow.pop %v2477
    %v2479 = vmul.f32 %v2468, 1.442695
    %v2480 = vpow.pop %v2479
    %v2481 = vmul.f32 %v2469, 1.442695
    %v2482 = vpow.pop %v2481
    %v2483 = vmul.f32 %v2470, 1.442695
    %v2484 = vpow.pop %v2483
    %v2485 = vmul.f32 %v2471, 1.442695
    %v2486 = vpow.pop %v2485
    %v2487 = vmul.f32 %v2472, 1.442695
    %v2488 = vpow.pop %v2487
    %v2489 = vmul.f32 %v2474, %v627
    %v2490 = vmul.f32 %v2476, %v631
    %v2491 = vmul.f32 %v2478, %v627
    %v2492 = vmul.f32 %v2480, %v631
    %v2493 = vmul.f32 %v2482, %v627
    %v2494 = vmul.f32 %v2484, %v631
    %v2495 = vmul.f32 %v2486, %v627
    %v2496 = vmul.f32 %v2488, %v631
    %v2497 = vadd.f32 %v2489, %v2491
    %v2498 = vadd.f32 %v2497, %v2493
    %v2499 = vadd.f32 %v2498, %v2495
    %v2500 = vrot.slane %v2499, 4
    %v2501 = vadd.f32 %v2499, %v2500
    %v2502 = vrot.slane %v2501, 2
    %v2503 = vadd.f32 %v2501, %v2502
    %v2504 = vrot.slane %v2503, 1
    %v2505 = vadd.f32 %v2503, %v2504
    %v2506 = vadd.f32 %v2490, %v2492
    %v2507 = vadd.f32 %v2506, %v2494
    %v2508 = vadd.f32 %v2507, %v2496
    %v2509 = vrot.slane %v2508, 4
    %v2510 = vadd.f32 %v2508, %v2509
    %v2511 = vrot.slane %v2510, 2
    %v2512 = vadd.f32 %v2510, %v2511
    %v2513 = vrot.slane %v2512, 1
    %v2514 = vadd.f32 %v2512, %v2513
    %v2515 = vmul.f32 %v2489, %v576
    %v2516 = vmul.f32 %v2490, %v578
    %v2517 = vmul.f32 %v2491, %v580
    %v2518 = vmul.f32 %v2492, %v582
    %v2519 = vmul.f32 %v2493, %v584
    %v2520 = vmul.f32 %v2494, %v586
    %v2521 = vmul.f32 %v2495, %v588
    %v2522 = vmul.f32 %v2496, %v590
    %v2523 = vmul.f32 %v2515, 0.95229656
    %v2524 = vmul.f32 %v2516, 0.95229656
    %v2525 = vmul.f32 %v2517, 0.95229656
    %v2526 = vmul.f32 %v2518, 0.95229656
    %v2527 = vmul.f32 %v2519, 0.95229656
    %v2528 = vmul.f32 %v2520, 0.95229656
    %v2529 = vmul.f32 %v2521, 0.95229656
    %v2530 = vmul.f32 %v2522, 0.95229656
    %v2531 = vadd.f32 %v2523, %v2525
    %v2532 = vadd.f32 %v2531, %v2527
    %v2533 = vadd.f32 %v2532, %v2529
    %v2534 = vrot.slane %v2533, 4
    %v2535 = vadd.f32 %v2533, %v2534
    %v2536 = vrot.slane %v2535, 2
    %v2537 = vadd.f32 %v2535, %v2536
    %v2538 = vrot.slane %v2537, 1
    %v2539 = vadd.f32 %v2537, %v2538
    %v2540 = vadd.f32 %v2524, %v2526
    %v2541 = vadd.f32 %v2540, %v2528
    %v2542 = vadd.f32 %v2541, %v2530
    %v2543 = vrot.slane %v2542, 4
    %v2544 = vadd.f32 %v2542, %v2543
    %v2545 = vrot.slane %v2544, 2
    %v2546 = vadd.f32 %v2544, %v2545
    %v2547 = vrot.slane %v2546, 1
    %v2548 = vadd.f32 %v2546, %v2547
    %v2549 = vmul.f32 %v2523, %v576
    %v2550 = vmul.f32 %v2524, %v578
    %v2551 = vmul.f32 %v2525, %v580
    %v2552 = vmul.f32 %v2526, %v582
    %v2553 = vmul.f32 %v2527, %v584
    %v2554 = vmul.f32 %v2528, %v586
    %v2555 = vmul.f32 %v2529, %v588
    %v2556 = vmul.f32 %v2530, %v590
    %v2557 = vmul.f32 %v2549, 0.9513373
    %v2558 = vmul.f32 %v2550, 0.9513373
    %v2559 = vmul.f32 %v2551, 0.9513373
    %v2560 = vmul.f32 %v2552, 0.9513373
    %v2561 = vmul.f32 %v2553, 0.9513373
    %v2562 = vmul.f32 %v2554, 0.9513373
    %v2563 = vmul.f32 %v2555, 0.9513373
    %v2564 = vmul.f32 %v2556, 0.9513373
    %v2565 = vadd.f32 %v2557, %v2559
    %v2566 = vadd.f32 %v2565, %v2561
    %v2567 = vadd.f32 %v2566, %v2563
    %v2568 = vrot.slane %v2567, 4
    %v2569 = vadd.f32 %v2567, %v2568
    %v2570 = vrot.slane %v2569, 2
    %v2571 = vadd.f32 %v2569, %v2570
    %v2572 = vrot.slane %v2571, 1
    %v2573 = vadd.f32 %v2571, %v2572
    %v2574 = vadd.f32 %v2558, %v2560
    %v2575 = vadd.f32 %v2574, %v2562
    %v2576 = vadd.f32 %v2575, %v2564
    %v2577 = vrot.slane %v2576, 4
    %v2578 = vadd.f32 %v2576, %v2577
    %v2579 = vrot.slane %v2578, 2
    %v2580 = vadd.f32 %v2578, %v2579
    %v2581 = vrot.slane %v2580, 1
    %v2582 = vadd.f32 %v2580, %v2581
    %v2583 = vmul.f32 %v2557, %v576
    %v2584 = vmul.f32 %v2558, %v578
    %v2585 = vmul.f32 %v2559, %v580
    %v2586 = vmul.f32 %v2560, %v582
    %v2587 = vmul.f32 %v2561, %v584
    %v2588 = vmul.f32 %v2562, %v586
    %v2589 = vmul.f32 %v2563, %v588
    %v2590 = vmul.f32 %v2564, %v590
    %v2591 = vmul.f32 %v2583, 0.950379
    %v2592 = vmul.f32 %v2584, 0.950379
    %v2593 = vmul.f32 %v2585, 0.950379
    %v2594 = vmul.f32 %v2586, 0.950379
    %v2595 = vmul.f32 %v2587, 0.950379
    %v2596 = vmul.f32 %v2588, 0.950379
    %v2597 = vmul.f32 %v2589, 0.950379
    %v2598 = vmul.f32 %v2590, 0.950379
    %v2599 = vadd.f32 %v2591, %v2593
    %v2600 = vadd.f32 %v2599, %v2595
    %v2601 = vadd.f32 %v2600, %v2597
    %v2602 = vrot.slane %v2601, 4
    %v2603 = vadd.f32 %v2601, %v2602
    %v2604 = vrot.slane %v2603, 2
    %v2605 = vadd.f32 %v2603, %v2604
    %v2606 = vrot.slane %v2605, 1
    %v2607 = vadd.f32 %v2605, %v2606
    %v2608 = vadd.f32 %v2592, %v2594
    %v2609 = vadd.f32 %v2608, %v2596
    %v2610 = vadd.f32 %v2609, %v2598
    %v2611 = vrot.slane %v2610, 4
    %v2612 = vadd.f32 %v2610, %v2611
    %v2613 = vrot.slane %v2612, 2
    %v2614 = vadd.f32 %v2612, %v2613
    %v2615 = vrot.slane %v2614, 1
    %v2616 = vadd.f32 %v2614, %v2615
    %v2617 = vmul.f32 %v2591, %v576
    %v2618 = vmul.f32 %v2592, %v578
    %v2619 = vmul.f32 %v2593, %v580
    %v2620 = vmul.f32 %v2594, %v582
    %v2621 = vmul.f32 %v2595, %v584
    %v2622 = vmul.f32 %v2596, %v586
    %v2623 = vmul.f32 %v2597, %v588
    %v2624 = vmul.f32 %v2598, %v590
    %v2625 = vmul.f32 %v2617, 0.9494217
    %v2626 = vmul.f32 %v2618, 0.9494217
    %v2627 = vmul.f32 %v2619, 0.9494217
    %v2628 = vmul.f32 %v2620, 0.9494217
    %v2629 = vmul.f32 %v2621, 0.9494217
    %v2630 = vmul.f32 %v2622, 0.9494217
    %v2631 = vmul.f32 %v2623, 0.9494217
    %v2632 = vmul.f32 %v2624, 0.9494217
    %v2633 = vadd.f32 %v2625, %v2627
    %v2634 = vadd.f32 %v2633, %v2629
    %v2635 = vadd.f32 %v2634, %v2631
    %v2636 = vrot.slane %v2635, 4
    %v2637 = vadd.f32 %v2635, %v2636
    %v2638 = vrot.slane %v2637, 2
    %v2639 = vadd.f32 %v2637, %v2638
    %v2640 = vrot.slane %v2639, 1
    %v2641 = vadd.f32 %v2639, %v2640
    %v2642 = vadd.f32 %v2626, %v2628
    %v2643 = vadd.f32 %v2642, %v2630
    %v2644 = vadd.f32 %v2643, %v2632
    %v2645 = vrot.slane %v2644, 4
    %v2646 = vadd.f32 %v2644, %v2645
    %v2647 = vrot.slane %v2646, 2
    %v2648 = vadd.f32 %v2646, %v2647
    %v2649 = vrot.slane %v2648, 1
    %v2650 = vadd.f32 %v2648, %v2649
    %v2651 = vmul.f32 %v2625, %v576
    %v2652 = vmul.f32 %v2626, %v578
    %v2653 = vmul.f32 %v2627, %v580
    %v2654 = vmul.f32 %v2628, %v582
    %v2655 = vmul.f32 %v2629, %v584
    %v2656 = vmul.f32 %v2630, %v586
    %v2657 = vmul.f32 %v2631, %v588
    %v2658 = vmul.f32 %v2632, %v590
    %v2659 = vmul.f32 %v2651, 0.94846535
    %v2660 = vmul.f32 %v2652, 0.94846535
    %v2661 = vmul.f32 %v2653, 0.94846535
    %v2662 = vmul.f32 %v2654, 0.94846535
    %v2663 = vmul.f32 %v2655, 0.94846535
    %v2664 = vmul.f32 %v2656, 0.94846535
    %v2665 = vmul.f32 %v2657, 0.94846535
    %v2666 = vmul.f32 %v2658, 0.94846535
    %v2667 = vadd.f32 %v2659, %v2661
    %v2668 = vadd.f32 %v2667, %v2663
    %v2669 = vadd.f32 %v2668, %v2665
    %v2670 = vrot.slane %v2669, 4
    %v2671 = vadd.f32 %v2669, %v2670
    %v2672 = vrot.slane %v2671, 2
    %v2673 = vadd.f32 %v2671, %v2672
    %v2674 = vrot.slane %v2673, 1
    %v2675 = vadd.f32 %v2673, %v2674
    %v2676 = vadd.f32 %v2660, %v2662
    %v2677 = vadd.f32 %v2676, %v2664
    %v2678 = vadd.f32 %v2677, %v2666
    %v2679 = vrot.slane %v2678, 4
    %v2680 = vadd.f32 %v2678, %v2679
    %v2681 = vrot.slane %v2680, 2
    %v2682 = vadd.f32 %v2680, %v2681
    %v2683 = vrot.slane %v2682, 1
    %v2684 = vadd.f32 %v2682, %v2683
    %v2685 = vmul.f32 %v2659, %v576
    %v2686 = vmul.f32 %v2660, %v578
    %v2687 = vmul.f32 %v2661, %v580
    %v2688 = vmul.f32 %v2662, %v582
    %v2689 = vmul.f32 %v2663, %v584
    %v2690 = vmul.f32 %v2664, %v586
    %v2691 = vmul.f32 %v2665, %v588
    %v2692 = vmul.f32 %v2666, %v590
    %v2693 = vmul.f32 %v2685, 0.94750994
    %v2694 = vmul.f32 %v2686, 0.94750994
    %v2695 = vmul.f32 %v2687, 0.94750994
    %v2696 = vmul.f32 %v2688, 0.94750994
    %v2697 = vmul.f32 %v2689, 0.94750994
    %v2698 = vmul.f32 %v2690, 0.94750994
    %v2699 = vmul.f32 %v2691, 0.94750994
    %v2700 = vmul.f32 %v2692, 0.94750994
    %v2701 = vadd.f32 %v2693, %v2695
    %v2702 = vadd.f32 %v2701, %v2697
    %v2703 = vadd.f32 %v2702, %v2699
    %v2704 = vrot.slane %v2703, 4
    %v2705 = vadd.f32 %v2703, %v2704
    %v2706 = vrot.slane %v2705, 2
    %v2707 = vadd.f32 %v2705, %v2706
    %v2708 = vrot.slane %v2707, 1
    %v2709 = vadd.f32 %v2707, %v2708
    %v2710 = vadd.f32 %v2694, %v2696
    %v2711 = vadd.f32 %v2710, %v2698
    %v2712 = vadd.f32 %v2711, %v2700
    %v2713 = vrot.slane %v2712, 4
    %v2714 = vadd.f32 %v2712, %v2713
    %v2715 = vrot.slane %v2714, 2
    %v2716 = vadd.f32 %v2714, %v2715
    %v2717 = vrot.slane %v2716, 1
    %v2718 = vadd.f32 %v2716, %v2717
    %v2719 = vmul.f32 %v2693, %v576
    %v2720 = vmul.f32 %v2694, %v578
    %v2721 = vmul.f32 %v2695, %v580
    %v2722 = vmul.f32 %v2696, %v582
    %v2723 = vmul.f32 %v2697, %v584
    %v2724 = vmul.f32 %v2698, %v586
    %v2725 = vmul.f32 %v2699, %v588
    %v2726 = vmul.f32 %v2700, %v590
    %v2727 = vmul.f32 %v2719, 0.9465555
    %v2728 = vmul.f32 %v2720, 0.9465555
    %v2729 = vmul.f32 %v2721, 0.9465555
    %v2730 = vmul.f32 %v2722, 0.9465555
    %v2731 = vmul.f32 %v2723, 0.9465555
    %v2732 = vmul.f32 %v2724, 0.9465555
    %v2733 = vmul.f32 %v2725, 0.9465555
    %v2734 = vmul.f32 %v2726, 0.9465555
    %v2735 = vadd.f32 %v2727, %v2729
    %v2736 = vadd.f32 %v2735, %v2731
    %v2737 = vadd.f32 %v2736, %v2733
    %v2738 = vrot.slane %v2737, 4
    %v2739 = vadd.f32 %v2737, %v2738
    %v2740 = vrot.slane %v2739, 2
    %v2741 = vadd.f32 %v2739, %v2740
    %v2742 = vrot.slane %v2741, 1
    %v2743 = vadd.f32 %v2741, %v2742
    %v2744 = vadd.f32 %v2728, %v2730
    %v2745 = vadd.f32 %v2744, %v2732
    %v2746 = vadd.f32 %v2745, %v2734
    %v2747 = vrot.slane %v2746, 4
    %v2748 = vadd.f32 %v2746, %v2747
    %v2749 = vrot.slane %v2748, 2
    %v2750 = vadd.f32 %v2748, %v2749
    %v2751 = vrot.slane %v2750, 1
    %v2752 = vadd.f32 %v2750, %v2751
    %v2753 = vmul.f32 %v2727, %v576
    %v2754 = vmul.f32 %v2728, %v578
    %v2755 = vmul.f32 %v2729, %v580
    %v2756 = vmul.f32 %v2730, %v582
    %v2757 = vmul.f32 %v2731, %v584
    %v2758 = vmul.f32 %v2732, %v586
    %v2759 = vmul.f32 %v2733, %v588
    %v2760 = vmul.f32 %v2734, %v590
    %v2761 = vmul.f32 %v2753, 0.94560206
    %v2762 = vmul.f32 %v2754, 0.94560206
    %v2763 = vmul.f32 %v2755, 0.94560206
    %v2764 = vmul.f32 %v2756, 0.94560206
    %v2765 = vmul.f32 %v2757, 0.94560206
    %v2766 = vmul.f32 %v2758, 0.94560206
    %v2767 = vmul.f32 %v2759, 0.94560206
    %v2768 = vmul.f32 %v2760, 0.94560206
    %v2769 = vadd.f32 %v2761, %v2763
    %v2770 = vadd.f32 %v2769, %v2765
    %v2771 = vadd.f32 %v2770, %v2767
    %v2772 = vrot.slane %v2771, 4
    %v2773 = vadd.f32 %v2771, %v2772
    %v2774 = vrot.slane %v2773, 2
    %v2775 = vadd.f32 %v2773, %v2774
    %v2776 = vrot.slane %v2775, 1
    %v2777 = vadd.f32 %v2775, %v2776
    %v2778 = vadd.f32 %v2762, %v2764
    %v2779 = vadd.f32 %v2778, %v2766
    %v2780 = vadd.f32 %v2779, %v2768
    %v2781 = vrot.slane %v2780, 4
    %v2782 = vadd.f32 %v2780, %v2781
    %v2783 = vrot.slane %v2782, 2
    %v2784 = vadd.f32 %v2782, %v2783
    %v2785 = vrot.slane %v2784, 1
    %v2786 = vadd.f32 %v2784, %v2785
    %v2787 = vmul.f32 %v2761, %v576
    %v2788 = vmul.f32 %v2762, %v578
    %v2789 = vmul.f32 %v2763, %v580
    %v2790 = vmul.f32 %v2764, %v582
    %v2791 = vmul.f32 %v2765, %v584
    %v2792 = vmul.f32 %v2766, %v586
    %v2793 = vmul.f32 %v2767, %v588
    %v2794 = vmul.f32 %v2768, %v590
    %v2795 = vmul.f32 %v2787, 0.9446495
    %v2796 = vmul.f32 %v2788, 0.9446495
    %v2797 = vmul.f32 %v2789, 0.9446495
    %v2798 = vmul.f32 %v2790, 0.9446495
    %v2799 = vmul.f32 %v2791, 0.9446495
    %v2800 = vmul.f32 %v2792, 0.9446495
    %v2801 = vmul.f32 %v2793, 0.9446495
    %v2802 = vmul.f32 %v2794, 0.9446495
    %v2803 = vadd.f32 %v2795, %v2797
    %v2804 = vadd.f32 %v2803, %v2799
    %v2805 = vadd.f32 %v2804, %v2801
    %v2806 = vrot.slane %v2805, 4
    %v2807 = vadd.f32 %v2805, %v2806
    %v2808 = vrot.slane %v2807, 2
    %v2809 = vadd.f32 %v2807, %v2808
    %v2810 = vrot.slane %v2809, 1
    %v2811 = vadd.f32 %v2809, %v2810
    %v2812 = vadd.f32 %v2796, %v2798
    %v2813 = vadd.f32 %v2812, %v2800
    %v2814 = vadd.f32 %v2813, %v2802
    %v2815 = vrot.slane %v2814, 4
    %v2816 = vadd.f32 %v2814, %v2815
    %v2817 = vrot.slane %v2816, 2
    %v2818 = vadd.f32 %v2816, %v2817
    %v2819 = vrot.slane %v2818, 1
    %v2820 = vadd.f32 %v2818, %v2819
    %v2821 = vmul.f32 %v2795, %v576
    %v2822 = vmul.f32 %v2796, %v578
    %v2823 = vmul.f32 %v2797, %v580
    %v2824 = vmul.f32 %v2798, %v582
    %v2825 = vmul.f32 %v2799, %v584
    %v2826 = vmul.f32 %v2800, %v586
    %v2827 = vmul.f32 %v2801, %v588
    %v2828 = vmul.f32 %v2802, %v590
    %v2829 = vmul.f32 %v2821, 0.943698
    %v2830 = vmul.f32 %v2822, 0.943698
    %v2831 = vmul.f32 %v2823, 0.943698
    %v2832 = vmul.f32 %v2824, 0.943698
    %v2833 = vmul.f32 %v2825, 0.943698
    %v2834 = vmul.f32 %v2826, 0.943698
    %v2835 = vmul.f32 %v2827, 0.943698
    %v2836 = vmul.f32 %v2828, 0.943698
    %v2837 = vadd.f32 %v2829, %v2831
    %v2838 = vadd.f32 %v2837, %v2833
    %v2839 = vadd.f32 %v2838, %v2835
    %v2840 = vrot.slane %v2839, 4
    %v2841 = vadd.f32 %v2839, %v2840
    %v2842 = vrot.slane %v2841, 2
    %v2843 = vadd.f32 %v2841, %v2842
    %v2844 = vrot.slane %v2843, 1
    %v2845 = vadd.f32 %v2843, %v2844
    %v2846 = vadd.f32 %v2830, %v2832
    %v2847 = vadd.f32 %v2846, %v2834
    %v2848 = vadd.f32 %v2847, %v2836
    %v2849 = vrot.slane %v2848, 4
    %v2850 = vadd.f32 %v2848, %v2849
    %v2851 = vrot.slane %v2850, 2
    %v2852 = vadd.f32 %v2850, %v2851
    %v2853 = vrot.slane %v2852, 1
    %v2854 = vadd.f32 %v2852, %v2853
    %v2855 = vmul.f32 %v2829, %v576
    %v2856 = vmul.f32 %v2830, %v578
    %v2857 = vmul.f32 %v2831, %v580
    %v2858 = vmul.f32 %v2832, %v582
    %v2859 = vmul.f32 %v2833, %v584
    %v2860 = vmul.f32 %v2834, %v586
    %v2861 = vmul.f32 %v2835, %v588
    %v2862 = vmul.f32 %v2836, %v590
    %v2863 = vmul.f32 %v2855, 0.9427474
    %v2864 = vmul.f32 %v2856, 0.9427474
    %v2865 = vmul.f32 %v2857, 0.9427474
    %v2866 = vmul.f32 %v2858, 0.9427474
    %v2867 = vmul.f32 %v2859, 0.9427474
    %v2868 = vmul.f32 %v2860, 0.9427474
    %v2869 = vmul.f32 %v2861, 0.9427474
    %v2870 = vmul.f32 %v2862, 0.9427474
    %v2871 = vadd.f32 %v2863, %v2865
    %v2872 = vadd.f32 %v2871, %v2867
    %v2873 = vadd.f32 %v2872, %v2869
    %v2874 = vrot.slane %v2873, 4
    %v2875 = vadd.f32 %v2873, %v2874
    %v2876 = vrot.slane %v2875, 2
    %v2877 = vadd.f32 %v2875, %v2876
    %v2878 = vrot.slane %v2877, 1
    %v2879 = vadd.f32 %v2877, %v2878
    %v2880 = vadd.f32 %v2864, %v2866
    %v2881 = vadd.f32 %v2880, %v2868
    %v2882 = vadd.f32 %v2881, %v2870
    %v2883 = vrot.slane %v2882, 4
    %v2884 = vadd.f32 %v2882, %v2883
    %v2885 = vrot.slane %v2884, 2
    %v2886 = vadd.f32 %v2884, %v2885
    %v2887 = vrot.slane %v2886, 1
    %v2888 = vadd.f32 %v2886, %v2887
    %v2889 = vmul.f32 %v2863, %v576
    %v2890 = vmul.f32 %v2864, %v578
    %v2891 = vmul.f32 %v2865, %v580
    %v2892 = vmul.f32 %v2866, %v582
    %v2893 = vmul.f32 %v2867, %v584
    %v2894 = vmul.f32 %v2868, %v586
    %v2895 = vmul.f32 %v2869, %v588
    %v2896 = vmul.f32 %v2870, %v590
    %v2897 = vmul.f32 %v2889, 0.94179773
    %v2898 = vmul.f32 %v2890, 0.94179773
    %v2899 = vmul.f32 %v2891, 0.94179773
    %v2900 = vmul.f32 %v2892, 0.94179773
    %v2901 = vmul.f32 %v2893, 0.94179773
    %v2902 = vmul.f32 %v2894, 0.94179773
    %v2903 = vmul.f32 %v2895, 0.94179773
    %v2904 = vmul.f32 %v2896, 0.94179773
    %v2905 = vadd.f32 %v2897, %v2899
    %v2906 = vadd.f32 %v2905, %v2901
    %v2907 = vadd.f32 %v2906, %v2903
    %v2908 = vrot.slane %v2907, 4
    %v2909 = vadd.f32 %v2907, %v2908
    %v2910 = vrot.slane %v2909, 2
    %v2911 = vadd.f32 %v2909, %v2910
    %v2912 = vrot.slane %v2911, 1
    %v2913 = vadd.f32 %v2911, %v2912
    %v2914 = vadd.f32 %v2898, %v2900
    %v2915 = vadd.f32 %v2914, %v2902
    %v2916 = vadd.f32 %v2915, %v2904
    %v2917 = vrot.slane %v2916, 4
    %v2918 = vadd.f32 %v2916, %v2917
    %v2919 = vrot.slane %v2918, 2
    %v2920 = vadd.f32 %v2918, %v2919
    %v2921 = vrot.slane %v2920, 1
    %v2922 = vadd.f32 %v2920, %v2921
    %v2923 = vmul.f32 %v2897, %v576
    %v2924 = vmul.f32 %v2898, %v578
    %v2925 = vmul.f32 %v2899, %v580
    %v2926 = vmul.f32 %v2900, %v582
    %v2927 = vmul.f32 %v2901, %v584
    %v2928 = vmul.f32 %v2902, %v586
    %v2929 = vmul.f32 %v2903, %v588
    %v2930 = vmul.f32 %v2904, %v590
    %v2931 = vmul.f32 %v2923, 0.94084907
    %v2932 = vmul.f32 %v2924, 0.94084907
    %v2933 = vmul.f32 %v2925, 0.94084907
    %v2934 = vmul.f32 %v2926, 0.94084907
    %v2935 = vmul.f32 %v2927, 0.94084907
    %v2936 = vmul.f32 %v2928, 0.94084907
    %v2937 = vmul.f32 %v2929, 0.94084907
    %v2938 = vmul.f32 %v2930, 0.94084907
    %v2939 = vadd.f32 %v2931, %v2933
    %v2940 = vadd.f32 %v2939, %v2935
    %v2941 = vadd.f32 %v2940, %v2937
    %v2942 = vrot.slane %v2941, 4
    %v2943 = vadd.f32 %v2941, %v2942
    %v2944 = vrot.slane %v2943, 2
    %v2945 = vadd.f32 %v2943, %v2944
    %v2946 = vrot.slane %v2945, 1
    %v2947 = vadd.f32 %v2945, %v2946
    %v2948 = vadd.f32 %v2932, %v2934
    %v2949 = vadd.f32 %v2948, %v2936
    %v2950 = vadd.f32 %v2949, %v2938
    %v2951 = vrot.slane %v2950, 4
    %v2952 = vadd.f32 %v2950, %v2951
    %v2953 = vrot.slane %v2952, 2
    %v2954 = vadd.f32 %v2952, %v2953
    %v2955 = vrot.slane %v2954, 1
    %v2956 = vadd.f32 %v2954, %v2955
    %v2957 = vmul.f32 %v2931, %v576
    %v2958 = vmul.f32 %v2932, %v578
    %v2959 = vmul.f32 %v2933, %v580
    %v2960 = vmul.f32 %v2934, %v582
    %v2961 = vmul.f32 %v2935, %v584
    %v2962 = vmul.f32 %v2936, %v586
    %v2963 = vmul.f32 %v2937, %v588
    %v2964 = vmul.f32 %v2938, %v590
    %v2965 = vmul.f32 %v2957, 0.93990135
    %v2966 = vmul.f32 %v2958, 0.93990135
    %v2967 = vmul.f32 %v2959, 0.93990135
    %v2968 = vmul.f32 %v2960, 0.93990135
    %v2969 = vmul.f32 %v2961, 0.93990135
    %v2970 = vmul.f32 %v2962, 0.93990135
    %v2971 = vmul.f32 %v2963, 0.93990135
    %v2972 = vmul.f32 %v2964, 0.93990135
    %v2973 = vadd.f32 %v2965, %v2967
    %v2974 = vadd.f32 %v2973, %v2969
    %v2975 = vadd.f32 %v2974, %v2971
    %v2976 = vrot.slane %v2975, 4
    %v2977 = vadd.f32 %v2975, %v2976
    %v2978 = vrot.slane %v2977, 2
    %v2979 = vadd.f32 %v2977, %v2978
    %v2980 = vrot.slane %v2979, 1
    %v2981 = vadd.f32 %v2979, %v2980
    %v2982 = vadd.f32 %v2966, %v2968
    %v2983 = vadd.f32 %v2982, %v2970
    %v2984 = vadd.f32 %v2983, %v2972
    %v2985 = vrot.slane %v2984, 4
    %v2986 = vadd.f32 %v2984, %v2985
    %v2987 = vrot.slane %v2986, 2
    %v2988 = vadd.f32 %v2986, %v2987
    %v2989 = vrot.slane %v2988, 1
    %v2990 = vadd.f32 %v2988, %v2989
    %v2991 = vmul.f32 %v2965, %v576
    %v2992 = vmul.f32 %v2966, %v578
    %v2993 = vmul.f32 %v2967, %v580
    %v2994 = vmul.f32 %v2968, %v582
    %v2995 = vmul.f32 %v2969, %v584
    %v2996 = vmul.f32 %v2970, %v586
    %v2997 = vmul.f32 %v2971, %v588
    %v2998 = vmul.f32 %v2972, %v590
    %v2999 = vmul.f32 %v2991, 0.9389546
    %v3000 = vmul.f32 %v2992, 0.9389546
    %v3001 = vmul.f32 %v2993, 0.9389546
    %v3002 = vmul.f32 %v2994, 0.9389546
    %v3003 = vmul.f32 %v2995, 0.9389546
    %v3004 = vmul.f32 %v2996, 0.9389546
    %v3005 = vmul.f32 %v2997, 0.9389546
    %v3006 = vmul.f32 %v2998, 0.9389546
    %v3007 = vadd.f32 %v2999, %v3001
    %v3008 = vadd.f32 %v3007, %v3003
    %v3009 = vadd.f32 %v3008, %v3005
    %v3010 = vrot.slane %v3009, 4
    %v3011 = vadd.f32 %v3009, %v3010
    %v3012 = vrot.slane %v3011, 2
    %v3013 = vadd.f32 %v3011, %v3012
    %v3014 = vrot.slane %v3013, 1
    %v3015 = vadd.f32 %v3013, %v3014
    %v3016 = vadd.f32 %v3000, %v3002
    %v3017 = vadd.f32 %v3016, %v3004
    %v3018 = vadd.f32 %v3017, %v3006
    %v3019 = vrot.slane %v3018, 4
    %v3020 = vadd.f32 %v3018, %v3019
    %v3021 = vrot.slane %v3020, 2
    %v3022 = vadd.f32 %v3020, %v3021
    %v3023 = vrot.slane %v3022, 1
    %v3024 = vadd.f32 %v3022, %v3023
    %v3025 = vsel %vm1170, %v2505, %v2539
    %v3026 = vsel %vm1170, %v2514, %v2548
    %v3027 = vsel %vm1173, %v3025, %v2573
    %v3028 = vsel %vm1173, %v3026, %v2582
    %v3029 = vsel %vm1176, %v3027, %v2607
    %v3030 = vsel %vm1176, %v3028, %v2616
    %v3031 = vsel %vm1179, %v3029, %v2641
    %v3032 = vsel %vm1179, %v3030, %v2650
    %v3033 = vsel %vm1182, %v3031, %v2675
    %v3034 = vsel %vm1182, %v3032, %v2684
    %v3035 = vsel %vm1185, %v3033, %v2709
    %v3036 = vsel %vm1185, %v3034, %v2718
    %v3037 = vsel %vm1188, %v3035, %v2743
    %v3038 = vsel %vm1188, %v3036, %v2752
    %v3039 = vsel %vm1170, %v2777, %v2811
    %v3040 = vsel %vm1170, %v2786, %v2820
    %v3041 = vsel %vm1173, %v3039, %v2845
    %v3042 = vsel %vm1173, %v3040, %v2854
    %v3043 = vsel %vm1176, %v3041, %v2879
    %v3044 = vsel %vm1176, %v3042, %v2888
    %v3045 = vsel %vm1179, %v3043, %v2913
    %v3046 = vsel %vm1179, %v3044, %v2922
    %v3047 = vsel %vm1182, %v3045, %v2947
    %v3048 = vsel %vm1182, %v3046, %v2956
    %v3049 = vsel %vm1185, %v3047, %v2981
    %v3050 = vsel %vm1185, %v3048, %v2990
    %v3051 = vsel %vm1188, %v3049, %v3015
    %v3052 = vsel %vm1188, %v3050, %v3024
    %v3053 = vld [vmem:[#allocation2 + $0x60] sm:$0xff]
    %v3054 = vld [vmem:[#allocation2 + $0x68] sm:$0xff]
    %v3055 = vld [vmem:[#allocation2 + $0x70] sm:$0xff]
    %v3056 = vld [vmem:[#allocation2 + $0x78] sm:$0xff]
    %v3057 = vadd.f32 %v3053, %v3037
    %v3058 = vadd.f32 %v3054, %v3038
    %v3059 = vadd.f32 %v3055, %v3051
    %v3060 = vadd.f32 %v3056, %v3052
    %3061 = vst [vmem:[#allocation2 + $0x60] sm:$0xff] %v3057
    %3062 = vst [vmem:[#allocation2 + $0x68] sm:$0xff] %v3058
    %3063 = vst [vmem:[#allocation2 + $0x70] sm:$0xff] %v3059
    %3064 = vst [vmem:[#allocation2 + $0x78] sm:$0xff] %v3060
    %v3065 = vld [vmem:[%s3] sm:$0xff]
    %v3066 = vld [vmem:[%s3 + $0x8] sm:$0xff]
    %v3067 = vld [vmem:[%s3 + $0x10] sm:$0xff]
    %v3068 = vld [vmem:[%s3 + $0x18] sm:$0xff]
    %v3069 = vld [vmem:[%s3 + $0x20] sm:$0xff]
    %v3070 = vld [vmem:[%s3 + $0x28] sm:$0xff]
    %v3071 = vld [vmem:[%s3 + $0x30] sm:$0xff]
    %v3072 = vld [vmem:[%s3 + $0x38] sm:$0xff]
    %v3073 = vrot.slane %v3065, 7
    %v3074 = vrot.slane %v3066, 7
    %v3075 = vrot.slane %v3067, 7
    %v3076 = vrot.slane %v3068, 7
    %v3077 = vrot.slane %v3069, 7
    %v3078 = vrot.slane %v3070, 7
    %v3079 = vrot.slane %v3071, 7
    %v3080 = vrot.slane %v3072, 7
    %v3081 = vsel %vm121, %v3077, %v3079
    %v3082 = vsel %vm121, %v3078, %v3080
    %v3083 = vsel %vm121, %v3075, %v3077
    %v3084 = vsel %vm121, %v3076, %v3078
    %v3085 = vsel %vm121, %v3073, %v3075
    %v3086 = vsel %vm121, %v3074, %v3076
    %v3087 = vsel %vm121, %v3079, %v3073
    %v3088 = vsel %vm121, %v3080, %v3074
    %3089 = vrot.lane.b32.xlu0 %v3087, 1
    %v3090 = vpop.permute.xlu0 %3089
    %3091 = vrot.lane.b32.xlu0 %v3085, 1
    %v3092 = vpop.permute.xlu0 %3091
    %3093 = vrot.lane.b32.xlu0 %v3083, 1
    %v3094 = vpop.permute.xlu0 %3093
    %3095 = vrot.lane.b32.xlu0 %v3081, 1
    %v3096 = vpop.permute.xlu0 %3095
    %3097 = vrot.lane.b32.xlu0 %v3088, 1
    %v3098 = vpop.permute.xlu0 %3097
    %3099 = vrot.lane.b32.xlu0 %v3086, 1
    %v3100 = vpop.permute.xlu0 %3099
    %3101 = vrot.lane.b32.xlu0 %v3084, 1
    %v3102 = vpop.permute.xlu0 %3101
    %3103 = vrot.lane.b32.xlu0 %v3082, 1
    %v3104 = vpop.permute.xlu0 %3103
    %v3105 = vsel %vm148, %v3090, %v3098
    %v3106 = vsel %vm148, %v3092, %v3100
    %v3107 = vsel %vm148, %v3094, %v3102
    %v3108 = vsel %vm148, %v3096, %v3104
    %v3109 = vsel %vm148, %v3098, %v3090
    %v3110 = vsel %vm148, %v3100, %v3092
    %v3111 = vsel %vm148, %v3102, %v3094
    %v3112 = vsel %vm148, %v3104, %v3096
    %v3113 = vmul.f32 %v3109, %v168
    %v3114 = vmul.f32 %v3105, %v169
    %v3115 = vmul.f32 %v3110, %v170
    %v3116 = vmul.f32 %v3106, %v171
    %v3117 = vmul.f32 %v3111, %v172
    %v3118 = vmul.f32 %v3107, %v173
    %v3119 = vmul.f32 %v3112, %v174
    %v3120 = vmul.f32 %v3108, %v175
    %s3121 = sld [smem:[#allocation4]]
    %v3122 = vstv %s3121
    %v3123 = vmul.f32 %v3113, %v3122
    %v3124 = vmul.f32 %v3114, %v3122
    %v3125 = vmul.f32 %v3115, %v3122
    %v3126 = vmul.f32 %v3116, %v3122
    %v3127 = vmul.f32 %v3117, %v3122
    %v3128 = vmul.f32 %v3118, %v3122
    %v3129 = vmul.f32 %v3119, %v3122
    %v3130 = vmul.f32 %v3120, %v3122
    %v3131 = vmul.f32 %v3087, %v83
    %v3132 = vmul.f32 %v3088, %v83
    %v3133 = vmul.f32 %v3085, %v84
    %v3134 = vmul.f32 %v3086, %v84
    %v3135 = vmul.f32 %v3083, %v85
    %v3136 = vmul.f32 %v3084, %v85
    %v3137 = vmul.f32 %v3081, %v86
    %v3138 = vmul.f32 %v3082, %v86
    %s3139 = sld [smem:[#allocation4 + $0x1]]
    %v3140 = vstv %s3139
    %v3141 = vmul.f32 %v3131, %v3140
    %v3142 = vmul.f32 %v3132, %v3140
    %v3143 = vmul.f32 %v3133, %v3140
    %v3144 = vmul.f32 %v3134, %v3140
    %v3145 = vmul.f32 %v3135, %v3140
    %v3146 = vmul.f32 %v3136, %v3140
    %v3147 = vmul.f32 %v3137, %v3140
    %v3148 = vmul.f32 %v3138, %v3140
    %v3149 = vadd.f32 %v3123, %v3141
    %v3150 = vadd.f32 %v3124, %v3142
    %v3151 = vadd.f32 %v3125, %v3143
    %v3152 = vadd.f32 %v3126, %v3144
    %v3153 = vadd.f32 %v3127, %v3145
    %v3154 = vadd.f32 %v3128, %v3146
    %v3155 = vadd.f32 %v3129, %v3147
    %v3156 = vadd.f32 %v3130, %v3148
    %3157 = vrot.lane.b32.xlu0 %v3087, 127
    %v3158 = vpop.permute.xlu0 %3157
    %3159 = vrot.lane.b32.xlu0 %v3085, 127
    %v3160 = vpop.permute.xlu0 %3159
    %3161 = vrot.lane.b32.xlu0 %v3083, 127
    %v3162 = vpop.permute.xlu0 %3161
    %3163 = vrot.lane.b32.xlu0 %v3081, 127
    %v3164 = vpop.permute.xlu0 %3163
    %3165 = vrot.lane.b32.xlu0 %v3088, 127
    %v3166 = vpop.permute.xlu0 %3165
    %3167 = vrot.lane.b32.xlu0 %v3086, 127
    %v3168 = vpop.permute.xlu0 %3167
    %3169 = vrot.lane.b32.xlu0 %v3084, 127
    %v3170 = vpop.permute.xlu0 %3169
    %3171 = vrot.lane.b32.xlu0 %v3082, 127
    %v3172 = vpop.permute.xlu0 %3171
    %v3173 = vsel %vm236, %v3158, %v3166
    %v3174 = vsel %vm236, %v3160, %v3168
    %v3175 = vsel %vm236, %v3162, %v3170
    %v3176 = vsel %vm236, %v3164, %v3172
    %v3177 = vsel %vm236, %v3166, %v3158
    %v3178 = vsel %vm236, %v3168, %v3160
    %v3179 = vsel %vm236, %v3170, %v3162
    %v3180 = vsel %vm236, %v3172, %v3164
    %v3181 = vmul.f32 %v3173, %v256
    %v3182 = vmul.f32 %v3177, %v257
    %v3183 = vmul.f32 %v3174, %v258
    %v3184 = vmul.f32 %v3178, %v259
    %v3185 = vmul.f32 %v3175, %v260
    %v3186 = vmul.f32 %v3179, %v261
    %v3187 = vmul.f32 %v3176, %v262
    %v3188 = vmul.f32 %v3180, %v263
    %s3189 = sld [smem:[#allocation4 + $0x2]]
    %v3190 = vstv %s3189
    %v3191 = vmul.f32 %v3181, %v3190
    %v3192 = vmul.f32 %v3182, %v3190
    %v3193 = vmul.f32 %v3183, %v3190
    %v3194 = vmul.f32 %v3184, %v3190
    %v3195 = vmul.f32 %v3185, %v3190
    %v3196 = vmul.f32 %v3186, %v3190
    %v3197 = vmul.f32 %v3187, %v3190
    %v3198 = vmul.f32 %v3188, %v3190
    %v3199 = vadd.f32 %v3149, %v3191
    %v3200 = vadd.f32 %v3150, %v3192
    %v3201 = vadd.f32 %v3151, %v3193
    %v3202 = vadd.f32 %v3152, %v3194
    %v3203 = vadd.f32 %v3153, %v3195
    %v3204 = vadd.f32 %v3154, %v3196
    %v3205 = vadd.f32 %v3155, %v3197
    %v3206 = vadd.f32 %v3156, %v3198
    %3207 = vrot.lane.b32.xlu0 %v3065, 1
    %v3208 = vpop.permute.xlu0 %3207
    %3209 = vrot.lane.b32.xlu0 %v3067, 1
    %v3210 = vpop.permute.xlu0 %3209
    %3211 = vrot.lane.b32.xlu0 %v3069, 1
    %v3212 = vpop.permute.xlu0 %3211
    %3213 = vrot.lane.b32.xlu0 %v3071, 1
    %v3214 = vpop.permute.xlu0 %3213
    %3215 = vrot.lane.b32.xlu0 %v3066, 1
    %v3216 = vpop.permute.xlu0 %3215
    %3217 = vrot.lane.b32.xlu0 %v3068, 1
    %v3218 = vpop.permute.xlu0 %3217
    %3219 = vrot.lane.b32.xlu0 %v3070, 1
    %v3220 = vpop.permute.xlu0 %3219
    %3221 = vrot.lane.b32.xlu0 %v3072, 1
    %v3222 = vpop.permute.xlu0 %3221
    %v3223 = vsel %vm148, %v3208, %v3216
    %v3224 = vsel %vm148, %v3210, %v3218
    %v3225 = vsel %vm148, %v3212, %v3220
    %v3226 = vsel %vm148, %v3214, %v3222
    %v3227 = vsel %vm148, %v3216, %v3208
    %v3228 = vsel %vm148, %v3218, %v3210
    %v3229 = vsel %vm148, %v3220, %v3212
    %v3230 = vsel %vm148, %v3222, %v3214
    %v3231 = vmul.f32 %v3227, %v161
    %v3232 = vmul.f32 %v3223, %v165
    %v3233 = vmul.f32 %v3228, %v161
    %v3234 = vmul.f32 %v3224, %v165
    %v3235 = vmul.f32 %v3229, %v161
    %v3236 = vmul.f32 %v3225, %v165
    %v3237 = vmul.f32 %v3230, %v161
    %v3238 = vmul.f32 %v3226, %v165
    %s3239 = sld [smem:[#allocation4 + $0x3]]
    %v3240 = vstv %s3239
    %v3241 = vmul.f32 %v3231, %v3240
    %v3242 = vmul.f32 %v3232, %v3240
    %v3243 = vmul.f32 %v3233, %v3240
    %v3244 = vmul.f32 %v3234, %v3240
    %v3245 = vmul.f32 %v3235, %v3240
    %v3246 = vmul.f32 %v3236, %v3240
    %v3247 = vmul.f32 %v3237, %v3240
    %v3248 = vmul.f32 %v3238, %v3240
    %v3249 = vadd.f32 %v3199, %v3241
    %v3250 = vadd.f32 %v3200, %v3242
    %v3251 = vadd.f32 %v3201, %v3243
    %v3252 = vadd.f32 %v3202, %v3244
    %v3253 = vadd.f32 %v3203, %v3245
    %v3254 = vadd.f32 %v3204, %v3246
    %v3255 = vadd.f32 %v3205, %v3247
    %v3256 = vadd.f32 %v3206, %v3248
    %s3257 = sld [smem:[#allocation4 + $0x4]]
    %v3258 = vstv %s3257
    %v3259 = vmul.f32 %v3065, %v3258
    %v3260 = vmul.f32 %v3066, %v3258
    %v3261 = vmul.f32 %v3067, %v3258
    %v3262 = vmul.f32 %v3068, %v3258
    %v3263 = vmul.f32 %v3069, %v3258
    %v3264 = vmul.f32 %v3070, %v3258
    %v3265 = vmul.f32 %v3071, %v3258
    %v3266 = vmul.f32 %v3072, %v3258
    %v3267 = vadd.f32 %v3249, %v3259
    %v3268 = vadd.f32 %v3250, %v3260
    %v3269 = vadd.f32 %v3251, %v3261
    %v3270 = vadd.f32 %v3252, %v3262
    %v3271 = vadd.f32 %v3253, %v3263
    %v3272 = vadd.f32 %v3254, %v3264
    %v3273 = vadd.f32 %v3255, %v3265
    %v3274 = vadd.f32 %v3256, %v3266
    %3275 = vrot.lane.b32.xlu0 %v3065, 127
    %v3276 = vpop.permute.xlu0 %3275
    %3277 = vrot.lane.b32.xlu0 %v3067, 127
    %v3278 = vpop.permute.xlu0 %3277
    %3279 = vrot.lane.b32.xlu0 %v3069, 127
    %v3280 = vpop.permute.xlu0 %3279
    %3281 = vrot.lane.b32.xlu0 %v3071, 127
    %v3282 = vpop.permute.xlu0 %3281
    %3283 = vrot.lane.b32.xlu0 %v3066, 127
    %v3284 = vpop.permute.xlu0 %3283
    %3285 = vrot.lane.b32.xlu0 %v3068, 127
    %v3286 = vpop.permute.xlu0 %3285
    %3287 = vrot.lane.b32.xlu0 %v3070, 127
    %v3288 = vpop.permute.xlu0 %3287
    %3289 = vrot.lane.b32.xlu0 %v3072, 127
    %v3290 = vpop.permute.xlu0 %3289
    %v3291 = vsel %vm236, %v3276, %v3284
    %v3292 = vsel %vm236, %v3278, %v3286
    %v3293 = vsel %vm236, %v3280, %v3288
    %v3294 = vsel %vm236, %v3282, %v3290
    %v3295 = vsel %vm236, %v3284, %v3276
    %v3296 = vsel %vm236, %v3286, %v3278
    %v3297 = vsel %vm236, %v3288, %v3280
    %v3298 = vsel %vm236, %v3290, %v3282
    %v3299 = vmul.f32 %v3291, %v249
    %v3300 = vmul.f32 %v3295, %v253
    %v3301 = vmul.f32 %v3292, %v249
    %v3302 = vmul.f32 %v3296, %v253
    %v3303 = vmul.f32 %v3293, %v249
    %v3304 = vmul.f32 %v3297, %v253
    %v3305 = vmul.f32 %v3294, %v249
    %v3306 = vmul.f32 %v3298, %v253
    %s3307 = sld [smem:[#allocation4 + $0x5]]
    %v3308 = vstv %s3307
    %v3309 = vmul.f32 %v3299, %v3308
    %v3310 = vmul.f32 %v3300, %v3308
    %v3311 = vmul.f32 %v3301, %v3308
    %v3312 = vmul.f32 %v3302, %v3308
    %v3313 = vmul.f32 %v3303, %v3308
    %v3314 = vmul.f32 %v3304, %v3308
    %v3315 = vmul.f32 %v3305, %v3308
    %v3316 = vmul.f32 %v3306, %v3308
    %v3317 = vadd.f32 %v3267, %v3309
    %v3318 = vadd.f32 %v3268, %v3310
    %v3319 = vadd.f32 %v3269, %v3311
    %v3320 = vadd.f32 %v3270, %v3312
    %v3321 = vadd.f32 %v3271, %v3313
    %v3322 = vadd.f32 %v3272, %v3314
    %v3323 = vadd.f32 %v3273, %v3315
    %v3324 = vadd.f32 %v3274, %v3316
    %v3325 = vrot.slane %v3065, 1
    %v3326 = vrot.slane %v3066, 1
    %v3327 = vrot.slane %v3067, 1
    %v3328 = vrot.slane %v3068, 1
    %v3329 = vrot.slane %v3069, 1
    %v3330 = vrot.slane %v3070, 1
    %v3331 = vrot.slane %v3071, 1
    %v3332 = vrot.slane %v3072, 1
    %v3333 = vsel %vm416, %v3329, %v3331
    %v3334 = vsel %vm416, %v3330, %v3332
    %v3335 = vsel %vm416, %v3327, %v3329
    %v3336 = vsel %vm416, %v3328, %v3330
    %v3337 = vsel %vm416, %v3325, %v3327
    %v3338 = vsel %vm416, %v3326, %v3328
    %v3339 = vsel %vm416, %v3331, %v3325
    %v3340 = vsel %vm416, %v3332, %v3326
    %3341 = vrot.lane.b32.xlu0 %v3337, 1
    %v3342 = vpop.permute.xlu0 %3341
    %3343 = vrot.lane.b32.xlu0 %v3335, 1
    %v3344 = vpop.permute.xlu0 %3343
    %3345 = vrot.lane.b32.xlu0 %v3333, 1
    %v3346 = vpop.permute.xlu0 %3345
    %3347 = vrot.lane.b32.xlu0 %v3339, 1
    %v3348 = vpop.permute.xlu0 %3347
    %3349 = vrot.lane.b32.xlu0 %v3338, 1
    %v3350 = vpop.permute.xlu0 %3349
    %3351 = vrot.lane.b32.xlu0 %v3336, 1
    %v3352 = vpop.permute.xlu0 %3351
    %3353 = vrot.lane.b32.xlu0 %v3334, 1
    %v3354 = vpop.permute.xlu0 %3353
    %3355 = vrot.lane.b32.xlu0 %v3340, 1
    %v3356 = vpop.permute.xlu0 %3355
    %v3357 = vsel %vm148, %v3342, %v3350
    %v3358 = vsel %vm148, %v3344, %v3352
    %v3359 = vsel %vm148, %v3346, %v3354
    %v3360 = vsel %vm148, %v3348, %v3356
    %v3361 = vsel %vm148, %v3350, %v3342
    %v3362 = vsel %vm148, %v3352, %v3344
    %v3363 = vsel %vm148, %v3354, %v3346
    %v3364 = vsel %vm148, %v3356, %v3348
    %v3365 = vmul.f32 %v3361, %v449
    %v3366 = vmul.f32 %v3357, %v450
    %v3367 = vmul.f32 %v3362, %v451
    %v3368 = vmul.f32 %v3358, %v452
    %v3369 = vmul.f32 %v3363, %v453
    %v3370 = vmul.f32 %v3359, %v454
    %v3371 = vmul.f32 %v3364, %v455
    %v3372 = vmul.f32 %v3360, %v456
    %s3373 = sld [smem:[#allocation4 + $0x6]]
    %v3374 = vstv %s3373
    %v3375 = vmul.f32 %v3365, %v3374
    %v3376 = vmul.f32 %v3366, %v3374
    %v3377 = vmul.f32 %v3367, %v3374
    %v3378 = vmul.f32 %v3368, %v3374
    %v3379 = vmul.f32 %v3369, %v3374
    %v3380 = vmul.f32 %v3370, %v3374
    %v3381 = vmul.f32 %v3371, %v3374
    %v3382 = vmul.f32 %v3372, %v3374
    %v3383 = vadd.f32 %v3317, %v3375
    %v3384 = vadd.f32 %v3318, %v3376
    %v3385 = vadd.f32 %v3319, %v3377
    %v3386 = vadd.f32 %v3320, %v3378
    %v3387 = vadd.f32 %v3321, %v3379
    %v3388 = vadd.f32 %v3322, %v3380
    %v3389 = vadd.f32 %v3323, %v3381
    %v3390 = vadd.f32 %v3324, %v3382
    %v3391 = vmul.f32 %v3337, %v95
    %v3392 = vmul.f32 %v3338, %v95
    %v3393 = vmul.f32 %v3335, %v96
    %v3394 = vmul.f32 %v3336, %v96
    %v3395 = vmul.f32 %v3333, %v97
    %v3396 = vmul.f32 %v3334, %v97
    %v3397 = vmul.f32 %v3339, %v98
    %v3398 = vmul.f32 %v3340, %v98
    %s3399 = sld [smem:[#allocation4 + $0x7]]
    %v3400 = vstv %s3399
    %v3401 = vmul.f32 %v3391, %v3400
    %v3402 = vmul.f32 %v3392, %v3400
    %v3403 = vmul.f32 %v3393, %v3400
    %v3404 = vmul.f32 %v3394, %v3400
    %v3405 = vmul.f32 %v3395, %v3400
    %v3406 = vmul.f32 %v3396, %v3400
    %v3407 = vmul.f32 %v3397, %v3400
    %v3408 = vmul.f32 %v3398, %v3400
    %v3409 = vadd.f32 %v3383, %v3401
    %v3410 = vadd.f32 %v3384, %v3402
    %v3411 = vadd.f32 %v3385, %v3403
    %v3412 = vadd.f32 %v3386, %v3404
    %v3413 = vadd.f32 %v3387, %v3405
    %v3414 = vadd.f32 %v3388, %v3406
    %v3415 = vadd.f32 %v3389, %v3407
    %v3416 = vadd.f32 %v3390, %v3408
    %3417 = vrot.lane.b32.xlu0 %v3337, 127
    %v3418 = vpop.permute.xlu0 %3417
    %3419 = vrot.lane.b32.xlu0 %v3335, 127
    %v3420 = vpop.permute.xlu0 %3419
    %3421 = vrot.lane.b32.xlu0 %v3333, 127
    %v3422 = vpop.permute.xlu0 %3421
    %3423 = vrot.lane.b32.xlu0 %v3339, 127
    %v3424 = vpop.permute.xlu0 %3423
    %3425 = vrot.lane.b32.xlu0 %v3338, 127
    %v3426 = vpop.permute.xlu0 %3425
    %3427 = vrot.lane.b32.xlu0 %v3336, 127
    %v3428 = vpop.permute.xlu0 %3427
    %3429 = vrot.lane.b32.xlu0 %v3334, 127
    %v3430 = vpop.permute.xlu0 %3429
    %3431 = vrot.lane.b32.xlu0 %v3340, 127
    %v3432 = vpop.permute.xlu0 %3431
    %v3433 = vsel %vm236, %v3418, %v3426
    %v3434 = vsel %vm236, %v3420, %v3428
    %v3435 = vsel %vm236, %v3422, %v3430
    %v3436 = vsel %vm236, %v3424, %v3432
    %v3437 = vsel %vm236, %v3426, %v3418
    %v3438 = vsel %vm236, %v3428, %v3420
    %v3439 = vsel %vm236, %v3430, %v3422
    %v3440 = vsel %vm236, %v3432, %v3424
    %v3441 = vmul.f32 %v3433, %v533
    %v3442 = vmul.f32 %v3437, %v534
    %v3443 = vmul.f32 %v3434, %v535
    %v3444 = vmul.f32 %v3438, %v536
    %v3445 = vmul.f32 %v3435, %v537
    %v3446 = vmul.f32 %v3439, %v538
    %v3447 = vmul.f32 %v3436, %v539
    %v3448 = vmul.f32 %v3440, %v540
    %s3449 = sld [smem:[#allocation4 + $0x8]]
    %v3450 = vstv %s3449
    %v3451 = vmul.f32 %v3441, %v3450
    %v3452 = vmul.f32 %v3442, %v3450
    %v3453 = vmul.f32 %v3443, %v3450
    %v3454 = vmul.f32 %v3444, %v3450
    %v3455 = vmul.f32 %v3445, %v3450
    %v3456 = vmul.f32 %v3446, %v3450
    %v3457 = vmul.f32 %v3447, %v3450
    %v3458 = vmul.f32 %v3448, %v3450
    %v3459 = vadd.f32 %v3409, %v3451
    %v3460 = vadd.f32 %v3410, %v3452
    %v3461 = vadd.f32 %v3411, %v3453
    %v3462 = vadd.f32 %v3412, %v3454
    %v3463 = vadd.f32 %v3413, %v3455
    %v3464 = vadd.f32 %v3414, %v3456
    %v3465 = vadd.f32 %v3415, %v3457
    %v3466 = vadd.f32 %v3416, %v3458
    %v3467 = vmul.f32 %v3459, 0.06349207
    %v3468 = vmul.f32 %v3460, 0.06349207
    %v3469 = vmul.f32 %v3461, 0.06349207
    %v3470 = vmul.f32 %v3462, 0.06349207
    %v3471 = vmul.f32 %v3463, 0.06349207
    %v3472 = vmul.f32 %v3464, 0.06349207
    %v3473 = vmul.f32 %v3465, 0.06349207
    %v3474 = vmul.f32 %v3466, 0.06349207
    %v3475 = vmul.f32 %v3467, 1.442695
    %v3476 = vpow.pop %v3475
    %v3477 = vmul.f32 %v3468, 1.442695
    %v3478 = vpow.pop %v3477
    %v3479 = vmul.f32 %v3469, 1.442695
    %v3480 = vpow.pop %v3479
    %v3481 = vmul.f32 %v3470, 1.442695
    %v3482 = vpow.pop %v3481
    %v3483 = vmul.f32 %v3471, 1.442695
    %v3484 = vpow.pop %v3483
    %v3485 = vmul.f32 %v3472, 1.442695
    %v3486 = vpow.pop %v3485
    %v3487 = vmul.f32 %v3473, 1.442695
    %v3488 = vpow.pop %v3487
    %v3489 = vmul.f32 %v3474, 1.442695
    %v3490 = vpow.pop %v3489
    %v3491 = vmul.f32 %v3459, %v3459
    %v3492 = vmul.f32 %v3460, %v3460
    %v3493 = vmul.f32 %v3461, %v3461
    %v3494 = vmul.f32 %v3462, %v3462
    %v3495 = vmul.f32 %v3463, %v3463
    %v3496 = vmul.f32 %v3464, %v3464
    %v3497 = vmul.f32 %v3465, %v3465
    %v3498 = vmul.f32 %v3466, %v3466
    %v3499 = vmul.f32 %v3491, -2.0
    %v3500 = vmul.f32 %v3492, -2.0
    %v3501 = vmul.f32 %v3493, -2.0
    %v3502 = vmul.f32 %v3494, -2.0
    %v3503 = vmul.f32 %v3495, -2.0
    %v3504 = vmul.f32 %v3496, -2.0
    %v3505 = vmul.f32 %v3497, -2.0
    %v3506 = vmul.f32 %v3498, -2.0
    %v3507 = vmul.f32 %v3499, 1.442695
    %v3508 = vpow.pop %v3507
    %v3509 = vmul.f32 %v3500, 1.442695
    %v3510 = vpow.pop %v3509
    %v3511 = vmul.f32 %v3501, 1.442695
    %v3512 = vpow.pop %v3511
    %v3513 = vmul.f32 %v3502, 1.442695
    %v3514 = vpow.pop %v3513
    %v3515 = vmul.f32 %v3503, 1.442695
    %v3516 = vpow.pop %v3515
    %v3517 = vmul.f32 %v3504, 1.442695
    %v3518 = vpow.pop %v3517
    %v3519 = vmul.f32 %v3505, 1.442695
    %v3520 = vpow.pop %v3519
    %v3521 = vmul.f32 %v3506, 1.442695
    %v3522 = vpow.pop %v3521
    %v3523 = vmul.f32 %v3508, %v627
    %v3524 = vmul.f32 %v3510, %v631
    %v3525 = vmul.f32 %v3512, %v627
    %v3526 = vmul.f32 %v3514, %v631
    %v3527 = vmul.f32 %v3516, %v627
    %v3528 = vmul.f32 %v3518, %v631
    %v3529 = vmul.f32 %v3520, %v627
    %v3530 = vmul.f32 %v3522, %v631
    %v3531 = vadd.f32 %v3523, %v3525
    %v3532 = vadd.f32 %v3531, %v3527
    %v3533 = vadd.f32 %v3532, %v3529
    %v3534 = vrot.slane %v3533, 4
    %v3535 = vadd.f32 %v3533, %v3534
    %v3536 = vrot.slane %v3535, 2
    %v3537 = vadd.f32 %v3535, %v3536
    %v3538 = vrot.slane %v3537, 1
    %v3539 = vadd.f32 %v3537, %v3538
    %v3540 = vadd.f32 %v3524, %v3526
    %v3541 = vadd.f32 %v3540, %v3528
    %v3542 = vadd.f32 %v3541, %v3530
    %v3543 = vrot.slane %v3542, 4
    %v3544 = vadd.f32 %v3542, %v3543
    %v3545 = vrot.slane %v3544, 2
    %v3546 = vadd.f32 %v3544, %v3545
    %v3547 = vrot.slane %v3546, 1
    %v3548 = vadd.f32 %v3546, %v3547
    %v3549 = vmul.f32 %v3523, %v3476
    %v3550 = vmul.f32 %v3524, %v3478
    %v3551 = vmul.f32 %v3525, %v3480
    %v3552 = vmul.f32 %v3526, %v3482
    %v3553 = vmul.f32 %v3527, %v3484
    %v3554 = vmul.f32 %v3528, %v3486
    %v3555 = vmul.f32 %v3529, %v3488
    %v3556 = vmul.f32 %v3530, %v3490
    %v3557 = vmul.f32 %v3549, 0.9994962
    %v3558 = vmul.f32 %v3550, 0.9994962
    %v3559 = vmul.f32 %v3551, 0.9994962
    %v3560 = vmul.f32 %v3552, 0.9994962
    %v3561 = vmul.f32 %v3553, 0.9994962
    %v3562 = vmul.f32 %v3554, 0.9994962
    %v3563 = vmul.f32 %v3555, 0.9994962
    %v3564 = vmul.f32 %v3556, 0.9994962
    %v3565 = vadd.f32 %v3557, %v3559
    %v3566 = vadd.f32 %v3565, %v3561
    %v3567 = vadd.f32 %v3566, %v3563
    %v3568 = vrot.slane %v3567, 4
    %v3569 = vadd.f32 %v3567, %v3568
    %v3570 = vrot.slane %v3569, 2
    %v3571 = vadd.f32 %v3569, %v3570
    %v3572 = vrot.slane %v3571, 1
    %v3573 = vadd.f32 %v3571, %v3572
    %v3574 = vadd.f32 %v3558, %v3560
    %v3575 = vadd.f32 %v3574, %v3562
    %v3576 = vadd.f32 %v3575, %v3564
    %v3577 = vrot.slane %v3576, 4
    %v3578 = vadd.f32 %v3576, %v3577
    %v3579 = vrot.slane %v3578, 2
    %v3580 = vadd.f32 %v3578, %v3579
    %v3581 = vrot.slane %v3580, 1
    %v3582 = vadd.f32 %v3580, %v3581
    %v3583 = vmul.f32 %v3557, %v3476
    %v3584 = vmul.f32 %v3558, %v3478
    %v3585 = vmul.f32 %v3559, %v3480
    %v3586 = vmul.f32 %v3560, %v3482
    %v3587 = vmul.f32 %v3561, %v3484
    %v3588 = vmul.f32 %v3562, %v3486
    %v3589 = vmul.f32 %v3563, %v3488
    %v3590 = vmul.f32 %v3564, %v3490
    %v3591 = vmul.f32 %v3583, 0.99848944
    %v3592 = vmul.f32 %v3584, 0.99848944
    %v3593 = vmul.f32 %v3585, 0.99848944
    %v3594 = vmul.f32 %v3586, 0.99848944
    %v3595 = vmul.f32 %v3587, 0.99848944
    %v3596 = vmul.f32 %v3588, 0.99848944
    %v3597 = vmul.f32 %v3589, 0.99848944
    %v3598 = vmul.f32 %v3590, 0.99848944
    %v3599 = vadd.f32 %v3591, %v3593
    %v3600 = vadd.f32 %v3599, %v3595
    %v3601 = vadd.f32 %v3600, %v3597
    %v3602 = vrot.slane %v3601, 4
    %v3603 = vadd.f32 %v3601, %v3602
    %v3604 = vrot.slane %v3603, 2
    %v3605 = vadd.f32 %v3603, %v3604
    %v3606 = vrot.slane %v3605, 1
    %v3607 = vadd.f32 %v3605, %v3606
    %v3608 = vadd.f32 %v3592, %v3594
    %v3609 = vadd.f32 %v3608, %v3596
    %v3610 = vadd.f32 %v3609, %v3598
    %v3611 = vrot.slane %v3610, 4
    %v3612 = vadd.f32 %v3610, %v3611
    %v3613 = vrot.slane %v3612, 2
    %v3614 = vadd.f32 %v3612, %v3613
    %v3615 = vrot.slane %v3614, 1
    %v3616 = vadd.f32 %v3614, %v3615
    %v3617 = vmul.f32 %v3591, %v3476
    %v3618 = vmul.f32 %v3592, %v3478
    %v3619 = vmul.f32 %v3593, %v3480
    %v3620 = vmul.f32 %v3594, %v3482
    %v3621 = vmul.f32 %v3595, %v3484
    %v3622 = vmul.f32 %v3596, %v3486
    %v3623 = vmul.f32 %v3597, %v3488
    %v3624 = vmul.f32 %v3598, %v3490
    %v3625 = vmul.f32 %v3617, 0.9974837
    %v3626 = vmul.f32 %v3618, 0.9974837
    %v3627 = vmul.f32 %v3619, 0.9974837
    %v3628 = vmul.f32 %v3620, 0.9974837
    %v3629 = vmul.f32 %v3621, 0.9974837
    %v3630 = vmul.f32 %v3622, 0.9974837
    %v3631 = vmul.f32 %v3623, 0.9974837
    %v3632 = vmul.f32 %v3624, 0.9974837
    %v3633 = vadd.f32 %v3625, %v3627
    %v3634 = vadd.f32 %v3633, %v3629
    %v3635 = vadd.f32 %v3634, %v3631
    %v3636 = vrot.slane %v3635, 4
    %v3637 = vadd.f32 %v3635, %v3636
    %v3638 = vrot.slane %v3637, 2
    %v3639 = vadd.f32 %v3637, %v3638
    %v3640 = vrot.slane %v3639, 1
    %v3641 = vadd.f32 %v3639, %v3640
    %v3642 = vadd.f32 %v3626, %v3628
    %v3643 = vadd.f32 %v3642, %v3630
    %v3644 = vadd.f32 %v3643, %v3632
    %v3645 = vrot.slane %v3644, 4
    %v3646 = vadd.f32 %v3644, %v3645
    %v3647 = vrot.slane %v3646, 2
    %v3648 = vadd.f32 %v3646, %v3647
    %v3649 = vrot.slane %v3648, 1
    %v3650 = vadd.f32 %v3648, %v3649
    %v3651 = vmul.f32 %v3625, %v3476
    %v3652 = vmul.f32 %v3626, %v3478
    %v3653 = vmul.f32 %v3627, %v3480
    %v3654 = vmul.f32 %v3628, %v3482
    %v3655 = vmul.f32 %v3629, %v3484
    %v3656 = vmul.f32 %v3630, %v3486
    %v3657 = vmul.f32 %v3631, %v3488
    %v3658 = vmul.f32 %v3632, %v3490
    %v3659 = vmul.f32 %v3651, 0.99647886
    %v3660 = vmul.f32 %v3652, 0.99647886
    %v3661 = vmul.f32 %v3653, 0.99647886
    %v3662 = vmul.f32 %v3654, 0.99647886
    %v3663 = vmul.f32 %v3655, 0.99647886
    %v3664 = vmul.f32 %v3656, 0.99647886
    %v3665 = vmul.f32 %v3657, 0.99647886
    %v3666 = vmul.f32 %v3658, 0.99647886
    %v3667 = vadd.f32 %v3659, %v3661
    %v3668 = vadd.f32 %v3667, %v3663
    %v3669 = vadd.f32 %v3668, %v3665
    %v3670 = vrot.slane %v3669, 4
    %v3671 = vadd.f32 %v3669, %v3670
    %v3672 = vrot.slane %v3671, 2
    %v3673 = vadd.f32 %v3671, %v3672
    %v3674 = vrot.slane %v3673, 1
    %v3675 = vadd.f32 %v3673, %v3674
    %v3676 = vadd.f32 %v3660, %v3662
    %v3677 = vadd.f32 %v3676, %v3664
    %v3678 = vadd.f32 %v3677, %v3666
    %v3679 = vrot.slane %v3678, 4
    %v3680 = vadd.f32 %v3678, %v3679
    %v3681 = vrot.slane %v3680, 2
    %v3682 = vadd.f32 %v3680, %v3681
    %v3683 = vrot.slane %v3682, 1
    %v3684 = vadd.f32 %v3682, %v3683
    %v3685 = vmul.f32 %v3659, %v3476
    %v3686 = vmul.f32 %v3660, %v3478
    %v3687 = vmul.f32 %v3661, %v3480
    %v3688 = vmul.f32 %v3662, %v3482
    %v3689 = vmul.f32 %v3663, %v3484
    %v3690 = vmul.f32 %v3664, %v3486
    %v3691 = vmul.f32 %v3665, %v3488
    %v3692 = vmul.f32 %v3666, %v3490
    %v3693 = vmul.f32 %v3685, 0.9954751
    %v3694 = vmul.f32 %v3686, 0.9954751
    %v3695 = vmul.f32 %v3687, 0.9954751
    %v3696 = vmul.f32 %v3688, 0.9954751
    %v3697 = vmul.f32 %v3689, 0.9954751
    %v3698 = vmul.f32 %v3690, 0.9954751
    %v3699 = vmul.f32 %v3691, 0.9954751
    %v3700 = vmul.f32 %v3692, 0.9954751
    %v3701 = vadd.f32 %v3693, %v3695
    %v3702 = vadd.f32 %v3701, %v3697
    %v3703 = vadd.f32 %v3702, %v3699
    %v3704 = vrot.slane %v3703, 4
    %v3705 = vadd.f32 %v3703, %v3704
    %v3706 = vrot.slane %v3705, 2
    %v3707 = vadd.f32 %v3705, %v3706
    %v3708 = vrot.slane %v3707, 1
    %v3709 = vadd.f32 %v3707, %v3708
    %v3710 = vadd.f32 %v3694, %v3696
    %v3711 = vadd.f32 %v3710, %v3698
    %v3712 = vadd.f32 %v3711, %v3700
    %v3713 = vrot.slane %v3712, 4
    %v3714 = vadd.f32 %v3712, %v3713
    %v3715 = vrot.slane %v3714, 2
    %v3716 = vadd.f32 %v3714, %v3715
    %v3717 = vrot.slane %v3716, 1
    %v3718 = vadd.f32 %v3716, %v3717
    %v3719 = vmul.f32 %v3693, %v3476
    %v3720 = vmul.f32 %v3694, %v3478
    %v3721 = vmul.f32 %v3695, %v3480
    %v3722 = vmul.f32 %v3696, %v3482
    %v3723 = vmul.f32 %v3697, %v3484
    %v3724 = vmul.f32 %v3698, %v3486
    %v3725 = vmul.f32 %v3699, %v3488
    %v3726 = vmul.f32 %v3700, %v3490
    %v3727 = vmul.f32 %v3719, 0.9944724
    %v3728 = vmul.f32 %v3720, 0.9944724
    %v3729 = vmul.f32 %v3721, 0.9944724
    %v3730 = vmul.f32 %v3722, 0.9944724
    %v3731 = vmul.f32 %v3723, 0.9944724
    %v3732 = vmul.f32 %v3724, 0.9944724
    %v3733 = vmul.f32 %v3725, 0.9944724
    %v3734 = vmul.f32 %v3726, 0.9944724
    %v3735 = vadd.f32 %v3727, %v3729
    %v3736 = vadd.f32 %v3735, %v3731
    %v3737 = vadd.f32 %v3736, %v3733
    %v3738 = vrot.slane %v3737, 4
    %v3739 = vadd.f32 %v3737, %v3738
    %v3740 = vrot.slane %v3739, 2
    %v3741 = vadd.f32 %v3739, %v3740
    %v3742 = vrot.slane %v3741, 1
    %v3743 = vadd.f32 %v3741, %v3742
    %v3744 = vadd.f32 %v3728, %v3730
    %v3745 = vadd.f32 %v3744, %v3732
    %v3746 = vadd.f32 %v3745, %v3734
    %v3747 = vrot.slane %v3746, 4
    %v3748 = vadd.f32 %v3746, %v3747
    %v3749 = vrot.slane %v3748, 2
    %v3750 = vadd.f32 %v3748, %v3749
    %v3751 = vrot.slane %v3750, 1
    %v3752 = vadd.f32 %v3750, %v3751
    %v3753 = vmul.f32 %v3727, %v3476
    %v3754 = vmul.f32 %v3728, %v3478
    %v3755 = vmul.f32 %v3729, %v3480
    %v3756 = vmul.f32 %v3730, %v3482
    %v3757 = vmul.f32 %v3731, %v3484
    %v3758 = vmul.f32 %v3732, %v3486
    %v3759 = vmul.f32 %v3733, %v3488
    %v3760 = vmul.f32 %v3734, %v3490
    %v3761 = vmul.f32 %v3753, 0.99347067
    %v3762 = vmul.f32 %v3754, 0.99347067
    %v3763 = vmul.f32 %v3755, 0.99347067
    %v3764 = vmul.f32 %v3756, 0.99347067
    %v3765 = vmul.f32 %v3757, 0.99347067
    %v3766 = vmul.f32 %v3758, 0.99347067
    %v3767 = vmul.f32 %v3759, 0.99347067
    %v3768 = vmul.f32 %v3760, 0.99347067
    %v3769 = vadd.f32 %v3761, %v3763
    %v3770 = vadd.f32 %v3769, %v3765
    %v3771 = vadd.f32 %v3770, %v3767
    %v3772 = vrot.slane %v3771, 4
    %v3773 = vadd.f32 %v3771, %v3772
    %v3774 = vrot.slane %v3773, 2
    %v3775 = vadd.f32 %v3773, %v3774
    %v3776 = vrot.slane %v3775, 1
    %v3777 = vadd.f32 %v3775, %v3776
    %v3778 = vadd.f32 %v3762, %v3764
    %v3779 = vadd.f32 %v3778, %v3766
    %v3780 = vadd.f32 %v3779, %v3768
    %v3781 = vrot.slane %v3780, 4
    %v3782 = vadd.f32 %v3780, %v3781
    %v3783 = vrot.slane %v3782, 2
    %v3784 = vadd.f32 %v3782, %v3783
    %v3785 = vrot.slane %v3784, 1
    %v3786 = vadd.f32 %v3784, %v3785
    %v3787 = vmul.f32 %v3761, %v3476
    %v3788 = vmul.f32 %v3762, %v3478
    %v3789 = vmul.f32 %v3763, %v3480
    %v3790 = vmul.f32 %v3764, %v3482
    %v3791 = vmul.f32 %v3765, %v3484
    %v3792 = vmul.f32 %v3766, %v3486
    %v3793 = vmul.f32 %v3767, %v3488
    %v3794 = vmul.f32 %v3768, %v3490
    %v3795 = vmul.f32 %v3787, 0.9924699
    %v3796 = vmul.f32 %v3788, 0.9924699
    %v3797 = vmul.f32 %v3789, 0.9924699
    %v3798 = vmul.f32 %v3790, 0.9924699
    %v3799 = vmul.f32 %v3791, 0.9924699
    %v3800 = vmul.f32 %v3792, 0.9924699
    %v3801 = vmul.f32 %v3793, 0.9924699
    %v3802 = vmul.f32 %v3794, 0.9924699
    %v3803 = vadd.f32 %v3795, %v3797
    %v3804 = vadd.f32 %v3803, %v3799
    %v3805 = vadd.f32 %v3804, %v3801
    %v3806 = vrot.slane %v3805, 4
    %v3807 = vadd.f32 %v3805, %v3806
    %v3808 = vrot.slane %v3807, 2
    %v3809 = vadd.f32 %v3807, %v3808
    %v3810 = vrot.slane %v3809, 1
    %v3811 = vadd.f32 %v3809, %v3810
    %v3812 = vadd.f32 %v3796, %v3798
    %v3813 = vadd.f32 %v3812, %v3800
    %v3814 = vadd.f32 %v3813, %v3802
    %v3815 = vrot.slane %v3814, 4
    %v3816 = vadd.f32 %v3814, %v3815
    %v3817 = vrot.slane %v3816, 2
    %v3818 = vadd.f32 %v3816, %v3817
    %v3819 = vrot.slane %v3818, 1
    %v3820 = vadd.f32 %v3818, %v3819
    %v3821 = vmul.f32 %v3795, %v3476
    %v3822 = vmul.f32 %v3796, %v3478
    %v3823 = vmul.f32 %v3797, %v3480
    %v3824 = vmul.f32 %v3798, %v3482
    %v3825 = vmul.f32 %v3799, %v3484
    %v3826 = vmul.f32 %v3800, %v3486
    %v3827 = vmul.f32 %v3801, %v3488
    %v3828 = vmul.f32 %v3802, %v3490
    %v3829 = vmul.f32 %v3821, 0.9914702
    %v3830 = vmul.f32 %v3822, 0.9914702
    %v3831 = vmul.f32 %v3823, 0.9914702
    %v3832 = vmul.f32 %v3824, 0.9914702
    %v3833 = vmul.f32 %v3825, 0.9914702
    %v3834 = vmul.f32 %v3826, 0.9914702
    %v3835 = vmul.f32 %v3827, 0.9914702
    %v3836 = vmul.f32 %v3828, 0.9914702
    %v3837 = vadd.f32 %v3829, %v3831
    %v3838 = vadd.f32 %v3837, %v3833
    %v3839 = vadd.f32 %v3838, %v3835
    %v3840 = vrot.slane %v3839, 4
    %v3841 = vadd.f32 %v3839, %v3840
    %v3842 = vrot.slane %v3841, 2
    %v3843 = vadd.f32 %v3841, %v3842
    %v3844 = vrot.slane %v3843, 1
    %v3845 = vadd.f32 %v3843, %v3844
    %v3846 = vadd.f32 %v3830, %v3832
    %v3847 = vadd.f32 %v3846, %v3834
    %v3848 = vadd.f32 %v3847, %v3836
    %v3849 = vrot.slane %v3848, 4
    %v3850 = vadd.f32 %v3848, %v3849
    %v3851 = vrot.slane %v3850, 2
    %v3852 = vadd.f32 %v3850, %v3851
    %v3853 = vrot.slane %v3852, 1
    %v3854 = vadd.f32 %v3852, %v3853
    %v3855 = vmul.f32 %v3829, %v3476
    %v3856 = vmul.f32 %v3830, %v3478
    %v3857 = vmul.f32 %v3831, %v3480
    %v3858 = vmul.f32 %v3832, %v3482
    %v3859 = vmul.f32 %v3833, %v3484
    %v3860 = vmul.f32 %v3834, %v3486
    %v3861 = vmul.f32 %v3835, %v3488
    %v3862 = vmul.f32 %v3836, %v3490
    %v3863 = vmul.f32 %v3855, 0.9904715
    %v3864 = vmul.f32 %v3856, 0.9904715
    %v3865 = vmul.f32 %v3857, 0.9904715
    %v3866 = vmul.f32 %v3858, 0.9904715
    %v3867 = vmul.f32 %v3859, 0.9904715
    %v3868 = vmul.f32 %v3860, 0.9904715
    %v3869 = vmul.f32 %v3861, 0.9904715
    %v3870 = vmul.f32 %v3862, 0.9904715
    %v3871 = vadd.f32 %v3863, %v3865
    %v3872 = vadd.f32 %v3871, %v3867
    %v3873 = vadd.f32 %v3872, %v3869
    %v3874 = vrot.slane %v3873, 4
    %v3875 = vadd.f32 %v3873, %v3874
    %v3876 = vrot.slane %v3875, 2
    %v3877 = vadd.f32 %v3875, %v3876
    %v3878 = vrot.slane %v3877, 1
    %v3879 = vadd.f32 %v3877, %v3878
    %v3880 = vadd.f32 %v3864, %v3866
    %v3881 = vadd.f32 %v3880, %v3868
    %v3882 = vadd.f32 %v3881, %v3870
    %v3883 = vrot.slane %v3882, 4
    %v3884 = vadd.f32 %v3882, %v3883
    %v3885 = vrot.slane %v3884, 2
    %v3886 = vadd.f32 %v3884, %v3885
    %v3887 = vrot.slane %v3886, 1
    %v3888 = vadd.f32 %v3886, %v3887
    %v3889 = vmul.f32 %v3863, %v3476
    %v3890 = vmul.f32 %v3864, %v3478
    %v3891 = vmul.f32 %v3865, %v3480
    %v3892 = vmul.f32 %v3866, %v3482
    %v3893 = vmul.f32 %v3867, %v3484
    %v3894 = vmul.f32 %v3868, %v3486
    %v3895 = vmul.f32 %v3869, %v3488
    %v3896 = vmul.f32 %v3870, %v3490
    %v3897 = vmul.f32 %v3889, 0.98947376
    %v3898 = vmul.f32 %v3890, 0.98947376
    %v3899 = vmul.f32 %v3891, 0.98947376
    %v3900 = vmul.f32 %v3892, 0.98947376
    %v3901 = vmul.f32 %v3893, 0.98947376
    %v3902 = vmul.f32 %v3894, 0.98947376
    %v3903 = vmul.f32 %v3895, 0.98947376
    %v3904 = vmul.f32 %v3896, 0.98947376
    %v3905 = vadd.f32 %v3897, %v3899
    %v3906 = vadd.f32 %v3905, %v3901
    %v3907 = vadd.f32 %v3906, %v3903
    %v3908 = vrot.slane %v3907, 4
    %v3909 = vadd.f32 %v3907, %v3908
    %v3910 = vrot.slane %v3909, 2
    %v3911 = vadd.f32 %v3909, %v3910
    %v3912 = vrot.slane %v3911, 1
    %v3913 = vadd.f32 %v3911, %v3912
    %v3914 = vadd.f32 %v3898, %v3900
    %v3915 = vadd.f32 %v3914, %v3902
    %v3916 = vadd.f32 %v3915, %v3904
    %v3917 = vrot.slane %v3916, 4
    %v3918 = vadd.f32 %v3916, %v3917
    %v3919 = vrot.slane %v3918, 2
    %v3920 = vadd.f32 %v3918, %v3919
    %v3921 = vrot.slane %v3920, 1
    %v3922 = vadd.f32 %v3920, %v3921
    %v3923 = vmul.f32 %v3897, %v3476
    %v3924 = vmul.f32 %v3898, %v3478
    %v3925 = vmul.f32 %v3899, %v3480
    %v3926 = vmul.f32 %v3900, %v3482
    %v3927 = vmul.f32 %v3901, %v3484
    %v3928 = vmul.f32 %v3902, %v3486
    %v3929 = vmul.f32 %v3903, %v3488
    %v3930 = vmul.f32 %v3904, %v3490
    %v3931 = vmul.f32 %v3923, 0.9884771
    %v3932 = vmul.f32 %v3924, 0.9884771
    %v3933 = vmul.f32 %v3925, 0.9884771
    %v3934 = vmul.f32 %v3926, 0.9884771
    %v3935 = vmul.f32 %v3927, 0.9884771
    %v3936 = vmul.f32 %v3928, 0.9884771
    %v3937 = vmul.f32 %v3929, 0.9884771
    %v3938 = vmul.f32 %v3930, 0.9884771
    %v3939 = vadd.f32 %v3931, %v3933
    %v3940 = vadd.f32 %v3939, %v3935
    %v3941 = vadd.f32 %v3940, %v3937
    %v3942 = vrot.slane %v3941, 4
    %v3943 = vadd.f32 %v3941, %v3942
    %v3944 = vrot.slane %v3943, 2
    %v3945 = vadd.f32 %v3943, %v3944
    %v3946 = vrot.slane %v3945, 1
    %v3947 = vadd.f32 %v3945, %v3946
    %v3948 = vadd.f32 %v3932, %v3934
    %v3949 = vadd.f32 %v3948, %v3936
    %v3950 = vadd.f32 %v3949, %v3938
    %v3951 = vrot.slane %v3950, 4
    %v3952 = vadd.f32 %v3950, %v3951
    %v3953 = vrot.slane %v3952, 2
    %v3954 = vadd.f32 %v3952, %v3953
    %v3955 = vrot.slane %v3954, 1
    %v3956 = vadd.f32 %v3954, %v3955
    %v3957 = vmul.f32 %v3931, %v3476
    %v3958 = vmul.f32 %v3932, %v3478
    %v3959 = vmul.f32 %v3933, %v3480
    %v3960 = vmul.f32 %v3934, %v3482
    %v3961 = vmul.f32 %v3935, %v3484
    %v3962 = vmul.f32 %v3936, %v3486
    %v3963 = vmul.f32 %v3937, %v3488
    %v3964 = vmul.f32 %v3938, %v3490
    %v3965 = vmul.f32 %v3957, 0.9874814
    %v3966 = vmul.f32 %v3958, 0.9874814
    %v3967 = vmul.f32 %v3959, 0.9874814
    %v3968 = vmul.f32 %v3960, 0.9874814
    %v3969 = vmul.f32 %v3961, 0.9874814
    %v3970 = vmul.f32 %v3962, 0.9874814
    %v3971 = vmul.f32 %v3963, 0.9874814
    %v3972 = vmul.f32 %v3964, 0.9874814
    %v3973 = vadd.f32 %v3965, %v3967
    %v3974 = vadd.f32 %v3973, %v3969
    %v3975 = vadd.f32 %v3974, %v3971
    %v3976 = vrot.slane %v3975, 4
    %v3977 = vadd.f32 %v3975, %v3976
    %v3978 = vrot.slane %v3977, 2
    %v3979 = vadd.f32 %v3977, %v3978
    %v3980 = vrot.slane %v3979, 1
    %v3981 = vadd.f32 %v3979, %v3980
    %v3982 = vadd.f32 %v3966, %v3968
    %v3983 = vadd.f32 %v3982, %v3970
    %v3984 = vadd.f32 %v3983, %v3972
    %v3985 = vrot.slane %v3984, 4
    %v3986 = vadd.f32 %v3984, %v3985
    %v3987 = vrot.slane %v3986, 2
    %v3988 = vadd.f32 %v3986, %v3987
    %v3989 = vrot.slane %v3988, 1
    %v3990 = vadd.f32 %v3988, %v3989
    %v3991 = vmul.f32 %v3965, %v3476
    %v3992 = vmul.f32 %v3966, %v3478
    %v3993 = vmul.f32 %v3967, %v3480
    %v3994 = vmul.f32 %v3968, %v3482
    %v3995 = vmul.f32 %v3969, %v3484
    %v3996 = vmul.f32 %v3970, %v3486
    %v3997 = vmul.f32 %v3971, %v3488
    %v3998 = vmul.f32 %v3972, %v3490
    %v3999 = vmul.f32 %v3991, 0.9864867
    %v4000 = vmul.f32 %v3992, 0.9864867
    %v4001 = vmul.f32 %v3993, 0.9864867
    %v4002 = vmul.f32 %v3994, 0.9864867
    %v4003 = vmul.f32 %v3995, 0.9864867
    %v4004 = vmul.f32 %v3996, 0.9864867
    %v4005 = vmul.f32 %v3997, 0.9864867
    %v4006 = vmul.f32 %v3998, 0.9864867
    %v4007 = vadd.f32 %v3999, %v4001
    %v4008 = vadd.f32 %v4007, %v4003
    %v4009 = vadd.f32 %v4008, %v4005
    %v4010 = vrot.slane %v4009, 4
    %v4011 = vadd.f32 %v4009, %v4010
    %v4012 = vrot.slane %v4011, 2
    %v4013 = vadd.f32 %v4011, %v4012
    %v4014 = vrot.slane %v4013, 1
    %v4015 = vadd.f32 %v4013, %v4014
    %v4016 = vadd.f32 %v4000, %v4002
    %v4017 = vadd.f32 %v4016, %v4004
    %v4018 = vadd.f32 %v4017, %v4006
    %v4019 = vrot.slane %v4018, 4
    %v4020 = vadd.f32 %v4018, %v4019
    %v4021 = vrot.slane %v4020, 2
    %v4022 = vadd.f32 %v4020, %v4021
    %v4023 = vrot.slane %v4022, 1
    %v4024 = vadd.f32 %v4022, %v4023
    %v4025 = vmul.f32 %v3999, %v3476
    %v4026 = vmul.f32 %v4000, %v3478
    %v4027 = vmul.f32 %v4001, %v3480
    %v4028 = vmul.f32 %v4002, %v3482
    %v4029 = vmul.f32 %v4003, %v3484
    %v4030 = vmul.f32 %v4004, %v3486
    %v4031 = vmul.f32 %v4005, %v3488
    %v4032 = vmul.f32 %v4006, %v3490
    %v4033 = vmul.f32 %v4025, 0.985493
    %v4034 = vmul.f32 %v4026, 0.985493
    %v4035 = vmul.f32 %v4027, 0.985493
    %v4036 = vmul.f32 %v4028, 0.985493
    %v4037 = vmul.f32 %v4029, 0.985493
    %v4038 = vmul.f32 %v4030, 0.985493
    %v4039 = vmul.f32 %v4031, 0.985493
    %v4040 = vmul.f32 %v4032, 0.985493
    %v4041 = vadd.f32 %v4033, %v4035
    %v4042 = vadd.f32 %v4041, %v4037
    %v4043 = vadd.f32 %v4042, %v4039
    %v4044 = vrot.slane %v4043, 4
    %v4045 = vadd.f32 %v4043, %v4044
    %v4046 = vrot.slane %v4045, 2
    %v4047 = vadd.f32 %v4045, %v4046
    %v4048 = vrot.slane %v4047, 1
    %v4049 = vadd.f32 %v4047, %v4048
    %v4050 = vadd.f32 %v4034, %v4036
    %v4051 = vadd.f32 %v4050, %v4038
    %v4052 = vadd.f32 %v4051, %v4040
    %v4053 = vrot.slane %v4052, 4
    %v4054 = vadd.f32 %v4052, %v4053
    %v4055 = vrot.slane %v4054, 2
    %v4056 = vadd.f32 %v4054, %v4055
    %v4057 = vrot.slane %v4056, 1
    %v4058 = vadd.f32 %v4056, %v4057
    %v4059 = vsel %vm1170, %v3539, %v3573
    %v4060 = vsel %vm1170, %v3548, %v3582
    %v4061 = vsel %vm1173, %v4059, %v3607
    %v4062 = vsel %vm1173, %v4060, %v3616
    %v4063 = vsel %vm1176, %v4061, %v3641
    %v4064 = vsel %vm1176, %v4062, %v3650
    %v4065 = vsel %vm1179, %v4063, %v3675
    %v4066 = vsel %vm1179, %v4064, %v3684
    %v4067 = vsel %vm1182, %v4065, %v3709
    %v4068 = vsel %vm1182, %v4066, %v3718
    %v4069 = vsel %vm1185, %v4067, %v3743
    %v4070 = vsel %vm1185, %v4068, %v3752
    %v4071 = vsel %vm1188, %v4069, %v3777
    %v4072 = vsel %vm1188, %v4070, %v3786
    %v4073 = vsel %vm1170, %v3811, %v3845
    %v4074 = vsel %vm1170, %v3820, %v3854
    %v4075 = vsel %vm1173, %v4073, %v3879
    %v4076 = vsel %vm1173, %v4074, %v3888
    %v4077 = vsel %vm1176, %v4075, %v3913
    %v4078 = vsel %vm1176, %v4076, %v3922
    %v4079 = vsel %vm1179, %v4077, %v3947
    %v4080 = vsel %vm1179, %v4078, %v3956
    %v4081 = vsel %vm1182, %v4079, %v3981
    %v4082 = vsel %vm1182, %v4080, %v3990
    %v4083 = vsel %vm1185, %v4081, %v4015
    %v4084 = vsel %vm1185, %v4082, %v4024
    %v4085 = vsel %vm1188, %v4083, %v4049
    %v4086 = vsel %vm1188, %v4084, %v4058
    %v4087 = vld [vmem:[#allocation3] sm:$0xff]
    %v4088 = vld [vmem:[#allocation3 + $0x8] sm:$0xff]
    %v4089 = vld [vmem:[#allocation3 + $0x10] sm:$0xff]
    %v4090 = vld [vmem:[#allocation3 + $0x18] sm:$0xff]
    %v4091 = vadd.f32 %v4087, %v4071
    %v4092 = vadd.f32 %v4088, %v4072
    %v4093 = vadd.f32 %v4089, %v4085
    %v4094 = vadd.f32 %v4090, %v4086
    %4095 = vst [vmem:[#allocation3] sm:$0xff] %v4091
    %4096 = vst [vmem:[#allocation3 + $0x8] sm:$0xff] %v4092
    %4097 = vst [vmem:[#allocation3 + $0x10] sm:$0xff] %v4093
    %4098 = vst [vmem:[#allocation3 + $0x18] sm:$0xff] %v4094
    %v4099 = vsub.f32 %v3459, 0.25396827
    %v4100 = vsub.f32 %v3460, 0.25396827
    %v4101 = vsub.f32 %v3461, 0.25396827
    %v4102 = vsub.f32 %v3462, 0.25396827
    %v4103 = vsub.f32 %v3463, 0.25396827
    %v4104 = vsub.f32 %v3464, 0.25396827
    %v4105 = vsub.f32 %v3465, 0.25396827
    %v4106 = vsub.f32 %v3466, 0.25396827
    %v4107 = vmul.f32 %v4099, %v4099
    %v4108 = vmul.f32 %v4100, %v4100
    %v4109 = vmul.f32 %v4101, %v4101
    %v4110 = vmul.f32 %v4102, %v4102
    %v4111 = vmul.f32 %v4103, %v4103
    %v4112 = vmul.f32 %v4104, %v4104
    %v4113 = vmul.f32 %v4105, %v4105
    %v4114 = vmul.f32 %v4106, %v4106
    %v4115 = vmul.f32 %v4107, -2.0
    %v4116 = vmul.f32 %v4108, -2.0
    %v4117 = vmul.f32 %v4109, -2.0
    %v4118 = vmul.f32 %v4110, -2.0
    %v4119 = vmul.f32 %v4111, -2.0
    %v4120 = vmul.f32 %v4112, -2.0
    %v4121 = vmul.f32 %v4113, -2.0
    %v4122 = vmul.f32 %v4114, -2.0
    %v4123 = vmul.f32 %v4115, 1.442695
    %v4124 = vpow.pop %v4123
    %v4125 = vmul.f32 %v4116, 1.442695
    %v4126 = vpow.pop %v4125
    %v4127 = vmul.f32 %v4117, 1.442695
    %v4128 = vpow.pop %v4127
    %v4129 = vmul.f32 %v4118, 1.442695
    %v4130 = vpow.pop %v4129
    %v4131 = vmul.f32 %v4119, 1.442695
    %v4132 = vpow.pop %v4131
    %v4133 = vmul.f32 %v4120, 1.442695
    %v4134 = vpow.pop %v4133
    %v4135 = vmul.f32 %v4121, 1.442695
    %v4136 = vpow.pop %v4135
    %v4137 = vmul.f32 %v4122, 1.442695
    %v4138 = vpow.pop %v4137
    %v4139 = vmul.f32 %v4124, %v627
    %v4140 = vmul.f32 %v4126, %v631
    %v4141 = vmul.f32 %v4128, %v627
    %v4142 = vmul.f32 %v4130, %v631
    %v4143 = vmul.f32 %v4132, %v627
    %v4144 = vmul.f32 %v4134, %v631
    %v4145 = vmul.f32 %v4136, %v627
    %v4146 = vmul.f32 %v4138, %v631
    %v4147 = vadd.f32 %v4139, %v4141
    %v4148 = vadd.f32 %v4147, %v4143
    %v4149 = vadd.f32 %v4148, %v4145
    %v4150 = vrot.slane %v4149, 4
    %v4151 = vadd.f32 %v4149, %v4150
    %v4152 = vrot.slane %v4151, 2
    %v4153 = vadd.f32 %v4151, %v4152
    %v4154 = vrot.slane %v4153, 1
    %v4155 = vadd.f32 %v4153, %v4154
    %v4156 = vadd.f32 %v4140, %v4142
    %v4157 = vadd.f32 %v4156, %v4144
    %v4158 = vadd.f32 %v4157, %v4146
    %v4159 = vrot.slane %v4158, 4
    %v4160 = vadd.f32 %v4158, %v4159
    %v4161 = vrot.slane %v4160, 2
    %v4162 = vadd.f32 %v4160, %v4161
    %v4163 = vrot.slane %v4162, 1
    %v4164 = vadd.f32 %v4162, %v4163
    %v4165 = vmul.f32 %v4139, %v3476
    %v4166 = vmul.f32 %v4140, %v3478
    %v4167 = vmul.f32 %v4141, %v3480
    %v4168 = vmul.f32 %v4142, %v3482
    %v4169 = vmul.f32 %v4143, %v3484
    %v4170 = vmul.f32 %v4144, %v3486
    %v4171 = vmul.f32 %v4145, %v3488
    %v4172 = vmul.f32 %v4146, %v3490
    %v4173 = vmul.f32 %v4165, 0.98350865
    %v4174 = vmul.f32 %v4166, 0.98350865
    %v4175 = vmul.f32 %v4167, 0.98350865
    %v4176 = vmul.f32 %v4168, 0.98350865
    %v4177 = vmul.f32 %v4169, 0.98350865
    %v4178 = vmul.f32 %v4170, 0.98350865
    %v4179 = vmul.f32 %v4171, 0.98350865
    %v4180 = vmul.f32 %v4172, 0.98350865
    %v4181 = vadd.f32 %v4173, %v4175
    %v4182 = vadd.f32 %v4181, %v4177
    %v4183 = vadd.f32 %v4182, %v4179
    %v4184 = vrot.slane %v4183, 4
    %v4185 = vadd.f32 %v4183, %v4184
    %v4186 = vrot.slane %v4185, 2
    %v4187 = vadd.f32 %v4185, %v4186
    %v4188 = vrot.slane %v4187, 1
    %v4189 = vadd.f32 %v4187, %v4188
    %v4190 = vadd.f32 %v4174, %v4176
    %v4191 = vadd.f32 %v4190, %v4178
    %v4192 = vadd.f32 %v4191, %v4180
    %v4193 = vrot.slane %v4192, 4
    %v4194 = vadd.f32 %v4192, %v4193
    %v4195 = vrot.slane %v4194, 2
    %v4196 = vadd.f32 %v4194, %v4195
    %v4197 = vrot.slane %v4196, 1
    %v4198 = vadd.f32 %v4196, %v4197
    %v4199 = vmul.f32 %v4173, %v3476
    %v4200 = vmul.f32 %v4174, %v3478
    %v4201 = vmul.f32 %v4175, %v3480
    %v4202 = vmul.f32 %v4176, %v3482
    %v4203 = vmul.f32 %v4177, %v3484
    %v4204 = vmul.f32 %v4178, %v3486
    %v4205 = vmul.f32 %v4179, %v3488
    %v4206 = vmul.f32 %v4180, %v3490
    %v4207 = vmul.f32 %v4199, 0.98251796
    %v4208 = vmul.f32 %v4200, 0.98251796
    %v4209 = vmul.f32 %v4201, 0.98251796
    %v4210 = vmul.f32 %v4202, 0.98251796
    %v4211 = vmul.f32 %v4203, 0.98251796
    %v4212 = vmul.f32 %v4204, 0.98251796
    %v4213 = vmul.f32 %v4205, 0.98251796
    %v4214 = vmul.f32 %v4206, 0.98251796
    %v4215 = vadd.f32 %v4207, %v4209
    %v4216 = vadd.f32 %v4215, %v4211
    %v4217 = vadd.f32 %v4216, %v4213
    %v4218 = vrot.slane %v4217, 4
    %v4219 = vadd.f32 %v4217, %v4218
    %v4220 = vrot.slane %v4219, 2
    %v4221 = vadd.f32 %v4219, %v4220
    %v4222 = vrot.slane %v4221, 1
    %v4223 = vadd.f32 %v4221, %v4222
    %v4224 = vadd.f32 %v4208, %v4210
    %v4225 = vadd.f32 %v4224, %v4212
    %v4226 = vadd.f32 %v4225, %v4214
    %v4227 = vrot.slane %v4226, 4
    %v4228 = vadd.f32 %v4226, %v4227
    %v4229 = vrot.slane %v4228, 2
    %v4230 = vadd.f32 %v4228, %v4229
    %v4231 = vrot.slane %v4230, 1
    %v4232 = vadd.f32 %v4230, %v4231
    %v4233 = vmul.f32 %v4207, %v3476
    %v4234 = vmul.f32 %v4208, %v3478
    %v4235 = vmul.f32 %v4209, %v3480
    %v4236 = vmul.f32 %v4210, %v3482
    %v4237 = vmul.f32 %v4211, %v3484
    %v4238 = vmul.f32 %v4212, %v3486
    %v4239 = vmul.f32 %v4213, %v3488
    %v4240 = vmul.f32 %v4214, %v3490
    %v4241 = vmul.f32 %v4233, 0.9815282
    %v4242 = vmul.f32 %v4234, 0.9815282
    %v4243 = vmul.f32 %v4235, 0.9815282
    %v4244 = vmul.f32 %v4236, 0.9815282
    %v4245 = vmul.f32 %v4237, 0.9815282
    %v4246 = vmul.f32 %v4238, 0.9815282
    %v4247 = vmul.f32 %v4239, 0.9815282
    %v4248 = vmul.f32 %v4240, 0.9815282
    %v4249 = vadd.f32 %v4241, %v4243
    %v4250 = vadd.f32 %v4249, %v4245
    %v4251 = vadd.f32 %v4250, %v4247
    %v4252 = vrot.slane %v4251, 4
    %v4253 = vadd.f32 %v4251, %v4252
    %v4254 = vrot.slane %v4253, 2
    %v4255 = vadd.f32 %v4253, %v4254
    %v4256 = vrot.slane %v4255, 1
    %v4257 = vadd.f32 %v4255, %v4256
    %v4258 = vadd.f32 %v4242, %v4244
    %v4259 = vadd.f32 %v4258, %v4246
    %v4260 = vadd.f32 %v4259, %v4248
    %v4261 = vrot.slane %v4260, 4
    %v4262 = vadd.f32 %v4260, %v4261
    %v4263 = vrot.slane %v4262, 2
    %v4264 = vadd.f32 %v4262, %v4263
    %v4265 = vrot.slane %v4264, 1
    %v4266 = vadd.f32 %v4264, %v4265
    %v4267 = vmul.f32 %v4241, %v3476
    %v4268 = vmul.f32 %v4242, %v3478
    %v4269 = vmul.f32 %v4243, %v3480
    %v4270 = vmul.f32 %v4244, %v3482
    %v4271 = vmul.f32 %v4245, %v3484
    %v4272 = vmul.f32 %v4246, %v3486
    %v4273 = vmul.f32 %v4247, %v3488
    %v4274 = vmul.f32 %v4248, %v3490
    %v4275 = vmul.f32 %v4267, 0.98053956
    %v4276 = vmul.f32 %v4268, 0.98053956
    %v4277 = vmul.f32 %v4269, 0.98053956
    %v4278 = vmul.f32 %v4270, 0.98053956
    %v4279 = vmul.f32 %v4271, 0.98053956
    %v4280 = vmul.f32 %v4272, 0.98053956
    %v4281 = vmul.f32 %v4273, 0.98053956
    %v4282 = vmul.f32 %v4274, 0.98053956
    %v4283 = vadd.f32 %v4275, %v4277
    %v4284 = vadd.f32 %v4283, %v4279
    %v4285 = vadd.f32 %v4284, %v4281
    %v4286 = vrot.slane %v4285, 4
    %v4287 = vadd.f32 %v4285, %v4286
    %v4288 = vrot.slane %v4287, 2
    %v4289 = vadd.f32 %v4287, %v4288
    %v4290 = vrot.slane %v4289, 1
    %v4291 = vadd.f32 %v4289, %v4290
    %v4292 = vadd.f32 %v4276, %v4278
    %v4293 = vadd.f32 %v4292, %v4280
    %v4294 = vadd.f32 %v4293, %v4282
    %v4295 = vrot.slane %v4294, 4
    %v4296 = vadd.f32 %v4294, %v4295
    %v4297 = vrot.slane %v4296, 2
    %v4298 = vadd.f32 %v4296, %v4297
    %v4299 = vrot.slane %v4298, 1
    %v4300 = vadd.f32 %v4298, %v4299
    %v4301 = vmul.f32 %v4275, %v3476
    %v4302 = vmul.f32 %v4276, %v3478
    %v4303 = vmul.f32 %v4277, %v3480
    %v4304 = vmul.f32 %v4278, %v3482
    %v4305 = vmul.f32 %v4279, %v3484
    %v4306 = vmul.f32 %v4280, %v3486
    %v4307 = vmul.f32 %v4281, %v3488
    %v4308 = vmul.f32 %v4282, %v3490
    %v4309 = vmul.f32 %v4301, 0.97955185
    %v4310 = vmul.f32 %v4302, 0.97955185
    %v4311 = vmul.f32 %v4303, 0.97955185
    %v4312 = vmul.f32 %v4304, 0.97955185
    %v4313 = vmul.f32 %v4305, 0.97955185
    %v4314 = vmul.f32 %v4306, 0.97955185
    %v4315 = vmul.f32 %v4307, 0.97955185
    %v4316 = vmul.f32 %v4308, 0.97955185
    %v4317 = vadd.f32 %v4309, %v4311
    %v4318 = vadd.f32 %v4317, %v4313
    %v4319 = vadd.f32 %v4318, %v4315
    %v4320 = vrot.slane %v4319, 4
    %v4321 = vadd.f32 %v4319, %v4320
    %v4322 = vrot.slane %v4321, 2
    %v4323 = vadd.f32 %v4321, %v4322
    %v4324 = vrot.slane %v4323, 1
    %v4325 = vadd.f32 %v4323, %v4324
    %v4326 = vadd.f32 %v4310, %v4312
    %v4327 = vadd.f32 %v4326, %v4314
    %v4328 = vadd.f32 %v4327, %v4316
    %v4329 = vrot.slane %v4328, 4
    %v4330 = vadd.f32 %v4328, %v4329
    %v4331 = vrot.slane %v4330, 2
    %v4332 = vadd.f32 %v4330, %v4331
    %v4333 = vrot.slane %v4332, 1
    %v4334 = vadd.f32 %v4332, %v4333
    %v4335 = vmul.f32 %v4309, %v3476
    %v4336 = vmul.f32 %v4310, %v3478
    %v4337 = vmul.f32 %v4311, %v3480
    %v4338 = vmul.f32 %v4312, %v3482
    %v4339 = vmul.f32 %v4313, %v3484
    %v4340 = vmul.f32 %v4314, %v3486
    %v4341 = vmul.f32 %v4315, %v3488
    %v4342 = vmul.f32 %v4316, %v3490
    %v4343 = vmul.f32 %v4335, 0.97856516
    %v4344 = vmul.f32 %v4336, 0.97856516
    %v4345 = vmul.f32 %v4337, 0.97856516
    %v4346 = vmul.f32 %v4338, 0.97856516
    %v4347 = vmul.f32 %v4339, 0.97856516
    %v4348 = vmul.f32 %v4340, 0.97856516
    %v4349 = vmul.f32 %v4341, 0.97856516
    %v4350 = vmul.f32 %v4342, 0.97856516
    %v4351 = vadd.f32 %v4343, %v4345
    %v4352 = vadd.f32 %v4351, %v4347
    %v4353 = vadd.f32 %v4352, %v4349
    %v4354 = vrot.slane %v4353, 4
    %v4355 = vadd.f32 %v4353, %v4354
    %v4356 = vrot.slane %v4355, 2
    %v4357 = vadd.f32 %v4355, %v4356
    %v4358 = vrot.slane %v4357, 1
    %v4359 = vadd.f32 %v4357, %v4358
    %v4360 = vadd.f32 %v4344, %v4346
    %v4361 = vadd.f32 %v4360, %v4348
    %v4362 = vadd.f32 %v4361, %v4350
    %v4363 = vrot.slane %v4362, 4
    %v4364 = vadd.f32 %v4362, %v4363
    %v4365 = vrot.slane %v4364, 2
    %v4366 = vadd.f32 %v4364, %v4365
    %v4367 = vrot.slane %v4366, 1
    %v4368 = vadd.f32 %v4366, %v4367
    %v4369 = vmul.f32 %v4343, %v3476
    %v4370 = vmul.f32 %v4344, %v3478
    %v4371 = vmul.f32 %v4345, %v3480
    %v4372 = vmul.f32 %v4346, %v3482
    %v4373 = vmul.f32 %v4347, %v3484
    %v4374 = vmul.f32 %v4348, %v3486
    %v4375 = vmul.f32 %v4349, %v3488
    %v4376 = vmul.f32 %v4350, %v3490
    %v4377 = vmul.f32 %v4369, 0.9775794
    %v4378 = vmul.f32 %v4370, 0.9775794
    %v4379 = vmul.f32 %v4371, 0.9775794
    %v4380 = vmul.f32 %v4372, 0.9775794
    %v4381 = vmul.f32 %v4373, 0.9775794
    %v4382 = vmul.f32 %v4374, 0.9775794
    %v4383 = vmul.f32 %v4375, 0.9775794
    %v4384 = vmul.f32 %v4376, 0.9775794
    %v4385 = vadd.f32 %v4377, %v4379
    %v4386 = vadd.f32 %v4385, %v4381
    %v4387 = vadd.f32 %v4386, %v4383
    %v4388 = vrot.slane %v4387, 4
    %v4389 = vadd.f32 %v4387, %v4388
    %v4390 = vrot.slane %v4389, 2
    %v4391 = vadd.f32 %v4389, %v4390
    %v4392 = vrot.slane %v4391, 1
    %v4393 = vadd.f32 %v4391, %v4392
    %v4394 = vadd.f32 %v4378, %v4380
    %v4395 = vadd.f32 %v4394, %v4382
    %v4396 = vadd.f32 %v4395, %v4384
    %v4397 = vrot.slane %v4396, 4
    %v4398 = vadd.f32 %v4396, %v4397
    %v4399 = vrot.slane %v4398, 2
    %v4400 = vadd.f32 %v4398, %v4399
    %v4401 = vrot.slane %v4400, 1
    %v4402 = vadd.f32 %v4400, %v4401
    %v4403 = vmul.f32 %v4377, %v3476
    %v4404 = vmul.f32 %v4378, %v3478
    %v4405 = vmul.f32 %v4379, %v3480
    %v4406 = vmul.f32 %v4380, %v3482
    %v4407 = vmul.f32 %v4381, %v3484
    %v4408 = vmul.f32 %v4382, %v3486
    %v4409 = vmul.f32 %v4383, %v3488
    %v4410 = vmul.f32 %v4384, %v3490
    %v4411 = vmul.f32 %v4403, 0.9765947
    %v4412 = vmul.f32 %v4404, 0.9765947
    %v4413 = vmul.f32 %v4405, 0.9765947
    %v4414 = vmul.f32 %v4406, 0.9765947
    %v4415 = vmul.f32 %v4407, 0.9765947
    %v4416 = vmul.f32 %v4408, 0.9765947
    %v4417 = vmul.f32 %v4409, 0.9765947
    %v4418 = vmul.f32 %v4410, 0.9765947
    %v4419 = vadd.f32 %v4411, %v4413
    %v4420 = vadd.f32 %v4419, %v4415
    %v4421 = vadd.f32 %v4420, %v4417
    %v4422 = vrot.slane %v4421, 4
    %v4423 = vadd.f32 %v4421, %v4422
    %v4424 = vrot.slane %v4423, 2
    %v4425 = vadd.f32 %v4423, %v4424
    %v4426 = vrot.slane %v4425, 1
    %v4427 = vadd.f32 %v4425, %v4426
    %v4428 = vadd.f32 %v4412, %v4414
    %v4429 = vadd.f32 %v4428, %v4416
    %v4430 = vadd.f32 %v4429, %v4418
    %v4431 = vrot.slane %v4430, 4
    %v4432 = vadd.f32 %v4430, %v4431
    %v4433 = vrot.slane %v4432, 2
    %v4434 = vadd.f32 %v4432, %v4433
    %v4435 = vrot.slane %v4434, 1
    %v4436 = vadd.f32 %v4434, %v4435
    %v4437 = vmul.f32 %v4411, %v3476
    %v4438 = vmul.f32 %v4412, %v3478
    %v4439 = vmul.f32 %v4413, %v3480
    %v4440 = vmul.f32 %v4414, %v3482
    %v4441 = vmul.f32 %v4415, %v3484
    %v4442 = vmul.f32 %v4416, %v3486
    %v4443 = vmul.f32 %v4417, %v3488
    %v4444 = vmul.f32 %v4418, %v3490
    %v4445 = vmul.f32 %v4437, 0.975611
    %v4446 = vmul.f32 %v4438, 0.975611
    %v4447 = vmul.f32 %v4439, 0.975611
    %v4448 = vmul.f32 %v4440, 0.975611
    %v4449 = vmul.f32 %v4441, 0.975611
    %v4450 = vmul.f32 %v4442, 0.975611
    %v4451 = vmul.f32 %v4443, 0.975611
    %v4452 = vmul.f32 %v4444, 0.975611
    %v4453 = vadd.f32 %v4445, %v4447
    %v4454 = vadd.f32 %v4453, %v4449
    %v4455 = vadd.f32 %v4454, %v4451
    %v4456 = vrot.slane %v4455, 4
    %v4457 = vadd.f32 %v4455, %v4456
    %v4458 = vrot.slane %v4457, 2
    %v4459 = vadd.f32 %v4457, %v4458
    %v4460 = vrot.slane %v4459, 1
    %v4461 = vadd.f32 %v4459, %v4460
    %v4462 = vadd.f32 %v4446, %v4448
    %v4463 = vadd.f32 %v4462, %v4450
    %v4464 = vadd.f32 %v4463, %v4452
    %v4465 = vrot.slane %v4464, 4
    %v4466 = vadd.f32 %v4464, %v4465
    %v4467 = vrot.slane %v4466, 2
    %v4468 = vadd.f32 %v4466, %v4467
    %v4469 = vrot.slane %v4468, 1
    %v4470 = vadd.f32 %v4468, %v4469
    %v4471 = vmul.f32 %v4445, %v3476
    %v4472 = vmul.f32 %v4446, %v3478
    %v4473 = vmul.f32 %v4447, %v3480
    %v4474 = vmul.f32 %v4448, %v3482
    %v4475 = vmul.f32 %v4449, %v3484
    %v4476 = vmul.f32 %v4450, %v3486
    %v4477 = vmul.f32 %v4451, %v3488
    %v4478 = vmul.f32 %v4452, %v3490
    %v4479 = vmul.f32 %v4471, 0.97462827
    %v4480 = vmul.f32 %v4472, 0.97462827
    %v4481 = vmul.f32 %v4473, 0.97462827
    %v4482 = vmul.f32 %v4474, 0.97462827
    %v4483 = vmul.f32 %v4475, 0.97462827
    %v4484 = vmul.f32 %v4476, 0.97462827
    %v4485 = vmul.f32 %v4477, 0.97462827
    %v4486 = vmul.f32 %v4478, 0.97462827
    %v4487 = vadd.f32 %v4479, %v4481
    %v4488 = vadd.f32 %v4487, %v4483
    %v4489 = vadd.f32 %v4488, %v4485
    %v4490 = vrot.slane %v4489, 4
    %v4491 = vadd.f32 %v4489, %v4490
    %v4492 = vrot.slane %v4491, 2
    %v4493 = vadd.f32 %v4491, %v4492
    %v4494 = vrot.slane %v4493, 1
    %v4495 = vadd.f32 %v4493, %v4494
    %v4496 = vadd.f32 %v4480, %v4482
    %v4497 = vadd.f32 %v4496, %v4484
    %v4498 = vadd.f32 %v4497, %v4486
    %v4499 = vrot.slane %v4498, 4
    %v4500 = vadd.f32 %v4498, %v4499
    %v4501 = vrot.slane %v4500, 2
    %v4502 = vadd.f32 %v4500, %v4501
    %v4503 = vrot.slane %v4502, 1
    %v4504 = vadd.f32 %v4502, %v4503
    %v4505 = vmul.f32 %v4479, %v3476
    %v4506 = vmul.f32 %v4480, %v3478
    %v4507 = vmul.f32 %v4481, %v3480
    %v4508 = vmul.f32 %v4482, %v3482
    %v4509 = vmul.f32 %v4483, %v3484
    %v4510 = vmul.f32 %v4484, %v3486
    %v4511 = vmul.f32 %v4485, %v3488
    %v4512 = vmul.f32 %v4486, %v3490
    %v4513 = vmul.f32 %v4505, 0.9736465
    %v4514 = vmul.f32 %v4506, 0.9736465
    %v4515 = vmul.f32 %v4507, 0.9736465
    %v4516 = vmul.f32 %v4508, 0.9736465
    %v4517 = vmul.f32 %v4509, 0.9736465
    %v4518 = vmul.f32 %v4510, 0.9736465
    %v4519 = vmul.f32 %v4511, 0.9736465
    %v4520 = vmul.f32 %v4512, 0.9736465
    %v4521 = vadd.f32 %v4513, %v4515
    %v4522 = vadd.f32 %v4521, %v4517
    %v4523 = vadd.f32 %v4522, %v4519
    %v4524 = vrot.slane %v4523, 4
    %v4525 = vadd.f32 %v4523, %v4524
    %v4526 = vrot.slane %v4525, 2
    %v4527 = vadd.f32 %v4525, %v4526
    %v4528 = vrot.slane %v4527, 1
    %v4529 = vadd.f32 %v4527, %v4528
    %v4530 = vadd.f32 %v4514, %v4516
    %v4531 = vadd.f32 %v4530, %v4518
    %v4532 = vadd.f32 %v4531, %v4520
    %v4533 = vrot.slane %v4532, 4
    %v4534 = vadd.f32 %v4532, %v4533
    %v4535 = vrot.slane %v4534, 2
    %v4536 = vadd.f32 %v4534, %v4535
    %v4537 = vrot.slane %v4536, 1
    %v4538 = vadd.f32 %v4536, %v4537
    %v4539 = vmul.f32 %v4513, %v3476
    %v4540 = vmul.f32 %v4514, %v3478
    %v4541 = vmul.f32 %v4515, %v3480
    %v4542 = vmul.f32 %v4516, %v3482
    %v4543 = vmul.f32 %v4517, %v3484
    %v4544 = vmul.f32 %v4518, %v3486
    %v4545 = vmul.f32 %v4519, %v3488
    %v4546 = vmul.f32 %v4520, %v3490
    %v4547 = vmul.f32 %v4539, 0.9726657
    %v4548 = vmul.f32 %v4540, 0.9726657
    %v4549 = vmul.f32 %v4541, 0.9726657
    %v4550 = vmul.f32 %v4542, 0.9726657
    %v4551 = vmul.f32 %v4543, 0.9726657
    %v4552 = vmul.f32 %v4544, 0.9726657
    %v4553 = vmul.f32 %v4545, 0.9726657
    %v4554 = vmul.f32 %v4546, 0.9726657
    %v4555 = vadd.f32 %v4547, %v4549
    %v4556 = vadd.f32 %v4555, %v4551
    %v4557 = vadd.f32 %v4556, %v4553
    %v4558 = vrot.slane %v4557, 4
    %v4559 = vadd.f32 %v4557, %v4558
    %v4560 = vrot.slane %v4559, 2
    %v4561 = vadd.f32 %v4559, %v4560
    %v4562 = vrot.slane %v4561, 1
    %v4563 = vadd.f32 %v4561, %v4562
    %v4564 = vadd.f32 %v4548, %v4550
    %v4565 = vadd.f32 %v4564, %v4552
    %v4566 = vadd.f32 %v4565, %v4554
    %v4567 = vrot.slane %v4566, 4
    %v4568 = vadd.f32 %v4566, %v4567
    %v4569 = vrot.slane %v4568, 2
    %v4570 = vadd.f32 %v4568, %v4569
    %v4571 = vrot.slane %v4570, 1
    %v4572 = vadd.f32 %v4570, %v4571
    %v4573 = vmul.f32 %v4547, %v3476
    %v4574 = vmul.f32 %v4548, %v3478
    %v4575 = vmul.f32 %v4549, %v3480
    %v4576 = vmul.f32 %v4550, %v3482
    %v4577 = vmul.f32 %v4551, %v3484
    %v4578 = vmul.f32 %v4552, %v3486
    %v4579 = vmul.f32 %v4553, %v3488
    %v4580 = vmul.f32 %v4554, %v3490
    %v4581 = vmul.f32 %v4573, 0.97168595
    %v4582 = vmul.f32 %v4574, 0.97168595
    %v4583 = vmul.f32 %v4575, 0.97168595
    %v4584 = vmul.f32 %v4576, 0.97168595
    %v4585 = vmul.f32 %v4577, 0.97168595
    %v4586 = vmul.f32 %v4578, 0.97168595
    %v4587 = vmul.f32 %v4579, 0.97168595
    %v4588 = vmul.f32 %v4580, 0.97168595
    %v4589 = vadd.f32 %v4581, %v4583
    %v4590 = vadd.f32 %v4589, %v4585
    %v4591 = vadd.f32 %v4590, %v4587
    %v4592 = vrot.slane %v4591, 4
    %v4593 = vadd.f32 %v4591, %v4592
    %v4594 = vrot.slane %v4593, 2
    %v4595 = vadd.f32 %v4593, %v4594
    %v4596 = vrot.slane %v4595, 1
    %v4597 = vadd.f32 %v4595, %v4596
    %v4598 = vadd.f32 %v4582, %v4584
    %v4599 = vadd.f32 %v4598, %v4586
    %v4600 = vadd.f32 %v4599, %v4588
    %v4601 = vrot.slane %v4600, 4
    %v4602 = vadd.f32 %v4600, %v4601
    %v4603 = vrot.slane %v4602, 2
    %v4604 = vadd.f32 %v4602, %v4603
    %v4605 = vrot.slane %v4604, 1
    %v4606 = vadd.f32 %v4604, %v4605
    %v4607 = vmul.f32 %v4581, %v3476
    %v4608 = vmul.f32 %v4582, %v3478
    %v4609 = vmul.f32 %v4583, %v3480
    %v4610 = vmul.f32 %v4584, %v3482
    %v4611 = vmul.f32 %v4585, %v3484
    %v4612 = vmul.f32 %v4586, %v3486
    %v4613 = vmul.f32 %v4587, %v3488
    %v4614 = vmul.f32 %v4588, %v3490
    %v4615 = vmul.f32 %v4607, 0.9707072
    %v4616 = vmul.f32 %v4608, 0.9707072
    %v4617 = vmul.f32 %v4609, 0.9707072
    %v4618 = vmul.f32 %v4610, 0.9707072
    %v4619 = vmul.f32 %v4611, 0.9707072
    %v4620 = vmul.f32 %v4612, 0.9707072
    %v4621 = vmul.f32 %v4613, 0.9707072
    %v4622 = vmul.f32 %v4614, 0.9707072
    %v4623 = vadd.f32 %v4615, %v4617
    %v4624 = vadd.f32 %v4623, %v4619
    %v4625 = vadd.f32 %v4624, %v4621
    %v4626 = vrot.slane %v4625, 4
    %v4627 = vadd.f32 %v4625, %v4626
    %v4628 = vrot.slane %v4627, 2
    %v4629 = vadd.f32 %v4627, %v4628
    %v4630 = vrot.slane %v4629, 1
    %v4631 = vadd.f32 %v4629, %v4630
    %v4632 = vadd.f32 %v4616, %v4618
    %v4633 = vadd.f32 %v4632, %v4620
    %v4634 = vadd.f32 %v4633, %v4622
    %v4635 = vrot.slane %v4634, 4
    %v4636 = vadd.f32 %v4634, %v4635
    %v4637 = vrot.slane %v4636, 2
    %v4638 = vadd.f32 %v4636, %v4637
    %v4639 = vrot.slane %v4638, 1
    %v4640 = vadd.f32 %v4638, %v4639
    %v4641 = vmul.f32 %v4615, %v3476
    %v4642 = vmul.f32 %v4616, %v3478
    %v4643 = vmul.f32 %v4617, %v3480
    %v4644 = vmul.f32 %v4618, %v3482
    %v4645 = vmul.f32 %v4619, %v3484
    %v4646 = vmul.f32 %v4620, %v3486
    %v4647 = vmul.f32 %v4621, %v3488
    %v4648 = vmul.f32 %v4622, %v3490
    %v4649 = vmul.f32 %v4641, 0.9697294
    %v4650 = vmul.f32 %v4642, 0.9697294
    %v4651 = vmul.f32 %v4643, 0.9697294
    %v4652 = vmul.f32 %v4644, 0.9697294
    %v4653 = vmul.f32 %v4645, 0.9697294
    %v4654 = vmul.f32 %v4646, 0.9697294
    %v4655 = vmul.f32 %v4647, 0.9697294
    %v4656 = vmul.f32 %v4648, 0.9697294
    %v4657 = vadd.f32 %v4649, %v4651
    %v4658 = vadd.f32 %v4657, %v4653
    %v4659 = vadd.f32 %v4658, %v4655
    %v4660 = vrot.slane %v4659, 4
    %v4661 = vadd.f32 %v4659, %v4660
    %v4662 = vrot.slane %v4661, 2
    %v4663 = vadd.f32 %v4661, %v4662
    %v4664 = vrot.slane %v4663, 1
    %v4665 = vadd.f32 %v4663, %v4664
    %v4666 = vadd.f32 %v4650, %v4652
    %v4667 = vadd.f32 %v4666, %v4654
    %v4668 = vadd.f32 %v4667, %v4656
    %v4669 = vrot.slane %v4668, 4
    %v4670 = vadd.f32 %v4668, %v4669
    %v4671 = vrot.slane %v4670, 2
    %v4672 = vadd.f32 %v4670, %v4671
    %v4673 = vrot.slane %v4672, 1
    %v4674 = vadd.f32 %v4672, %v4673
    %v4675 = vsel %vm1170, %v4155, %v4189
    %v4676 = vsel %vm1170, %v4164, %v4198
    %v4677 = vsel %vm1173, %v4675, %v4223
    %v4678 = vsel %vm1173, %v4676, %v4232
    %v4679 = vsel %vm1176, %v4677, %v4257
    %v4680 = vsel %vm1176, %v4678, %v4266
    %v4681 = vsel %vm1179, %v4679, %v4291
    %v4682 = vsel %vm1179, %v4680, %v4300
    %v4683 = vsel %vm1182, %v4681, %v4325
    %v4684 = vsel %vm1182, %v4682, %v4334
    %v4685 = vsel %vm1185, %v4683, %v4359
    %v4686 = vsel %vm1185, %v4684, %v4368
    %v4687 = vsel %vm1188, %v4685, %v4393
    %v4688 = vsel %vm1188, %v4686, %v4402
    %v4689 = vsel %vm1170, %v4427, %v4461
    %v4690 = vsel %vm1170, %v4436, %v4470
    %v4691 = vsel %vm1173, %v4689, %v4495
    %v4692 = vsel %vm1173, %v4690, %v4504
    %v4693 = vsel %vm1176, %v4691, %v4529
    %v4694 = vsel %vm1176, %v4692, %v4538
    %v4695 = vsel %vm1179, %v4693, %v4563
    %v4696 = vsel %vm1179, %v4694, %v4572
    %v4697 = vsel %vm1182, %v4695, %v4597
    %v4698 = vsel %vm1182, %v4696, %v4606
    %v4699 = vsel %vm1185, %v4697, %v4631
    %v4700 = vsel %vm1185, %v4698, %v4640
    %v4701 = vsel %vm1188, %v4699, %v4665
    %v4702 = vsel %vm1188, %v4700, %v4674
    %v4703 = vld [vmem:[#allocation3 + $0x20] sm:$0xff]
    %v4704 = vld [vmem:[#allocation3 + $0x28] sm:$0xff]
    %v4705 = vld [vmem:[#allocation3 + $0x30] sm:$0xff]
    %v4706 = vld [vmem:[#allocation3 + $0x38] sm:$0xff]
    %v4707 = vadd.f32 %v4703, %v4687
    %v4708 = vadd.f32 %v4704, %v4688
    %v4709 = vadd.f32 %v4705, %v4701
    %v4710 = vadd.f32 %v4706, %v4702
    %4711 = vst [vmem:[#allocation3 + $0x20] sm:$0xff] %v4707
    %4712 = vst [vmem:[#allocation3 + $0x28] sm:$0xff] %v4708
    %4713 = vst [vmem:[#allocation3 + $0x30] sm:$0xff] %v4709
    %4714 = vst [vmem:[#allocation3 + $0x38] sm:$0xff] %v4710
    %v4715 = vsub.f32 %v3459, 0.50793654
    %v4716 = vsub.f32 %v3460, 0.50793654
    %v4717 = vsub.f32 %v3461, 0.50793654
    %v4718 = vsub.f32 %v3462, 0.50793654
    %v4719 = vsub.f32 %v3463, 0.50793654
    %v4720 = vsub.f32 %v3464, 0.50793654
    %v4721 = vsub.f32 %v3465, 0.50793654
    %v4722 = vsub.f32 %v3466, 0.50793654
    %v4723 = vmul.f32 %v4715, %v4715
    %v4724 = vmul.f32 %v4716, %v4716
    %v4725 = vmul.f32 %v4717, %v4717
    %v4726 = vmul.f32 %v4718, %v4718
    %v4727 = vmul.f32 %v4719, %v4719
    %v4728 = vmul.f32 %v4720, %v4720
    %v4729 = vmul.f32 %v4721, %v4721
    %v4730 = vmul.f32 %v4722, %v4722
    %v4731 = vmul.f32 %v4723, -2.0
    %v4732 = vmul.f32 %v4724, -2.0
    %v4733 = vmul.f32 %v4725, -2.0
    %v4734 = vmul.f32 %v4726, -2.0
    %v4735 = vmul.f32 %v4727, -2.0
    %v4736 = vmul.f32 %v4728, -2.0
    %v4737 = vmul.f32 %v4729, -2.0
    %v4738 = vmul.f32 %v4730, -2.0
    %v4739 = vmul.f32 %v4731, 1.442695
    %v4740 = vpow.pop %v4739
    %v4741 = vmul.f32 %v4732, 1.442695
    %v4742 = vpow.pop %v4741
    %v4743 = vmul.f32 %v4733, 1.442695
    %v4744 = vpow.pop %v4743
    %v4745 = vmul.f32 %v4734, 1.442695
    %v4746 = vpow.pop %v4745
    %v4747 = vmul.f32 %v4735, 1.442695
    %v4748 = vpow.pop %v4747
    %v4749 = vmul.f32 %v4736, 1.442695
    %v4750 = vpow.pop %v4749
    %v4751 = vmul.f32 %v4737, 1.442695
    %v4752 = vpow.pop %v4751
    %v4753 = vmul.f32 %v4738, 1.442695
    %v4754 = vpow.pop %v4753
    %v4755 = vmul.f32 %v4740, %v627
    %v4756 = vmul.f32 %v4742, %v631
    %v4757 = vmul.f32 %v4744, %v627
    %v4758 = vmul.f32 %v4746, %v631
    %v4759 = vmul.f32 %v4748, %v627
    %v4760 = vmul.f32 %v4750, %v631
    %v4761 = vmul.f32 %v4752, %v627
    %v4762 = vmul.f32 %v4754, %v631
    %v4763 = vadd.f32 %v4755, %v4757
    %v4764 = vadd.f32 %v4763, %v4759
    %v4765 = vadd.f32 %v4764, %v4761
    %v4766 = vrot.slane %v4765, 4
    %v4767 = vadd.f32 %v4765, %v4766
    %v4768 = vrot.slane %v4767, 2
    %v4769 = vadd.f32 %v4767, %v4768
    %v4770 = vrot.slane %v4769, 1
    %v4771 = vadd.f32 %v4769, %v4770
    %v4772 = vadd.f32 %v4756, %v4758
    %v4773 = vadd.f32 %v4772, %v4760
    %v4774 = vadd.f32 %v4773, %v4762
    %v4775 = vrot.slane %v4774, 4
    %v4776 = vadd.f32 %v4774, %v4775
    %v4777 = vrot.slane %v4776, 2
    %v4778 = vadd.f32 %v4776, %v4777
    %v4779 = vrot.slane %v4778, 1
    %v4780 = vadd.f32 %v4778, %v4779
    %v4781 = vmul.f32 %v4755, %v3476
    %v4782 = vmul.f32 %v4756, %v3478
    %v4783 = vmul.f32 %v4757, %v3480
    %v4784 = vmul.f32 %v4758, %v3482
    %v4785 = vmul.f32 %v4759, %v3484
    %v4786 = vmul.f32 %v4760, %v3486
    %v4787 = vmul.f32 %v4761, %v3488
    %v4788 = vmul.f32 %v4762, %v3490
    %v4789 = vmul.f32 %v4781, 0.9677768
    %v4790 = vmul.f32 %v4782, 0.9677768
    %v4791 = vmul.f32 %v4783, 0.9677768
    %v4792 = vmul.f32 %v4784, 0.9677768
    %v4793 = vmul.f32 %v4785, 0.9677768
    %v4794 = vmul.f32 %v4786, 0.9677768
    %v4795 = vmul.f32 %v4787, 0.9677768
    %v4796 = vmul.f32 %v4788, 0.9677768
    %v4797 = vadd.f32 %v4789, %v4791
    %v4798 = vadd.f32 %v4797, %v4793
    %v4799 = vadd.f32 %v4798, %v4795
    %v4800 = vrot.slane %v4799, 4
    %v4801 = vadd.f32 %v4799, %v4800
    %v4802 = vrot.slane %v4801, 2
    %v4803 = vadd.f32 %v4801, %v4802
    %v4804 = vrot.slane %v4803, 1
    %v4805 = vadd.f32 %v4803, %v4804
    %v4806 = vadd.f32 %v4790, %v4792
    %v4807 = vadd.f32 %v4806, %v4794
    %v4808 = vadd.f32 %v4807, %v4796
    %v4809 = vrot.slane %v4808, 4
    %v4810 = vadd.f32 %v4808, %v4809
    %v4811 = vrot.slane %v4810, 2
    %v4812 = vadd.f32 %v4810, %v4811
    %v4813 = vrot.slane %v4812, 1
    %v4814 = vadd.f32 %v4812, %v4813
    %v4815 = vmul.f32 %v4789, %v3476
    %v4816 = vmul.f32 %v4790, %v3478
    %v4817 = vmul.f32 %v4791, %v3480
    %v4818 = vmul.f32 %v4792, %v3482
    %v4819 = vmul.f32 %v4793, %v3484
    %v4820 = vmul.f32 %v4794, %v3486
    %v4821 = vmul.f32 %v4795, %v3488
    %v4822 = vmul.f32 %v4796, %v3490
    %v4823 = vmul.f32 %v4815, 0.96680194
    %v4824 = vmul.f32 %v4816, 0.96680194
    %v4825 = vmul.f32 %v4817, 0.96680194
    %v4826 = vmul.f32 %v4818, 0.96680194
    %v4827 = vmul.f32 %v4819, 0.96680194
    %v4828 = vmul.f32 %v4820, 0.96680194
    %v4829 = vmul.f32 %v4821, 0.96680194
    %v4830 = vmul.f32 %v4822, 0.96680194
    %v4831 = vadd.f32 %v4823, %v4825
    %v4832 = vadd.f32 %v4831, %v4827
    %v4833 = vadd.f32 %v4832, %v4829
    %v4834 = vrot.slane %v4833, 4
    %v4835 = vadd.f32 %v4833, %v4834
    %v4836 = vrot.slane %v4835, 2
    %v4837 = vadd.f32 %v4835, %v4836
    %v4838 = vrot.slane %v4837, 1
    %v4839 = vadd.f32 %v4837, %v4838
    %v4840 = vadd.f32 %v4824, %v4826
    %v4841 = vadd.f32 %v4840, %v4828
    %v4842 = vadd.f32 %v4841, %v4830
    %v4843 = vrot.slane %v4842, 4
    %v4844 = vadd.f32 %v4842, %v4843
    %v4845 = vrot.slane %v4844, 2
    %v4846 = vadd.f32 %v4844, %v4845
    %v4847 = vrot.slane %v4846, 1
    %v4848 = vadd.f32 %v4846, %v4847
    %v4849 = vmul.f32 %v4823, %v3476
    %v4850 = vmul.f32 %v4824, %v3478
    %v4851 = vmul.f32 %v4825, %v3480
    %v4852 = vmul.f32 %v4826, %v3482
    %v4853 = vmul.f32 %v4827, %v3484
    %v4854 = vmul.f32 %v4828, %v3486
    %v4855 = vmul.f32 %v4829, %v3488
    %v4856 = vmul.f32 %v4830, %v3490
    %v4857 = vmul.f32 %v4849, 0.96582806
    %v4858 = vmul.f32 %v4850, 0.96582806
    %v4859 = vmul.f32 %v4851, 0.96582806
    %v4860 = vmul.f32 %v4852, 0.96582806
    %v4861 = vmul.f32 %v4853, 0.96582806
    %v4862 = vmul.f32 %v4854, 0.96582806
    %v4863 = vmul.f32 %v4855, 0.96582806
    %v4864 = vmul.f32 %v4856, 0.96582806
    %v4865 = vadd.f32 %v4857, %v4859
    %v4866 = vadd.f32 %v4865, %v4861
    %v4867 = vadd.f32 %v4866, %v4863
    %v4868 = vrot.slane %v4867, 4
    %v4869 = vadd.f32 %v4867, %v4868
    %v4870 = vrot.slane %v4869, 2
    %v4871 = vadd.f32 %v4869, %v4870
    %v4872 = vrot.slane %v4871, 1
    %v4873 = vadd.f32 %v4871, %v4872
    %v4874 = vadd.f32 %v4858, %v4860
    %v4875 = vadd.f32 %v4874, %v4862
    %v4876 = vadd.f32 %v4875, %v4864
    %v4877 = vrot.slane %v4876, 4
    %v4878 = vadd.f32 %v4876, %v4877
    %v4879 = vrot.slane %v4878, 2
    %v4880 = vadd.f32 %v4878, %v4879
    %v4881 = vrot.slane %v4880, 1
    %v4882 = vadd.f32 %v4880, %v4881
    %v4883 = vmul.f32 %v4857, %v3476
    %v4884 = vmul.f32 %v4858, %v3478
    %v4885 = vmul.f32 %v4859, %v3480
    %v4886 = vmul.f32 %v4860, %v3482
    %v4887 = vmul.f32 %v4861, %v3484
    %v4888 = vmul.f32 %v4862, %v3486
    %v4889 = vmul.f32 %v4863, %v3488
    %v4890 = vmul.f32 %v4864, %v3490
    %v4891 = vmul.f32 %v4883, 0.9648552
    %v4892 = vmul.f32 %v4884, 0.9648552
    %v4893 = vmul.f32 %v4885, 0.9648552
    %v4894 = vmul.f32 %v4886, 0.9648552
    %v4895 = vmul.f32 %v4887, 0.9648552
    %v4896 = vmul.f32 %v4888, 0.9648552
    %v4897 = vmul.f32 %v4889, 0.9648552
    %v4898 = vmul.f32 %v4890, 0.9648552
    %v4899 = vadd.f32 %v4891, %v4893
    %v4900 = vadd.f32 %v4899, %v4895
    %v4901 = vadd.f32 %v4900, %v4897
    %v4902 = vrot.slane %v4901, 4
    %v4903 = vadd.f32 %v4901, %v4902
    %v4904 = vrot.slane %v4903, 2
    %v4905 = vadd.f32 %v4903, %v4904
    %v4906 = vrot.slane %v4905, 1
    %v4907 = vadd.f32 %v4905, %v4906
    %v4908 = vadd.f32 %v4892, %v4894
    %v4909 = vadd.f32 %v4908, %v4896
    %v4910 = vadd.f32 %v4909, %v4898
    %v4911 = vrot.slane %v4910, 4
    %v4912 = vadd.f32 %v4910, %v4911
    %v4913 = vrot.slane %v4912, 2
    %v4914 = vadd.f32 %v4912, %v4913
    %v4915 = vrot.slane %v4914, 1
    %v4916 = vadd.f32 %v4914, %v4915
    %v4917 = vmul.f32 %v4891, %v3476
    %v4918 = vmul.f32 %v4892, %v3478
    %v4919 = vmul.f32 %v4893, %v3480
    %v4920 = vmul.f32 %v4894, %v3482
    %v4921 = vmul.f32 %v4895, %v3484
    %v4922 = vmul.f32 %v4896, %v3486
    %v4923 = vmul.f32 %v4897, %v3488
    %v4924 = vmul.f32 %v4898, %v3490
    %v4925 = vmul.f32 %v4917, 0.9638833
    %v4926 = vmul.f32 %v4918, 0.9638833
    %v4927 = vmul.f32 %v4919, 0.9638833
    %v4928 = vmul.f32 %v4920, 0.9638833
    %v4929 = vmul.f32 %v4921, 0.9638833
    %v4930 = vmul.f32 %v4922, 0.9638833
    %v4931 = vmul.f32 %v4923, 0.9638833
    %v4932 = vmul.f32 %v4924, 0.9638833
    %v4933 = vadd.f32 %v4925, %v4927
    %v4934 = vadd.f32 %v4933, %v4929
    %v4935 = vadd.f32 %v4934, %v4931
    %v4936 = vrot.slane %v4935, 4
    %v4937 = vadd.f32 %v4935, %v4936
    %v4938 = vrot.slane %v4937, 2
    %v4939 = vadd.f32 %v4937, %v4938
    %v4940 = vrot.slane %v4939, 1
    %v4941 = vadd.f32 %v4939, %v4940
    %v4942 = vadd.f32 %v4926, %v4928
    %v4943 = vadd.f32 %v4942, %v4930
    %v4944 = vadd.f32 %v4943, %v4932
    %v4945 = vrot.slane %v4944, 4
    %v4946 = vadd.f32 %v4944, %v4945
    %v4947 = vrot.slane %v4946, 2
    %v4948 = vadd.f32 %v4946, %v4947
    %v4949 = vrot.slane %v4948, 1
    %v4950 = vadd.f32 %v4948, %v4949
    %v4951 = vmul.f32 %v4925, %v3476
    %v4952 = vmul.f32 %v4926, %v3478
    %v4953 = vmul.f32 %v4927, %v3480
    %v4954 = vmul.f32 %v4928, %v3482
    %v4955 = vmul.f32 %v4929, %v3484
    %v4956 = vmul.f32 %v4930, %v3486
    %v4957 = vmul.f32 %v4931, %v3488
    %v4958 = vmul.f32 %v4932, %v3490
    %v4959 = vmul.f32 %v4951, 0.9629123
    %v4960 = vmul.f32 %v4952, 0.9629123
    %v4961 = vmul.f32 %v4953, 0.9629123
    %v4962 = vmul.f32 %v4954, 0.9629123
    %v4963 = vmul.f32 %v4955, 0.9629123
    %v4964 = vmul.f32 %v4956, 0.9629123
    %v4965 = vmul.f32 %v4957, 0.9629123
    %v4966 = vmul.f32 %v4958, 0.9629123
    %v4967 = vadd.f32 %v4959, %v4961
    %v4968 = vadd.f32 %v4967, %v4963
    %v4969 = vadd.f32 %v4968, %v4965
    %v4970 = vrot.slane %v4969, 4
    %v4971 = vadd.f32 %v4969, %v4970
    %v4972 = vrot.slane %v4971, 2
    %v4973 = vadd.f32 %v4971, %v4972
    %v4974 = vrot.slane %v4973, 1
    %v4975 = vadd.f32 %v4973, %v4974
    %v4976 = vadd.f32 %v4960, %v4962
    %v4977 = vadd.f32 %v4976, %v4964
    %v4978 = vadd.f32 %v4977, %v4966
    %v4979 = vrot.slane %v4978, 4
    %v4980 = vadd.f32 %v4978, %v4979
    %v4981 = vrot.slane %v4980, 2
    %v4982 = vadd.f32 %v4980, %v4981
    %v4983 = vrot.slane %v4982, 1
    %v4984 = vadd.f32 %v4982, %v4983
    %v4985 = vmul.f32 %v4959, %v3476
    %v4986 = vmul.f32 %v4960, %v3478
    %v4987 = vmul.f32 %v4961, %v3480
    %v4988 = vmul.f32 %v4962, %v3482
    %v4989 = vmul.f32 %v4963, %v3484
    %v4990 = vmul.f32 %v4964, %v3486
    %v4991 = vmul.f32 %v4965, %v3488
    %v4992 = vmul.f32 %v4966, %v3490
    %v4993 = vmul.f32 %v4985, 0.9619424
    %v4994 = vmul.f32 %v4986, 0.9619424
    %v4995 = vmul.f32 %v4987, 0.9619424
    %v4996 = vmul.f32 %v4988, 0.9619424
    %v4997 = vmul.f32 %v4989, 0.9619424
    %v4998 = vmul.f32 %v4990, 0.9619424
    %v4999 = vmul.f32 %v4991, 0.9619424
    %v5000 = vmul.f32 %v4992, 0.9619424
    %v5001 = vadd.f32 %v4993, %v4995
    %v5002 = vadd.f32 %v5001, %v4997
    %v5003 = vadd.f32 %v5002, %v4999
    %v5004 = vrot.slane %v5003, 4
    %v5005 = vadd.f32 %v5003, %v5004
    %v5006 = vrot.slane %v5005, 2
    %v5007 = vadd.f32 %v5005, %v5006
    %v5008 = vrot.slane %v5007, 1
    %v5009 = vadd.f32 %v5007, %v5008
    %v5010 = vadd.f32 %v4994, %v4996
    %v5011 = vadd.f32 %v5010, %v4998
    %v5012 = vadd.f32 %v5011, %v5000
    %v5013 = vrot.slane %v5012, 4
    %v5014 = vadd.f32 %v5012, %v5013
    %v5015 = vrot.slane %v5014, 2
    %v5016 = vadd.f32 %v5014, %v5015
    %v5017 = vrot.slane %v5016, 1
    %v5018 = vadd.f32 %v5016, %v5017
    %v5019 = vmul.f32 %v4993, %v3476
    %v5020 = vmul.f32 %v4994, %v3478
    %v5021 = vmul.f32 %v4995, %v3480
    %v5022 = vmul.f32 %v4996, %v3482
    %v5023 = vmul.f32 %v4997, %v3484
    %v5024 = vmul.f32 %v4998, %v3486
    %v5025 = vmul.f32 %v4999, %v3488
    %v5026 = vmul.f32 %v5000, %v3490
    %v5027 = vmul.f32 %v5019, 0.96097344
    %v5028 = vmul.f32 %v5020, 0.96097344
    %v5029 = vmul.f32 %v5021, 0.96097344
    %v5030 = vmul.f32 %v5022, 0.96097344
    %v5031 = vmul.f32 %v5023, 0.96097344
    %v5032 = vmul.f32 %v5024, 0.96097344
    %v5033 = vmul.f32 %v5025, 0.96097344
    %v5034 = vmul.f32 %v5026, 0.96097344
    %v5035 = vadd.f32 %v5027, %v5029
    %v5036 = vadd.f32 %v5035, %v5031
    %v5037 = vadd.f32 %v5036, %v5033
    %v5038 = vrot.slane %v5037, 4
    %v5039 = vadd.f32 %v5037, %v5038
    %v5040 = vrot.slane %v5039, 2
    %v5041 = vadd.f32 %v5039, %v5040
    %v5042 = vrot.slane %v5041, 1
    %v5043 = vadd.f32 %v5041, %v5042
    %v5044 = vadd.f32 %v5028, %v5030
    %v5045 = vadd.f32 %v5044, %v5032
    %v5046 = vadd.f32 %v5045, %v5034
    %v5047 = vrot.slane %v5046, 4
    %v5048 = vadd.f32 %v5046, %v5047
    %v5049 = vrot.slane %v5048, 2
    %v5050 = vadd.f32 %v5048, %v5049
    %v5051 = vrot.slane %v5050, 1
    %v5052 = vadd.f32 %v5050, %v5051
    %v5053 = vmul.f32 %v5027, %v3476
    %v5054 = vmul.f32 %v5028, %v3478
    %v5055 = vmul.f32 %v5029, %v3480
    %v5056 = vmul.f32 %v5030, %v3482
    %v5057 = vmul.f32 %v5031, %v3484
    %v5058 = vmul.f32 %v5032, %v3486
    %v5059 = vmul.f32 %v5033, %v3488
    %v5060 = vmul.f32 %v5034, %v3490
    %v5061 = vmul.f32 %v5053, 0.96000546
    %v5062 = vmul.f32 %v5054, 0.96000546
    %v5063 = vmul.f32 %v5055, 0.96000546
    %v5064 = vmul.f32 %v5056, 0.96000546
    %v5065 = vmul.f32 %v5057, 0.96000546
    %v5066 = vmul.f32 %v5058, 0.96000546
    %v5067 = vmul.f32 %v5059, 0.96000546
    %v5068 = vmul.f32 %v5060, 0.96000546
    %v5069 = vadd.f32 %v5061, %v5063
    %v5070 = vadd.f32 %v5069, %v5065
    %v5071 = vadd.f32 %v5070, %v5067
    %v5072 = vrot.slane %v5071, 4
    %v5073 = vadd.f32 %v5071, %v5072
    %v5074 = vrot.slane %v5073, 2
    %v5075 = vadd.f32 %v5073, %v5074
    %v5076 = vrot.slane %v5075, 1
    %v5077 = vadd.f32 %v5075, %v5076
    %v5078 = vadd.f32 %v5062, %v5064
    %v5079 = vadd.f32 %v5078, %v5066
    %v5080 = vadd.f32 %v5079, %v5068
    %v5081 = vrot.slane %v5080, 4
    %v5082 = vadd.f32 %v5080, %v5081
    %v5083 = vrot.slane %v5082, 2
    %v5084 = vadd.f32 %v5082, %v5083
    %v5085 = vrot.slane %v5084, 1
    %v5086 = vadd.f32 %v5084, %v5085
    %v5087 = vmul.f32 %v5061, %v3476
    %v5088 = vmul.f32 %v5062, %v3478
    %v5089 = vmul.f32 %v5063, %v3480
    %v5090 = vmul.f32 %v5064, %v3482
    %v5091 = vmul.f32 %v5065, %v3484
    %v5092 = vmul.f32 %v5066, %v3486
    %v5093 = vmul.f32 %v5067, %v3488
    %v5094 = vmul.f32 %v5068, %v3490
    %v5095 = vmul.f32 %v5087, 0.95903844
    %v5096 = vmul.f32 %v5088, 0.95903844
    %v5097 = vmul.f32 %v5089, 0.95903844
    %v5098 = vmul.f32 %v5090, 0.95903844
    %v5099 = vmul.f32 %v5091, 0.95903844
    %v5100 = vmul.f32 %v5092, 0.95903844
    %v5101 = vmul.f32 %v5093, 0.95903844
    %v5102 = vmul.f32 %v5094, 0.95903844
    %v5103 = vadd.f32 %v5095, %v5097
    %v5104 = vadd.f32 %v5103, %v5099
    %v5105 = vadd.f32 %v5104, %v5101
    %v5106 = vrot.slane %v5105, 4
    %v5107 = vadd.f32 %v5105, %v5106
    %v5108 = vrot.slane %v5107, 2
    %v5109 = vadd.f32 %v5107, %v5108
    %v5110 = vrot.slane %v5109, 1
    %v5111 = vadd.f32 %v5109, %v5110
    %v5112 = vadd.f32 %v5096, %v5098
    %v5113 = vadd.f32 %v5112, %v5100
    %v5114 = vadd.f32 %v5113, %v5102
    %v5115 = vrot.slane %v5114, 4
    %v5116 = vadd.f32 %v5114, %v5115
    %v5117 = vrot.slane %v5116, 2
    %v5118 = vadd.f32 %v5116, %v5117
    %v5119 = vrot.slane %v5118, 1
    %v5120 = vadd.f32 %v5118, %v5119
    %v5121 = vmul.f32 %v5095, %v3476
    %v5122 = vmul.f32 %v5096, %v3478
    %v5123 = vmul.f32 %v5097, %v3480
    %v5124 = vmul.f32 %v5098, %v3482
    %v5125 = vmul.f32 %v5099, %v3484
    %v5126 = vmul.f32 %v5100, %v3486
    %v5127 = vmul.f32 %v5101, %v3488
    %v5128 = vmul.f32 %v5102, %v3490
    %v5129 = vmul.f32 %v5121, 0.95807236
    %v5130 = vmul.f32 %v5122, 0.95807236
    %v5131 = vmul.f32 %v5123, 0.95807236
    %v5132 = vmul.f32 %v5124, 0.95807236
    %v5133 = vmul.f32 %v5125, 0.95807236
    %v5134 = vmul.f32 %v5126, 0.95807236
    %v5135 = vmul.f32 %v5127, 0.95807236
    %v5136 = vmul.f32 %v5128, 0.95807236
    %v5137 = vadd.f32 %v5129, %v5131
    %v5138 = vadd.f32 %v5137, %v5133
    %v5139 = vadd.f32 %v5138, %v5135
    %v5140 = vrot.slane %v5139, 4
    %v5141 = vadd.f32 %v5139, %v5140
    %v5142 = vrot.slane %v5141, 2
    %v5143 = vadd.f32 %v5141, %v5142
    %v5144 = vrot.slane %v5143, 1
    %v5145 = vadd.f32 %v5143, %v5144
    %v5146 = vadd.f32 %v5130, %v5132
    %v5147 = vadd.f32 %v5146, %v5134
    %v5148 = vadd.f32 %v5147, %v5136
    %v5149 = vrot.slane %v5148, 4
    %v5150 = vadd.f32 %v5148, %v5149
    %v5151 = vrot.slane %v5150, 2
    %v5152 = vadd.f32 %v5150, %v5151
    %v5153 = vrot.slane %v5152, 1
    %v5154 = vadd.f32 %v5152, %v5153
    %v5155 = vmul.f32 %v5129, %v3476
    %v5156 = vmul.f32 %v5130, %v3478
    %v5157 = vmul.f32 %v5131, %v3480
    %v5158 = vmul.f32 %v5132, %v3482
    %v5159 = vmul.f32 %v5133, %v3484
    %v5160 = vmul.f32 %v5134, %v3486
    %v5161 = vmul.f32 %v5135, %v3488
    %v5162 = vmul.f32 %v5136, %v3490
    %v5163 = vmul.f32 %v5155, 0.9571073
    %v5164 = vmul.f32 %v5156, 0.9571073
    %v5165 = vmul.f32 %v5157, 0.9571073
    %v5166 = vmul.f32 %v5158, 0.9571073
    %v5167 = vmul.f32 %v5159, 0.9571073
    %v5168 = vmul.f32 %v5160, 0.9571073
    %v5169 = vmul.f32 %v5161, 0.9571073
    %v5170 = vmul.f32 %v5162, 0.9571073
    %v5171 = vadd.f32 %v5163, %v5165
    %v5172 = vadd.f32 %v5171, %v5167
    %v5173 = vadd.f32 %v5172, %v5169
    %v5174 = vrot.slane %v5173, 4
    %v5175 = vadd.f32 %v5173, %v5174
    %v5176 = vrot.slane %v5175, 2
    %v5177 = vadd.f32 %v5175, %v5176
    %v5178 = vrot.slane %v5177, 1
    %v5179 = vadd.f32 %v5177, %v5178
    %v5180 = vadd.f32 %v5164, %v5166
    %v5181 = vadd.f32 %v5180, %v5168
    %v5182 = vadd.f32 %v5181, %v5170
    %v5183 = vrot.slane %v5182, 4
    %v5184 = vadd.f32 %v5182, %v5183
    %v5185 = vrot.slane %v5184, 2
    %v5186 = vadd.f32 %v5184, %v5185
    %v5187 = vrot.slane %v5186, 1
    %v5188 = vadd.f32 %v5186, %v5187
    %v5189 = vmul.f32 %v5163, %v3476
    %v5190 = vmul.f32 %v5164, %v3478
    %v5191 = vmul.f32 %v5165, %v3480
    %v5192 = vmul.f32 %v5166, %v3482
    %v5193 = vmul.f32 %v5167, %v3484
    %v5194 = vmul.f32 %v5168, %v3486
    %v5195 = vmul.f32 %v5169, %v3488
    %v5196 = vmul.f32 %v5170, %v3490
    %v5197 = vmul.f32 %v5189, 0.9561432
    %v5198 = vmul.f32 %v5190, 0.9561432
    %v5199 = vmul.f32 %v5191, 0.9561432
    %v5200 = vmul.f32 %v5192, 0.9561432
    %v5201 = vmul.f32 %v5193, 0.9561432
    %v5202 = vmul.f32 %v5194, 0.9561432
    %v5203 = vmul.f32 %v5195, 0.9561432
    %v5204 = vmul.f32 %v5196, 0.9561432
    %v5205 = vadd.f32 %v5197, %v5199
    %v5206 = vadd.f32 %v5205, %v5201
    %v5207 = vadd.f32 %v5206, %v5203
    %v5208 = vrot.slane %v5207, 4
    %v5209 = vadd.f32 %v5207, %v5208
    %v5210 = vrot.slane %v5209, 2
    %v5211 = vadd.f32 %v5209, %v5210
    %v5212 = vrot.slane %v5211, 1
    %v5213 = vadd.f32 %v5211, %v5212
    %v5214 = vadd.f32 %v5198, %v5200
    %v5215 = vadd.f32 %v5214, %v5202
    %v5216 = vadd.f32 %v5215, %v5204
    %v5217 = vrot.slane %v5216, 4
    %v5218 = vadd.f32 %v5216, %v5217
    %v5219 = vrot.slane %v5218, 2
    %v5220 = vadd.f32 %v5218, %v5219
    %v5221 = vrot.slane %v5220, 1
    %v5222 = vadd.f32 %v5220, %v5221
    %v5223 = vmul.f32 %v5197, %v3476
    %v5224 = vmul.f32 %v5198, %v3478
    %v5225 = vmul.f32 %v5199, %v3480
    %v5226 = vmul.f32 %v5200, %v3482
    %v5227 = vmul.f32 %v5201, %v3484
    %v5228 = vmul.f32 %v5202, %v3486
    %v5229 = vmul.f32 %v5203, %v3488
    %v5230 = vmul.f32 %v5204, %v3490
    %v5231 = vmul.f32 %v5223, 0.9551801
    %v5232 = vmul.f32 %v5224, 0.9551801
    %v5233 = vmul.f32 %v5225, 0.9551801
    %v5234 = vmul.f32 %v5226, 0.9551801
    %v5235 = vmul.f32 %v5227, 0.9551801
    %v5236 = vmul.f32 %v5228, 0.9551801
    %v5237 = vmul.f32 %v5229, 0.9551801
    %v5238 = vmul.f32 %v5230, 0.9551801
    %v5239 = vadd.f32 %v5231, %v5233
    %v5240 = vadd.f32 %v5239, %v5235
    %v5241 = vadd.f32 %v5240, %v5237
    %v5242 = vrot.slane %v5241, 4
    %v5243 = vadd.f32 %v5241, %v5242
    %v5244 = vrot.slane %v5243, 2
    %v5245 = vadd.f32 %v5243, %v5244
    %v5246 = vrot.slane %v5245, 1
    %v5247 = vadd.f32 %v5245, %v5246
    %v5248 = vadd.f32 %v5232, %v5234
    %v5249 = vadd.f32 %v5248, %v5236
    %v5250 = vadd.f32 %v5249, %v5238
    %v5251 = vrot.slane %v5250, 4
    %v5252 = vadd.f32 %v5250, %v5251
    %v5253 = vrot.slane %v5252, 2
    %v5254 = vadd.f32 %v5252, %v5253
    %v5255 = vrot.slane %v5254, 1
    %v5256 = vadd.f32 %v5254, %v5255
    %v5257 = vmul.f32 %v5231, %v3476
    %v5258 = vmul.f32 %v5232, %v3478
    %v5259 = vmul.f32 %v5233, %v3480
    %v5260 = vmul.f32 %v5234, %v3482
    %v5261 = vmul.f32 %v5235, %v3484
    %v5262 = vmul.f32 %v5236, %v3486
    %v5263 = vmul.f32 %v5237, %v3488
    %v5264 = vmul.f32 %v5238, %v3490
    %v5265 = vmul.f32 %v5257, 0.9542179
    %v5266 = vmul.f32 %v5258, 0.9542179
    %v5267 = vmul.f32 %v5259, 0.9542179
    %v5268 = vmul.f32 %v5260, 0.9542179
    %v5269 = vmul.f32 %v5261, 0.9542179
    %v5270 = vmul.f32 %v5262, 0.9542179
    %v5271 = vmul.f32 %v5263, 0.9542179
    %v5272 = vmul.f32 %v5264, 0.9542179
    %v5273 = vadd.f32 %v5265, %v5267
    %v5274 = vadd.f32 %v5273, %v5269
    %v5275 = vadd.f32 %v5274, %v5271
    %v5276 = vrot.slane %v5275, 4
    %v5277 = vadd.f32 %v5275, %v5276
    %v5278 = vrot.slane %v5277, 2
    %v5279 = vadd.f32 %v5277, %v5278
    %v5280 = vrot.slane %v5279, 1
    %v5281 = vadd.f32 %v5279, %v5280
    %v5282 = vadd.f32 %v5266, %v5268
    %v5283 = vadd.f32 %v5282, %v5270
    %v5284 = vadd.f32 %v5283, %v5272
    %v5285 = vrot.slane %v5284, 4
    %v5286 = vadd.f32 %v5284, %v5285
    %v5287 = vrot.slane %v5286, 2
    %v5288 = vadd.f32 %v5286, %v5287
    %v5289 = vrot.slane %v5288, 1
    %v5290 = vadd.f32 %v5288, %v5289
    %v5291 = vsel %vm1170, %v4771, %v4805
    %v5292 = vsel %vm1170, %v4780, %v4814
    %v5293 = vsel %vm1173, %v5291, %v4839
    %v5294 = vsel %vm1173, %v5292, %v4848
    %v5295 = vsel %vm1176, %v5293, %v4873
    %v5296 = vsel %vm1176, %v5294, %v4882
    %v5297 = vsel %vm1179, %v5295, %v4907
    %v5298 = vsel %vm1179, %v5296, %v4916
    %v5299 = vsel %vm1182, %v5297, %v4941
    %v5300 = vsel %vm1182, %v5298, %v4950
    %v5301 = vsel %vm1185, %v5299, %v4975
    %v5302 = vsel %vm1185, %v5300, %v4984
    %v5303 = vsel %vm1188, %v5301, %v5009
    %v5304 = vsel %vm1188, %v5302, %v5018
    %v5305 = vsel %vm1170, %v5043, %v5077
    %v5306 = vsel %vm1170, %v5052, %v5086
    %v5307 = vsel %vm1173, %v5305, %v5111
    %v5308 = vsel %vm1173, %v5306, %v5120
    %v5309 = vsel %vm1176, %v5307, %v5145
    %v5310 = vsel %vm1176, %v5308, %v5154
    %v5311 = vsel %vm1179, %v5309, %v5179
    %v5312 = vsel %vm1179, %v5310, %v5188
    %v5313 = vsel %vm1182, %v5311, %v5213
    %v5314 = vsel %vm1182, %v5312, %v5222
    %v5315 = vsel %vm1185, %v5313, %v5247
    %v5316 = vsel %vm1185, %v5314, %v5256
    %v5317 = vsel %vm1188, %v5315, %v5281
    %v5318 = vsel %vm1188, %v5316, %v5290
    %v5319 = vld [vmem:[#allocation3 + $0x40] sm:$0xff]
    %v5320 = vld [vmem:[#allocation3 + $0x48] sm:$0xff]
    %v5321 = vld [vmem:[#allocation3 + $0x50] sm:$0xff]
    %v5322 = vld [vmem:[#allocation3 + $0x58] sm:$0xff]
    %v5323 = vadd.f32 %v5319, %v5303
    %v5324 = vadd.f32 %v5320, %v5304
    %v5325 = vadd.f32 %v5321, %v5317
    %v5326 = vadd.f32 %v5322, %v5318
    %5327 = vst [vmem:[#allocation3 + $0x40] sm:$0xff] %v5323
    %5328 = vst [vmem:[#allocation3 + $0x48] sm:$0xff] %v5324
    %5329 = vst [vmem:[#allocation3 + $0x50] sm:$0xff] %v5325
    %5330 = vst [vmem:[#allocation3 + $0x58] sm:$0xff] %v5326
    %v5331 = vsub.f32 %v3459, 0.7619048
    %v5332 = vsub.f32 %v3460, 0.7619048
    %v5333 = vsub.f32 %v3461, 0.7619048
    %v5334 = vsub.f32 %v3462, 0.7619048
    %v5335 = vsub.f32 %v3463, 0.7619048
    %v5336 = vsub.f32 %v3464, 0.7619048
    %v5337 = vsub.f32 %v3465, 0.7619048
    %v5338 = vsub.f32 %v3466, 0.7619048
    %v5339 = vmul.f32 %v5331, %v5331
    %v5340 = vmul.f32 %v5332, %v5332
    %v5341 = vmul.f32 %v5333, %v5333
    %v5342 = vmul.f32 %v5334, %v5334
    %v5343 = vmul.f32 %v5335, %v5335
    %v5344 = vmul.f32 %v5336, %v5336
    %v5345 = vmul.f32 %v5337, %v5337
    %v5346 = vmul.f32 %v5338, %v5338
    %v5347 = vmul.f32 %v5339, -2.0
    %v5348 = vmul.f32 %v5340, -2.0
    %v5349 = vmul.f32 %v5341, -2.0
    %v5350 = vmul.f32 %v5342, -2.0
    %v5351 = vmul.f32 %v5343, -2.0
    %v5352 = vmul.f32 %v5344, -2.0
    %v5353 = vmul.f32 %v5345, -2.0
    %v5354 = vmul.f32 %v5346, -2.0
    %v5355 = vmul.f32 %v5347, 1.442695
    %v5356 = vpow.pop %v5355
    %v5357 = vmul.f32 %v5348, 1.442695
    %v5358 = vpow.pop %v5357
    %v5359 = vmul.f32 %v5349, 1.442695
    %v5360 = vpow.pop %v5359
    %v5361 = vmul.f32 %v5350, 1.442695
    %v5362 = vpow.pop %v5361
    %v5363 = vmul.f32 %v5351, 1.442695
    %v5364 = vpow.pop %v5363
    %v5365 = vmul.f32 %v5352, 1.442695
    %v5366 = vpow.pop %v5365
    %v5367 = vmul.f32 %v5353, 1.442695
    %v5368 = vpow.pop %v5367
    %v5369 = vmul.f32 %v5354, 1.442695
    %v5370 = vpow.pop %v5369
    %v5371 = vmul.f32 %v5356, %v627
    %v5372 = vmul.f32 %v5358, %v631
    %v5373 = vmul.f32 %v5360, %v627
    %v5374 = vmul.f32 %v5362, %v631
    %v5375 = vmul.f32 %v5364, %v627
    %v5376 = vmul.f32 %v5366, %v631
    %v5377 = vmul.f32 %v5368, %v627
    %v5378 = vmul.f32 %v5370, %v631
    %v5379 = vadd.f32 %v5371, %v5373
    %v5380 = vadd.f32 %v5379, %v5375
    %v5381 = vadd.f32 %v5380, %v5377
    %v5382 = vrot.slane %v5381, 4
    %v5383 = vadd.f32 %v5381, %v5382
    %v5384 = vrot.slane %v5383, 2
    %v5385 = vadd.f32 %v5383, %v5384
    %v5386 = vrot.slane %v5385, 1
    %v5387 = vadd.f32 %v5385, %v5386
    %v5388 = vadd.f32 %v5372, %v5374
    %v5389 = vadd.f32 %v5388, %v5376
    %v5390 = vadd.f32 %v5389, %v5378
    %v5391 = vrot.slane %v5390, 4
    %v5392 = vadd.f32 %v5390, %v5391
    %v5393 = vrot.slane %v5392, 2
    %v5394 = vadd.f32 %v5392, %v5393
    %v5395 = vrot.slane %v5394, 1
    %v5396 = vadd.f32 %v5394, %v5395
    %v5397 = vmul.f32 %v5371, %v3476
    %v5398 = vmul.f32 %v5372, %v3478
    %v5399 = vmul.f32 %v5373, %v3480
    %v5400 = vmul.f32 %v5374, %v3482
    %v5401 = vmul.f32 %v5375, %v3484
    %v5402 = vmul.f32 %v5376, %v3486
    %v5403 = vmul.f32 %v5377, %v3488
    %v5404 = vmul.f32 %v5378, %v3490
    %v5405 = vmul.f32 %v5397, 0.95229656
    %v5406 = vmul.f32 %v5398, 0.95229656
    %v5407 = vmul.f32 %v5399, 0.95229656
    %v5408 = vmul.f32 %v5400, 0.95229656
    %v5409 = vmul.f32 %v5401, 0.95229656
    %v5410 = vmul.f32 %v5402, 0.95229656
    %v5411 = vmul.f32 %v5403, 0.95229656
    %v5412 = vmul.f32 %v5404, 0.95229656
    %v5413 = vadd.f32 %v5405, %v5407
    %v5414 = vadd.f32 %v5413, %v5409
    %v5415 = vadd.f32 %v5414, %v5411
    %v5416 = vrot.slane %v5415, 4
    %v5417 = vadd.f32 %v5415, %v5416
    %v5418 = vrot.slane %v5417, 2
    %v5419 = vadd.f32 %v5417, %v5418
    %v5420 = vrot.slane %v5419, 1
    %v5421 = vadd.f32 %v5419, %v5420
    %v5422 = vadd.f32 %v5406, %v5408
    %v5423 = vadd.f32 %v5422, %v5410
    %v5424 = vadd.f32 %v5423, %v5412
    %v5425 = vrot.slane %v5424, 4
    %v5426 = vadd.f32 %v5424, %v5425
    %v5427 = vrot.slane %v5426, 2
    %v5428 = vadd.f32 %v5426, %v5427
    %v5429 = vrot.slane %v5428, 1
    %v5430 = vadd.f32 %v5428, %v5429
    %v5431 = vmul.f32 %v5405, %v3476
    %v5432 = vmul.f32 %v5406, %v3478
    %v5433 = vmul.f32 %v5407, %v3480
    %v5434 = vmul.f32 %v5408, %v3482
    %v5435 = vmul.f32 %v5409, %v3484
    %v5436 = vmul.f32 %v5410, %v3486
    %v5437 = vmul.f32 %v5411, %v3488
    %v5438 = vmul.f32 %v5412, %v3490
    %v5439 = vmul.f32 %v5431, 0.9513373
    %v5440 = vmul.f32 %v5432, 0.9513373
    %v5441 = vmul.f32 %v5433, 0.9513373
    %v5442 = vmul.f32 %v5434, 0.9513373
    %v5443 = vmul.f32 %v5435, 0.9513373
    %v5444 = vmul.f32 %v5436, 0.9513373
    %v5445 = vmul.f32 %v5437, 0.9513373
    %v5446 = vmul.f32 %v5438, 0.9513373
    %v5447 = vadd.f32 %v5439, %v5441
    %v5448 = vadd.f32 %v5447, %v5443
    %v5449 = vadd.f32 %v5448, %v5445
    %v5450 = vrot.slane %v5449, 4
    %v5451 = vadd.f32 %v5449, %v5450
    %v5452 = vrot.slane %v5451, 2
    %v5453 = vadd.f32 %v5451, %v5452
    %v5454 = vrot.slane %v5453, 1
    %v5455 = vadd.f32 %v5453, %v5454
    %v5456 = vadd.f32 %v5440, %v5442
    %v5457 = vadd.f32 %v5456, %v5444
    %v5458 = vadd.f32 %v5457, %v5446
    %v5459 = vrot.slane %v5458, 4
    %v5460 = vadd.f32 %v5458, %v5459
    %v5461 = vrot.slane %v5460, 2
    %v5462 = vadd.f32 %v5460, %v5461
    %v5463 = vrot.slane %v5462, 1
    %v5464 = vadd.f32 %v5462, %v5463
    %v5465 = vmul.f32 %v5439, %v3476
    %v5466 = vmul.f32 %v5440, %v3478
    %v5467 = vmul.f32 %v5441, %v3480
    %v5468 = vmul.f32 %v5442, %v3482
    %v5469 = vmul.f32 %v5443, %v3484
    %v5470 = vmul.f32 %v5444, %v3486
    %v5471 = vmul.f32 %v5445, %v3488
    %v5472 = vmul.f32 %v5446, %v3490
    %v5473 = vmul.f32 %v5465, 0.950379
    %v5474 = vmul.f32 %v5466, 0.950379
    %v5475 = vmul.f32 %v5467, 0.950379
    %v5476 = vmul.f32 %v5468, 0.950379
    %v5477 = vmul.f32 %v5469, 0.950379
    %v5478 = vmul.f32 %v5470, 0.950379
    %v5479 = vmul.f32 %v5471, 0.950379
    %v5480 = vmul.f32 %v5472, 0.950379
    %v5481 = vadd.f32 %v5473, %v5475
    %v5482 = vadd.f32 %v5481, %v5477
    %v5483 = vadd.f32 %v5482, %v5479
    %v5484 = vrot.slane %v5483, 4
    %v5485 = vadd.f32 %v5483, %v5484
    %v5486 = vrot.slane %v5485, 2
    %v5487 = vadd.f32 %v5485, %v5486
    %v5488 = vrot.slane %v5487, 1
    %v5489 = vadd.f32 %v5487, %v5488
    %v5490 = vadd.f32 %v5474, %v5476
    %v5491 = vadd.f32 %v5490, %v5478
    %v5492 = vadd.f32 %v5491, %v5480
    %v5493 = vrot.slane %v5492, 4
    %v5494 = vadd.f32 %v5492, %v5493
    %v5495 = vrot.slane %v5494, 2
    %v5496 = vadd.f32 %v5494, %v5495
    %v5497 = vrot.slane %v5496, 1
    %v5498 = vadd.f32 %v5496, %v5497
    %v5499 = vmul.f32 %v5473, %v3476
    %v5500 = vmul.f32 %v5474, %v3478
    %v5501 = vmul.f32 %v5475, %v3480
    %v5502 = vmul.f32 %v5476, %v3482
    %v5503 = vmul.f32 %v5477, %v3484
    %v5504 = vmul.f32 %v5478, %v3486
    %v5505 = vmul.f32 %v5479, %v3488
    %v5506 = vmul.f32 %v5480, %v3490
    %v5507 = vmul.f32 %v5499, 0.9494217
    %v5508 = vmul.f32 %v5500, 0.9494217
    %v5509 = vmul.f32 %v5501, 0.9494217
    %v5510 = vmul.f32 %v5502, 0.9494217
    %v5511 = vmul.f32 %v5503, 0.9494217
    %v5512 = vmul.f32 %v5504, 0.9494217
    %v5513 = vmul.f32 %v5505, 0.9494217
    %v5514 = vmul.f32 %v5506, 0.9494217
    %v5515 = vadd.f32 %v5507, %v5509
    %v5516 = vadd.f32 %v5515, %v5511
    %v5517 = vadd.f32 %v5516, %v5513
    %v5518 = vrot.slane %v5517, 4
    %v5519 = vadd.f32 %v5517, %v5518
    %v5520 = vrot.slane %v5519, 2
    %v5521 = vadd.f32 %v5519, %v5520
    %v5522 = vrot.slane %v5521, 1
    %v5523 = vadd.f32 %v5521, %v5522
    %v5524 = vadd.f32 %v5508, %v5510
    %v5525 = vadd.f32 %v5524, %v5512
    %v5526 = vadd.f32 %v5525, %v5514
    %v5527 = vrot.slane %v5526, 4
    %v5528 = vadd.f32 %v5526, %v5527
    %v5529 = vrot.slane %v5528, 2
    %v5530 = vadd.f32 %v5528, %v5529
    %v5531 = vrot.slane %v5530, 1
    %v5532 = vadd.f32 %v5530, %v5531
    %v5533 = vmul.f32 %v5507, %v3476
    %v5534 = vmul.f32 %v5508, %v3478
    %v5535 = vmul.f32 %v5509, %v3480
    %v5536 = vmul.f32 %v5510, %v3482
    %v5537 = vmul.f32 %v5511, %v3484
    %v5538 = vmul.f32 %v5512, %v3486
    %v5539 = vmul.f32 %v5513, %v3488
    %v5540 = vmul.f32 %v5514, %v3490
    %v5541 = vmul.f32 %v5533, 0.94846535
    %v5542 = vmul.f32 %v5534, 0.94846535
    %v5543 = vmul.f32 %v5535, 0.94846535
    %v5544 = vmul.f32 %v5536, 0.94846535
    %v5545 = vmul.f32 %v5537, 0.94846535
    %v5546 = vmul.f32 %v5538, 0.94846535
    %v5547 = vmul.f32 %v5539, 0.94846535
    %v5548 = vmul.f32 %v5540, 0.94846535
    %v5549 = vadd.f32 %v5541, %v5543
    %v5550 = vadd.f32 %v5549, %v5545
    %v5551 = vadd.f32 %v5550, %v5547
    %v5552 = vrot.slane %v5551, 4
    %v5553 = vadd.f32 %v5551, %v5552
    %v5554 = vrot.slane %v5553, 2
    %v5555 = vadd.f32 %v5553, %v5554
    %v5556 = vrot.slane %v5555, 1
    %v5557 = vadd.f32 %v5555, %v5556
    %v5558 = vadd.f32 %v5542, %v5544
    %v5559 = vadd.f32 %v5558, %v5546
    %v5560 = vadd.f32 %v5559, %v5548
    %v5561 = vrot.slane %v5560, 4
    %v5562 = vadd.f32 %v5560, %v5561
    %v5563 = vrot.slane %v5562, 2
    %v5564 = vadd.f32 %v5562, %v5563
    %v5565 = vrot.slane %v5564, 1
    %v5566 = vadd.f32 %v5564, %v5565
    %v5567 = vmul.f32 %v5541, %v3476
    %v5568 = vmul.f32 %v5542, %v3478
    %v5569 = vmul.f32 %v5543, %v3480
    %v5570 = vmul.f32 %v5544, %v3482
    %v5571 = vmul.f32 %v5545, %v3484
    %v5572 = vmul.f32 %v5546, %v3486
    %v5573 = vmul.f32 %v5547, %v3488
    %v5574 = vmul.f32 %v5548, %v3490
    %v5575 = vmul.f32 %v5567, 0.94750994
    %v5576 = vmul.f32 %v5568, 0.94750994
    %v5577 = vmul.f32 %v5569, 0.94750994
    %v5578 = vmul.f32 %v5570, 0.94750994
    %v5579 = vmul.f32 %v5571, 0.94750994
    %v5580 = vmul.f32 %v5572, 0.94750994
    %v5581 = vmul.f32 %v5573, 0.94750994
    %v5582 = vmul.f32 %v5574, 0.94750994
    %v5583 = vadd.f32 %v5575, %v5577
    %v5584 = vadd.f32 %v5583, %v5579
    %v5585 = vadd.f32 %v5584, %v5581
    %v5586 = vrot.slane %v5585, 4
    %v5587 = vadd.f32 %v5585, %v5586
    %v5588 = vrot.slane %v5587, 2
    %v5589 = vadd.f32 %v5587, %v5588
    %v5590 = vrot.slane %v5589, 1
    %v5591 = vadd.f32 %v5589, %v5590
    %v5592 = vadd.f32 %v5576, %v5578
    %v5593 = vadd.f32 %v5592, %v5580
    %v5594 = vadd.f32 %v5593, %v5582
    %v5595 = vrot.slane %v5594, 4
    %v5596 = vadd.f32 %v5594, %v5595
    %v5597 = vrot.slane %v5596, 2
    %v5598 = vadd.f32 %v5596, %v5597
    %v5599 = vrot.slane %v5598, 1
    %v5600 = vadd.f32 %v5598, %v5599
    %v5601 = vmul.f32 %v5575, %v3476
    %v5602 = vmul.f32 %v5576, %v3478
    %v5603 = vmul.f32 %v5577, %v3480
    %v5604 = vmul.f32 %v5578, %v3482
    %v5605 = vmul.f32 %v5579, %v3484
    %v5606 = vmul.f32 %v5580, %v3486
    %v5607 = vmul.f32 %v5581, %v3488
    %v5608 = vmul.f32 %v5582, %v3490
    %v5609 = vmul.f32 %v5601, 0.9465555
    %v5610 = vmul.f32 %v5602, 0.9465555
    %v5611 = vmul.f32 %v5603, 0.9465555
    %v5612 = vmul.f32 %v5604, 0.9465555
    %v5613 = vmul.f32 %v5605, 0.9465555
    %v5614 = vmul.f32 %v5606, 0.9465555
    %v5615 = vmul.f32 %v5607, 0.9465555
    %v5616 = vmul.f32 %v5608, 0.9465555
    %v5617 = vadd.f32 %v5609, %v5611
    %v5618 = vadd.f32 %v5617, %v5613
    %v5619 = vadd.f32 %v5618, %v5615
    %v5620 = vrot.slane %v5619, 4
    %v5621 = vadd.f32 %v5619, %v5620
    %v5622 = vrot.slane %v5621, 2
    %v5623 = vadd.f32 %v5621, %v5622
    %v5624 = vrot.slane %v5623, 1
    %v5625 = vadd.f32 %v5623, %v5624
    %v5626 = vadd.f32 %v5610, %v5612
    %v5627 = vadd.f32 %v5626, %v5614
    %v5628 = vadd.f32 %v5627, %v5616
    %v5629 = vrot.slane %v5628, 4
    %v5630 = vadd.f32 %v5628, %v5629
    %v5631 = vrot.slane %v5630, 2
    %v5632 = vadd.f32 %v5630, %v5631
    %v5633 = vrot.slane %v5632, 1
    %v5634 = vadd.f32 %v5632, %v5633
    %v5635 = vmul.f32 %v5609, %v3476
    %v5636 = vmul.f32 %v5610, %v3478
    %v5637 = vmul.f32 %v5611, %v3480
    %v5638 = vmul.f32 %v5612, %v3482
    %v5639 = vmul.f32 %v5613, %v3484
    %v5640 = vmul.f32 %v5614, %v3486
    %v5641 = vmul.f32 %v5615, %v3488
    %v5642 = vmul.f32 %v5616, %v3490
    %v5643 = vmul.f32 %v5635, 0.94560206
    %v5644 = vmul.f32 %v5636, 0.94560206
    %v5645 = vmul.f32 %v5637, 0.94560206
    %v5646 = vmul.f32 %v5638, 0.94560206
    %v5647 = vmul.f32 %v5639, 0.94560206
    %v5648 = vmul.f32 %v5640, 0.94560206
    %v5649 = vmul.f32 %v5641, 0.94560206
    %v5650 = vmul.f32 %v5642, 0.94560206
    %v5651 = vadd.f32 %v5643, %v5645
    %v5652 = vadd.f32 %v5651, %v5647
    %v5653 = vadd.f32 %v5652, %v5649
    %v5654 = vrot.slane %v5653, 4
    %v5655 = vadd.f32 %v5653, %v5654
    %v5656 = vrot.slane %v5655, 2
    %v5657 = vadd.f32 %v5655, %v5656
    %v5658 = vrot.slane %v5657, 1
    %v5659 = vadd.f32 %v5657, %v5658
    %v5660 = vadd.f32 %v5644, %v5646
    %v5661 = vadd.f32 %v5660, %v5648
    %v5662 = vadd.f32 %v5661, %v5650
    %v5663 = vrot.slane %v5662, 4
    %v5664 = vadd.f32 %v5662, %v5663
    %v5665 = vrot.slane %v5664, 2
    %v5666 = vadd.f32 %v5664, %v5665
    %v5667 = vrot.slane %v5666, 1
    %v5668 = vadd.f32 %v5666, %v5667
    %v5669 = vmul.f32 %v5643, %v3476
    %v5670 = vmul.f32 %v5644, %v3478
    %v5671 = vmul.f32 %v5645, %v3480
    %v5672 = vmul.f32 %v5646, %v3482
    %v5673 = vmul.f32 %v5647, %v3484
    %v5674 = vmul.f32 %v5648, %v3486
    %v5675 = vmul.f32 %v5649, %v3488
    %v5676 = vmul.f32 %v5650, %v3490
    %v5677 = vmul.f32 %v5669, 0.9446495
    %v5678 = vmul.f32 %v5670, 0.9446495
    %v5679 = vmul.f32 %v5671, 0.9446495
    %v5680 = vmul.f32 %v5672, 0.9446495
    %v5681 = vmul.f32 %v5673, 0.9446495
    %v5682 = vmul.f32 %v5674, 0.9446495
    %v5683 = vmul.f32 %v5675, 0.9446495
    %v5684 = vmul.f32 %v5676, 0.9446495
    %v5685 = vadd.f32 %v5677, %v5679
    %v5686 = vadd.f32 %v5685, %v5681
    %v5687 = vadd.f32 %v5686, %v5683
    %v5688 = vrot.slane %v5687, 4
    %v5689 = vadd.f32 %v5687, %v5688
    %v5690 = vrot.slane %v5689, 2
    %v5691 = vadd.f32 %v5689, %v5690
    %v5692 = vrot.slane %v5691, 1
    %v5693 = vadd.f32 %v5691, %v5692
    %v5694 = vadd.f32 %v5678, %v5680
    %v5695 = vadd.f32 %v5694, %v5682
    %v5696 = vadd.f32 %v5695, %v5684
    %v5697 = vrot.slane %v5696, 4
    %v5698 = vadd.f32 %v5696, %v5697
    %v5699 = vrot.slane %v5698, 2
    %v5700 = vadd.f32 %v5698, %v5699
    %v5701 = vrot.slane %v5700, 1
    %v5702 = vadd.f32 %v5700, %v5701
    %v5703 = vmul.f32 %v5677, %v3476
    %v5704 = vmul.f32 %v5678, %v3478
    %v5705 = vmul.f32 %v5679, %v3480
    %v5706 = vmul.f32 %v5680, %v3482
    %v5707 = vmul.f32 %v5681, %v3484
    %v5708 = vmul.f32 %v5682, %v3486
    %v5709 = vmul.f32 %v5683, %v3488
    %v5710 = vmul.f32 %v5684, %v3490
    %v5711 = vmul.f32 %v5703, 0.943698
    %v5712 = vmul.f32 %v5704, 0.943698
    %v5713 = vmul.f32 %v5705, 0.943698
    %v5714 = vmul.f32 %v5706, 0.943698
    %v5715 = vmul.f32 %v5707, 0.943698
    %v5716 = vmul.f32 %v5708, 0.943698
    %v5717 = vmul.f32 %v5709, 0.943698
    %v5718 = vmul.f32 %v5710, 0.943698
    %v5719 = vadd.f32 %v5711, %v5713
    %v5720 = vadd.f32 %v5719, %v5715
    %v5721 = vadd.f32 %v5720, %v5717
    %v5722 = vrot.slane %v5721, 4
    %v5723 = vadd.f32 %v5721, %v5722
    %v5724 = vrot.slane %v5723, 2
    %v5725 = vadd.f32 %v5723, %v5724
    %v5726 = vrot.slane %v5725, 1
    %v5727 = vadd.f32 %v5725, %v5726
    %v5728 = vadd.f32 %v5712, %v5714
    %v5729 = vadd.f32 %v5728, %v5716
    %v5730 = vadd.f32 %v5729, %v5718
    %v5731 = vrot.slane %v5730, 4
    %v5732 = vadd.f32 %v5730, %v5731
    %v5733 = vrot.slane %v5732, 2
    %v5734 = vadd.f32 %v5732, %v5733
    %v5735 = vrot.slane %v5734, 1
    %v5736 = vadd.f32 %v5734, %v5735
    %v5737 = vmul.f32 %v5711, %v3476
    %v5738 = vmul.f32 %v5712, %v3478
    %v5739 = vmul.f32 %v5713, %v3480
    %v5740 = vmul.f32 %v5714, %v3482
    %v5741 = vmul.f32 %v5715, %v3484
    %v5742 = vmul.f32 %v5716, %v3486
    %v5743 = vmul.f32 %v5717, %v3488
    %v5744 = vmul.f32 %v5718, %v3490
    %v5745 = vmul.f32 %v5737, 0.9427474
    %v5746 = vmul.f32 %v5738, 0.9427474
    %v5747 = vmul.f32 %v5739, 0.9427474
    %v5748 = vmul.f32 %v5740, 0.9427474
    %v5749 = vmul.f32 %v5741, 0.9427474
    %v5750 = vmul.f32 %v5742, 0.9427474
    %v5751 = vmul.f32 %v5743, 0.9427474
    %v5752 = vmul.f32 %v5744, 0.9427474
    %v5753 = vadd.f32 %v5745, %v5747
    %v5754 = vadd.f32 %v5753, %v5749
    %v5755 = vadd.f32 %v5754, %v5751
    %v5756 = vrot.slane %v5755, 4
    %v5757 = vadd.f32 %v5755, %v5756
    %v5758 = vrot.slane %v5757, 2
    %v5759 = vadd.f32 %v5757, %v5758
    %v5760 = vrot.slane %v5759, 1
    %v5761 = vadd.f32 %v5759, %v5760
    %v5762 = vadd.f32 %v5746, %v5748
    %v5763 = vadd.f32 %v5762, %v5750
    %v5764 = vadd.f32 %v5763, %v5752
    %v5765 = vrot.slane %v5764, 4
    %v5766 = vadd.f32 %v5764, %v5765
    %v5767 = vrot.slane %v5766, 2
    %v5768 = vadd.f32 %v5766, %v5767
    %v5769 = vrot.slane %v5768, 1
    %v5770 = vadd.f32 %v5768, %v5769
    %v5771 = vmul.f32 %v5745, %v3476
    %v5772 = vmul.f32 %v5746, %v3478
    %v5773 = vmul.f32 %v5747, %v3480
    %v5774 = vmul.f32 %v5748, %v3482
    %v5775 = vmul.f32 %v5749, %v3484
    %v5776 = vmul.f32 %v5750, %v3486
    %v5777 = vmul.f32 %v5751, %v3488
    %v5778 = vmul.f32 %v5752, %v3490
    %v5779 = vmul.f32 %v5771, 0.94179773
    %v5780 = vmul.f32 %v5772, 0.94179773
    %v5781 = vmul.f32 %v5773, 0.94179773
    %v5782 = vmul.f32 %v5774, 0.94179773
    %v5783 = vmul.f32 %v5775, 0.94179773
    %v5784 = vmul.f32 %v5776, 0.94179773
    %v5785 = vmul.f32 %v5777, 0.94179773
    %v5786 = vmul.f32 %v5778, 0.94179773
    %v5787 = vadd.f32 %v5779, %v5781
    %v5788 = vadd.f32 %v5787, %v5783
    %v5789 = vadd.f32 %v5788, %v5785
    %v5790 = vrot.slane %v5789, 4
    %v5791 = vadd.f32 %v5789, %v5790
    %v5792 = vrot.slane %v5791, 2
    %v5793 = vadd.f32 %v5791, %v5792
    %v5794 = vrot.slane %v5793, 1
    %v5795 = vadd.f32 %v5793, %v5794
    %v5796 = vadd.f32 %v5780, %v5782
    %v5797 = vadd.f32 %v5796, %v5784
    %v5798 = vadd.f32 %v5797, %v5786
    %v5799 = vrot.slane %v5798, 4
    %v5800 = vadd.f32 %v5798, %v5799
    %v5801 = vrot.slane %v5800, 2
    %v5802 = vadd.f32 %v5800, %v5801
    %v5803 = vrot.slane %v5802, 1
    %v5804 = vadd.f32 %v5802, %v5803
    %v5805 = vmul.f32 %v5779, %v3476
    %v5806 = vmul.f32 %v5780, %v3478
    %v5807 = vmul.f32 %v5781, %v3480
    %v5808 = vmul.f32 %v5782, %v3482
    %v5809 = vmul.f32 %v5783, %v3484
    %v5810 = vmul.f32 %v5784, %v3486
    %v5811 = vmul.f32 %v5785, %v3488
    %v5812 = vmul.f32 %v5786, %v3490
    %v5813 = vmul.f32 %v5805, 0.94084907
    %v5814 = vmul.f32 %v5806, 0.94084907
    %v5815 = vmul.f32 %v5807, 0.94084907
    %v5816 = vmul.f32 %v5808, 0.94084907
    %v5817 = vmul.f32 %v5809, 0.94084907
    %v5818 = vmul.f32 %v5810, 0.94084907
    %v5819 = vmul.f32 %v5811, 0.94084907
    %v5820 = vmul.f32 %v5812, 0.94084907
    %v5821 = vadd.f32 %v5813, %v5815
    %v5822 = vadd.f32 %v5821, %v5817
    %v5823 = vadd.f32 %v5822, %v5819
    %v5824 = vrot.slane %v5823, 4
    %v5825 = vadd.f32 %v5823, %v5824
    %v5826 = vrot.slane %v5825, 2
    %v5827 = vadd.f32 %v5825, %v5826
    %v5828 = vrot.slane %v5827, 1
    %v5829 = vadd.f32 %v5827, %v5828
    %v5830 = vadd.f32 %v5814, %v5816
    %v5831 = vadd.f32 %v5830, %v5818
    %v5832 = vadd.f32 %v5831, %v5820
    %v5833 = vrot.slane %v5832, 4
    %v5834 = vadd.f32 %v5832, %v5833
    %v5835 = vrot.slane %v5834, 2
    %v5836 = vadd.f32 %v5834, %v5835
    %v5837 = vrot.slane %v5836, 1
    %v5838 = vadd.f32 %v5836, %v5837
    %v5839 = vmul.f32 %v5813, %v3476
    %v5840 = vmul.f32 %v5814, %v3478
    %v5841 = vmul.f32 %v5815, %v3480
    %v5842 = vmul.f32 %v5816, %v3482
    %v5843 = vmul.f32 %v5817, %v3484
    %v5844 = vmul.f32 %v5818, %v3486
    %v5845 = vmul.f32 %v5819, %v3488
    %v5846 = vmul.f32 %v5820, %v3490
    %v5847 = vmul.f32 %v5839, 0.93990135
    %v5848 = vmul.f32 %v5840, 0.93990135
    %v5849 = vmul.f32 %v5841, 0.93990135
    %v5850 = vmul.f32 %v5842, 0.93990135
    %v5851 = vmul.f32 %v5843, 0.93990135
    %v5852 = vmul.f32 %v5844, 0.93990135
    %v5853 = vmul.f32 %v5845, 0.93990135
    %v5854 = vmul.f32 %v5846, 0.93990135
    %v5855 = vadd.f32 %v5847, %v5849
    %v5856 = vadd.f32 %v5855, %v5851
    %v5857 = vadd.f32 %v5856, %v5853
    %v5858 = vrot.slane %v5857, 4
    %v5859 = vadd.f32 %v5857, %v5858
    %v5860 = vrot.slane %v5859, 2
    %v5861 = vadd.f32 %v5859, %v5860
    %v5862 = vrot.slane %v5861, 1
    %v5863 = vadd.f32 %v5861, %v5862
    %v5864 = vadd.f32 %v5848, %v5850
    %v5865 = vadd.f32 %v5864, %v5852
    %v5866 = vadd.f32 %v5865, %v5854
    %v5867 = vrot.slane %v5866, 4
    %v5868 = vadd.f32 %v5866, %v5867
    %v5869 = vrot.slane %v5868, 2
    %v5870 = vadd.f32 %v5868, %v5869
    %v5871 = vrot.slane %v5870, 1
    %v5872 = vadd.f32 %v5870, %v5871
    %v5873 = vmul.f32 %v5847, %v3476
    %v5874 = vmul.f32 %v5848, %v3478
    %v5875 = vmul.f32 %v5849, %v3480
    %v5876 = vmul.f32 %v5850, %v3482
    %v5877 = vmul.f32 %v5851, %v3484
    %v5878 = vmul.f32 %v5852, %v3486
    %v5879 = vmul.f32 %v5853, %v3488
    %v5880 = vmul.f32 %v5854, %v3490
    %v5881 = vmul.f32 %v5873, 0.9389546
    %v5882 = vmul.f32 %v5874, 0.9389546
    %v5883 = vmul.f32 %v5875, 0.9389546
    %v5884 = vmul.f32 %v5876, 0.9389546
    %v5885 = vmul.f32 %v5877, 0.9389546
    %v5886 = vmul.f32 %v5878, 0.9389546
    %v5887 = vmul.f32 %v5879, 0.9389546
    %v5888 = vmul.f32 %v5880, 0.9389546
    %v5889 = vadd.f32 %v5881, %v5883
    %v5890 = vadd.f32 %v5889, %v5885
    %v5891 = vadd.f32 %v5890, %v5887
    %v5892 = vrot.slane %v5891, 4
    %v5893 = vadd.f32 %v5891, %v5892
    %v5894 = vrot.slane %v5893, 2
    %v5895 = vadd.f32 %v5893, %v5894
    %v5896 = vrot.slane %v5895, 1
    %v5897 = vadd.f32 %v5895, %v5896
    %v5898 = vadd.f32 %v5882, %v5884
    %v5899 = vadd.f32 %v5898, %v5886
    %v5900 = vadd.f32 %v5899, %v5888
    %v5901 = vrot.slane %v5900, 4
    %v5902 = vadd.f32 %v5900, %v5901
    %v5903 = vrot.slane %v5902, 2
    %v5904 = vadd.f32 %v5902, %v5903
    %v5905 = vrot.slane %v5904, 1
    %v5906 = vadd.f32 %v5904, %v5905
    %v5907 = vsel %vm1170, %v5387, %v5421
    %v5908 = vsel %vm1170, %v5396, %v5430
    %v5909 = vsel %vm1173, %v5907, %v5455
    %v5910 = vsel %vm1173, %v5908, %v5464
    %v5911 = vsel %vm1176, %v5909, %v5489
    %v5912 = vsel %vm1176, %v5910, %v5498
    %v5913 = vsel %vm1179, %v5911, %v5523
    %v5914 = vsel %vm1179, %v5912, %v5532
    %v5915 = vsel %vm1182, %v5913, %v5557
    %v5916 = vsel %vm1182, %v5914, %v5566
    %v5917 = vsel %vm1185, %v5915, %v5591
    %v5918 = vsel %vm1185, %v5916, %v5600
    %v5919 = vsel %vm1188, %v5917, %v5625
    %v5920 = vsel %vm1188, %v5918, %v5634
    %v5921 = vsel %vm1170, %v5659, %v5693
    %v5922 = vsel %vm1170, %v5668, %v5702
    %v5923 = vsel %vm1173, %v5921, %v5727
    %v5924 = vsel %vm1173, %v5922, %v5736
    %v5925 = vsel %vm1176, %v5923, %v5761
    %v5926 = vsel %vm1176, %v5924, %v5770
    %v5927 = vsel %vm1179, %v5925, %v5795
    %v5928 = vsel %vm1179, %v5926, %v5804
    %v5929 = vsel %vm1182, %v5927, %v5829
    %v5930 = vsel %vm1182, %v5928, %v5838
    %v5931 = vsel %vm1185, %v5929, %v5863
    %v5932 = vsel %vm1185, %v5930, %v5872
    %v5933 = vsel %vm1188, %v5931, %v5897
    %v5934 = vsel %vm1188, %v5932, %v5906
    %v5935 = vld [vmem:[#allocation3 + $0x60] sm:$0xff]
    %v5936 = vld [vmem:[#allocation3 + $0x68] sm:$0xff]
    %v5937 = vld [vmem:[#allocation3 + $0x70] sm:$0xff]
    %v5938 = vld [vmem:[#allocation3 + $0x78] sm:$0xff]
    %v5939 = vadd.f32 %v5935, %v5919
    %v5940 = vadd.f32 %v5936, %v5920
    %v5941 = vadd.f32 %v5937, %v5933
    %v5942 = vadd.f32 %v5938, %v5934
    %5943 = vst [vmem:[#allocation3 + $0x60] sm:$0xff] %v5939
    %5944 = vst [vmem:[#allocation3 + $0x68] sm:$0xff] %v5940
    %5945 = vst [vmem:[#allocation3 + $0x70] sm:$0xff] %v5941
    %5946 = vst [vmem:[#allocation3 + $0x78] sm:$0xff] %v5942
    // Predicated region
    $region26: #{a_call__.1} parent=1 // pred_check
      %p5947 = pneg %p31
    $region27: #{a_call__.1} parent=1 // pred_check_branch
      %5949 = sbr.rel (%p5947) target = $region29
    $region28: #{a_call__.1} parent=1 // pred_region
      %v5950 = vld [vmem:[#allocation2] sm:$0xff]
      %v5951 = vld [vmem:[#allocation2 + $0x8] sm:$0xff]
      %v5952 = vld [vmem:[#allocation2 + $0x10] sm:$0xff]
      %v5953 = vld [vmem:[#allocation2 + $0x18] sm:$0xff]
      %v5954 = vld [vmem:[#allocation2 + $0x20] sm:$0xff]
      %v5955 = vld [vmem:[#allocation2 + $0x28] sm:$0xff]
      %v5956 = vld [vmem:[#allocation2 + $0x30] sm:$0xff]
      %v5957 = vld [vmem:[#allocation2 + $0x38] sm:$0xff]
      %v5958 = vld [vmem:[#allocation2 + $0x40] sm:$0xff]
      %v5959 = vld [vmem:[#allocation2 + $0x48] sm:$0xff]
      %v5960 = vld [vmem:[#allocation2 + $0x50] sm:$0xff]
      %v5961 = vld [vmem:[#allocation2 + $0x58] sm:$0xff]
      %v5962 = vld [vmem:[#allocation2 + $0x60] sm:$0xff]
      %v5963 = vld [vmem:[#allocation2 + $0x68] sm:$0xff]
      %v5964 = vld [vmem:[#allocation2 + $0x70] sm:$0xff]
      %v5965 = vld [vmem:[#allocation2 + $0x78] sm:$0xff]
      %v5966 = vadd.f32 %v5950, %v5951
      %5967 = vadd.xlane.f32.xlu0 %v5966
      %v5968 = vpop.xlane.xlu0 %5967
      %v5969 = vadd.f32 %v5952, %v5953
      %5970 = vadd.xlane.f32.xlu0 %v5969
      %v5971 = vpop.xlane.xlu0 %5970
      %v5972 = vadd.f32 %v5954, %v5955
      %5973 = vadd.xlane.f32.xlu0 %v5972
      %v5974 = vpop.xlane.xlu0 %5973
      %v5975 = vadd.f32 %v5956, %v5957
      %5976 = vadd.xlane.f32.xlu0 %v5975
      %v5977 = vpop.xlane.xlu0 %5976
      %v5978 = vadd.f32 %v5958, %v5959
      %5979 = vadd.xlane.f32.xlu0 %v5978
      %v5980 = vpop.xlane.xlu0 %5979
      %v5981 = vadd.f32 %v5960, %v5961
      %5982 = vadd.xlane.f32.xlu0 %v5981
      %v5983 = vpop.xlane.xlu0 %5982
      %v5984 = vadd.f32 %v5962, %v5963
      %5985 = vadd.xlane.f32.xlu0 %v5984
      %v5986 = vpop.xlane.xlu0 %5985
      %v5987 = vadd.f32 %v5964, %v5965
      %5988 = vadd.xlane.f32.xlu0 %v5987
      %v5989 = vpop.xlane.xlu0 %5988
      %v5990 = vld [vmem:[#allocation3] sm:$0xff]
      %v5991 = vld [vmem:[#allocation3 + $0x8] sm:$0xff]
      %v5992 = vld [vmem:[#allocation3 + $0x10] sm:$0xff]
      %v5993 = vld [vmem:[#allocation3 + $0x18] sm:$0xff]
      %v5994 = vld [vmem:[#allocation3 + $0x20] sm:$0xff]
      %v5995 = vld [vmem:[#allocation3 + $0x28] sm:$0xff]
      %v5996 = vld [vmem:[#allocation3 + $0x30] sm:$0xff]
      %v5997 = vld [vmem:[#allocation3 + $0x38] sm:$0xff]
      %v5998 = vld [vmem:[#allocation3 + $0x40] sm:$0xff]
      %v5999 = vld [vmem:[#allocation3 + $0x48] sm:$0xff]
      %v6000 = vld [vmem:[#allocation3 + $0x50] sm:$0xff]
      %v6001 = vld [vmem:[#allocation3 + $0x58] sm:$0xff]
      %v6002 = vld [vmem:[#allocation3 + $0x60] sm:$0xff]
      %v6003 = vld [vmem:[#allocation3 + $0x68] sm:$0xff]
      %v6004 = vld [vmem:[#allocation3 + $0x70] sm:$0xff]
      %v6005 = vld [vmem:[#allocation3 + $0x78] sm:$0xff]
      %v6006 = vadd.f32 %v5990, %v5991
      %6007 = vadd.xlane.f32.xlu0 %v6006
      %v6008 = vpop.xlane.xlu0 %6007
      %v6009 = vadd.f32 %v5992, %v5993
      %6010 = vadd.xlane.f32.xlu0 %v6009
      %v6011 = vpop.xlane.xlu0 %6010
      %v6012 = vadd.f32 %v5994, %v5995
      %6013 = vadd.xlane.f32.xlu0 %v6012
      %v6014 = vpop.xlane.xlu0 %6013
      %v6015 = vadd.f32 %v5996, %v5997
      %6016 = vadd.xlane.f32.xlu0 %v6015
      %v6017 = vpop.xlane.xlu0 %6016
      %v6018 = vadd.f32 %v5998, %v5999
      %6019 = vadd.xlane.f32.xlu0 %v6018
      %v6020 = vpop.xlane.xlu0 %6019
      %v6021 = vadd.f32 %v6000, %v6001
      %6022 = vadd.xlane.f32.xlu0 %v6021
      %v6023 = vpop.xlane.xlu0 %6022
      %v6024 = vadd.f32 %v6002, %v6003
      %6025 = vadd.xlane.f32.xlu0 %v6024
      %v6026 = vpop.xlane.xlu0 %6025
      %v6027 = vadd.f32 %v6004, %v6005
      %6028 = vadd.xlane.f32.xlu0 %v6027
      %v6029 = vpop.xlane.xlu0 %6028
      %v6030 = vadd.f32 %v5968, %v5971
      %v6031 = vadd.f32 %v6030, %v5974
      %v6032 = vadd.f32 %v6031, %v5977
      %v6033 = vadd.f32 %v6032, %v5980
      %v6034 = vadd.f32 %v6033, %v5983
      %v6035 = vadd.f32 %v6034, %v5986
      %v6036 = vadd.f32 %v6035, %v5989
      %v6037 = vrot.slane %v6036, 4
      %v6038 = vadd.f32 %v6036, %v6037
      %v6039 = vrot.slane %v6038, 2
      %v6040 = vadd.f32 %v6038, %v6039
      %v6041 = vrot.slane %v6040, 1
      %v6042 = vadd.f32 %v6040, %v6041
      %v6043 = vrcp.pop %v6042
      %v6044 = vmul.f32 %v5968, %v6043
      %v6045 = vmul.f32 %v5971, %v6043
      %v6046 = vmul.f32 %v5974, %v6043
      %v6047 = vmul.f32 %v5977, %v6043
      %v6048 = vmul.f32 %v5980, %v6043
      %v6049 = vmul.f32 %v5983, %v6043
      %v6050 = vmul.f32 %v5986, %v6043
      %v6051 = vmul.f32 %v5989, %v6043
      %v6052 = vadd.f32 %v6008, %v6011
      %v6053 = vadd.f32 %v6052, %v6014
      %v6054 = vadd.f32 %v6053, %v6017
      %v6055 = vadd.f32 %v6054, %v6020
      %v6056 = vadd.f32 %v6055, %v6023
      %v6057 = vadd.f32 %v6056, %v6026
      %v6058 = vadd.f32 %v6057, %v6029
      %v6059 = vrot.slane %v6058, 4
      %v6060 = vadd.f32 %v6058, %v6059
      %v6061 = vrot.slane %v6060, 2
      %v6062 = vadd.f32 %v6060, %v6061
      %v6063 = vrot.slane %v6062, 1
      %v6064 = vadd.f32 %v6062, %v6063
      %v6065 = vrcp.pop %v6064
      %v6066 = vmul.f32 %v6008, %v6065
      %v6067 = vmul.f32 %v6011, %v6065
      %v6068 = vmul.f32 %v6014, %v6065
      %v6069 = vmul.f32 %v6017, %v6065
      %v6070 = vmul.f32 %v6020, %v6065
      %v6071 = vmul.f32 %v6023, %v6065
      %v6072 = vmul.f32 %v6026, %v6065
      %v6073 = vmul.f32 %v6029, %v6065
      %v6074 = vadd.f32 %v6066, 1e-12
      %v6075 = vadd.f32 %v6067, 1e-12
      %v6076 = vadd.f32 %v6068, 1e-12
      %v6077 = vadd.f32 %v6069, 1e-12
      %v6078 = vadd.f32 %v6070, 1e-12
      %v6079 = vadd.f32 %v6071, 1e-12
      %v6080 = vadd.f32 %v6072, 1e-12
      %v6081 = vadd.f32 %v6073, 1e-12
      %v6082 = vlog2.pop %v6074
      %v6083 = vmul.f32 %v6082, 0.6931472
      %v6084 = vlog2.pop %v6075
      %v6085 = vmul.f32 %v6084, 0.6931472
      %v6086 = vlog2.pop %v6076
      %v6087 = vmul.f32 %v6086, 0.6931472
      %v6088 = vlog2.pop %v6077
      %v6089 = vmul.f32 %v6088, 0.6931472
      %v6090 = vlog2.pop %v6078
      %v6091 = vmul.f32 %v6090, 0.6931472
      %v6092 = vlog2.pop %v6079
      %v6093 = vmul.f32 %v6092, 0.6931472
      %v6094 = vlog2.pop %v6080
      %v6095 = vmul.f32 %v6094, 0.6931472
      %v6096 = vlog2.pop %v6081
      %v6097 = vmul.f32 %v6096, 0.6931472
      %v6098 = vadd.f32 %v6044, 1e-12
      %v6099 = vadd.f32 %v6045, 1e-12
      %v6100 = vadd.f32 %v6046, 1e-12
      %v6101 = vadd.f32 %v6047, 1e-12
      %v6102 = vadd.f32 %v6048, 1e-12
      %v6103 = vadd.f32 %v6049, 1e-12
      %v6104 = vadd.f32 %v6050, 1e-12
      %v6105 = vadd.f32 %v6051, 1e-12
      %v6106 = vlog2.pop %v6098
      %v6107 = vmul.f32 %v6106, 0.6931472
      %v6108 = vlog2.pop %v6099
      %v6109 = vmul.f32 %v6108, 0.6931472
      %v6110 = vlog2.pop %v6100
      %v6111 = vmul.f32 %v6110, 0.6931472
      %v6112 = vlog2.pop %v6101
      %v6113 = vmul.f32 %v6112, 0.6931472
      %v6114 = vlog2.pop %v6102
      %v6115 = vmul.f32 %v6114, 0.6931472
      %v6116 = vlog2.pop %v6103
      %v6117 = vmul.f32 %v6116, 0.6931472
      %v6118 = vlog2.pop %v6104
      %v6119 = vmul.f32 %v6118, 0.6931472
      %v6120 = vlog2.pop %v6105
      %v6121 = vmul.f32 %v6120, 0.6931472
      %v6122 = vsub.f32 %v6083, %v6107
      %v6123 = vsub.f32 %v6085, %v6109
      %v6124 = vsub.f32 %v6087, %v6111
      %v6125 = vsub.f32 %v6089, %v6113
      %v6126 = vsub.f32 %v6091, %v6115
      %v6127 = vsub.f32 %v6093, %v6117
      %v6128 = vsub.f32 %v6095, %v6119
      %v6129 = vsub.f32 %v6097, %v6121
      %v6130 = vmul.f32 %v6066, %v6122
      %v6131 = vmul.f32 %v6067, %v6123
      %v6132 = vmul.f32 %v6068, %v6124
      %v6133 = vmul.f32 %v6069, %v6125
      %v6134 = vmul.f32 %v6070, %v6126
      %v6135 = vmul.f32 %v6071, %v6127
      %v6136 = vmul.f32 %v6072, %v6128
      %v6137 = vmul.f32 %v6073, %v6129
      %v6138 = vadd.f32 %v6130, %v6131
      %v6139 = vadd.f32 %v6138, %v6132
      %v6140 = vadd.f32 %v6139, %v6133
      %v6141 = vadd.f32 %v6140, %v6134
      %v6142 = vadd.f32 %v6141, %v6135
      %v6143 = vadd.f32 %v6142, %v6136
      %v6144 = vadd.f32 %v6143, %v6137
      %v6145 = vrot.slane %v6144, 4
      %v6146 = vadd.f32 %v6144, %v6145
      %v6147 = vrot.slane %v6146, 2
      %v6148 = vadd.f32 %v6146, %v6147
      %v6149 = vrot.slane %v6148, 1
      %v6150 = vadd.f32 %v6148, %v6149
      %v6151 = vadd.f32 %v6150, 0.0
      %6152 = vst [vmem:[#allocation7] sm:$0x1] %v6151
    $region29: #{a_call__.1} parent=1 // pred_fallthru
      _
    // Predicated region
    $region30: #{a_call__.1} parent=1 // pred_check
      _
    $region31: #{a_call__.1} parent=1 // pred_check_branch
      %6154 = sbr.rel (0) target = $region33
    $region32: #{a_call__.1} parent=1 // pred_region
      %s6156 = ssub.s32 16, 16
      %6157 = vsyncadd [#allocation5], %s6156
      %s6159 = sshll.u32 [#allocation7], 4
      %s6160 = int_to_ptr.vmem [resolvable:$true] %s6159
      %6162 = dma.vmem_to_hbm [thread:$0]  %s6160, 16, %s4, [#allocation5]
    $region33: #{a_call__.1} parent=1 // pred_fallthru
      _
    // Predicated region
    $region34: #{a_call__.1} parent=1 // pred_check
      _
    $region35: #{a_call__.1} parent=1 // pred_check_branch
      %6164 = sbr.rel (0) target = $region37
    $region36: #{a_call__.1} parent=1 // pred_region
      %6165 = dma.done [#allocation5], 16
    $region37: #{a_call__.1} parent=1 // pred_fallthru
      _
    %6166 = vsyncpa [#allocation5], 1
    %6167 = vsyncpa [#allocation6], 1

</llo_original>
